<compile_context>
chip_gen: v7x
topology: tpu7x:2x2x1
jax: 0.10.0
libtpu: 0.0.40
codegen_flags: <defaults>
</compile_context>

<pallas_src>
import jax
import jax.numpy as jnp
import numpy as np
from jax.experimental import pallas as pl
from jax.experimental.pallas import tpu as pltpu

EPS = 1e-5  # torch.nn.InstanceNorm2d default eps


def _resnet_block_kernel(x_ref, w1_ref, b1_ref, w2_ref, b2_ref, o_ref,
                         pad_ref, slab_ref, conv_ref):
    # x_ref    : (1, H, W, C)        bf16 input block (also the residual)
    # w*_ref   : (9*C, C)            bf16 im2col weight matrix (row = (ky,kx,cin))
    # b*_ref   : (1, C)              f32 conv bias
    # o_ref    : (1, H, W, C)        f32 output block
    # pad_ref  : (H+2, W+2, C) bf16  reflection-pad scratch (reused for both convs)
    # slab_ref : (RT, W, 9*C)  bf16  im2col patch slab for one row strip
    # conv_ref : (H, W, C)     f32   conv output before InstanceNorm (reused)
    H, W, C = conv_ref.shape
    RT = slab_ref.shape[0]
    n_strips = H // RT
    inv_hw = 1.0 / float(H * W)

    def reflect_pad(src):
        # interior
        pad_ref[1:H + 1, 1:W + 1, :] = src
        # left / right columns: col -1 <- col 1, col W <- col W-2
        pad_ref[1:H + 1, 0:1, :] = src[:, 1:2, :]
        pad_ref[1:H + 1, W + 1:W + 2, :] = src[:, W - 2:W - 1, :]
        # top / bottom rows copied from already-padded rows (corners come out right)
        pad_ref[0:1, :, :] = pad_ref[2:3, :, :]
        pad_ref[H + 1:H + 2, :, :] = pad_ref[H - 1:H, :, :]

    dn = (((2,), (0,)), ((), ()))  # contract slab's 9*C dim with weight rows

    def conv3x3_im2col(w_ref, b_ref):
        # 3x3 stride-1 conv over the padded scratch: build a (RT, W, 9*C) patch slab
        # per row strip, then ONE MXU matmul with K = 9*C.  Bias added once at the end
        # via implicit broadcast.  All offsets are static (Python loop).
        w = w_ref[...]          # (9*C, C) bf16
        b = b_ref[0]            # (C,)     f32
        for s in range(n_strips):
            r = s * RT
            for ky in range(3):
                for kx in range(3):
                    k = ky * 3 + kx
                    slab_ref[:, :, k * C:(k + 1) * C] = (
                        pad_ref[r + ky:r + ky + RT, kx:kx + W, :])
            acc = jax.lax.dot_general(slab_ref[...], w, dn,
                                      preferred_element_type=jnp.float32)
            conv_ref[r:r + RT, :, :] = acc + b

    def instance_norm(v):
        # two-pass stats in f32 (mean, then variance of (v - mean))
        mean = jnp.sum(v, axis=(0, 1), keepdims=True) * inv_hw
        d = v - mean
        var = jnp.sum(d * d, axis=(0, 1), keepdims=True) * inv_hw
        return d * jax.lax.rsqrt(var + EPS)

    # ---- ReflPad -> Conv1 -> InstanceNorm -> ReLU ---------------------------
    reflect_pad(x_ref[0])
    conv3x3_im2col(w1_ref, b1_ref)
    y = jnp.maximum(instance_norm(conv_ref[...]), 0.0)

    # ---- Dropout(0.5): identity (inference semantics) -----------------------
    # TODO(synk): training-mode stochastic dropout (pltpu.prng_seed/prng_random_bits)
    # is not implemented.

    # ---- ReflPad -> Conv2 -> InstanceNorm (scratches reused) -----------------
    reflect_pad(y.astype(pad_ref.dtype))
    conv3x3_im2col(w2_ref, b2_ref)
    z = instance_norm(conv_ref[...])

    # ---- residual (f32) -------------------------------------------------------
    o_ref[0] = x_ref[0].astype(jnp.float32) + z


def resnet_block_nhwc(x_nhwc, w1, b1, w2, b2):
    """NHWC entry point. x_nhwc: (N,H,W,C); w*: PyTorch (Cout,Cin,3,3); b*: (C,)."""
    N, H, W, C = x_nhwc.shape
    assert H >= 2 and W >= 2, "ReflectionPad2d(1) needs H, W >= 2"
    # Row tile for the im2col slab: bounds slab VMEM to RT*W*9*C*2 bytes per step.
    RT = 8 if (H % 8 == 0 and H >= 8) else H

    x = x_nhwc.astype(jnp.bfloat16)
    # (Cout, Cin, 3, 3) -> (ky, kx, Cin, Cout) -> (9*Cin, Cout) im2col matrix
    w1m = jnp.transpose(w1, (2, 3, 1, 0)).reshape(9 * C, C).astype(jnp.bfloat16)
    w2m = jnp.transpose(w2, (2, 3, 1, 0)).reshape(9 * C, C).astype(jnp.bfloat16)
    b1r = b1.reshape(1, C).astype(jnp.float32)
    b2r = b2.reshape(1, C).astype(jnp.float32)

    return pl.pallas_call(
        _resnet_block_kernel,
        out_shape=jax.ShapeDtypeStruct((N, H, W, C), jnp.float32),
        grid=(N,),
        in_specs=[
            pl.BlockSpec((1, H, W, C), lambda n: (n, 0, 0, 0)),
            pl.BlockSpec((9 * C, C), lambda n: (0, 0)),
            pl.BlockSpec((1, C), lambda n: (0, 0)),
            pl.BlockSpec((9 * C, C), lambda n: (0, 0)),
            pl.BlockSpec((1, C), lambda n: (0, 0)),
        ],
        out_specs=pl.BlockSpec((1, H, W, C), lambda n: (n, 0, 0, 0)),
        scratch_shapes=[
            pltpu.VMEM((H + 2, W + 2, C), jnp.bfloat16),  # reflection-pad scratch
            pltpu.VMEM((RT, W, 9 * C), jnp.bfloat16),     # im2col slab (row strip)
            pltpu.VMEM((H, W, C), jnp.float32),           # conv output, pre-norm
        ],
        compiler_params=pltpu.CompilerParams(
            dimension_semantics=("parallel",),            # N>=2 keeps both v7x TCs busy
            vmem_limit_bytes=32 * 1024 * 1024),           # <= half of v7x's 64 MiB
    )(x, w1m, b1r, w2m, b2r)


@jax.jit
def resnet_block(x_nchw, w1, b1, w2, b2):
    """PyTorch-interface wrapper. x_nchw: (N,C,H,W) f32; returns (N,C,H,W) f32."""
    # The NCHW<->NHWC transposes exist only to preserve the PyTorch interface; the
    # input transpose fuses with the bf16 cast inside resnet_block_nhwc.  In an
    # NHWC-native model, call resnet_block_nhwc directly and they disappear.
    x_nhwc = jnp.transpose(x_nchw, (0, 2, 3, 1))
    out = resnet_block_nhwc(x_nhwc, w1, b1, w2, b2)
    return jnp.transpose(out, (0, 3, 1, 2))


def resnet_block_ref(x_nchw, w1, b1, w2, b2):
    """Pure-JAX f32 reference matching the PyTorch module (eval-mode dropout)."""
    x = jnp.transpose(x_nchw, (0, 2, 3, 1)).astype(jnp.float32)

    def conv3(inp, w, b):
        H, W = inp.shape[1], inp.shape[2]
        pad = jnp.pad(inp, ((0, 0), (1, 1), (1, 1), (0, 0)), mode="reflect")
        wt = jnp.transpose(w, (2, 3, 1, 0)).astype(jnp.float32)
        out = b.reshape(1, 1, 1, -1).astype(jnp.float32)
        for ky in range(3):
            for kx in range(3):
                out = out + jnp.einsum(
                    "nhwc,cd->nhwd", pad[:, ky:ky + H, kx:kx + W, :], wt[ky, kx],
                    precision=jax.lax.Precision.HIGHEST)
        return out

    def inorm(v):
        m = jnp.mean(v, axis=(1, 2), keepdims=True)
        var = jnp.mean((v - m) ** 2, axis=(1, 2), keepdims=True)
        return (v - m) * jax.lax.rsqrt(var + EPS)

    y = jnp.maximum(inorm(conv3(x, w1, b1)), 0.0)
    z = inorm(conv3(y, w2, b2))
    return jnp.transpose(x + z, (0, 3, 1, 2))


if __name__ == "__main__":
    N, C, H, W = 2, 4, 16, 16  # dim = 4
    key = jax.random.PRNGKey(0)
    kx, kw1, kb1, kw2, kb2 = jax.random.split(key, 5)

    x = jax.random.normal(kx, (N, C, H, W), jnp.float32)
    fan_in = C * 3 * 3
    w1 = jax.random.normal(kw1, (C, C, 3, 3), jnp.float32) / jnp.sqrt(fan_in)
    b1 = jax.random.normal(kb1, (C,), jnp.float32) * 0.1
    w2 = jax.random.normal(kw2, (C, C, 3, 3), jnp.float32) / jnp.sqrt(fan_in)
    b2 = jax.random.normal(kb2, (C,), jnp.float32) * 0.1

    out = resnet_block(x, w1, b1, w2, b2)
    out = jax.block_until_ready(out)

    ref = resnet_block_ref(x, w1, b1, w2, b2)
    # Tolerance covers bf16 activations/weights on the MXU vs the f32
    # HIGHEST-precision reference (intended perf/precision trade).
    np.testing.assert_allclose(np.asarray(out), np.asarray(ref),
                               rtol=3e-2, atol=3e-2)
    print("KERNEL_OK")
</pallas_src>

<mosaic_0001>
module attributes {stable_mosaic.version = 11 : i64} {
  func.func @_resnet_block_kernel(%arg0: i32, %arg1: memref<1x16x16x4xbf16, #tpu.memory_space<vmem>>, %arg2: memref<36x4xbf16, #tpu.memory_space<vmem>>, %arg3: memref<1x4xf32, #tpu.memory_space<vmem>>, %arg4: memref<36x4xbf16, #tpu.memory_space<vmem>>, %arg5: memref<1x4xf32, #tpu.memory_space<vmem>>, %arg6: memref<1x16x16x4xf32, #tpu.memory_space<vmem>>, %arg7: memref<18x18x4xbf16, #tpu.memory_space<vmem>>, %arg8: memref<8x16x36xbf16, #tpu.memory_space<vmem>>, %arg9: memref<16x16x4xf32, #tpu.memory_space<vmem>>) attributes {dimension_semantics = [#tpu.dimension_semantics<parallel>], iteration_bounds = array<i64: 2>, scalar_prefetch = 0 : i64, scratch_operands = 3 : i64, tpu.core_type = #tpu.core_type<tc>, window_params = [{transform_indices = @transform_0, window_bounds = array<i64: 1, 16, 16, 4>}, {pipeline_mode = #tpu.pipeline_mode<synchronous>, transform_indices = @transform_1, window_bounds = array<i64: 36, 4>}, {pipeline_mode = #tpu.pipeline_mode<synchronous>, transform_indices = @transform_2, window_bounds = array<i64: 1, 4>}, {pipeline_mode = #tpu.pipeline_mode<synchronous>, transform_indices = @transform_3, window_bounds = array<i64: 36, 4>}, {pipeline_mode = #tpu.pipeline_mode<synchronous>, transform_indices = @transform_4, window_bounds = array<i64: 1, 4>}, {transform_indices = @transform_5, window_bounds = array<i64: 1, 16, 16, 4>}]} {
    %c0 = arith.constant 0 : index
    %c0_0 = arith.constant 0 : index
    %c0_1 = arith.constant 0 : index
    %c0_2 = arith.constant 0 : index
    %0 = vector.load %arg1[%c0, %c0_0, %c0_1, %c0_2] : memref<1x16x16x4xbf16, #tpu.memory_space<vmem>>, vector<1x16x16x4xbf16>
    %1 = vector.shape_cast %0 : vector<1x16x16x4xbf16> to vector<16x16x4xbf16>
    %c1 = arith.constant 1 : index
    %c1_3 = arith.constant 1 : index
    %c0_4 = arith.constant 0 : index
    %2 = vector.load %arg7[%c1, %c1_3, %c0_4] : memref<18x18x4xbf16, #tpu.memory_space<vmem>>, vector<16x16x4xbf16>
    tpu.vector_store %arg7[%c1, %c1_3, %c0_4], %1 {strides = array<i32>} : memref<18x18x4xbf16, #tpu.memory_space<vmem>>, vector<16x16x4xbf16>,
    %3 = vector.extract_strided_slice %1 {offsets = [0, 1, 0], sizes = [16, 1, 4], strides = [1, 1, 1]} : vector<16x16x4xbf16> to vector<16x1x4xbf16>
    %c1_5 = arith.constant 1 : index
    %c0_6 = arith.constant 0 : index
    %c0_7 = arith.constant 0 : index
    %4 = vector.load %arg7[%c1_5, %c0_6, %c0_7] : memref<18x18x4xbf16, #tpu.memory_space<vmem>>, vector<16x1x4xbf16>
    tpu.vector_store %arg7[%c1_5, %c0_6, %c0_7], %3 {strides = array<i32>} : memref<18x18x4xbf16, #tpu.memory_space<vmem>>, vector<16x1x4xbf16>,
    %5 = vector.extract_strided_slice %1 {offsets = [0, 14, 0], sizes = [16, 1, 4], strides = [1, 1, 1]} : vector<16x16x4xbf16> to vector<16x1x4xbf16>
    %c1_8 = arith.constant 1 : index
    %c17 = arith.constant 17 : index
    %c0_9 = arith.constant 0 : index
    %6 = vector.load %arg7[%c1_8, %c17, %c0_9] : memref<18x18x4xbf16, #tpu.memory_space<vmem>>, vector<16x1x4xbf16>
    tpu.vector_store %arg7[%c1_8, %c17, %c0_9], %5 {strides = array<i32>} : memref<18x18x4xbf16, #tpu.memory_space<vmem>>, vector<16x1x4xbf16>,
    %c2 = arith.constant 2 : index
    %c0_10 = arith.constant 0 : index
    %c0_11 = arith.constant 0 : index
    %7 = vector.load %arg7[%c2, %c0_10, %c0_11] : memref<18x18x4xbf16, #tpu.memory_space<vmem>>, vector<1x18x4xbf16>
    %c0_12 = arith.constant 0 : index
    %c0_13 = arith.constant 0 : index
    %c0_14 = arith.constant 0 : index
    %8 = vector.load %arg7[%c0_12, %c0_13, %c0_14] : memref<18x18x4xbf16, #tpu.memory_space<vmem>>, vector<1x18x4xbf16>
    tpu.vector_store %arg7[%c0_12, %c0_13, %c0_14], %7 {strides = array<i32>} : memref<18x18x4xbf16, #tpu.memory_space<vmem>>, vector<1x18x4xbf16>,
    %c15 = arith.constant 15 : index
    %c0_15 = arith.constant 0 : index
    %c0_16 = arith.constant 0 : index
    %9 = vector.load %arg7[%c15, %c0_15, %c0_16] : memref<18x18x4xbf16, #tpu.memory_space<vmem>>, vector<1x18x4xbf16>
    %c17_17 = arith.constant 17 : index
    %c0_18 = arith.constant 0 : index
    %c0_19 = arith.constant 0 : index
    %10 = vector.load %arg7[%c17_17, %c0_18, %c0_19] : memref<18x18x4xbf16, #tpu.memory_space<vmem>>, vector<1x18x4xbf16>
    tpu.vector_store %arg7[%c17_17, %c0_18, %c0_19], %9 {strides = array<i32>} : memref<18x18x4xbf16, #tpu.memory_space<vmem>>, vector<1x18x4xbf16>,
    %c0_20 = arith.constant 0 : index
    %c0_21 = arith.constant 0 : index
    %11 = vector.load %arg2[%c0_20, %c0_21] : memref<36x4xbf16, #tpu.memory_space<vmem>>, vector<36x4xbf16>
    %c0_22 = arith.constant 0 : index
    %c0_23 = arith.constant 0 : index
    %12 = vector.load %arg3[%c0_22, %c0_23] : memref<1x4xf32, #tpu.memory_space<vmem>>, vector<1x4xf32>
    %13 = vector.shape_cast %12 : vector<1x4xf32> to vector<4xf32>
    %c0_24 = arith.constant 0 : index
    %c0_25 = arith.constant 0 : index
    %c0_26 = arith.constant 0 : index
    %14 = vector.load %arg7[%c0_24, %c0_25, %c0_26] : memref<18x18x4xbf16, #tpu.memory_space<vmem>>, vector<8x16x4xbf16>
    %c0_27 = arith.constant 0 : index
    %c0_28 = arith.constant 0 : index
    %c0_29 = arith.constant 0 : index
    %15 = vector.load %arg8[%c0_27, %c0_28, %c0_29] : memref<8x16x36xbf16, #tpu.memory_space<vmem>>, vector<8x16x4xbf16>
    tpu.vector_store %arg8[%c0_27, %c0_28, %c0_29], %14 {strides = array<i32>} : memref<8x16x36xbf16, #tpu.memory_space<vmem>>, vector<8x16x4xbf16>,
    %c0_30 = arith.constant 0 : index
    %c1_31 = arith.constant 1 : index
    %c0_32 = arith.constant 0 : index
    %16 = vector.load %arg7[%c0_30, %c1_31, %c0_32] : memref<18x18x4xbf16, #tpu.memory_space<vmem>>, vector<8x16x4xbf16>
    %c0_33 = arith.constant 0 : index
    %c0_34 = arith.constant 0 : index
    %c4 = arith.constant 4 : index
    %17 = vector.load %arg8[%c0_33, %c0_34, %c4] : memref<8x16x36xbf16, #tpu.memory_space<vmem>>, vector<8x16x4xbf16>
    tpu.vector_store %arg8[%c0_33, %c0_34, %c4], %16 {strides = array<i32>} : memref<8x16x36xbf16, #tpu.memory_space<vmem>>, vector<8x16x4xbf16>,
    %c0_35 = arith.constant 0 : index
    %c2_36 = arith.constant 2 : index
    %c0_37 = arith.constant 0 : index
    %18 = vector.load %arg7[%c0_35, %c2_36, %c0_37] : memref<18x18x4xbf16, #tpu.memory_space<vmem>>, vector<8x16x4xbf16>
    %c0_38 = arith.constant 0 : index
    %c0_39 = arith.constant 0 : index
    %c8 = arith.constant 8 : index
    %19 = vector.load %arg8[%c0_38, %c0_39, %c8] : memref<8x16x36xbf16, #tpu.memory_space<vmem>>, vector<8x16x4xbf16>
    tpu.vector_store %arg8[%c0_38, %c0_39, %c8], %18 {strides = array<i32>} : memref<8x16x36xbf16, #tpu.memory_space<vmem>>, vector<8x16x4xbf16>,
    %c1_40 = arith.constant 1 : index
    %c0_41 = arith.constant 0 : index
    %c0_42 = arith.constant 0 : index
    %20 = vector.load %arg7[%c1_40, %c0_41, %c0_42] : memref<18x18x4xbf16, #tpu.memory_space<vmem>>, vector<8x16x4xbf16>
    %c0_43 = arith.constant 0 : index
    %c0_44 = arith.constant 0 : index
    %c12 = arith.constant 12 : index
    %21 = vector.load %arg8[%c0_43, %c0_44, %c12] : memref<8x16x36xbf16, #tpu.memory_space<vmem>>, vector<8x16x4xbf16>
    tpu.vector_store %arg8[%c0_43, %c0_44, %c12], %20 {strides = array<i32>} : memref<8x16x36xbf16, #tpu.memory_space<vmem>>, vector<8x16x4xbf16>,
    %c1_45 = arith.constant 1 : index
    %c1_46 = arith.constant 1 : index
    %c0_47 = arith.constant 0 : index
    %22 = vector.load %arg7[%c1_45, %c1_46, %c0_47] : memref<18x18x4xbf16, #tpu.memory_space<vmem>>, vector<8x16x4xbf16>
    %c0_48 = arith.constant 0 : index
    %c0_49 = arith.constant 0 : index
    %c16 = arith.constant 16 : index
    %23 = vector.load %arg8[%c0_48, %c0_49, %c16] : memref<8x16x36xbf16, #tpu.memory_space<vmem>>, vector<8x16x4xbf16>
    tpu.vector_store %arg8[%c0_48, %c0_49, %c16], %22 {strides = array<i32>} : memref<8x16x36xbf16, #tpu.memory_space<vmem>>, vector<8x16x4xbf16>,
    %c1_50 = arith.constant 1 : index
    %c2_51 = arith.constant 2 : index
    %c0_52 = arith.constant 0 : index
    %24 = vector.load %arg7[%c1_50, %c2_51, %c0_52] : memref<18x18x4xbf16, #tpu.memory_space<vmem>>, vector<8x16x4xbf16>
    %c0_53 = arith.constant 0 : index
    %c0_54 = arith.constant 0 : index
    %c20 = arith.constant 20 : index
    %25 = vector.load %arg8[%c0_53, %c0_54, %c20] : memref<8x16x36xbf16, #tpu.memory_space<vmem>>, vector<8x16x4xbf16>
    tpu.vector_store %arg8[%c0_53, %c0_54, %c20], %24 {strides = array<i32>} : memref<8x16x36xbf16, #tpu.memory_space<vmem>>, vector<8x16x4xbf16>,
    %c2_55 = arith.constant 2 : index
    %c0_56 = arith.constant 0 : index
    %c0_57 = arith.constant 0 : index
    %26 = vector.load %arg7[%c2_55, %c0_56, %c0_57] : memref<18x18x4xbf16, #tpu.memory_space<vmem>>, vector<8x16x4xbf16>
    %c0_58 = arith.constant 0 : index
    %c0_59 = arith.constant 0 : index
    %c24 = arith.constant 24 : index
    %27 = vector.load %arg8[%c0_58, %c0_59, %c24] : memref<8x16x36xbf16, #tpu.memory_space<vmem>>, vector<8x16x4xbf16>
    tpu.vector_store %arg8[%c0_58, %c0_59, %c24], %26 {strides = array<i32>} : memref<8x16x36xbf16, #tpu.memory_space<vmem>>, vector<8x16x4xbf16>,
    %c2_60 = arith.constant 2 : index
    %c1_61 = arith.constant 1 : index
    %c0_62 = arith.constant 0 : index
    %28 = vector.load %arg7[%c2_60, %c1_61, %c0_62] : memref<18x18x4xbf16, #tpu.memory_space<vmem>>, vector<8x16x4xbf16>
    %c0_63 = arith.constant 0 : index
    %c0_64 = arith.constant 0 : index
    %c28 = arith.constant 28 : index
    %29 = vector.load %arg8[%c0_63, %c0_64, %c28] : memref<8x16x36xbf16, #tpu.memory_space<vmem>>, vector<8x16x4xbf16>
    tpu.vector_store %arg8[%c0_63, %c0_64, %c28], %28 {strides = array<i32>} : memref<8x16x36xbf16, #tpu.memory_space<vmem>>, vector<8x16x4xbf16>,
    %c2_65 = arith.constant 2 : index
    %c2_66 = arith.constant 2 : index
    %c0_67 = arith.constant 0 : index
    %30 = vector.load %arg7[%c2_65, %c2_66, %c0_67] : memref<18x18x4xbf16, #tpu.memory_space<vmem>>, vector<8x16x4xbf16>
    %c0_68 = arith.constant 0 : index
    %c0_69 = arith.constant 0 : index
    %c32 = arith.constant 32 : index
    %31 = vector.load %arg8[%c0_68, %c0_69, %c32] : memref<8x16x36xbf16, #tpu.memory_space<vmem>>, vector<8x16x4xbf16>
    tpu.vector_store %arg8[%c0_68, %c0_69, %c32], %30 {strides = array<i32>} : memref<8x16x36xbf16, #tpu.memory_space<vmem>>, vector<8x16x4xbf16>,
    %c0_70 = arith.constant 0 : index
    %c0_71 = arith.constant 0 : index
    %c0_72 = arith.constant 0 : index
    %32 = vector.load %arg8[%c0_70, %c0_71, %c0_72] : memref<8x16x36xbf16, #tpu.memory_space<vmem>>, vector<8x16x36xbf16>
    %cst = arith.constant dense<0.000000e+00> : vector<8x16x4xf32>
    %33 = tpu.matmul %32, %11, %cst {dimension_numbers = #tpu.dot_dimension_numbers<[2], [0], [0, 1], [1], [0, 0, 0, 1, 1, 1], [], []>} : vector<8x16x36xbf16>, vector<36x4xbf16>, vector<8x16x4xf32> -> vector<8x16x4xf32>
    %34 = vector.shape_cast %13 : vector<4xf32> to vector<1x1x4xf32>
    %35 = vector.broadcast %34 : vector<1x1x4xf32> to vector<8x16x4xf32>
    %36 = arith.addf %33, %35 : vector<8x16x4xf32>
    %c0_73 = arith.constant 0 : index
    %c0_74 = arith.constant 0 : index
    %c0_75 = arith.constant 0 : index
    %37 = vector.load %arg9[%c0_73, %c0_74, %c0_75] : memref<16x16x4xf32, #tpu.memory_space<vmem>>, vector<8x16x4xf32>
    tpu.vector_store %arg9[%c0_73, %c0_74, %c0_75], %36 {strides = array<i32>} : memref<16x16x4xf32, #tpu.memory_space<vmem>>, vector<8x16x4xf32>,
    %c8_76 = arith.constant 8 : index
    %c0_77 = arith.constant 0 : index
    %c0_78 = arith.constant 0 : index
    %38 = vector.load %arg7[%c8_76, %c0_77, %c0_78] : memref<18x18x4xbf16, #tpu.memory_space<vmem>>, vector<8x16x4xbf16>
    %c0_79 = arith.constant 0 : index
    %c0_80 = arith.constant 0 : index
    %c0_81 = arith.constant 0 : index
    %39 = vector.load %arg8[%c0_79, %c0_80, %c0_81] : memref<8x16x36xbf16, #tpu.memory_space<vmem>>, vector<8x16x4xbf16>
    tpu.vector_store %arg8[%c0_79, %c0_80, %c0_81], %38 {strides = array<i32>} : memref<8x16x36xbf16, #tpu.memory_space<vmem>>, vector<8x16x4xbf16>,
    %c8_82 = arith.constant 8 : index
    %c1_83 = arith.constant 1 : index
    %c0_84 = arith.constant 0 : index
    %40 = vector.load %arg7[%c8_82, %c1_83, %c0_84] : memref<18x18x4xbf16, #tpu.memory_space<vmem>>, vector<8x16x4xbf16>
    %c0_85 = arith.constant 0 : index
    %c0_86 = arith.constant 0 : index
    %c4_87 = arith.constant 4 : index
    %41 = vector.load %arg8[%c0_85, %c0_86, %c4_87] : memref<8x16x36xbf16, #tpu.memory_space<vmem>>, vector<8x16x4xbf16>
    tpu.vector_store %arg8[%c0_85, %c0_86, %c4_87], %40 {strides = array<i32>} : memref<8x16x36xbf16, #tpu.memory_space<vmem>>, vector<8x16x4xbf16>,
    %c8_88 = arith.constant 8 : index
    %c2_89 = arith.constant 2 : index
    %c0_90 = arith.constant 0 : index
    %42 = vector.load %arg7[%c8_88, %c2_89, %c0_90] : memref<18x18x4xbf16, #tpu.memory_space<vmem>>, vector<8x16x4xbf16>
    %c0_91 = arith.constant 0 : index
    %c0_92 = arith.constant 0 : index
    %c8_93 = arith.constant 8 : index
    %43 = vector.load %arg8[%c0_91, %c0_92, %c8_93] : memref<8x16x36xbf16, #tpu.memory_space<vmem>>, vector<8x16x4xbf16>
    tpu.vector_store %arg8[%c0_91, %c0_92, %c8_93], %42 {strides = array<i32>} : memref<8x16x36xbf16, #tpu.memory_space<vmem>>, vector<8x16x4xbf16>,
    %c9 = arith.constant 9 : index
    %c0_94 = arith.constant 0 : index
    %c0_95 = arith.constant 0 : index
    %44 = vector.load %arg7[%c9, %c0_94, %c0_95] : memref<18x18x4xbf16, #tpu.memory_space<vmem>>, vector<8x16x4xbf16>
    %c0_96 = arith.constant 0 : index
    %c0_97 = arith.constant 0 : index
    %c12_98 = arith.constant 12 : index
    %45 = vector.load %arg8[%c0_96, %c0_97, %c12_98] : memref<8x16x36xbf16, #tpu.memory_space<vmem>>, vector<8x16x4xbf16>
    tpu.vector_store %arg8[%c0_96, %c0_97, %c12_98], %44 {strides = array<i32>} : memref<8x16x36xbf16, #tpu.memory_space<vmem>>, vector<8x16x4xbf16>,
    %c9_99 = arith.constant 9 : index
    %c1_100 = arith.constant 1 : index
    %c0_101 = arith.constant 0 : index
    %46 = vector.load %arg7[%c9_99, %c1_100, %c0_101] : memref<18x18x4xbf16, #tpu.memory_space<vmem>>, vector<8x16x4xbf16>
    %c0_102 = arith.constant 0 : index
    %c0_103 = arith.constant 0 : index
    %c16_104 = arith.constant 16 : index
    %47 = vector.load %arg8[%c0_102, %c0_103, %c16_104] : memref<8x16x36xbf16, #tpu.memory_space<vmem>>, vector<8x16x4xbf16>
    tpu.vector_store %arg8[%c0_102, %c0_103, %c16_104], %46 {strides = array<i32>} : memref<8x16x36xbf16, #tpu.memory_space<vmem>>, vector<8x16x4xbf16>,
    %c9_105 = arith.constant 9 : index
    %c2_106 = arith.constant 2 : index
    %c0_107 = arith.constant 0 : index
    %48 = vector.load %arg7[%c9_105, %c2_106, %c0_107] : memref<18x18x4xbf16, #tpu.memory_space<vmem>>, vector<8x16x4xbf16>
    %c0_108 = arith.constant 0 : index
    %c0_109 = arith.constant 0 : index
    %c20_110 = arith.constant 20 : index
    %49 = vector.load %arg8[%c0_108, %c0_109, %c20_110] : memref<8x16x36xbf16, #tpu.memory_space<vmem>>, vector<8x16x4xbf16>
    tpu.vector_store %arg8[%c0_108, %c0_109, %c20_110], %48 {strides = array<i32>} : memref<8x16x36xbf16, #tpu.memory_space<vmem>>, vector<8x16x4xbf16>,
    %c10 = arith.constant 10 : index
    %c0_111 = arith.constant 0 : index
    %c0_112 = arith.constant 0 : index
    %50 = vector.load %arg7[%c10, %c0_111, %c0_112] : memref<18x18x4xbf16, #tpu.memory_space<vmem>>, vector<8x16x4xbf16>
    %c0_113 = arith.constant 0 : index
    %c0_114 = arith.constant 0 : index
    %c24_115 = arith.constant 24 : index
    %51 = vector.load %arg8[%c0_113, %c0_114, %c24_115] : memref<8x16x36xbf16, #tpu.memory_space<vmem>>, vector<8x16x4xbf16>
    tpu.vector_store %arg8[%c0_113, %c0_114, %c24_115], %50 {strides = array<i32>} : memref<8x16x36xbf16, #tpu.memory_space<vmem>>, vector<8x16x4xbf16>,
    %c10_116 = arith.constant 10 : index
    %c1_117 = arith.constant 1 : index
    %c0_118 = arith.constant 0 : index
    %52 = vector.load %arg7[%c10_116, %c1_117, %c0_118] : memref<18x18x4xbf16, #tpu.memory_space<vmem>>, vector<8x16x4xbf16>
    %c0_119 = arith.constant 0 : index
    %c0_120 = arith.constant 0 : index
    %c28_121 = arith.constant 28 : index
    %53 = vector.load %arg8[%c0_119, %c0_120, %c28_121] : memref<8x16x36xbf16, #tpu.memory_space<vmem>>, vector<8x16x4xbf16>
    tpu.vector_store %arg8[%c0_119, %c0_120, %c28_121], %52 {strides = array<i32>} : memref<8x16x36xbf16, #tpu.memory_space<vmem>>, vector<8x16x4xbf16>,
    %c10_122 = arith.constant 10 : index
    %c2_123 = arith.constant 2 : index
    %c0_124 = arith.constant 0 : index
    %54 = vector.load %arg7[%c10_122, %c2_123, %c0_124] : memref<18x18x4xbf16, #tpu.memory_space<vmem>>, vector<8x16x4xbf16>
    %c0_125 = arith.constant 0 : index
    %c0_126 = arith.constant 0 : index
    %c32_127 = arith.constant 32 : index
    %55 = vector.load %arg8[%c0_125, %c0_126, %c32_127] : memref<8x16x36xbf16, #tpu.memory_space<vmem>>, vector<8x16x4xbf16>
    tpu.vector_store %arg8[%c0_125, %c0_126, %c32_127], %54 {strides = array<i32>} : memref<8x16x36xbf16, #tpu.memory_space<vmem>>, vector<8x16x4xbf16>,
    %c0_128 = arith.constant 0 : index
    %c0_129 = arith.constant 0 : index
    %c0_130 = arith.constant 0 : index
    %56 = vector.load %arg8[%c0_128, %c0_129, %c0_130] : memref<8x16x36xbf16, #tpu.memory_space<vmem>>, vector<8x16x36xbf16>
    %cst_131 = arith.constant dense<0.000000e+00> : vector<8x16x4xf32>
    %57 = tpu.matmul %56, %11, %cst_131 {dimension_numbers = #tpu.dot_dimension_numbers<[2], [0], [0, 1], [1], [0, 0, 0, 1, 1, 1], [], []>} : vector<8x16x36xbf16>, vector<36x4xbf16>, vector<8x16x4xf32> -> vector<8x16x4xf32>
    %58 = vector.shape_cast %13 : vector<4xf32> to vector<1x1x4xf32>
    %59 = vector.broadcast %58 : vector<1x1x4xf32> to vector<8x16x4xf32>
    %60 = arith.addf %57, %59 : vector<8x16x4xf32>
    %c8_132 = arith.constant 8 : index
    %c0_133 = arith.constant 0 : index
    %c0_134 = arith.constant 0 : index
    %61 = vector.load %arg9[%c8_132, %c0_133, %c0_134] : memref<16x16x4xf32, #tpu.memory_space<vmem>>, vector<8x16x4xf32>
    tpu.vector_store %arg9[%c8_132, %c0_133, %c0_134], %60 {strides = array<i32>} : memref<16x16x4xf32, #tpu.memory_space<vmem>>, vector<8x16x4xf32>,
    %c0_135 = arith.constant 0 : index
    %c0_136 = arith.constant 0 : index
    %c0_137 = arith.constant 0 : index
    %62 = vector.load %arg9[%c0_135, %c0_136, %c0_137] : memref<16x16x4xf32, #tpu.memory_space<vmem>>, vector<16x16x4xf32>
    %cst_138 = arith.constant dense<0.000000e+00> : vector<4xf32>
    %63 = vector.multi_reduction <add>, %62, %cst_138 [0, 1] : vector<16x16x4xf32> to vector<4xf32>
    %64 = vector.shape_cast %63 : vector<4xf32> to vector<1x1x4xf32>
    %cst_139 = arith.constant 3.906250e-03 : f32
    %65 = vector.broadcast %cst_139 : f32 to vector<1x1x4xf32>
    %66 = arith.mulf %64, %65 : vector<1x1x4xf32>
    %67 = vector.broadcast %66 : vector<1x1x4xf32> to vector<16x16x4xf32>
    %68 = arith.subf %62, %67 : vector<16x16x4xf32>
    %69 = arith.mulf %68, %68 : vector<16x16x4xf32>
    %cst_140 = arith.constant dense<0.000000e+00> : vector<4xf32>
    %70 = vector.multi_reduction <add>, %69, %cst_140 [0, 1] : vector<16x16x4xf32> to vector<4xf32>
    %71 = vector.shape_cast %70 : vector<4xf32> to vector<1x1x4xf32>
    %cst_141 = arith.constant 3.906250e-03 : f32
    %72 = vector.broadcast %cst_141 : f32 to vector<1x1x4xf32>
    %73 = arith.mulf %71, %72 : vector<1x1x4xf32>
    %cst_142 = arith.constant 9.99999974E-6 : f32
    %74 = vector.broadcast %cst_142 : f32 to vector<1x1x4xf32>
    %75 = arith.addf %73, %74 : vector<1x1x4xf32>
    %76 = math.rsqrt %75 : vector<1x1x4xf32>
    %77 = vector.broadcast %76 : vector<1x1x4xf32> to vector<16x16x4xf32>
    %78 = arith.mulf %68, %77 : vector<16x16x4xf32>
    %cst_143 = arith.constant 0.000000e+00 : f32
    %79 = vector.broadcast %cst_143 : f32 to vector<16x16x4xf32>
    %80 = arith.maximumf %78, %79 : vector<16x16x4xf32>
    %81 = arith.truncf %80 : vector<16x16x4xf32> to vector<16x16x4xbf16>
    %c1_144 = arith.constant 1 : index
    %c1_145 = arith.constant 1 : index
    %c0_146 = arith.constant 0 : index
    %82 = vector.load %arg7[%c1_144, %c1_145, %c0_146] : memref<18x18x4xbf16, #tpu.memory_space<vmem>>, vector<16x16x4xbf16>
    tpu.vector_store %arg7[%c1_144, %c1_145, %c0_146], %81 {strides = array<i32>} : memref<18x18x4xbf16, #tpu.memory_space<vmem>>, vector<16x16x4xbf16>,
    %83 = vector.extract_strided_slice %81 {offsets = [0, 1, 0], sizes = [16, 1, 4], strides = [1, 1, 1]} : vector<16x16x4xbf16> to vector<16x1x4xbf16>
    %c1_147 = arith.constant 1 : index
    %c0_148 = arith.constant 0 : index
    %c0_149 = arith.constant 0 : index
    %84 = vector.load %arg7[%c1_147, %c0_148, %c0_149] : memref<18x18x4xbf16, #tpu.memory_space<vmem>>, vector<16x1x4xbf16>
    tpu.vector_store %arg7[%c1_147, %c0_148, %c0_149], %83 {strides = array<i32>} : memref<18x18x4xbf16, #tpu.memory_space<vmem>>, vector<16x1x4xbf16>,
    %85 = vector.extract_strided_slice %81 {offsets = [0, 14, 0], sizes = [16, 1, 4], strides = [1, 1, 1]} : vector<16x16x4xbf16> to vector<16x1x4xbf16>
    %c1_150 = arith.constant 1 : index
    %c17_151 = arith.constant 17 : index
    %c0_152 = arith.constant 0 : index
    %86 = vector.load %arg7[%c1_150, %c17_151, %c0_152] : memref<18x18x4xbf16, #tpu.memory_space<vmem>>, vector<16x1x4xbf16>
    tpu.vector_store %arg7[%c1_150, %c17_151, %c0_152], %85 {strides = array<i32>} : memref<18x18x4xbf16, #tpu.memory_space<vmem>>, vector<16x1x4xbf16>,
    %c2_153 = arith.constant 2 : index
    %c0_154 = arith.constant 0 : index
    %c0_155 = arith.constant 0 : index
    %87 = vector.load %arg7[%c2_153, %c0_154, %c0_155] : memref<18x18x4xbf16, #tpu.memory_space<vmem>>, vector<1x18x4xbf16>
    %c0_156 = arith.constant 0 : index
    %c0_157 = arith.constant 0 : index
    %c0_158 = arith.constant 0 : index
    %88 = vector.load %arg7[%c0_156, %c0_157, %c0_158] : memref<18x18x4xbf16, #tpu.memory_space<vmem>>, vector<1x18x4xbf16>
    tpu.vector_store %arg7[%c0_156, %c0_157, %c0_158], %87 {strides = array<i32>} : memref<18x18x4xbf16, #tpu.memory_space<vmem>>, vector<1x18x4xbf16>,
    %c15_159 = arith.constant 15 : index
    %c0_160 = arith.constant 0 : index
    %c0_161 = arith.constant 0 : index
    %89 = vector.load %arg7[%c15_159, %c0_160, %c0_161] : memref<18x18x4xbf16, #tpu.memory_space<vmem>>, vector<1x18x4xbf16>
    %c17_162 = arith.constant 17 : index
    %c0_163 = arith.constant 0 : index
    %c0_164 = arith.constant 0 : index
    %90 = vector.load %arg7[%c17_162, %c0_163, %c0_164] : memref<18x18x4xbf16, #tpu.memory_space<vmem>>, vector<1x18x4xbf16>
    tpu.vector_store %arg7[%c17_162, %c0_163, %c0_164], %89 {strides = array<i32>} : memref<18x18x4xbf16, #tpu.memory_space<vmem>>, vector<1x18x4xbf16>,
    %c0_165 = arith.constant 0 : index
    %c0_166 = arith.constant 0 : index
    %91 = vector.load %arg4[%c0_165, %c0_166] : memref<36x4xbf16, #tpu.memory_space<vmem>>, vector<36x4xbf16>
    %c0_167 = arith.constant 0 : index
    %c0_168 = arith.constant 0 : index
    %92 = vector.load %arg5[%c0_167, %c0_168] : memref<1x4xf32, #tpu.memory_space<vmem>>, vector<1x4xf32>
    %93 = vector.shape_cast %92 : vector<1x4xf32> to vector<4xf32>
    %c0_169 = arith.constant 0 : index
    %c0_170 = arith.constant 0 : index
    %c0_171 = arith.constant 0 : index
    %94 = vector.load %arg7[%c0_169, %c0_170, %c0_171] : memref<18x18x4xbf16, #tpu.memory_space<vmem>>, vector<8x16x4xbf16>
    %c0_172 = arith.constant 0 : index
    %c0_173 = arith.constant 0 : index
    %c0_174 = arith.constant 0 : index
    %95 = vector.load %arg8[%c0_172, %c0_173, %c0_174] : memref<8x16x36xbf16, #tpu.memory_space<vmem>>, vector<8x16x4xbf16>
    tpu.vector_store %arg8[%c0_172, %c0_173, %c0_174], %94 {strides = array<i32>} : memref<8x16x36xbf16, #tpu.memory_space<vmem>>, vector<8x16x4xbf16>,
    %c0_175 = arith.constant 0 : index
    %c1_176 = arith.constant 1 : index
    %c0_177 = arith.constant 0 : index
    %96 = vector.load %arg7[%c0_175, %c1_176, %c0_177] : memref<18x18x4xbf16, #tpu.memory_space<vmem>>, vector<8x16x4xbf16>
    %c0_178 = arith.constant 0 : index
    %c0_179 = arith.constant 0 : index
    %c4_180 = arith.constant 4 : index
    %97 = vector.load %arg8[%c0_178, %c0_179, %c4_180] : memref<8x16x36xbf16, #tpu.memory_space<vmem>>, vector<8x16x4xbf16>
    tpu.vector_store %arg8[%c0_178, %c0_179, %c4_180], %96 {strides = array<i32>} : memref<8x16x36xbf16, #tpu.memory_space<vmem>>, vector<8x16x4xbf16>,
    %c0_181 = arith.constant 0 : index
    %c2_182 = arith.constant 2 : index
    %c0_183 = arith.constant 0 : index
    %98 = vector.load %arg7[%c0_181, %c2_182, %c0_183] : memref<18x18x4xbf16, #tpu.memory_space<vmem>>, vector<8x16x4xbf16>
    %c0_184 = arith.constant 0 : index
    %c0_185 = arith.constant 0 : index
    %c8_186 = arith.constant 8 : index
    %99 = vector.load %arg8[%c0_184, %c0_185, %c8_186] : memref<8x16x36xbf16, #tpu.memory_space<vmem>>, vector<8x16x4xbf16>
    tpu.vector_store %arg8[%c0_184, %c0_185, %c8_186], %98 {strides = array<i32>} : memref<8x16x36xbf16, #tpu.memory_space<vmem>>, vector<8x16x4xbf16>,
    %c1_187 = arith.constant 1 : index
    %c0_188 = arith.constant 0 : index
    %c0_189 = arith.constant 0 : index
    %100 = vector.load %arg7[%c1_187, %c0_188, %c0_189] : memref<18x18x4xbf16, #tpu.memory_space<vmem>>, vector<8x16x4xbf16>
    %c0_190 = arith.constant 0 : index
    %c0_191 = arith.constant 0 : index
    %c12_192 = arith.constant 12 : index
    %101 = vector.load %arg8[%c0_190, %c0_191, %c12_192] : memref<8x16x36xbf16, #tpu.memory_space<vmem>>, vector<8x16x4xbf16>
    tpu.vector_store %arg8[%c0_190, %c0_191, %c12_192], %100 {strides = array<i32>} : memref<8x16x36xbf16, #tpu.memory_space<vmem>>, vector<8x16x4xbf16>,
    %c1_193 = arith.constant 1 : index
    %c1_194 = arith.constant 1 : index
    %c0_195 = arith.constant 0 : index
    %102 = vector.load %arg7[%c1_193, %c1_194, %c0_195] : memref<18x18x4xbf16, #tpu.memory_space<vmem>>, vector<8x16x4xbf16>
    %c0_196 = arith.constant 0 : index
    %c0_197 = arith.constant 0 : index
    %c16_198 = arith.constant 16 : index
    %103 = vector.load %arg8[%c0_196, %c0_197, %c16_198] : memref<8x16x36xbf16, #tpu.memory_space<vmem>>, vector<8x16x4xbf16>
    tpu.vector_store %arg8[%c0_196, %c0_197, %c16_198], %102 {strides = array<i32>} : memref<8x16x36xbf16, #tpu.memory_space<vmem>>, vector<8x16x4xbf16>,
    %c1_199 = arith.constant 1 : index
    %c2_200 = arith.constant 2 : index
    %c0_201 = arith.constant 0 : index
    %104 = vector.load %arg7[%c1_199, %c2_200, %c0_201] : memref<18x18x4xbf16, #tpu.memory_space<vmem>>, vector<8x16x4xbf16>
    %c0_202 = arith.constant 0 : index
    %c0_203 = arith.constant 0 : index
    %c20_204 = arith.constant 20 : index
    %105 = vector.load %arg8[%c0_202, %c0_203, %c20_204] : memref<8x16x36xbf16, #tpu.memory_space<vmem>>, vector<8x16x4xbf16>
    tpu.vector_store %arg8[%c0_202, %c0_203, %c20_204], %104 {strides = array<i32>} : memref<8x16x36xbf16, #tpu.memory_space<vmem>>, vector<8x16x4xbf16>,
    %c2_205 = arith.constant 2 : index
    %c0_206 = arith.constant 0 : index
    %c0_207 = arith.constant 0 : index
    %106 = vector.load %arg7[%c2_205, %c0_206, %c0_207] : memref<18x18x4xbf16, #tpu.memory_space<vmem>>, vector<8x16x4xbf16>
    %c0_208 = arith.constant 0 : index
    %c0_209 = arith.constant 0 : index
    %c24_210 = arith.constant 24 : index
    %107 = vector.load %arg8[%c0_208, %c0_209, %c24_210] : memref<8x16x36xbf16, #tpu.memory_space<vmem>>, vector<8x16x4xbf16>
    tpu.vector_store %arg8[%c0_208, %c0_209, %c24_210], %106 {strides = array<i32>} : memref<8x16x36xbf16, #tpu.memory_space<vmem>>, vector<8x16x4xbf16>,
    %c2_211 = arith.constant 2 : index
    %c1_212 = arith.constant 1 : index
    %c0_213 = arith.constant 0 : index
    %108 = vector.load %arg7[%c2_211, %c1_212, %c0_213] : memref<18x18x4xbf16, #tpu.memory_space<vmem>>, vector<8x16x4xbf16>
    %c0_214 = arith.constant 0 : index
    %c0_215 = arith.constant 0 : index
    %c28_216 = arith.constant 28 : index
    %109 = vector.load %arg8[%c0_214, %c0_215, %c28_216] : memref<8x16x36xbf16, #tpu.memory_space<vmem>>, vector<8x16x4xbf16>
    tpu.vector_store %arg8[%c0_214, %c0_215, %c28_216], %108 {strides = array<i32>} : memref<8x16x36xbf16, #tpu.memory_space<vmem>>, vector<8x16x4xbf16>,
    %c2_217 = arith.constant 2 : index
    %c2_218 = arith.constant 2 : index
    %c0_219 = arith.constant 0 : index
    %110 = vector.load %arg7[%c2_217, %c2_218, %c0_219] : memref<18x18x4xbf16, #tpu.memory_space<vmem>>, vector<8x16x4xbf16>
    %c0_220 = arith.constant 0 : index
    %c0_221 = arith.constant 0 : index
    %c32_222 = arith.constant 32 : index
    %111 = vector.load %arg8[%c0_220, %c0_221, %c32_222] : memref<8x16x36xbf16, #tpu.memory_space<vmem>>, vector<8x16x4xbf16>
    tpu.vector_store %arg8[%c0_220, %c0_221, %c32_222], %110 {strides = array<i32>} : memref<8x16x36xbf16, #tpu.memory_space<vmem>>, vector<8x16x4xbf16>,
    %c0_223 = arith.constant 0 : index
    %c0_224 = arith.constant 0 : index
    %c0_225 = arith.constant 0 : index
    %112 = vector.load %arg8[%c0_223, %c0_224, %c0_225] : memref<8x16x36xbf16, #tpu.memory_space<vmem>>, vector<8x16x36xbf16>
    %cst_226 = arith.constant dense<0.000000e+00> : vector<8x16x4xf32>
    %113 = tpu.matmul %112, %91, %cst_226 {dimension_numbers = #tpu.dot_dimension_numbers<[2], [0], [0, 1], [1], [0, 0, 0, 1, 1, 1], [], []>} : vector<8x16x36xbf16>, vector<36x4xbf16>, vector<8x16x4xf32> -> vector<8x16x4xf32>
    %114 = vector.shape_cast %93 : vector<4xf32> to vector<1x1x4xf32>
    %115 = vector.broadcast %114 : vector<1x1x4xf32> to vector<8x16x4xf32>
    %116 = arith.addf %113, %115 : vector<8x16x4xf32>
    %c0_227 = arith.constant 0 : index
    %c0_228 = arith.constant 0 : index
    %c0_229 = arith.constant 0 : index
    %117 = vector.load %arg9[%c0_227, %c0_228, %c0_229] : memref<16x16x4xf32, #tpu.memory_space<vmem>>, vector<8x16x4xf32>
    tpu.vector_store %arg9[%c0_227, %c0_228, %c0_229], %116 {strides = array<i32>} : memref<16x16x4xf32, #tpu.memory_space<vmem>>, vector<8x16x4xf32>,
    %c8_230 = arith.constant 8 : index
    %c0_231 = arith.constant 0 : index
    %c0_232 = arith.constant 0 : index
    %118 = vector.load %arg7[%c8_230, %c0_231, %c0_232] : memref<18x18x4xbf16, #tpu.memory_space<vmem>>, vector<8x16x4xbf16>
    %c0_233 = arith.constant 0 : index
    %c0_234 = arith.constant 0 : index
    %c0_235 = arith.constant 0 : index
    %119 = vector.load %arg8[%c0_233, %c0_234, %c0_235] : memref<8x16x36xbf16, #tpu.memory_space<vmem>>, vector<8x16x4xbf16>
    tpu.vector_store %arg8[%c0_233, %c0_234, %c0_235], %118 {strides = array<i32>} : memref<8x16x36xbf16, #tpu.memory_space<vmem>>, vector<8x16x4xbf16>,
    %c8_236 = arith.constant 8 : index
    %c1_237 = arith.constant 1 : index
    %c0_238 = arith.constant 0 : index
    %120 = vector.load %arg7[%c8_236, %c1_237, %c0_238] : memref<18x18x4xbf16, #tpu.memory_space<vmem>>, vector<8x16x4xbf16>
    %c0_239 = arith.constant 0 : index
    %c0_240 = arith.constant 0 : index
    %c4_241 = arith.constant 4 : index
    %121 = vector.load %arg8[%c0_239, %c0_240, %c4_241] : memref<8x16x36xbf16, #tpu.memory_space<vmem>>, vector<8x16x4xbf16>
    tpu.vector_store %arg8[%c0_239, %c0_240, %c4_241], %120 {strides = array<i32>} : memref<8x16x36xbf16, #tpu.memory_space<vmem>>, vector<8x16x4xbf16>,
    %c8_242 = arith.constant 8 : index
    %c2_243 = arith.constant 2 : index
    %c0_244 = arith.constant 0 : index
    %122 = vector.load %arg7[%c8_242, %c2_243, %c0_244] : memref<18x18x4xbf16, #tpu.memory_space<vmem>>, vector<8x16x4xbf16>
    %c0_245 = arith.constant 0 : index
    %c0_246 = arith.constant 0 : index
    %c8_247 = arith.constant 8 : index
    %123 = vector.load %arg8[%c0_245, %c0_246, %c8_247] : memref<8x16x36xbf16, #tpu.memory_space<vmem>>, vector<8x16x4xbf16>
    tpu.vector_store %arg8[%c0_245, %c0_246, %c8_247], %122 {strides = array<i32>} : memref<8x16x36xbf16, #tpu.memory_space<vmem>>, vector<8x16x4xbf16>,
    %c9_248 = arith.constant 9 : index
    %c0_249 = arith.constant 0 : index
    %c0_250 = arith.constant 0 : index
    %124 = vector.load %arg7[%c9_248, %c0_249, %c0_250] : memref<18x18x4xbf16, #tpu.memory_space<vmem>>, vector<8x16x4xbf16>
    %c0_251 = arith.constant 0 : index
    %c0_252 = arith.constant 0 : index
    %c12_253 = arith.constant 12 : index
    %125 = vector.load %arg8[%c0_251, %c0_252, %c12_253] : memref<8x16x36xbf16, #tpu.memory_space<vmem>>, vector<8x16x4xbf16>
    tpu.vector_store %arg8[%c0_251, %c0_252, %c12_253], %124 {strides = array<i32>} : memref<8x16x36xbf16, #tpu.memory_space<vmem>>, vector<8x16x4xbf16>,
    %c9_254 = arith.constant 9 : index
    %c1_255 = arith.constant 1 : index
    %c0_256 = arith.constant 0 : index
    %126 = vector.load %arg7[%c9_254, %c1_255, %c0_256] : memref<18x18x4xbf16, #tpu.memory_space<vmem>>, vector<8x16x4xbf16>
    %c0_257 = arith.constant 0 : index
    %c0_258 = arith.constant 0 : index
    %c16_259 = arith.constant 16 : index
    %127 = vector.load %arg8[%c0_257, %c0_258, %c16_259] : memref<8x16x36xbf16, #tpu.memory_space<vmem>>, vector<8x16x4xbf16>
    tpu.vector_store %arg8[%c0_257, %c0_258, %c16_259], %126 {strides = array<i32>} : memref<8x16x36xbf16, #tpu.memory_space<vmem>>, vector<8x16x4xbf16>,
    %c9_260 = arith.constant 9 : index
    %c2_261 = arith.constant 2 : index
    %c0_262 = arith.constant 0 : index
    %128 = vector.load %arg7[%c9_260, %c2_261, %c0_262] : memref<18x18x4xbf16, #tpu.memory_space<vmem>>, vector<8x16x4xbf16>
    %c0_263 = arith.constant 0 : index
    %c0_264 = arith.constant 0 : index
    %c20_265 = arith.constant 20 : index
    %129 = vector.load %arg8[%c0_263, %c0_264, %c20_265] : memref<8x16x36xbf16, #tpu.memory_space<vmem>>, vector<8x16x4xbf16>
    tpu.vector_store %arg8[%c0_263, %c0_264, %c20_265], %128 {strides = array<i32>} : memref<8x16x36xbf16, #tpu.memory_space<vmem>>, vector<8x16x4xbf16>,
    %c10_266 = arith.constant 10 : index
    %c0_267 = arith.constant 0 : index
    %c0_268 = arith.constant 0 : index
    %130 = vector.load %arg7[%c10_266, %c0_267, %c0_268] : memref<18x18x4xbf16, #tpu.memory_space<vmem>>, vector<8x16x4xbf16>
    %c0_269 = arith.constant 0 : index
    %c0_270 = arith.constant 0 : index
    %c24_271 = arith.constant 24 : index
    %131 = vector.load %arg8[%c0_269, %c0_270, %c24_271] : memref<8x16x36xbf16, #tpu.memory_space<vmem>>, vector<8x16x4xbf16>
    tpu.vector_store %arg8[%c0_269, %c0_270, %c24_271], %130 {strides = array<i32>} : memref<8x16x36xbf16, #tpu.memory_space<vmem>>, vector<8x16x4xbf16>,
    %c10_272 = arith.constant 10 : index
    %c1_273 = arith.constant 1 : index
    %c0_274 = arith.constant 0 : index
    %132 = vector.load %arg7[%c10_272, %c1_273, %c0_274] : memref<18x18x4xbf16, #tpu.memory_space<vmem>>, vector<8x16x4xbf16>
    %c0_275 = arith.constant 0 : index
    %c0_276 = arith.constant 0 : index
    %c28_277 = arith.constant 28 : index
    %133 = vector.load %arg8[%c0_275, %c0_276, %c28_277] : memref<8x16x36xbf16, #tpu.memory_space<vmem>>, vector<8x16x4xbf16>
    tpu.vector_store %arg8[%c0_275, %c0_276, %c28_277], %132 {strides = array<i32>} : memref<8x16x36xbf16, #tpu.memory_space<vmem>>, vector<8x16x4xbf16>,
    %c10_278 = arith.constant 10 : index
    %c2_279 = arith.constant 2 : index
    %c0_280 = arith.constant 0 : index
    %134 = vector.load %arg7[%c10_278, %c2_279, %c0_280] : memref<18x18x4xbf16, #tpu.memory_space<vmem>>, vector<8x16x4xbf16>
    %c0_281 = arith.constant 0 : index
    %c0_282 = arith.constant 0 : index
    %c32_283 = arith.constant 32 : index
    %135 = vector.load %arg8[%c0_281, %c0_282, %c32_283] : memref<8x16x36xbf16, #tpu.memory_space<vmem>>, vector<8x16x4xbf16>
    tpu.vector_store %arg8[%c0_281, %c0_282, %c32_283], %134 {strides = array<i32>} : memref<8x16x36xbf16, #tpu.memory_space<vmem>>, vector<8x16x4xbf16>,
    %c0_284 = arith.constant 0 : index
    %c0_285 = arith.constant 0 : index
    %c0_286 = arith.constant 0 : index
    %136 = vector.load %arg8[%c0_284, %c0_285, %c0_286] : memref<8x16x36xbf16, #tpu.memory_space<vmem>>, vector<8x16x36xbf16>
    %cst_287 = arith.constant dense<0.000000e+00> : vector<8x16x4xf32>
    %137 = tpu.matmul %136, %91, %cst_287 {dimension_numbers = #tpu.dot_dimension_numbers<[2], [0], [0, 1], [1], [0, 0, 0, 1, 1, 1], [], []>} : vector<8x16x36xbf16>, vector<36x4xbf16>, vector<8x16x4xf32> -> vector<8x16x4xf32>
    %138 = vector.shape_cast %93 : vector<4xf32> to vector<1x1x4xf32>
    %139 = vector.broadcast %138 : vector<1x1x4xf32> to vector<8x16x4xf32>
    %140 = arith.addf %137, %139 : vector<8x16x4xf32>
    %c8_288 = arith.constant 8 : index
    %c0_289 = arith.constant 0 : index
    %c0_290 = arith.constant 0 : index
    %141 = vector.load %arg9[%c8_288, %c0_289, %c0_290] : memref<16x16x4xf32, #tpu.memory_space<vmem>>, vector<8x16x4xf32>
    tpu.vector_store %arg9[%c8_288, %c0_289, %c0_290], %140 {strides = array<i32>} : memref<16x16x4xf32, #tpu.memory_space<vmem>>, vector<8x16x4xf32>,
    %c0_291 = arith.constant 0 : index
    %c0_292 = arith.constant 0 : index
    %c0_293 = arith.constant 0 : index
    %142 = vector.load %arg9[%c0_291, %c0_292, %c0_293] : memref<16x16x4xf32, #tpu.memory_space<vmem>>, vector<16x16x4xf32>
    %cst_294 = arith.constant dense<0.000000e+00> : vector<4xf32>
    %143 = vector.multi_reduction <add>, %142, %cst_294 [0, 1] : vector<16x16x4xf32> to vector<4xf32>
    %144 = vector.shape_cast %143 : vector<4xf32> to vector<1x1x4xf32>
    %cst_295 = arith.constant 3.906250e-03 : f32
    %145 = vector.broadcast %cst_295 : f32 to vector<1x1x4xf32>
    %146 = arith.mulf %144, %145 : vector<1x1x4xf32>
    %147 = vector.broadcast %146 : vector<1x1x4xf32> to vector<16x16x4xf32>
    %148 = arith.subf %142, %147 : vector<16x16x4xf32>
    %149 = arith.mulf %148, %148 : vector<16x16x4xf32>
    %cst_296 = arith.constant dense<0.000000e+00> : vector<4xf32>
    %150 = vector.multi_reduction <add>, %149, %cst_296 [0, 1] : vector<16x16x4xf32> to vector<4xf32>
    %151 = vector.shape_cast %150 : vector<4xf32> to vector<1x1x4xf32>
    %cst_297 = arith.constant 3.906250e-03 : f32
    %152 = vector.broadcast %cst_297 : f32 to vector<1x1x4xf32>
    %153 = arith.mulf %151, %152 : vector<1x1x4xf32>
    %cst_298 = arith.constant 9.99999974E-6 : f32
    %154 = vector.broadcast %cst_298 : f32 to vector<1x1x4xf32>
    %155 = arith.addf %153, %154 : vector<1x1x4xf32>
    %156 = math.rsqrt %155 : vector<1x1x4xf32>
    %157 = vector.broadcast %156 : vector<1x1x4xf32> to vector<16x16x4xf32>
    %158 = arith.mulf %148, %157 : vector<16x16x4xf32>
    %c0_299 = arith.constant 0 : index
    %c0_300 = arith.constant 0 : index
    %c0_301 = arith.constant 0 : index
    %c0_302 = arith.constant 0 : index
    %159 = vector.load %arg1[%c0_299, %c0_300, %c0_301, %c0_302] : memref<1x16x16x4xbf16, #tpu.memory_space<vmem>>, vector<1x16x16x4xbf16>
    %160 = vector.shape_cast %159 : vector<1x16x16x4xbf16> to vector<16x16x4xbf16>
    %161 = arith.extf %160 : vector<16x16x4xbf16> to vector<16x16x4xf32>
    %162 = arith.addf %161, %158 : vector<16x16x4xf32>
    %c0_303 = arith.constant 0 : index
    %c0_304 = arith.constant 0 : index
    %c0_305 = arith.constant 0 : index
    %c0_306 = arith.constant 0 : index
    %163 = vector.load %arg6[%c0_303, %c0_304, %c0_305, %c0_306] : memref<1x16x16x4xf32, #tpu.memory_space<vmem>>, vector<1x16x16x4xf32>
    %164 = vector.shape_cast %163 : vector<1x16x16x4xf32> to vector<16x16x4xf32>
    %165 = vector.shape_cast %162 : vector<16x16x4xf32> to vector<1x16x16x4xf32>
    tpu.vector_store %arg6[%c0_303, %c0_304, %c0_305, %c0_306], %165 {strides = array<i32>} : memref<1x16x16x4xf32, #tpu.memory_space<vmem>>, vector<1x16x16x4xf32>,
    return
  }
  func.func @transform_0(%arg0: i32) -> (i32, i32, i32, i32) {
    %c0_i32 = arith.constant 0 : i32
    %c0_i32_0 = arith.constant 0 : i32
    %c0_i32_1 = arith.constant 0 : i32
    %c0_i32_2 = arith.constant 0 : i32
    return %arg0, %c0_i32, %c0_i32_0, %c0_i32_1 : i32, i32, i32, i32
  }
  func.func @transform_1(%arg0: i32) -> (i32, i32) {
    %c0_i32 = arith.constant 0 : i32
    %c0_i32_0 = arith.constant 0 : i32
    %c0_i32_1 = arith.constant 0 : i32
    return %c0_i32, %c0_i32_0 : i32, i32
  }
  func.func @transform_2(%arg0: i32) -> (i32, i32) {
    %c0_i32 = arith.constant 0 : i32
    %c0_i32_0 = arith.constant 0 : i32
    %c0_i32_1 = arith.constant 0 : i32
    return %c0_i32, %c0_i32_0 : i32, i32
  }
  func.func @transform_3(%arg0: i32) -> (i32, i32) {
    %c0_i32 = arith.constant 0 : i32
    %c0_i32_0 = arith.constant 0 : i32
    %c0_i32_1 = arith.constant 0 : i32
    return %c0_i32, %c0_i32_0 : i32, i32
  }
  func.func @transform_4(%arg0: i32) -> (i32, i32) {
    %c0_i32 = arith.constant 0 : i32
    %c0_i32_0 = arith.constant 0 : i32
    %c0_i32_1 = arith.constant 0 : i32
    return %c0_i32, %c0_i32_0 : i32, i32
  }
  func.func @transform_5(%arg0: i32) -> (i32, i32, i32, i32) {
    %c0_i32 = arith.constant 0 : i32
    %c0_i32_0 = arith.constant 0 : i32
    %c0_i32_1 = arith.constant 0 : i32
    %c0_i32_2 = arith.constant 0 : i32
    return %arg0, %c0_i32, %c0_i32_0, %c0_i32_1 : i32, i32, i32, i32
  }
}

</mosaic_0001>

<llo_original>
// kernel: resnet_block.1
$region0: #{resnet_block.1}
  #allocation0 [shape = 'u32[]', space=smem, size = 0x4, offset = 0x4, fixed_abs, tag = 'smem constant byte address 0x4 - core index']
  #allocation1 [shape = 'u32[144,128]{1,0:T(1,128)}', space=vmem, size = 0x12000, scoped, tag = 'internal scratch']
  #allocation2 [shape = 'bf16[18,18,4]{2,1,0:T(8,128)(2,1)}', space=vmem, size = 0x1b000, scoped, tag = 'scratch operand']
  #allocation3 [shape = 'bf16[8,16,36]{2,1,0:T(16,128)(2,1)}', space=vmem, size = 0x8000, scoped, tag = 'scratch operand']
  #allocation4 [shape = 'f32[16,16,4]{2,1,0:T(8,128)}', space=vmem, size = 0x20000, scoped, tag = 'scratch operand']
  %s0 = inlined_call_operand.vmem [shape: bf16[2,16,16,4], index: 0, kind: input, shape index: {}]
  %s1 = inlined_call_operand.vmem [shape: bf16[36,4], index: 1, kind: input, shape index: {}]
  %s2 = inlined_call_operand.vmem [shape: f32[1,4], index: 2, kind: input, shape index: {}]
  %s3 = inlined_call_operand.vmem [shape: bf16[36,4], index: 3, kind: input, shape index: {}]
  %s4 = inlined_call_operand.vmem [shape: f32[1,4], index: 4, kind: input, shape index: {}]
  %s5 = inlined_call_operand.vmem [shape: f32[2,16,16,4], index: 5, kind: output, shape index: {}]
  %s6 = sld [smem:[#allocation0]]
  $region53: #{resnet_block.1} parent=0
    _
  %s8 = ssub.s32 1, %s6
  %s9 = scalar_select 0, %s8, %s6
  loop: start=0, step=1, limit=4
  $region2: #{resnet_block.1} parent=0 // loop_pre_header
    _
  $region3: #{resnet_block.1} parent=0 // loop_header
    %s11 = sphi 0, %s15
    %p12 = scmp.ge.s32.totalorder %s11, 4
    %s21 = sphi 0, %s23
    %s24 = sphi 0, %s21
    %s25 = sphi 0, %s24
    %s41 = sphi 0, %s25
    %s45 = sphi 0, %s45
    %s47 = sphi 0, %s45
    %s48 = sphi 0, %s47
    %s62 = sphi 0, %s48
    %s66 = sphi 0, %s66
    %s68 = sphi 0, %s66
    %s69 = sphi 0, %s68
    %s83 = sphi 0, %s69
    %s87 = sphi 0, %s87
    %s89 = sphi 0, %s87
    %s90 = sphi 0, %s89
    %s104 = sphi 0, %s90
    %s108 = sphi 0, %s108
    %s110 = sphi 0, %s108
    %s111 = sphi 0, %s110
    %s125 = sphi 0, %s111
    %s131 = sphi 0, %s133
    %s134 = sphi 0, %s131
    %s135 = sphi 0, %s134
    %s151 = sphi 0, %s135
  $region4: #{resnet_block.1} parent=0 // loop_header_branch
    %14 = sbr.rel (%p12) target = $region8
  $region5: #{resnet_block.1} parent=0 // loop_body
    %s16 = ssub.s32 %s11, 1
    %s17 = ssub.s32 %s11, 2
    %s18 = sadd.s32 %s11, 1
    %s19 = ssub.s32 %s11, %s18
    %p20 = scmp.eq.s32.totalorder %s19, 0
    %s22 = sadd.s32 %s21, 1
    %s23 = scalar_select %p20, %s21, %s22
    %p26 = pneg %p20
    %p27 = scmp.eq.s32.totalorder %s11, 1
    %p28 = por %p26, %p27
    %p29 = scmp.ne.s32.totalorder %s21, %s24
    %p30 = scmp.eq.s32.totalorder %s11, 0
    %p31 = por %p29, %p30
    %p32 = scmp.ne.s32.totalorder %s21, %s24
    %p33 = scmp.eq.s32.totalorder %s16, 1
    %p34 = por %p32, %p33
    %p35 = scmp.ne.s32.totalorder %s24, %s25
    %p36 = scmp.eq.s32.totalorder %s16, 0
    %p37 = por %p35, %p36
    %p38 = scmp.ne.s32.totalorder %s24, %s25
    %p39 = scmp.eq.s32.totalorder %s17, 1
    %p40 = por %p38, %p39
    %p42 = scmp.ne.s32.totalorder %s25, %s41
    %p43 = scmp.eq.s32.totalorder %s17, 0
    %p44 = por %p42, %p43
    %s46 = sadd.s32 %s45, 1
    %p49 = scmp.eq.s32.totalorder %s11, 1
    %p50 = scmp.ne.s32.totalorder %s45, %s47
    %p51 = scmp.eq.s32.totalorder %s11, 0
    %p52 = por %p50, %p51
    %p53 = scmp.ne.s32.totalorder %s45, %s47
    %p54 = scmp.eq.s32.totalorder %s16, 1
    %p55 = por %p53, %p54
    %p56 = scmp.ne.s32.totalorder %s47, %s48
    %p57 = scmp.eq.s32.totalorder %s16, 0
    %p58 = por %p56, %p57
    %p59 = scmp.ne.s32.totalorder %s47, %s48
    %p60 = scmp.eq.s32.totalorder %s17, 1
    %p61 = por %p59, %p60
    %p63 = scmp.ne.s32.totalorder %s48, %s62
    %p64 = scmp.eq.s32.totalorder %s17, 0
    %p65 = por %p63, %p64
    %s67 = sadd.s32 %s66, 1
    %p70 = scmp.eq.s32.totalorder %s11, 1
    %p71 = scmp.ne.s32.totalorder %s66, %s68
    %p72 = scmp.eq.s32.totalorder %s11, 0
    %p73 = por %p71, %p72
    %p74 = scmp.ne.s32.totalorder %s66, %s68
    %p75 = scmp.eq.s32.totalorder %s16, 1
    %p76 = por %p74, %p75
    %p77 = scmp.ne.s32.totalorder %s68, %s69
    %p78 = scmp.eq.s32.totalorder %s16, 0
    %p79 = por %p77, %p78
    %p80 = scmp.ne.s32.totalorder %s68, %s69
    %p81 = scmp.eq.s32.totalorder %s17, 1
    %p82 = por %p80, %p81
    %p84 = scmp.ne.s32.totalorder %s69, %s83
    %p85 = scmp.eq.s32.totalorder %s17, 0
    %p86 = por %p84, %p85
    %s88 = sadd.s32 %s87, 1
    %p91 = scmp.eq.s32.totalorder %s11, 1
    %p92 = scmp.ne.s32.totalorder %s87, %s89
    %p93 = scmp.eq.s32.totalorder %s11, 0
    %p94 = por %p92, %p93
    %p95 = scmp.ne.s32.totalorder %s87, %s89
    %p96 = scmp.eq.s32.totalorder %s16, 1
    %p97 = por %p95, %p96
    %p98 = scmp.ne.s32.totalorder %s89, %s90
    %p99 = scmp.eq.s32.totalorder %s16, 0
    %p100 = por %p98, %p99
    %p101 = scmp.ne.s32.totalorder %s89, %s90
    %p102 = scmp.eq.s32.totalorder %s17, 1
    %p103 = por %p101, %p102
    %p105 = scmp.ne.s32.totalorder %s90, %s104
    %p106 = scmp.eq.s32.totalorder %s17, 0
    %p107 = por %p105, %p106
    %s109 = sadd.s32 %s108, 1
    %p112 = scmp.eq.s32.totalorder %s11, 1
    %p113 = scmp.ne.s32.totalorder %s108, %s110
    %p114 = scmp.eq.s32.totalorder %s11, 0
    %p115 = por %p113, %p114
    %p116 = scmp.ne.s32.totalorder %s108, %s110
    %p117 = scmp.eq.s32.totalorder %s16, 1
    %p118 = por %p116, %p117
    %p119 = scmp.ne.s32.totalorder %s110, %s111
    %p120 = scmp.eq.s32.totalorder %s16, 0
    %p121 = por %p119, %p120
    %p122 = scmp.ne.s32.totalorder %s110, %s111
    %p123 = scmp.eq.s32.totalorder %s17, 1
    %p124 = por %p122, %p123
    %p126 = scmp.ne.s32.totalorder %s111, %s125
    %p127 = scmp.eq.s32.totalorder %s17, 0
    %p128 = por %p126, %p127
    %s129 = ssub.s32 %s11, %s18
    %p130 = scmp.eq.s32.totalorder %s129, 0
    %s132 = sadd.s32 %s131, 1
    %s133 = scalar_select %p130, %s131, %s132
    %p136 = pneg %p130
    %p137 = scmp.eq.s32.totalorder %s11, 1
    %p138 = por %p136, %p137
    %p139 = scmp.ne.s32.totalorder %s131, %s134
    %p140 = scmp.eq.s32.totalorder %s11, 0
    %p141 = por %p139, %p140
    %p142 = scmp.ne.s32.totalorder %s131, %s134
    %p143 = scmp.eq.s32.totalorder %s16, 1
    %p144 = por %p142, %p143
    %p145 = scmp.ne.s32.totalorder %s134, %s135
    %p146 = scmp.eq.s32.totalorder %s16, 0
    %p147 = por %p145, %p146
    %p148 = scmp.ne.s32.totalorder %s134, %s135
    %p149 = scmp.eq.s32.totalorder %s17, 1
    %p150 = por %p148, %p149
    %p152 = scmp.ne.s32.totalorder %s135, %s151
    %p153 = scmp.eq.s32.totalorder %s17, 0
    %p154 = por %p152, %p153
    %p155 = scmp.le.s32.totalorder 1, %s11
    %p156 = scmp.lt.s32.totalorder %s11, 3
    %p157 = pnand %p155, %p156
    %p158 = pneg %p157
    // Predicated region
    $region9: #{resnet_block.1} parent=5 // pred_check
      _
    $region10: #{resnet_block.1} parent=5 // pred_check_branch
      %160 = sbr.rel (%p157) target = $region12
    $region11: #{resnet_block.1} parent=5 // pred_region
      %s161 = ssub.s32 %s11, 1
      // Predicated region
      $region13: #{resnet_block.1} parent=11 // pred_check
        %p162 = pneg %p58
      $region14: #{resnet_block.1} parent=11 // pred_check_branch
        %164 = sbr.rel (%p162) target = $region16
      $region15: #{resnet_block.1} parent=11 // pred_region
        _
      $region16: #{resnet_block.1} parent=11 // pred_fallthru
        _
      // Predicated region
      $region17: #{resnet_block.1} parent=11 // pred_check
        %p165 = pneg %p79
      $region18: #{resnet_block.1} parent=11 // pred_check_branch
        %167 = sbr.rel (%p165) target = $region20
      $region19: #{resnet_block.1} parent=11 // pred_region
        _
      $region20: #{resnet_block.1} parent=11 // pred_fallthru
        _
      // Predicated region
      $region21: #{resnet_block.1} parent=11 // pred_check
        %p168 = pneg %p100
      $region22: #{resnet_block.1} parent=11 // pred_check_branch
        %170 = sbr.rel (%p168) target = $region24
      $region23: #{resnet_block.1} parent=11 // pred_region
        _
      $region24: #{resnet_block.1} parent=11 // pred_fallthru
        _
      // Predicated region
      $region25: #{resnet_block.1} parent=11 // pred_check
        %p171 = pneg %p121
      $region26: #{resnet_block.1} parent=11 // pred_check_branch
        %173 = sbr.rel (%p171) target = $region28
      $region27: #{resnet_block.1} parent=11 // pred_region
        _
      $region28: #{resnet_block.1} parent=11 // pred_fallthru
        _
    $region12: #{resnet_block.1} parent=5 // pred_fallthru
      _
    %p174 = scmp.lt.s32.totalorder %s11, 2
    // Predicated region
    $region29: #{resnet_block.1} parent=5 // pred_check
      %p175 = pneg %p174
    $region30: #{resnet_block.1} parent=5 // pred_check_branch
      %177 = sbr.rel (%p175) target = $region32
    $region31: #{resnet_block.1} parent=5 // pred_region
      // Predicated region
      $region33: #{resnet_block.1} parent=31 // pred_check
        %p178 = pneg %p31
      $region34: #{resnet_block.1} parent=31 // pred_check_branch
        %180 = sbr.rel (%p178) target = $region36
      $region35: #{resnet_block.1} parent=31 // pred_region
        %p181 = scmp.lt.s32.totalorder %s11, 1
        %s182 = scalar_select %p181, %s11, 1
        %s183 = smul.addr %s182, 32
        %s184 = smul.addr %s183, 4
        %s185 = scalar_lea.vmem %s0, %s184
      $region36: #{resnet_block.1} parent=31 // pred_fallthru
        _
    $region32: #{resnet_block.1} parent=5 // pred_fallthru
      _
    %p186 = scmp.le.s32.totalorder 1, %s11
    %p187 = scmp.lt.s32.totalorder %s11, 3
    %p188 = pnand %p186, %p187
    %p189 = pneg %p188
    // Predicated region
    $region37: #{resnet_block.1} parent=5 // pred_check
      _
    $region38: #{resnet_block.1} parent=5 // pred_check_branch
      %191 = sbr.rel (%p188) target = $region40
    $region39: #{resnet_block.1} parent=5 // pred_region
      %s192 = ssub.s32 %s11, 1
      %p193 = scmp.lt.s32.totalorder %s16, 1
      %s194 = scalar_select %p193, %s16, 1
      %s195 = smul.addr %s194, 32
      %s196 = smul.addr %s195, 4
      %s197 = scalar_lea.vmem %s0, %s196
      %p198 = pneg %p37
      %p199 = pneg %p34
      %p200 = pneg %p58
      %p201 = pneg %p55
      %p202 = pneg %p79
      %p203 = pneg %p76
      %p204 = pneg %p100
      %p205 = pneg %p97
      %p206 = pneg %p121
      %p207 = pneg %p118
      %p208 = pneg %p147
      %p209 = pneg %p144
      %p210 = scmp.lt.s32.totalorder %s16, 1
      %s211 = scalar_select %p210, %s16, 1
      %s212 = smul.addr %s211, 32
      %s213 = smul.addr %s212, 8
      %s214 = scalar_lea.vmem %s5, %s213
      %p215 = scmp.lt.s32.totalorder %s16, 1
      %s216 = scalar_select %p215, %s16, 1
      %s217 = smul.addr %s216, 32
      %s218 = smul.addr %s217, 4
      %s219 = scalar_lea.vmem %s0, %s218
      %p220 = scmp.lt.s32.totalorder %s16, 1
      %s221 = scalar_select %p220, %s16, 1
      %s222 = smul.addr %s221, 32
      %s223 = smul.addr %s222, 8
      %s224 = scalar_lea.vmem %s5, %s223
      %v226 = vld [vmem:[%s219] sm:$0xf]
      %v227 = vld [vmem:[%s219 + $0x4] sm:$0xf]
      %v228 = vld [vmem:[%s219 + $0x8] sm:$0xf]
      %v229 = vld [vmem:[%s219 + $0xc] sm:$0xf]
      %v230 = vld [vmem:[%s219 + $0x10] sm:$0xf]
      %v231 = vld [vmem:[%s219 + $0x14] sm:$0xf]
      %v232 = vld [vmem:[%s219 + $0x18] sm:$0xf]
      %v233 = vld [vmem:[%s219 + $0x1c] sm:$0xf]
      %v234 = vld [vmem:[%s219 + $0x20] sm:$0xf]
      %v235 = vld [vmem:[%s219 + $0x24] sm:$0xf]
      %v236 = vld [vmem:[%s219 + $0x28] sm:$0xf]
      %v237 = vld [vmem:[%s219 + $0x2c] sm:$0xf]
      %v238 = vld [vmem:[%s219 + $0x30] sm:$0xf]
      %v239 = vld [vmem:[%s219 + $0x34] sm:$0xf]
      %v240 = vld [vmem:[%s219 + $0x38] sm:$0xf]
      %v241 = vld [vmem:[%s219 + $0x3c] sm:$0xf]
      %v242 = vld [vmem:[%s219 + $0x40] sm:$0xf]
      %v243 = vld [vmem:[%s219 + $0x44] sm:$0xf]
      %v244 = vld [vmem:[%s219 + $0x48] sm:$0xf]
      %v245 = vld [vmem:[%s219 + $0x4c] sm:$0xf]
      %v246 = vld [vmem:[%s219 + $0x50] sm:$0xf]
      %v247 = vld [vmem:[%s219 + $0x54] sm:$0xf]
      %v248 = vld [vmem:[%s219 + $0x58] sm:$0xf]
      %v249 = vld [vmem:[%s219 + $0x5c] sm:$0xf]
      %v250 = vld [vmem:[%s219 + $0x60] sm:$0xf]
      %v251 = vld [vmem:[%s219 + $0x64] sm:$0xf]
      %v252 = vld [vmem:[%s219 + $0x68] sm:$0xf]
      %v253 = vld [vmem:[%s219 + $0x6c] sm:$0xf]
      %v254 = vld [vmem:[%s219 + $0x70] sm:$0xf]
      %v255 = vld [vmem:[%s219 + $0x74] sm:$0xf]
      %v256 = vld [vmem:[%s219 + $0x78] sm:$0xf]
      %v257 = vld [vmem:[%s219 + $0x7c] sm:$0xf]
      %vm258 = vsmask.f32 256
      %vm259 = vsmask.f32 4368
      %vm260 = vmor %vm258, %vm259
      %v262 = vshrl.u32 %v226, 16
      %v264 = vrot.slane %v262, 7
      %v265 = vshll.u32 %v226, 16
      %v267 = vor.u32 %v264, %v265
      %v268 = vrot.slane %v264, 4
      %v270 = vshrl.u32 %v227, 16
      %v272 = vrot.slane %v270, 7
      %v273 = vshll.u32 %v227, 16
      %v275 = vor.u32 %v272, %v273
      %v276 = vsel %vm260, %v268, %v275
      %v277 = vrot.slane %v272, 4
      %v279 = vshrl.u32 %v228, 16
      %v281 = vrot.slane %v279, 7
      %v282 = vshll.u32 %v228, 16
      %v284 = vor.u32 %v281, %v282
      %v285 = vrot.slane %v281, 4
      %v287 = vshrl.u32 %v229, 16
      %v289 = vrot.slane %v287, 7
      %v290 = vshll.u32 %v229, 16
      %v292 = vor.u32 %v289, %v290
      %v293 = vsel %vm260, %v285, %v292
      %v294 = vrot.slane %v289, 4
      %v296 = vshrl.u32 %v230, 16
      %v298 = vrot.slane %v296, 7
      %v299 = vshll.u32 %v230, 16
      %v301 = vor.u32 %v298, %v299
      %v302 = vrot.slane %v298, 4
      %v304 = vshrl.u32 %v231, 16
      %v306 = vrot.slane %v304, 7
      %v307 = vshll.u32 %v231, 16
      %v309 = vor.u32 %v306, %v307
      %v310 = vsel %vm260, %v302, %v309
      %v311 = vrot.slane %v306, 4
      %v313 = vshrl.u32 %v232, 16
      %v315 = vrot.slane %v313, 7
      %v316 = vshll.u32 %v232, 16
      %v318 = vor.u32 %v315, %v316
      %v319 = vrot.slane %v315, 4
      %v321 = vshrl.u32 %v233, 16
      %v323 = vrot.slane %v321, 7
      %v324 = vshll.u32 %v233, 16
      %v326 = vor.u32 %v323, %v324
      %v327 = vsel %vm260, %v319, %v326
      %v328 = vrot.slane %v323, 4
      %v330 = vshrl.u32 %v234, 16
      %v332 = vrot.slane %v330, 7
      %v333 = vshll.u32 %v234, 16
      %v335 = vor.u32 %v332, %v333
      %v336 = vrot.slane %v332, 4
      %v338 = vshrl.u32 %v235, 16
      %v340 = vrot.slane %v338, 7
      %v341 = vshll.u32 %v235, 16
      %v343 = vor.u32 %v340, %v341
      %v344 = vsel %vm260, %v336, %v343
      %v345 = vrot.slane %v340, 4
      %v347 = vshrl.u32 %v236, 16
      %v349 = vrot.slane %v347, 7
      %v350 = vshll.u32 %v236, 16
      %v352 = vor.u32 %v349, %v350
      %v353 = vrot.slane %v349, 4
      %v355 = vshrl.u32 %v237, 16
      %v357 = vrot.slane %v355, 7
      %v358 = vshll.u32 %v237, 16
      %v360 = vor.u32 %v357, %v358
      %v361 = vsel %vm260, %v353, %v360
      %v362 = vrot.slane %v357, 4
      %v364 = vshrl.u32 %v238, 16
      %v366 = vrot.slane %v364, 7
      %v367 = vshll.u32 %v238, 16
      %v369 = vor.u32 %v366, %v367
      %v370 = vrot.slane %v366, 4
      %v372 = vshrl.u32 %v239, 16
      %v374 = vrot.slane %v372, 7
      %v375 = vshll.u32 %v239, 16
      %v377 = vor.u32 %v374, %v375
      %v378 = vsel %vm260, %v370, %v377
      %v379 = vrot.slane %v374, 4
      %v381 = vshrl.u32 %v240, 16
      %v383 = vrot.slane %v381, 7
      %v384 = vshll.u32 %v240, 16
      %v386 = vor.u32 %v383, %v384
      %v387 = vrot.slane %v383, 4
      %v389 = vshrl.u32 %v241, 16
      %v391 = vrot.slane %v389, 7
      %v392 = vshll.u32 %v241, 16
      %v394 = vor.u32 %v391, %v392
      %v395 = vsel %vm260, %v387, %v394
      %v396 = vrot.slane %v391, 4
      %v398 = vshrl.u32 %v242, 16
      %v400 = vrot.slane %v398, 7
      %v401 = vshll.u32 %v242, 16
      %v403 = vor.u32 %v400, %v401
      %v404 = vrot.slane %v400, 4
      %v406 = vshrl.u32 %v243, 16
      %v408 = vrot.slane %v406, 7
      %v409 = vshll.u32 %v243, 16
      %v411 = vor.u32 %v408, %v409
      %v412 = vsel %vm260, %v404, %v411
      %v413 = vrot.slane %v408, 4
      %v415 = vshrl.u32 %v244, 16
      %v417 = vrot.slane %v415, 7
      %v418 = vshll.u32 %v244, 16
      %v420 = vor.u32 %v417, %v418
      %v421 = vrot.slane %v417, 4
      %v423 = vshrl.u32 %v245, 16
      %v425 = vrot.slane %v423, 7
      %v426 = vshll.u32 %v245, 16
      %v428 = vor.u32 %v425, %v426
      %v429 = vsel %vm260, %v421, %v428
      %v430 = vrot.slane %v425, 4
      %v432 = vshrl.u32 %v246, 16
      %v434 = vrot.slane %v432, 7
      %v435 = vshll.u32 %v246, 16
      %v437 = vor.u32 %v434, %v435
      %v438 = vrot.slane %v434, 4
      %v440 = vshrl.u32 %v247, 16
      %v442 = vrot.slane %v440, 7
      %v443 = vshll.u32 %v247, 16
      %v445 = vor.u32 %v442, %v443
      %v446 = vsel %vm260, %v438, %v445
      %v447 = vrot.slane %v442, 4
      %v449 = vshrl.u32 %v248, 16
      %v451 = vrot.slane %v449, 7
      %v452 = vshll.u32 %v248, 16
      %v454 = vor.u32 %v451, %v452
      %v455 = vrot.slane %v451, 4
      %v457 = vshrl.u32 %v249, 16
      %v459 = vrot.slane %v457, 7
      %v460 = vshll.u32 %v249, 16
      %v462 = vor.u32 %v459, %v460
      %v463 = vsel %vm260, %v455, %v462
      %v464 = vrot.slane %v459, 4
      %v466 = vshrl.u32 %v250, 16
      %v468 = vrot.slane %v466, 7
      %v469 = vshll.u32 %v250, 16
      %v471 = vor.u32 %v468, %v469
      %v472 = vrot.slane %v468, 4
      %v474 = vshrl.u32 %v251, 16
      %v476 = vrot.slane %v474, 7
      %v477 = vshll.u32 %v251, 16
      %v479 = vor.u32 %v476, %v477
      %v480 = vsel %vm260, %v472, %v479
      %v481 = vrot.slane %v476, 4
      %v483 = vshrl.u32 %v252, 16
      %v485 = vrot.slane %v483, 7
      %v486 = vshll.u32 %v252, 16
      %v488 = vor.u32 %v485, %v486
      %v489 = vrot.slane %v485, 4
      %v491 = vshrl.u32 %v253, 16
      %v493 = vrot.slane %v491, 7
      %v494 = vshll.u32 %v253, 16
      %v496 = vor.u32 %v493, %v494
      %v497 = vsel %vm260, %v489, %v496
      %v498 = vrot.slane %v493, 4
      %v500 = vshrl.u32 %v254, 16
      %v502 = vrot.slane %v500, 7
      %v503 = vshll.u32 %v254, 16
      %v505 = vor.u32 %v502, %v503
      %v506 = vrot.slane %v502, 4
      %v508 = vshrl.u32 %v255, 16
      %v510 = vrot.slane %v508, 7
      %v511 = vshll.u32 %v255, 16
      %v513 = vor.u32 %v510, %v511
      %v514 = vsel %vm260, %v506, %v513
      %v515 = vrot.slane %v510, 4
      %v517 = vshrl.u32 %v256, 16
      %v519 = vrot.slane %v517, 7
      %v520 = vshll.u32 %v256, 16
      %v522 = vor.u32 %v519, %v520
      %v523 = vrot.slane %v519, 4
      %v525 = vshrl.u32 %v257, 16
      %v527 = vrot.slane %v525, 7
      %v528 = vshll.u32 %v257, 16
      %v530 = vor.u32 %v527, %v528
      %v531 = vsel %vm260, %v523, %v530
      %v532 = vrot.slane %v527, 4
      %s581 = scalar_lea.vmem [#allocation2], 12
      %vm582 = vcmask 27648
      %vm583 = vsmask.f32 7938
      %vm584 = vmand %vm582, %vm583
      %v585 = vld [vmem:[%s581] sm:$0xf]
      %v586 = vsel %vm584, %v267, %v585
      %587 = vst [vmem:[%s581] sm:$0xf] %v586
      %vm588 = vcmask 27648
      %589 = vst.msk [vmem:[%s581 + $0x4] sm:$0xf] %vm588, %v276
      %vm590 = vcmask 24576
      %vm591 = vmand %vm590, %vm258
      %v592 = vld [vmem:[%s581 + $0x8] sm:$0x1]
      %v593 = vsel %vm591, %v277, %v592
      %594 = vst [vmem:[%s581 + $0x8] sm:$0x1] %v593
      %v595 = vld [vmem:[%s581 + $0xc] sm:$0xf]
      %v596 = vsel %vm584, %v284, %v595
      %597 = vst [vmem:[%s581 + $0xc] sm:$0xf] %v596
      %598 = vst.msk [vmem:[%s581 + $0x10] sm:$0xf] %vm588, %v293
      %v599 = vld [vmem:[%s581 + $0x14] sm:$0x1]
      %v600 = vsel %vm591, %v294, %v599
      %601 = vst [vmem:[%s581 + $0x14] sm:$0x1] %v600
      %v602 = vld [vmem:[%s581 + $0x18] sm:$0xf]
      %v603 = vsel %vm584, %v301, %v602
      %604 = vst [vmem:[%s581 + $0x18] sm:$0xf] %v603
      %605 = vst.msk [vmem:[%s581 + $0x1c] sm:$0xf] %vm588, %v310
      %v606 = vld [vmem:[%s581 + $0x20] sm:$0x1]
      %v607 = vsel %vm591, %v311, %v606
      %608 = vst [vmem:[%s581 + $0x20] sm:$0x1] %v607
      %v609 = vld [vmem:[%s581 + $0x24] sm:$0xf]
      %v610 = vsel %vm584, %v318, %v609
      %611 = vst [vmem:[%s581 + $0x24] sm:$0xf] %v610
      %612 = vst.msk [vmem:[%s581 + $0x28] sm:$0xf] %vm588, %v327
      %v613 = vld [vmem:[%s581 + $0x2c] sm:$0x1]
      %v614 = vsel %vm591, %v328, %v613
      %615 = vst [vmem:[%s581 + $0x2c] sm:$0x1] %v614
      %v616 = vld [vmem:[%s581 + $0x30] sm:$0xf]
      %v617 = vsel %vm584, %v335, %v616
      %618 = vst [vmem:[%s581 + $0x30] sm:$0xf] %v617
      %619 = vst.msk [vmem:[%s581 + $0x34] sm:$0xf] %vm588, %v344
      %v620 = vld [vmem:[%s581 + $0x38] sm:$0x1]
      %v621 = vsel %vm591, %v345, %v620
      %622 = vst [vmem:[%s581 + $0x38] sm:$0x1] %v621
      %v623 = vld [vmem:[%s581 + $0x3c] sm:$0xf]
      %v624 = vsel %vm584, %v352, %v623
      %625 = vst [vmem:[%s581 + $0x3c] sm:$0xf] %v624
      %626 = vst.msk [vmem:[%s581 + $0x40] sm:$0xf] %vm588, %v361
      %v627 = vld [vmem:[%s581 + $0x44] sm:$0x1]
      %v628 = vsel %vm591, %v362, %v627
      %629 = vst [vmem:[%s581 + $0x44] sm:$0x1] %v628
      %v630 = vld [vmem:[%s581 + $0x48] sm:$0xf]
      %v631 = vsel %vm584, %v369, %v630
      %632 = vst [vmem:[%s581 + $0x48] sm:$0xf] %v631
      %633 = vst.msk [vmem:[%s581 + $0x4c] sm:$0xf] %vm588, %v378
      %v634 = vld [vmem:[%s581 + $0x50] sm:$0x1]
      %v635 = vsel %vm591, %v379, %v634
      %636 = vst [vmem:[%s581 + $0x50] sm:$0x1] %v635
      %v637 = vld [vmem:[%s581 + $0x54] sm:$0xf]
      %v638 = vsel %vm584, %v386, %v637
      %639 = vst [vmem:[%s581 + $0x54] sm:$0xf] %v638
      %640 = vst.msk [vmem:[%s581 + $0x58] sm:$0xf] %vm588, %v395
      %v641 = vld [vmem:[%s581 + $0x5c] sm:$0x1]
      %v642 = vsel %vm591, %v396, %v641
      %643 = vst [vmem:[%s581 + $0x5c] sm:$0x1] %v642
      %v644 = vld [vmem:[%s581 + $0x60] sm:$0xf]
      %v645 = vsel %vm584, %v403, %v644
      %646 = vst [vmem:[%s581 + $0x60] sm:$0xf] %v645
      %647 = vst.msk [vmem:[%s581 + $0x64] sm:$0xf] %vm588, %v412
      %v648 = vld [vmem:[%s581 + $0x68] sm:$0x1]
      %v649 = vsel %vm591, %v413, %v648
      %650 = vst [vmem:[%s581 + $0x68] sm:$0x1] %v649
      %v651 = vld [vmem:[%s581 + $0x6c] sm:$0xf]
      %v652 = vsel %vm584, %v420, %v651
      %653 = vst [vmem:[%s581 + $0x6c] sm:$0xf] %v652
      %654 = vst.msk [vmem:[%s581 + $0x70] sm:$0xf] %vm588, %v429
      %v655 = vld [vmem:[%s581 + $0x74] sm:$0x1]
      %v656 = vsel %vm591, %v430, %v655
      %657 = vst [vmem:[%s581 + $0x74] sm:$0x1] %v656
      %v658 = vld [vmem:[%s581 + $0x78] sm:$0xf]
      %v659 = vsel %vm584, %v437, %v658
      %660 = vst [vmem:[%s581 + $0x78] sm:$0xf] %v659
      %661 = vst.msk [vmem:[%s581 + $0x7c] sm:$0xf] %vm588, %v446
      %v662 = vld [vmem:[%s581 + $0x80] sm:$0x1]
      %v663 = vsel %vm591, %v447, %v662
      %664 = vst [vmem:[%s581 + $0x80] sm:$0x1] %v663
      %v665 = vld [vmem:[%s581 + $0x84] sm:$0xf]
      %v666 = vsel %vm584, %v454, %v665
      %667 = vst [vmem:[%s581 + $0x84] sm:$0xf] %v666
      %668 = vst.msk [vmem:[%s581 + $0x88] sm:$0xf] %vm588, %v463
      %v669 = vld [vmem:[%s581 + $0x8c] sm:$0x1]
      %v670 = vsel %vm591, %v464, %v669
      %671 = vst [vmem:[%s581 + $0x8c] sm:$0x1] %v670
      %v672 = vld [vmem:[%s581 + $0x90] sm:$0xf]
      %v673 = vsel %vm584, %v471, %v672
      %674 = vst [vmem:[%s581 + $0x90] sm:$0xf] %v673
      %675 = vst.msk [vmem:[%s581 + $0x94] sm:$0xf] %vm588, %v480
      %v676 = vld [vmem:[%s581 + $0x98] sm:$0x1]
      %v677 = vsel %vm591, %v481, %v676
      %678 = vst [vmem:[%s581 + $0x98] sm:$0x1] %v677
      %v679 = vld [vmem:[%s581 + $0x9c] sm:$0xf]
      %v680 = vsel %vm584, %v488, %v679
      %681 = vst [vmem:[%s581 + $0x9c] sm:$0xf] %v680
      %682 = vst.msk [vmem:[%s581 + $0xa0] sm:$0xf] %vm588, %v497
      %v683 = vld [vmem:[%s581 + $0xa4] sm:$0x1]
      %v684 = vsel %vm591, %v498, %v683
      %685 = vst [vmem:[%s581 + $0xa4] sm:$0x1] %v684
      %v686 = vld [vmem:[%s581 + $0xa8] sm:$0xf]
      %v687 = vsel %vm584, %v505, %v686
      %688 = vst [vmem:[%s581 + $0xa8] sm:$0xf] %v687
      %689 = vst.msk [vmem:[%s581 + $0xac] sm:$0xf] %vm588, %v514
      %v690 = vld [vmem:[%s581 + $0xb0] sm:$0x1]
      %v691 = vsel %vm591, %v515, %v690
      %692 = vst [vmem:[%s581 + $0xb0] sm:$0x1] %v691
      %v693 = vld [vmem:[%s581 + $0xb4] sm:$0xf]
      %v694 = vsel %vm584, %v522, %v693
      %695 = vst [vmem:[%s581 + $0xb4] sm:$0xf] %v694
      %696 = vst.msk [vmem:[%s581 + $0xb8] sm:$0xf] %vm588, %v531
      %v697 = vld [vmem:[%s581 + $0xbc] sm:$0x1]
      %v698 = vsel %vm591, %v532, %v697
      %699 = vst [vmem:[%s581 + $0xbc] sm:$0x1] %v698
      %v700 = vrot.slane %v262, 4
      %v701 = vrot.slane %v700, 4
      %v702 = vrot.slane %v279, 4
      %v703 = vrot.slane %v702, 4
      %v704 = vrot.slane %v296, 4
      %v705 = vrot.slane %v704, 4
      %v706 = vrot.slane %v313, 4
      %v707 = vrot.slane %v706, 4
      %v708 = vrot.slane %v330, 4
      %v709 = vrot.slane %v708, 4
      %v710 = vrot.slane %v347, 4
      %v711 = vrot.slane %v710, 4
      %v712 = vrot.slane %v364, 4
      %v713 = vrot.slane %v712, 4
      %v714 = vrot.slane %v381, 4
      %v715 = vrot.slane %v714, 4
      %v716 = vrot.slane %v398, 4
      %v717 = vrot.slane %v716, 4
      %v718 = vrot.slane %v415, 4
      %v719 = vrot.slane %v718, 4
      %v720 = vrot.slane %v432, 4
      %v721 = vrot.slane %v720, 4
      %v722 = vrot.slane %v449, 4
      %v723 = vrot.slane %v722, 4
      %v724 = vrot.slane %v466, 4
      %v725 = vrot.slane %v724, 4
      %v726 = vrot.slane %v483, 4
      %v727 = vrot.slane %v726, 4
      %v728 = vrot.slane %v500, 4
      %v729 = vrot.slane %v728, 4
      %v730 = vrot.slane %v517, 4
      %v731 = vrot.slane %v730, 4
      %v748 = vld [vmem:[%s581] sm:$0x1]
      %v749 = vsel %vm591, %v701, %v748
      %750 = vst [vmem:[%s581] sm:$0x1] %v749
      %v751 = vld [vmem:[%s581 + $0xc] sm:$0x1]
      %v752 = vsel %vm591, %v703, %v751
      %753 = vst [vmem:[%s581 + $0xc] sm:$0x1] %v752
      %v754 = vld [vmem:[%s581 + $0x18] sm:$0x1]
      %v755 = vsel %vm591, %v705, %v754
      %756 = vst [vmem:[%s581 + $0x18] sm:$0x1] %v755
      %v757 = vld [vmem:[%s581 + $0x24] sm:$0x1]
      %v758 = vsel %vm591, %v707, %v757
      %759 = vst [vmem:[%s581 + $0x24] sm:$0x1] %v758
      %v760 = vld [vmem:[%s581 + $0x30] sm:$0x1]
      %v761 = vsel %vm591, %v709, %v760
      %762 = vst [vmem:[%s581 + $0x30] sm:$0x1] %v761
      %v763 = vld [vmem:[%s581 + $0x3c] sm:$0x1]
      %v764 = vsel %vm591, %v711, %v763
      %765 = vst [vmem:[%s581 + $0x3c] sm:$0x1] %v764
      %v766 = vld [vmem:[%s581 + $0x48] sm:$0x1]
      %v767 = vsel %vm591, %v713, %v766
      %768 = vst [vmem:[%s581 + $0x48] sm:$0x1] %v767
      %v769 = vld [vmem:[%s581 + $0x54] sm:$0x1]
      %v770 = vsel %vm591, %v715, %v769
      %771 = vst [vmem:[%s581 + $0x54] sm:$0x1] %v770
      %v772 = vld [vmem:[%s581 + $0x60] sm:$0x1]
      %v773 = vsel %vm591, %v717, %v772
      %774 = vst [vmem:[%s581 + $0x60] sm:$0x1] %v773
      %v775 = vld [vmem:[%s581 + $0x6c] sm:$0x1]
      %v776 = vsel %vm591, %v719, %v775
      %777 = vst [vmem:[%s581 + $0x6c] sm:$0x1] %v776
      %v778 = vld [vmem:[%s581 + $0x78] sm:$0x1]
      %v779 = vsel %vm591, %v721, %v778
      %780 = vst [vmem:[%s581 + $0x78] sm:$0x1] %v779
      %v781 = vld [vmem:[%s581 + $0x84] sm:$0x1]
      %v782 = vsel %vm591, %v723, %v781
      %783 = vst [vmem:[%s581 + $0x84] sm:$0x1] %v782
      %v784 = vld [vmem:[%s581 + $0x90] sm:$0x1]
      %v785 = vsel %vm591, %v725, %v784
      %786 = vst [vmem:[%s581 + $0x90] sm:$0x1] %v785
      %v787 = vld [vmem:[%s581 + $0x9c] sm:$0x1]
      %v788 = vsel %vm591, %v727, %v787
      %789 = vst [vmem:[%s581 + $0x9c] sm:$0x1] %v788
      %v790 = vld [vmem:[%s581 + $0xa8] sm:$0x1]
      %v791 = vsel %vm591, %v729, %v790
      %792 = vst [vmem:[%s581 + $0xa8] sm:$0x1] %v791
      %v793 = vld [vmem:[%s581 + $0xb4] sm:$0x1]
      %v794 = vsel %vm591, %v731, %v793
      %795 = vst [vmem:[%s581 + $0xb4] sm:$0x1] %v794
      %v796 = vrot.slane %v273, 7
      %v797 = vrot.slane %v796, 4
      %v798 = vrot.slane %v290, 7
      %v799 = vrot.slane %v798, 4
      %v800 = vrot.slane %v307, 7
      %v801 = vrot.slane %v800, 4
      %v802 = vrot.slane %v324, 7
      %v803 = vrot.slane %v802, 4
      %v804 = vrot.slane %v341, 7
      %v805 = vrot.slane %v804, 4
      %v806 = vrot.slane %v358, 7
      %v807 = vrot.slane %v806, 4
      %v808 = vrot.slane %v375, 7
      %v809 = vrot.slane %v808, 4
      %v810 = vrot.slane %v392, 7
      %v811 = vrot.slane %v810, 4
      %v812 = vrot.slane %v409, 7
      %v813 = vrot.slane %v812, 4
      %v814 = vrot.slane %v426, 7
      %v815 = vrot.slane %v814, 4
      %v816 = vrot.slane %v443, 7
      %v817 = vrot.slane %v816, 4
      %v818 = vrot.slane %v460, 7
      %v819 = vrot.slane %v818, 4
      %v820 = vrot.slane %v477, 7
      %v821 = vrot.slane %v820, 4
      %v822 = vrot.slane %v494, 7
      %v823 = vrot.slane %v822, 4
      %v824 = vrot.slane %v511, 7
      %v825 = vrot.slane %v824, 4
      %v826 = vrot.slane %v528, 7
      %v827 = vrot.slane %v826, 4
      %vm844 = vmand %vm590, %vm583
      %v845 = vld [vmem:[%s581 + $0x8] sm:$0x1]
      %v846 = vsel %vm844, %v797, %v845
      %847 = vst [vmem:[%s581 + $0x8] sm:$0x1] %v846
      %v848 = vld [vmem:[%s581 + $0x14] sm:$0x1]
      %v849 = vsel %vm844, %v799, %v848
      %850 = vst [vmem:[%s581 + $0x14] sm:$0x1] %v849
      %v851 = vld [vmem:[%s581 + $0x20] sm:$0x1]
      %v852 = vsel %vm844, %v801, %v851
      %853 = vst [vmem:[%s581 + $0x20] sm:$0x1] %v852
      %v854 = vld [vmem:[%s581 + $0x2c] sm:$0x1]
      %v855 = vsel %vm844, %v803, %v854
      %856 = vst [vmem:[%s581 + $0x2c] sm:$0x1] %v855
      %v857 = vld [vmem:[%s581 + $0x38] sm:$0x1]
      %v858 = vsel %vm844, %v805, %v857
      %859 = vst [vmem:[%s581 + $0x38] sm:$0x1] %v858
      %v860 = vld [vmem:[%s581 + $0x44] sm:$0x1]
      %v861 = vsel %vm844, %v807, %v860
      %862 = vst [vmem:[%s581 + $0x44] sm:$0x1] %v861
      %v863 = vld [vmem:[%s581 + $0x50] sm:$0x1]
      %v864 = vsel %vm844, %v809, %v863
      %865 = vst [vmem:[%s581 + $0x50] sm:$0x1] %v864
      %v866 = vld [vmem:[%s581 + $0x5c] sm:$0x1]
      %v867 = vsel %vm844, %v811, %v866
      %868 = vst [vmem:[%s581 + $0x5c] sm:$0x1] %v867
      %v869 = vld [vmem:[%s581 + $0x68] sm:$0x1]
      %v870 = vsel %vm844, %v813, %v869
      %871 = vst [vmem:[%s581 + $0x68] sm:$0x1] %v870
      %v872 = vld [vmem:[%s581 + $0x74] sm:$0x1]
      %v873 = vsel %vm844, %v815, %v872
      %874 = vst [vmem:[%s581 + $0x74] sm:$0x1] %v873
      %v875 = vld [vmem:[%s581 + $0x80] sm:$0x1]
      %v876 = vsel %vm844, %v817, %v875
      %877 = vst [vmem:[%s581 + $0x80] sm:$0x1] %v876
      %v878 = vld [vmem:[%s581 + $0x8c] sm:$0x1]
      %v879 = vsel %vm844, %v819, %v878
      %880 = vst [vmem:[%s581 + $0x8c] sm:$0x1] %v879
      %v881 = vld [vmem:[%s581 + $0x98] sm:$0x1]
      %v882 = vsel %vm844, %v821, %v881
      %883 = vst [vmem:[%s581 + $0x98] sm:$0x1] %v882
      %v884 = vld [vmem:[%s581 + $0xa4] sm:$0x1]
      %v885 = vsel %vm844, %v823, %v884
      %886 = vst [vmem:[%s581 + $0xa4] sm:$0x1] %v885
      %v887 = vld [vmem:[%s581 + $0xb0] sm:$0x1]
      %v888 = vsel %vm844, %v825, %v887
      %889 = vst [vmem:[%s581 + $0xb0] sm:$0x1] %v888
      %v890 = vld [vmem:[%s581 + $0xbc] sm:$0x1]
      %v891 = vsel %vm844, %v827, %v890
      %892 = vst [vmem:[%s581 + $0xbc] sm:$0x1] %v891
      %s893 = scalar_lea.vmem [#allocation2], 24
      %v894 = vld [vmem:[%s893] sm:$0xf]
      %v895 = vld [vmem:[%s893 + $0x4] sm:$0xf]
      %v896 = vld [vmem:[%s893 + $0x8] sm:$0x1]
      %897 = vst.msk [vmem:[#allocation2] sm:$0xf] %vm588, %v894
      %898 = vst.msk [vmem:[#allocation2 + $0x4] sm:$0xf] %vm588, %v895
      %vm899 = vcmask 24576
      %900 = vst.msk [vmem:[#allocation2 + $0x8] sm:$0x1] %vm899, %v896
      %s901 = scalar_lea.vmem [#allocation2], 180
      %v902 = vld [vmem:[%s901] sm:$0xf]
      %v903 = vld [vmem:[%s901 + $0x4] sm:$0xf]
      %v904 = vld [vmem:[%s901 + $0x8] sm:$0x1]
      %s905 = scalar_lea.vmem [#allocation2], 204
      %906 = vst.msk [vmem:[%s905] sm:$0xf] %vm588, %v902
      %907 = vst.msk [vmem:[%s905 + $0x4] sm:$0xf] %vm588, %v903
      %908 = vst.msk [vmem:[%s905 + $0x8] sm:$0x1] %vm899, %v904
      %v909 = vld [vmem:[%s1] sm:$0xf]
      %v910 = vld [vmem:[%s1 + $0x4] sm:$0xf]
      %v911 = vld [vmem:[%s1 + $0x8] sm:$0xf]
      %v912 = vld [vmem:[%s1 + $0xc] sm:$0xf]
      %v913 = vld [vmem:[%s1 + $0x10] sm:$0x3]
      %v914 = vld [vmem:[%s2] sm:$0x1]
      %v915 = vld [vmem:[#allocation2] sm:$0xf]
      %v916 = vld [vmem:[#allocation2 + $0x4] sm:$0xf]
      %v917 = vld [vmem:[#allocation2 + $0xc] sm:$0xf]
      %v918 = vld [vmem:[#allocation2 + $0x10] sm:$0xf]
      %v919 = vld [vmem:[#allocation2 + $0x18] sm:$0xf]
      %v920 = vld [vmem:[#allocation2 + $0x1c] sm:$0xf]
      %v921 = vld [vmem:[#allocation2 + $0x24] sm:$0xf]
      %v922 = vld [vmem:[#allocation2 + $0x28] sm:$0xf]
      %v923 = vld [vmem:[#allocation2 + $0x30] sm:$0xf]
      %v924 = vld [vmem:[#allocation2 + $0x34] sm:$0xf]
      %v925 = vld [vmem:[#allocation2 + $0x3c] sm:$0xf]
      %v926 = vld [vmem:[#allocation2 + $0x40] sm:$0xf]
      %v927 = vld [vmem:[#allocation2 + $0x48] sm:$0xf]
      %v928 = vld [vmem:[#allocation2 + $0x4c] sm:$0xf]
      %v929 = vld [vmem:[#allocation2 + $0x54] sm:$0xf]
      %v930 = vld [vmem:[#allocation2 + $0x58] sm:$0xf]
      %v947 = vunpack.c.l.b16 %v915
      %v948 = vunpack.c.l.b16 %v916
      %v949 = vunpack.c.l.b16 %v917
      %v950 = vunpack.c.l.b16 %v918
      %v951 = vunpack.c.l.b16 %v919
      %v952 = vunpack.c.l.b16 %v920
      %v953 = vunpack.c.l.b16 %v921
      %v954 = vunpack.c.l.b16 %v922
      %v955 = vunpack.c.l.b16 %v923
      %v956 = vunpack.c.l.b16 %v924
      %v957 = vunpack.c.l.b16 %v925
      %v958 = vunpack.c.l.b16 %v926
      %v959 = vunpack.c.l.b16 %v927
      %v960 = vunpack.c.l.b16 %v928
      %v961 = vunpack.c.l.b16 %v929
      %v962 = vunpack.c.l.b16 %v930
      %v963 = vpack.c.b16 %v948, %v947
      %v964 = vpack.c.b16 %v950, %v949
      %v965 = vpack.c.b16 %v952, %v951
      %v966 = vpack.c.b16 %v954, %v953
      %v967 = vpack.c.b16 %v956, %v955
      %v968 = vpack.c.b16 %v958, %v957
      %v969 = vpack.c.b16 %v960, %v959
      %v970 = vpack.c.b16 %v962, %v961
      %vm979 = vcmask 31744
      %980 = vst.msk [vmem:[#allocation3] sm:$0xff] %vm979, %v963
      %981 = vst.msk [vmem:[#allocation3 + $0x8] sm:$0xff] %vm979, %v964
      %982 = vst.msk [vmem:[#allocation3 + $0x10] sm:$0xff] %vm979, %v965
      %983 = vst.msk [vmem:[#allocation3 + $0x18] sm:$0xff] %vm979, %v966
      %984 = vst.msk [vmem:[#allocation3 + $0x20] sm:$0xff] %vm979, %v967
      %985 = vst.msk [vmem:[#allocation3 + $0x28] sm:$0xff] %vm979, %v968
      %986 = vst.msk [vmem:[#allocation3 + $0x30] sm:$0xff] %vm979, %v969
      %987 = vst.msk [vmem:[#allocation3 + $0x38] sm:$0xff] %vm979, %v970
      %v988 = vld [vmem:[#allocation2] sm:$0xf]
      %v989 = vld [vmem:[#allocation2 + $0x4] sm:$0xf]
      %v990 = vld [vmem:[#allocation2 + $0x8] sm:$0x1]
      %v991 = vld [vmem:[#allocation2 + $0xc] sm:$0xf]
      %v992 = vld [vmem:[#allocation2 + $0x10] sm:$0xf]
      %v993 = vld [vmem:[#allocation2 + $0x14] sm:$0x1]
      %v994 = vld [vmem:[#allocation2 + $0x18] sm:$0xf]
      %v995 = vld [vmem:[#allocation2 + $0x1c] sm:$0xf]
      %v996 = vld [vmem:[#allocation2 + $0x20] sm:$0x1]
      %v997 = vld [vmem:[#allocation2 + $0x24] sm:$0xf]
      %v998 = vld [vmem:[#allocation2 + $0x28] sm:$0xf]
      %v999 = vld [vmem:[#allocation2 + $0x2c] sm:$0x1]
      %v1000 = vld [vmem:[#allocation2 + $0x30] sm:$0xf]
      %v1001 = vld [vmem:[#allocation2 + $0x34] sm:$0xf]
      %v1002 = vld [vmem:[#allocation2 + $0x38] sm:$0x1]
      %v1003 = vld [vmem:[#allocation2 + $0x3c] sm:$0xf]
      %v1004 = vld [vmem:[#allocation2 + $0x40] sm:$0xf]
      %v1005 = vld [vmem:[#allocation2 + $0x44] sm:$0x1]
      %v1006 = vld [vmem:[#allocation2 + $0x48] sm:$0xf]
      %v1007 = vld [vmem:[#allocation2 + $0x4c] sm:$0xf]
      %v1008 = vld [vmem:[#allocation2 + $0x50] sm:$0x1]
      %v1009 = vld [vmem:[#allocation2 + $0x54] sm:$0xf]
      %v1010 = vld [vmem:[#allocation2 + $0x58] sm:$0xf]
      %v1011 = vld [vmem:[#allocation2 + $0x5c] sm:$0x1]
      %v1036 = vunpack.c.l.b16 %v988
      %v1037 = vunpack.c.l.b16 %v989
      %v1038 = vunpack.c.l.b16 %v990
      %v1039 = vunpack.c.l.b16 %v991
      %v1040 = vunpack.c.l.b16 %v992
      %v1041 = vunpack.c.l.b16 %v993
      %v1042 = vunpack.c.l.b16 %v994
      %v1043 = vunpack.c.l.b16 %v995
      %v1044 = vunpack.c.l.b16 %v996
      %v1045 = vunpack.c.l.b16 %v997
      %v1046 = vunpack.c.l.b16 %v998
      %v1047 = vunpack.c.l.b16 %v999
      %v1048 = vunpack.c.l.b16 %v1000
      %v1049 = vunpack.c.l.b16 %v1001
      %v1050 = vunpack.c.l.b16 %v1002
      %v1051 = vunpack.c.l.b16 %v1003
      %v1052 = vunpack.c.l.b16 %v1004
      %v1053 = vunpack.c.l.b16 %v1005
      %v1054 = vunpack.c.l.b16 %v1006
      %v1055 = vunpack.c.l.b16 %v1007
      %v1056 = vunpack.c.l.b16 %v1008
      %v1057 = vunpack.c.l.b16 %v1009
      %v1058 = vunpack.c.l.b16 %v1010
      %v1059 = vunpack.c.l.b16 %v1011
      %v1060 = vpack.c.b16 %v1037, %v1036
      %v1061 = vpack.c.b16 %v1038, %v1038
      %v1062 = vpack.c.b16 %v1040, %v1039
      %v1063 = vpack.c.b16 %v1041, %v1041
      %v1064 = vpack.c.b16 %v1043, %v1042
      %v1065 = vpack.c.b16 %v1044, %v1044
      %v1066 = vpack.c.b16 %v1046, %v1045
      %v1067 = vpack.c.b16 %v1047, %v1047
      %v1068 = vpack.c.b16 %v1049, %v1048
      %v1069 = vpack.c.b16 %v1050, %v1050
      %v1070 = vpack.c.b16 %v1052, %v1051
      %v1071 = vpack.c.b16 %v1053, %v1053
      %v1072 = vpack.c.b16 %v1055, %v1054
      %v1073 = vpack.c.b16 %v1056, %v1056
      %v1074 = vpack.c.b16 %v1058, %v1057
      %v1075 = vpack.c.b16 %v1059, %v1059
      %vm1076 = vsmask.f32 7424
      %v1078 = vshrl.u32 %v1060, 16
      %v1080 = vshll.u32 %v1060, 16
      %v1082 = vrot.slane %v1080, 1
      %v1083 = vor.u32 %v1078, %v1082
      %v1085 = vshll.u32 %v1061, 16
      %v1087 = vrot.slane %v1085, 1
      %v1088 = vsel %vm1076, %v1083, %v1087
      %v1090 = vshrl.u32 %v1062, 16
      %v1092 = vshll.u32 %v1062, 16
      %v1094 = vrot.slane %v1092, 1
      %v1095 = vor.u32 %v1090, %v1094
      %v1097 = vshll.u32 %v1063, 16
      %v1099 = vrot.slane %v1097, 1
      %v1100 = vsel %vm1076, %v1095, %v1099
      %v1102 = vshrl.u32 %v1064, 16
      %v1104 = vshll.u32 %v1064, 16
      %v1106 = vrot.slane %v1104, 1
      %v1107 = vor.u32 %v1102, %v1106
      %v1109 = vshll.u32 %v1065, 16
      %v1111 = vrot.slane %v1109, 1
      %v1112 = vsel %vm1076, %v1107, %v1111
      %v1114 = vshrl.u32 %v1066, 16
      %v1116 = vshll.u32 %v1066, 16
      %v1118 = vrot.slane %v1116, 1
      %v1119 = vor.u32 %v1114, %v1118
      %v1121 = vshll.u32 %v1067, 16
      %v1123 = vrot.slane %v1121, 1
      %v1124 = vsel %vm1076, %v1119, %v1123
      %v1126 = vshrl.u32 %v1068, 16
      %v1128 = vshll.u32 %v1068, 16
      %v1130 = vrot.slane %v1128, 1
      %v1131 = vor.u32 %v1126, %v1130
      %v1133 = vshll.u32 %v1069, 16
      %v1135 = vrot.slane %v1133, 1
      %v1136 = vsel %vm1076, %v1131, %v1135
      %v1138 = vshrl.u32 %v1070, 16
      %v1140 = vshll.u32 %v1070, 16
      %v1142 = vrot.slane %v1140, 1
      %v1143 = vor.u32 %v1138, %v1142
      %v1145 = vshll.u32 %v1071, 16
      %v1147 = vrot.slane %v1145, 1
      %v1148 = vsel %vm1076, %v1143, %v1147
      %v1150 = vshrl.u32 %v1072, 16
      %v1152 = vshll.u32 %v1072, 16
      %v1154 = vrot.slane %v1152, 1
      %v1155 = vor.u32 %v1150, %v1154
      %v1157 = vshll.u32 %v1073, 16
      %v1159 = vrot.slane %v1157, 1
      %v1160 = vsel %vm1076, %v1155, %v1159
      %v1162 = vshrl.u32 %v1074, 16
      %v1164 = vshll.u32 %v1074, 16
      %v1166 = vrot.slane %v1164, 1
      %v1167 = vor.u32 %v1162, %v1166
      %v1169 = vshll.u32 %v1075, 16
      %v1171 = vrot.slane %v1169, 1
      %v1172 = vsel %vm1076, %v1167, %v1171
      %1173 = vrot.lane.b32.xlu0 %v1088, 4
      %v1174 = vpop.permute.xlu0 %1173
      %1175 = vrot.lane.b32.xlu0 %v1100, 4
      %v1176 = vpop.permute.xlu0 %1175
      %1177 = vrot.lane.b32.xlu0 %v1112, 4
      %v1178 = vpop.permute.xlu0 %1177
      %1179 = vrot.lane.b32.xlu0 %v1124, 4
      %v1180 = vpop.permute.xlu0 %1179
      %1181 = vrot.lane.b32.xlu0 %v1136, 4
      %v1182 = vpop.permute.xlu0 %1181
      %1183 = vrot.lane.b32.xlu0 %v1148, 4
      %v1184 = vpop.permute.xlu0 %1183
      %1185 = vrot.lane.b32.xlu0 %v1160, 4
      %v1186 = vpop.permute.xlu0 %1185
      %1187 = vrot.lane.b32.xlu0 %v1172, 4
      %v1188 = vpop.permute.xlu0 %1187
      %vm1197 = vcmask 64544
      %1198 = vst.msk [vmem:[#allocation3] sm:$0xff] %vm1197, %v1174
      %1199 = vst.msk [vmem:[#allocation3 + $0x8] sm:$0xff] %vm1197, %v1176
      %1200 = vst.msk [vmem:[#allocation3 + $0x10] sm:$0xff] %vm1197, %v1178
      %1201 = vst.msk [vmem:[#allocation3 + $0x18] sm:$0xff] %vm1197, %v1180
      %1202 = vst.msk [vmem:[#allocation3 + $0x20] sm:$0xff] %vm1197, %v1182
      %1203 = vst.msk [vmem:[#allocation3 + $0x28] sm:$0xff] %vm1197, %v1184
      %1204 = vst.msk [vmem:[#allocation3 + $0x30] sm:$0xff] %vm1197, %v1186
      %1205 = vst.msk [vmem:[#allocation3 + $0x38] sm:$0xff] %vm1197, %v1188
      %v1206 = vld [vmem:[#allocation2] sm:$0xe]
      %v1207 = vld [vmem:[#allocation2 + $0x4] sm:$0xf]
      %v1208 = vld [vmem:[#allocation2 + $0x8] sm:$0x1]
      %v1209 = vld [vmem:[#allocation2 + $0xc] sm:$0xe]
      %v1210 = vld [vmem:[#allocation2 + $0x10] sm:$0xf]
      %v1211 = vld [vmem:[#allocation2 + $0x14] sm:$0x1]
      %v1212 = vld [vmem:[#allocation2 + $0x18] sm:$0xe]
      %v1213 = vld [vmem:[#allocation2 + $0x1c] sm:$0xf]
      %v1214 = vld [vmem:[#allocation2 + $0x20] sm:$0x1]
      %v1215 = vld [vmem:[#allocation2 + $0x24] sm:$0xe]
      %v1216 = vld [vmem:[#allocation2 + $0x28] sm:$0xf]
      %v1217 = vld [vmem:[#allocation2 + $0x2c] sm:$0x1]
      %v1218 = vld [vmem:[#allocation2 + $0x30] sm:$0xe]
      %v1219 = vld [vmem:[#allocation2 + $0x34] sm:$0xf]
      %v1220 = vld [vmem:[#allocation2 + $0x38] sm:$0x1]
      %v1221 = vld [vmem:[#allocation2 + $0x3c] sm:$0xe]
      %v1222 = vld [vmem:[#allocation2 + $0x40] sm:$0xf]
      %v1223 = vld [vmem:[#allocation2 + $0x44] sm:$0x1]
      %v1224 = vld [vmem:[#allocation2 + $0x48] sm:$0xe]
      %v1225 = vld [vmem:[#allocation2 + $0x4c] sm:$0xf]
      %v1226 = vld [vmem:[#allocation2 + $0x50] sm:$0x1]
      %v1227 = vld [vmem:[#allocation2 + $0x54] sm:$0xe]
      %v1228 = vld [vmem:[#allocation2 + $0x58] sm:$0xf]
      %v1229 = vld [vmem:[#allocation2 + $0x5c] sm:$0x1]
      %v1254 = vunpack.c.l.b16 %v1206
      %v1255 = vunpack.c.l.b16 %v1207
      %v1256 = vunpack.c.l.b16 %v1208
      %v1257 = vunpack.c.l.b16 %v1209
      %v1258 = vunpack.c.l.b16 %v1210
      %v1259 = vunpack.c.l.b16 %v1211
      %v1260 = vunpack.c.l.b16 %v1212
      %v1261 = vunpack.c.l.b16 %v1213
      %v1262 = vunpack.c.l.b16 %v1214
      %v1263 = vunpack.c.l.b16 %v1215
      %v1264 = vunpack.c.l.b16 %v1216
      %v1265 = vunpack.c.l.b16 %v1217
      %v1266 = vunpack.c.l.b16 %v1218
      %v1267 = vunpack.c.l.b16 %v1219
      %v1268 = vunpack.c.l.b16 %v1220
      %v1269 = vunpack.c.l.b16 %v1221
      %v1270 = vunpack.c.l.b16 %v1222
      %v1271 = vunpack.c.l.b16 %v1223
      %v1272 = vunpack.c.l.b16 %v1224
      %v1273 = vunpack.c.l.b16 %v1225
      %v1274 = vunpack.c.l.b16 %v1226
      %v1275 = vunpack.c.l.b16 %v1227
      %v1276 = vunpack.c.l.b16 %v1228
      %v1277 = vunpack.c.l.b16 %v1229
      %v1278 = vpack.c.b16 %v1255, %v1254
      %v1279 = vpack.c.b16 %v1256, %v1256
      %v1280 = vpack.c.b16 %v1258, %v1257
      %v1281 = vpack.c.b16 %v1259, %v1259
      %v1282 = vpack.c.b16 %v1261, %v1260
      %v1283 = vpack.c.b16 %v1262, %v1262
      %v1284 = vpack.c.b16 %v1264, %v1263
      %v1285 = vpack.c.b16 %v1265, %v1265
      %v1286 = vpack.c.b16 %v1267, %v1266
      %v1287 = vpack.c.b16 %v1268, %v1268
      %v1288 = vpack.c.b16 %v1270, %v1269
      %v1289 = vpack.c.b16 %v1271, %v1271
      %v1290 = vpack.c.b16 %v1273, %v1272
      %v1291 = vpack.c.b16 %v1274, %v1274
      %v1292 = vpack.c.b16 %v1276, %v1275
      %v1293 = vpack.c.b16 %v1277, %v1277
      %vm1294 = vcmask 1046528
      %v1295 = vrot.slane %v1278, 1
      %v1296 = vrot.slane %v1279, 1
      %v1297 = vsel %vm1294, %v1295, %v1296
      %v1298 = vrot.slane %v1280, 1
      %v1299 = vrot.slane %v1281, 1
      %v1300 = vsel %vm1294, %v1298, %v1299
      %v1301 = vrot.slane %v1282, 1
      %v1302 = vrot.slane %v1283, 1
      %v1303 = vsel %vm1294, %v1301, %v1302
      %v1304 = vrot.slane %v1284, 1
      %v1305 = vrot.slane %v1285, 1
      %v1306 = vsel %vm1294, %v1304, %v1305
      %v1307 = vrot.slane %v1286, 1
      %v1308 = vrot.slane %v1287, 1
      %v1309 = vsel %vm1294, %v1307, %v1308
      %v1310 = vrot.slane %v1288, 1
      %v1311 = vrot.slane %v1289, 1
      %v1312 = vsel %vm1294, %v1310, %v1311
      %v1313 = vrot.slane %v1290, 1
      %v1314 = vrot.slane %v1291, 1
      %v1315 = vsel %vm1294, %v1313, %v1314
      %v1316 = vrot.slane %v1292, 1
      %v1317 = vrot.slane %v1293, 1
      %v1318 = vsel %vm1294, %v1316, %v1317
      %1319 = vrot.lane.b32.xlu0 %v1297, 8
      %v1320 = vpop.permute.xlu0 %1319
      %1321 = vrot.lane.b32.xlu0 %v1300, 8
      %v1322 = vpop.permute.xlu0 %1321
      %1323 = vrot.lane.b32.xlu0 %v1303, 8
      %v1324 = vpop.permute.xlu0 %1323
      %1325 = vrot.lane.b32.xlu0 %v1306, 8
      %v1326 = vpop.permute.xlu0 %1325
      %1327 = vrot.lane.b32.xlu0 %v1309, 8
      %v1328 = vpop.permute.xlu0 %1327
      %1329 = vrot.lane.b32.xlu0 %v1312, 8
      %v1330 = vpop.permute.xlu0 %1329
      %1331 = vrot.lane.b32.xlu0 %v1315, 8
      %v1332 = vpop.permute.xlu0 %1331
      %1333 = vrot.lane.b32.xlu0 %v1318, 8
      %v1334 = vpop.permute.xlu0 %1333
      %vm1343 = vcmask 97344
      %1344 = vst.msk [vmem:[#allocation3] sm:$0xff] %vm1343, %v1320
      %1345 = vst.msk [vmem:[#allocation3 + $0x8] sm:$0xff] %vm1343, %v1322
      %1346 = vst.msk [vmem:[#allocation3 + $0x10] sm:$0xff] %vm1343, %v1324
      %1347 = vst.msk [vmem:[#allocation3 + $0x18] sm:$0xff] %vm1343, %v1326
      %1348 = vst.msk [vmem:[#allocation3 + $0x20] sm:$0xff] %vm1343, %v1328
      %1349 = vst.msk [vmem:[#allocation3 + $0x28] sm:$0xff] %vm1343, %v1330
      %1350 = vst.msk [vmem:[#allocation3 + $0x30] sm:$0xff] %vm1343, %v1332
      %1351 = vst.msk [vmem:[#allocation3 + $0x38] sm:$0xff] %vm1343, %v1334
      %v1352 = vld [vmem:[%s581] sm:$0xf]
      %v1353 = vld [vmem:[%s581 + $0x4] sm:$0xf]
      %v1354 = vld [vmem:[%s581 + $0xc] sm:$0xf]
      %v1355 = vld [vmem:[%s581 + $0x10] sm:$0xf]
      %v1356 = vld [vmem:[%s581 + $0x18] sm:$0xf]
      %v1357 = vld [vmem:[%s581 + $0x1c] sm:$0xf]
      %v1358 = vld [vmem:[%s581 + $0x24] sm:$0xf]
      %v1359 = vld [vmem:[%s581 + $0x28] sm:$0xf]
      %v1360 = vld [vmem:[%s581 + $0x30] sm:$0xf]
      %v1361 = vld [vmem:[%s581 + $0x34] sm:$0xf]
      %v1362 = vld [vmem:[%s581 + $0x3c] sm:$0xf]
      %v1363 = vld [vmem:[%s581 + $0x40] sm:$0xf]
      %v1364 = vld [vmem:[%s581 + $0x48] sm:$0xf]
      %v1365 = vld [vmem:[%s581 + $0x4c] sm:$0xf]
      %v1366 = vld [vmem:[%s581 + $0x54] sm:$0xf]
      %v1367 = vld [vmem:[%s581 + $0x58] sm:$0xf]
      %v1384 = vunpack.c.l.b16 %v1352
      %v1385 = vunpack.c.l.b16 %v1353
      %v1386 = vunpack.c.l.b16 %v1354
      %v1387 = vunpack.c.l.b16 %v1355
      %v1388 = vunpack.c.l.b16 %v1356
      %v1389 = vunpack.c.l.b16 %v1357
      %v1390 = vunpack.c.l.b16 %v1358
      %v1391 = vunpack.c.l.b16 %v1359
      %v1392 = vunpack.c.l.b16 %v1360
      %v1393 = vunpack.c.l.b16 %v1361
      %v1394 = vunpack.c.l.b16 %v1362
      %v1395 = vunpack.c.l.b16 %v1363
      %v1396 = vunpack.c.l.b16 %v1364
      %v1397 = vunpack.c.l.b16 %v1365
      %v1398 = vunpack.c.l.b16 %v1366
      %v1399 = vunpack.c.l.b16 %v1367
      %v1400 = vpack.c.b16 %v1385, %v1384
      %v1401 = vpack.c.b16 %v1387, %v1386
      %v1402 = vpack.c.b16 %v1389, %v1388
      %v1403 = vpack.c.b16 %v1391, %v1390
      %v1404 = vpack.c.b16 %v1393, %v1392
      %v1405 = vpack.c.b16 %v1395, %v1394
      %v1406 = vpack.c.b16 %v1397, %v1396
      %v1407 = vpack.c.b16 %v1399, %v1398
      %1408 = vrot.lane.b32.xlu0 %v1400, 12
      %v1409 = vpop.permute.xlu0 %1408
      %1410 = vrot.lane.b32.xlu0 %v1401, 12
      %v1411 = vpop.permute.xlu0 %1410
      %1412 = vrot.lane.b32.xlu0 %v1402, 12
      %v1413 = vpop.permute.xlu0 %1412
      %1414 = vrot.lane.b32.xlu0 %v1403, 12
      %v1415 = vpop.permute.xlu0 %1414
      %1416 = vrot.lane.b32.xlu0 %v1404, 12
      %v1417 = vpop.permute.xlu0 %1416
      %1418 = vrot.lane.b32.xlu0 %v1405, 12
      %v1419 = vpop.permute.xlu0 %1418
      %1420 = vrot.lane.b32.xlu0 %v1406, 12
      %v1421 = vpop.permute.xlu0 %1420
      %1422 = vrot.lane.b32.xlu0 %v1407, 12
      %v1423 = vpop.permute.xlu0 %1422
      %vm1432 = vcmask 130144
      %1433 = vst.msk [vmem:[#allocation3] sm:$0xff] %vm1432, %v1409
      %1434 = vst.msk [vmem:[#allocation3 + $0x8] sm:$0xff] %vm1432, %v1411
      %1435 = vst.msk [vmem:[#allocation3 + $0x10] sm:$0xff] %vm1432, %v1413
      %1436 = vst.msk [vmem:[#allocation3 + $0x18] sm:$0xff] %vm1432, %v1415
      %1437 = vst.msk [vmem:[#allocation3 + $0x20] sm:$0xff] %vm1432, %v1417
      %1438 = vst.msk [vmem:[#allocation3 + $0x28] sm:$0xff] %vm1432, %v1419
      %1439 = vst.msk [vmem:[#allocation3 + $0x30] sm:$0xff] %vm1432, %v1421
      %1440 = vst.msk [vmem:[#allocation3 + $0x38] sm:$0xff] %vm1432, %v1423
      %v1441 = vld [vmem:[%s581] sm:$0xf]
      %v1442 = vld [vmem:[%s581 + $0x4] sm:$0xf]
      %v1443 = vld [vmem:[%s581 + $0x8] sm:$0x1]
      %v1444 = vld [vmem:[%s581 + $0xc] sm:$0xf]
      %v1445 = vld [vmem:[%s581 + $0x10] sm:$0xf]
      %v1446 = vld [vmem:[%s581 + $0x14] sm:$0x1]
      %v1447 = vld [vmem:[%s581 + $0x18] sm:$0xf]
      %v1448 = vld [vmem:[%s581 + $0x1c] sm:$0xf]
      %v1449 = vld [vmem:[%s581 + $0x20] sm:$0x1]
      %v1450 = vld [vmem:[%s581 + $0x24] sm:$0xf]
      %v1451 = vld [vmem:[%s581 + $0x28] sm:$0xf]
      %v1452 = vld [vmem:[%s581 + $0x2c] sm:$0x1]
      %v1453 = vld [vmem:[%s581 + $0x30] sm:$0xf]
      %v1454 = vld [vmem:[%s581 + $0x34] sm:$0xf]
      %v1455 = vld [vmem:[%s581 + $0x38] sm:$0x1]
      %v1456 = vld [vmem:[%s581 + $0x3c] sm:$0xf]
      %v1457 = vld [vmem:[%s581 + $0x40] sm:$0xf]
      %v1458 = vld [vmem:[%s581 + $0x44] sm:$0x1]
      %v1459 = vld [vmem:[%s581 + $0x48] sm:$0xf]
      %v1460 = vld [vmem:[%s581 + $0x4c] sm:$0xf]
      %v1461 = vld [vmem:[%s581 + $0x50] sm:$0x1]
      %v1462 = vld [vmem:[%s581 + $0x54] sm:$0xf]
      %v1463 = vld [vmem:[%s581 + $0x58] sm:$0xf]
      %v1464 = vld [vmem:[%s581 + $0x5c] sm:$0x1]
      %v1489 = vunpack.c.l.b16 %v1441
      %v1490 = vunpack.c.l.b16 %v1442
      %v1491 = vunpack.c.l.b16 %v1443
      %v1492 = vunpack.c.l.b16 %v1444
      %v1493 = vunpack.c.l.b16 %v1445
      %v1494 = vunpack.c.l.b16 %v1446
      %v1495 = vunpack.c.l.b16 %v1447
      %v1496 = vunpack.c.l.b16 %v1448
      %v1497 = vunpack.c.l.b16 %v1449
      %v1498 = vunpack.c.l.b16 %v1450
      %v1499 = vunpack.c.l.b16 %v1451
      %v1500 = vunpack.c.l.b16 %v1452
      %v1501 = vunpack.c.l.b16 %v1453
      %v1502 = vunpack.c.l.b16 %v1454
      %v1503 = vunpack.c.l.b16 %v1455
      %v1504 = vunpack.c.l.b16 %v1456
      %v1505 = vunpack.c.l.b16 %v1457
      %v1506 = vunpack.c.l.b16 %v1458
      %v1507 = vunpack.c.l.b16 %v1459
      %v1508 = vunpack.c.l.b16 %v1460
      %v1509 = vunpack.c.l.b16 %v1461
      %v1510 = vunpack.c.l.b16 %v1462
      %v1511 = vunpack.c.l.b16 %v1463
      %v1512 = vunpack.c.l.b16 %v1464
      %v1513 = vpack.c.b16 %v1490, %v1489
      %v1514 = vpack.c.b16 %v1491, %v1491
      %v1515 = vpack.c.b16 %v1493, %v1492
      %v1516 = vpack.c.b16 %v1494, %v1494
      %v1517 = vpack.c.b16 %v1496, %v1495
      %v1518 = vpack.c.b16 %v1497, %v1497
      %v1519 = vpack.c.b16 %v1499, %v1498
      %v1520 = vpack.c.b16 %v1500, %v1500
      %v1521 = vpack.c.b16 %v1502, %v1501
      %v1522 = vpack.c.b16 %v1503, %v1503
      %v1523 = vpack.c.b16 %v1505, %v1504
      %v1524 = vpack.c.b16 %v1506, %v1506
      %v1525 = vpack.c.b16 %v1508, %v1507
      %v1526 = vpack.c.b16 %v1509, %v1509
      %v1527 = vpack.c.b16 %v1511, %v1510
      %v1528 = vpack.c.b16 %v1512, %v1512
      %v1530 = vshrl.u32 %v1513, 16
      %v1532 = vshll.u32 %v1513, 16
      %v1534 = vrot.slane %v1532, 1
      %v1535 = vor.u32 %v1530, %v1534
      %v1537 = vshll.u32 %v1514, 16
      %v1539 = vrot.slane %v1537, 1
      %v1540 = vsel %vm1076, %v1535, %v1539
      %v1542 = vshrl.u32 %v1515, 16
      %v1544 = vshll.u32 %v1515, 16
      %v1546 = vrot.slane %v1544, 1
      %v1547 = vor.u32 %v1542, %v1546
      %v1549 = vshll.u32 %v1516, 16
      %v1551 = vrot.slane %v1549, 1
      %v1552 = vsel %vm1076, %v1547, %v1551
      %v1554 = vshrl.u32 %v1517, 16
      %v1556 = vshll.u32 %v1517, 16
      %v1558 = vrot.slane %v1556, 1
      %v1559 = vor.u32 %v1554, %v1558
      %v1561 = vshll.u32 %v1518, 16
      %v1563 = vrot.slane %v1561, 1
      %v1564 = vsel %vm1076, %v1559, %v1563
      %v1566 = vshrl.u32 %v1519, 16
      %v1568 = vshll.u32 %v1519, 16
      %v1570 = vrot.slane %v1568, 1
      %v1571 = vor.u32 %v1566, %v1570
      %v1573 = vshll.u32 %v1520, 16
      %v1575 = vrot.slane %v1573, 1
      %v1576 = vsel %vm1076, %v1571, %v1575
      %v1578 = vshrl.u32 %v1521, 16
      %v1580 = vshll.u32 %v1521, 16
      %v1582 = vrot.slane %v1580, 1
      %v1583 = vor.u32 %v1578, %v1582
      %v1585 = vshll.u32 %v1522, 16
      %v1587 = vrot.slane %v1585, 1
      %v1588 = vsel %vm1076, %v1583, %v1587
      %v1590 = vshrl.u32 %v1523, 16
      %v1592 = vshll.u32 %v1523, 16
      %v1594 = vrot.slane %v1592, 1
      %v1595 = vor.u32 %v1590, %v1594
      %v1597 = vshll.u32 %v1524, 16
      %v1599 = vrot.slane %v1597, 1
      %v1600 = vsel %vm1076, %v1595, %v1599
      %v1602 = vshrl.u32 %v1525, 16
      %v1604 = vshll.u32 %v1525, 16
      %v1606 = vrot.slane %v1604, 1
      %v1607 = vor.u32 %v1602, %v1606
      %v1609 = vshll.u32 %v1526, 16
      %v1611 = vrot.slane %v1609, 1
      %v1612 = vsel %vm1076, %v1607, %v1611
      %v1614 = vshrl.u32 %v1527, 16
      %v1616 = vshll.u32 %v1527, 16
      %v1618 = vrot.slane %v1616, 1
      %v1619 = vor.u32 %v1614, %v1618
      %v1621 = vshll.u32 %v1528, 16
      %v1623 = vrot.slane %v1621, 1
      %v1624 = vsel %vm1076, %v1619, %v1623
      %1625 = vrot.lane.b32.xlu0 %v1540, 16
      %v1626 = vpop.permute.xlu0 %1625
      %1627 = vrot.lane.b32.xlu0 %v1552, 16
      %v1628 = vpop.permute.xlu0 %1627
      %1629 = vrot.lane.b32.xlu0 %v1564, 16
      %v1630 = vpop.permute.xlu0 %1629
      %1631 = vrot.lane.b32.xlu0 %v1576, 16
      %v1632 = vpop.permute.xlu0 %1631
      %1633 = vrot.lane.b32.xlu0 %v1588, 16
      %v1634 = vpop.permute.xlu0 %1633
      %1635 = vrot.lane.b32.xlu0 %v1600, 16
      %v1636 = vpop.permute.xlu0 %1635
      %1637 = vrot.lane.b32.xlu0 %v1612, 16
      %v1638 = vpop.permute.xlu0 %1637
      %1639 = vrot.lane.b32.xlu0 %v1624, 16
      %v1640 = vpop.permute.xlu0 %1639
      %vm1649 = vcmask 162944
      %1650 = vst.msk [vmem:[#allocation3] sm:$0xff] %vm1649, %v1626
      %1651 = vst.msk [vmem:[#allocation3 + $0x8] sm:$0xff] %vm1649, %v1628
      %1652 = vst.msk [vmem:[#allocation3 + $0x10] sm:$0xff] %vm1649, %v1630
      %1653 = vst.msk [vmem:[#allocation3 + $0x18] sm:$0xff] %vm1649, %v1632
      %1654 = vst.msk [vmem:[#allocation3 + $0x20] sm:$0xff] %vm1649, %v1634
      %1655 = vst.msk [vmem:[#allocation3 + $0x28] sm:$0xff] %vm1649, %v1636
      %1656 = vst.msk [vmem:[#allocation3 + $0x30] sm:$0xff] %vm1649, %v1638
      %1657 = vst.msk [vmem:[#allocation3 + $0x38] sm:$0xff] %vm1649, %v1640
      %v1658 = vld [vmem:[%s581] sm:$0xe]
      %v1659 = vld [vmem:[%s581 + $0x4] sm:$0xf]
      %v1660 = vld [vmem:[%s581 + $0x8] sm:$0x1]
      %v1661 = vld [vmem:[%s581 + $0xc] sm:$0xe]
      %v1662 = vld [vmem:[%s581 + $0x10] sm:$0xf]
      %v1663 = vld [vmem:[%s581 + $0x14] sm:$0x1]
      %v1664 = vld [vmem:[%s581 + $0x18] sm:$0xe]
      %v1665 = vld [vmem:[%s581 + $0x1c] sm:$0xf]
      %v1666 = vld [vmem:[%s581 + $0x20] sm:$0x1]
      %v1667 = vld [vmem:[%s581 + $0x24] sm:$0xe]
      %v1668 = vld [vmem:[%s581 + $0x28] sm:$0xf]
      %v1669 = vld [vmem:[%s581 + $0x2c] sm:$0x1]
      %v1670 = vld [vmem:[%s581 + $0x30] sm:$0xe]
      %v1671 = vld [vmem:[%s581 + $0x34] sm:$0xf]
      %v1672 = vld [vmem:[%s581 + $0x38] sm:$0x1]
      %v1673 = vld [vmem:[%s581 + $0x3c] sm:$0xe]
      %v1674 = vld [vmem:[%s581 + $0x40] sm:$0xf]
      %v1675 = vld [vmem:[%s581 + $0x44] sm:$0x1]
      %v1676 = vld [vmem:[%s581 + $0x48] sm:$0xe]
      %v1677 = vld [vmem:[%s581 + $0x4c] sm:$0xf]
      %v1678 = vld [vmem:[%s581 + $0x50] sm:$0x1]
      %v1679 = vld [vmem:[%s581 + $0x54] sm:$0xe]
      %v1680 = vld [vmem:[%s581 + $0x58] sm:$0xf]
      %v1681 = vld [vmem:[%s581 + $0x5c] sm:$0x1]
      %v1706 = vunpack.c.l.b16 %v1658
      %v1707 = vunpack.c.l.b16 %v1659
      %v1708 = vunpack.c.l.b16 %v1660
      %v1709 = vunpack.c.l.b16 %v1661
      %v1710 = vunpack.c.l.b16 %v1662
      %v1711 = vunpack.c.l.b16 %v1663
      %v1712 = vunpack.c.l.b16 %v1664
      %v1713 = vunpack.c.l.b16 %v1665
      %v1714 = vunpack.c.l.b16 %v1666
      %v1715 = vunpack.c.l.b16 %v1667
      %v1716 = vunpack.c.l.b16 %v1668
      %v1717 = vunpack.c.l.b16 %v1669
      %v1718 = vunpack.c.l.b16 %v1670
      %v1719 = vunpack.c.l.b16 %v1671
      %v1720 = vunpack.c.l.b16 %v1672
      %v1721 = vunpack.c.l.b16 %v1673
      %v1722 = vunpack.c.l.b16 %v1674
      %v1723 = vunpack.c.l.b16 %v1675
      %v1724 = vunpack.c.l.b16 %v1676
      %v1725 = vunpack.c.l.b16 %v1677
      %v1726 = vunpack.c.l.b16 %v1678
      %v1727 = vunpack.c.l.b16 %v1679
      %v1728 = vunpack.c.l.b16 %v1680
      %v1729 = vunpack.c.l.b16 %v1681
      %v1730 = vpack.c.b16 %v1707, %v1706
      %v1731 = vpack.c.b16 %v1708, %v1708
      %v1732 = vpack.c.b16 %v1710, %v1709
      %v1733 = vpack.c.b16 %v1711, %v1711
      %v1734 = vpack.c.b16 %v1713, %v1712
      %v1735 = vpack.c.b16 %v1714, %v1714
      %v1736 = vpack.c.b16 %v1716, %v1715
      %v1737 = vpack.c.b16 %v1717, %v1717
      %v1738 = vpack.c.b16 %v1719, %v1718
      %v1739 = vpack.c.b16 %v1720, %v1720
      %v1740 = vpack.c.b16 %v1722, %v1721
      %v1741 = vpack.c.b16 %v1723, %v1723
      %v1742 = vpack.c.b16 %v1725, %v1724
      %v1743 = vpack.c.b16 %v1726, %v1726
      %v1744 = vpack.c.b16 %v1728, %v1727
      %v1745 = vpack.c.b16 %v1729, %v1729
      %v1746 = vrot.slane %v1730, 1
      %v1747 = vrot.slane %v1731, 1
      %v1748 = vsel %vm1294, %v1746, %v1747
      %v1749 = vrot.slane %v1732, 1
      %v1750 = vrot.slane %v1733, 1
      %v1751 = vsel %vm1294, %v1749, %v1750
      %v1752 = vrot.slane %v1734, 1
      %v1753 = vrot.slane %v1735, 1
      %v1754 = vsel %vm1294, %v1752, %v1753
      %v1755 = vrot.slane %v1736, 1
      %v1756 = vrot.slane %v1737, 1
      %v1757 = vsel %vm1294, %v1755, %v1756
      %v1758 = vrot.slane %v1738, 1
      %v1759 = vrot.slane %v1739, 1
      %v1760 = vsel %vm1294, %v1758, %v1759
      %v1761 = vrot.slane %v1740, 1
      %v1762 = vrot.slane %v1741, 1
      %v1763 = vsel %vm1294, %v1761, %v1762
      %v1764 = vrot.slane %v1742, 1
      %v1765 = vrot.slane %v1743, 1
      %v1766 = vsel %vm1294, %v1764, %v1765
      %v1767 = vrot.slane %v1744, 1
      %v1768 = vrot.slane %v1745, 1
      %v1769 = vsel %vm1294, %v1767, %v1768
      %1770 = vrot.lane.b32.xlu0 %v1748, 20
      %v1771 = vpop.permute.xlu0 %1770
      %1772 = vrot.lane.b32.xlu0 %v1751, 20
      %v1773 = vpop.permute.xlu0 %1772
      %1774 = vrot.lane.b32.xlu0 %v1754, 20
      %v1775 = vpop.permute.xlu0 %1774
      %1776 = vrot.lane.b32.xlu0 %v1757, 20
      %v1777 = vpop.permute.xlu0 %1776
      %1778 = vrot.lane.b32.xlu0 %v1760, 20
      %v1779 = vpop.permute.xlu0 %1778
      %1780 = vrot.lane.b32.xlu0 %v1763, 20
      %v1781 = vpop.permute.xlu0 %1780
      %1782 = vrot.lane.b32.xlu0 %v1766, 20
      %v1783 = vpop.permute.xlu0 %1782
      %1784 = vrot.lane.b32.xlu0 %v1769, 20
      %v1785 = vpop.permute.xlu0 %1784
      %vm1794 = vcmask 195744
      %1795 = vst.msk [vmem:[#allocation3] sm:$0xff] %vm1794, %v1771
      %1796 = vst.msk [vmem:[#allocation3 + $0x8] sm:$0xff] %vm1794, %v1773
      %1797 = vst.msk [vmem:[#allocation3 + $0x10] sm:$0xff] %vm1794, %v1775
      %1798 = vst.msk [vmem:[#allocation3 + $0x18] sm:$0xff] %vm1794, %v1777
      %1799 = vst.msk [vmem:[#allocation3 + $0x20] sm:$0xff] %vm1794, %v1779
      %1800 = vst.msk [vmem:[#allocation3 + $0x28] sm:$0xff] %vm1794, %v1781
      %1801 = vst.msk [vmem:[#allocation3 + $0x30] sm:$0xff] %vm1794, %v1783
      %1802 = vst.msk [vmem:[#allocation3 + $0x38] sm:$0xff] %vm1794, %v1785
      %v1803 = vld [vmem:[%s893] sm:$0xf]
      %v1804 = vld [vmem:[%s893 + $0x4] sm:$0xf]
      %v1805 = vld [vmem:[%s893 + $0xc] sm:$0xf]
      %v1806 = vld [vmem:[%s893 + $0x10] sm:$0xf]
      %v1807 = vld [vmem:[%s893 + $0x18] sm:$0xf]
      %v1808 = vld [vmem:[%s893 + $0x1c] sm:$0xf]
      %v1809 = vld [vmem:[%s893 + $0x24] sm:$0xf]
      %v1810 = vld [vmem:[%s893 + $0x28] sm:$0xf]
      %v1811 = vld [vmem:[%s893 + $0x30] sm:$0xf]
      %v1812 = vld [vmem:[%s893 + $0x34] sm:$0xf]
      %v1813 = vld [vmem:[%s893 + $0x3c] sm:$0xf]
      %v1814 = vld [vmem:[%s893 + $0x40] sm:$0xf]
      %v1815 = vld [vmem:[%s893 + $0x48] sm:$0xf]
      %v1816 = vld [vmem:[%s893 + $0x4c] sm:$0xf]
      %v1817 = vld [vmem:[%s893 + $0x54] sm:$0xf]
      %v1818 = vld [vmem:[%s893 + $0x58] sm:$0xf]
      %v1835 = vunpack.c.l.b16 %v1803
      %v1836 = vunpack.c.l.b16 %v1804
      %v1837 = vunpack.c.l.b16 %v1805
      %v1838 = vunpack.c.l.b16 %v1806
      %v1839 = vunpack.c.l.b16 %v1807
      %v1840 = vunpack.c.l.b16 %v1808
      %v1841 = vunpack.c.l.b16 %v1809
      %v1842 = vunpack.c.l.b16 %v1810
      %v1843 = vunpack.c.l.b16 %v1811
      %v1844 = vunpack.c.l.b16 %v1812
      %v1845 = vunpack.c.l.b16 %v1813
      %v1846 = vunpack.c.l.b16 %v1814
      %v1847 = vunpack.c.l.b16 %v1815
      %v1848 = vunpack.c.l.b16 %v1816
      %v1849 = vunpack.c.l.b16 %v1817
      %v1850 = vunpack.c.l.b16 %v1818
      %v1851 = vpack.c.b16 %v1836, %v1835
      %v1852 = vpack.c.b16 %v1838, %v1837
      %v1853 = vpack.c.b16 %v1840, %v1839
      %v1854 = vpack.c.b16 %v1842, %v1841
      %v1855 = vpack.c.b16 %v1844, %v1843
      %v1856 = vpack.c.b16 %v1846, %v1845
      %v1857 = vpack.c.b16 %v1848, %v1847
      %v1858 = vpack.c.b16 %v1850, %v1849
      %1859 = vrot.lane.b32.xlu0 %v1851, 24
      %v1860 = vpop.permute.xlu0 %1859
      %1861 = vrot.lane.b32.xlu0 %v1852, 24
      %v1862 = vpop.permute.xlu0 %1861
      %1863 = vrot.lane.b32.xlu0 %v1853, 24
      %v1864 = vpop.permute.xlu0 %1863
      %1865 = vrot.lane.b32.xlu0 %v1854, 24
      %v1866 = vpop.permute.xlu0 %1865
      %1867 = vrot.lane.b32.xlu0 %v1855, 24
      %v1868 = vpop.permute.xlu0 %1867
      %1869 = vrot.lane.b32.xlu0 %v1856, 24
      %v1870 = vpop.permute.xlu0 %1869
      %1871 = vrot.lane.b32.xlu0 %v1857, 24
      %v1872 = vpop.permute.xlu0 %1871
      %1873 = vrot.lane.b32.xlu0 %v1858, 24
      %v1874 = vpop.permute.xlu0 %1873
      %vm1883 = vcmask 228544
      %1884 = vst.msk [vmem:[#allocation3] sm:$0xff] %vm1883, %v1860
      %1885 = vst.msk [vmem:[#allocation3 + $0x8] sm:$0xff] %vm1883, %v1862
      %1886 = vst.msk [vmem:[#allocation3 + $0x10] sm:$0xff] %vm1883, %v1864
      %1887 = vst.msk [vmem:[#allocation3 + $0x18] sm:$0xff] %vm1883, %v1866
      %1888 = vst.msk [vmem:[#allocation3 + $0x20] sm:$0xff] %vm1883, %v1868
      %1889 = vst.msk [vmem:[#allocation3 + $0x28] sm:$0xff] %vm1883, %v1870
      %1890 = vst.msk [vmem:[#allocation3 + $0x30] sm:$0xff] %vm1883, %v1872
      %1891 = vst.msk [vmem:[#allocation3 + $0x38] sm:$0xff] %vm1883, %v1874
      %v1892 = vld [vmem:[%s893] sm:$0xf]
      %v1893 = vld [vmem:[%s893 + $0x4] sm:$0xf]
      %v1894 = vld [vmem:[%s893 + $0x8] sm:$0x1]
      %v1895 = vld [vmem:[%s893 + $0xc] sm:$0xf]
      %v1896 = vld [vmem:[%s893 + $0x10] sm:$0xf]
      %v1897 = vld [vmem:[%s893 + $0x14] sm:$0x1]
      %v1898 = vld [vmem:[%s893 + $0x18] sm:$0xf]
      %v1899 = vld [vmem:[%s893 + $0x1c] sm:$0xf]
      %v1900 = vld [vmem:[%s893 + $0x20] sm:$0x1]
      %v1901 = vld [vmem:[%s893 + $0x24] sm:$0xf]
      %v1902 = vld [vmem:[%s893 + $0x28] sm:$0xf]
      %v1903 = vld [vmem:[%s893 + $0x2c] sm:$0x1]
      %v1904 = vld [vmem:[%s893 + $0x30] sm:$0xf]
      %v1905 = vld [vmem:[%s893 + $0x34] sm:$0xf]
      %v1906 = vld [vmem:[%s893 + $0x38] sm:$0x1]
      %v1907 = vld [vmem:[%s893 + $0x3c] sm:$0xf]
      %v1908 = vld [vmem:[%s893 + $0x40] sm:$0xf]
      %v1909 = vld [vmem:[%s893 + $0x44] sm:$0x1]
      %v1910 = vld [vmem:[%s893 + $0x48] sm:$0xf]
      %v1911 = vld [vmem:[%s893 + $0x4c] sm:$0xf]
      %v1912 = vld [vmem:[%s893 + $0x50] sm:$0x1]
      %v1913 = vld [vmem:[%s893 + $0x54] sm:$0xf]
      %v1914 = vld [vmem:[%s893 + $0x58] sm:$0xf]
      %v1915 = vld [vmem:[%s893 + $0x5c] sm:$0x1]
      %v1940 = vunpack.c.l.b16 %v1892
      %v1941 = vunpack.c.l.b16 %v1893
      %v1942 = vunpack.c.l.b16 %v1894
      %v1943 = vunpack.c.l.b16 %v1895
      %v1944 = vunpack.c.l.b16 %v1896
      %v1945 = vunpack.c.l.b16 %v1897
      %v1946 = vunpack.c.l.b16 %v1898
      %v1947 = vunpack.c.l.b16 %v1899
      %v1948 = vunpack.c.l.b16 %v1900
      %v1949 = vunpack.c.l.b16 %v1901
      %v1950 = vunpack.c.l.b16 %v1902
      %v1951 = vunpack.c.l.b16 %v1903
      %v1952 = vunpack.c.l.b16 %v1904
      %v1953 = vunpack.c.l.b16 %v1905
      %v1954 = vunpack.c.l.b16 %v1906
      %v1955 = vunpack.c.l.b16 %v1907
      %v1956 = vunpack.c.l.b16 %v1908
      %v1957 = vunpack.c.l.b16 %v1909
      %v1958 = vunpack.c.l.b16 %v1910
      %v1959 = vunpack.c.l.b16 %v1911
      %v1960 = vunpack.c.l.b16 %v1912
      %v1961 = vunpack.c.l.b16 %v1913
      %v1962 = vunpack.c.l.b16 %v1914
      %v1963 = vunpack.c.l.b16 %v1915
      %v1964 = vpack.c.b16 %v1941, %v1940
      %v1965 = vpack.c.b16 %v1942, %v1942
      %v1966 = vpack.c.b16 %v1944, %v1943
      %v1967 = vpack.c.b16 %v1945, %v1945
      %v1968 = vpack.c.b16 %v1947, %v1946
      %v1969 = vpack.c.b16 %v1948, %v1948
      %v1970 = vpack.c.b16 %v1950, %v1949
      %v1971 = vpack.c.b16 %v1951, %v1951
      %v1972 = vpack.c.b16 %v1953, %v1952
      %v1973 = vpack.c.b16 %v1954, %v1954
      %v1974 = vpack.c.b16 %v1956, %v1955
      %v1975 = vpack.c.b16 %v1957, %v1957
      %v1976 = vpack.c.b16 %v1959, %v1958
      %v1977 = vpack.c.b16 %v1960, %v1960
      %v1978 = vpack.c.b16 %v1962, %v1961
      %v1979 = vpack.c.b16 %v1963, %v1963
      %v1981 = vshrl.u32 %v1964, 16
      %v1983 = vshll.u32 %v1964, 16
      %v1985 = vrot.slane %v1983, 1
      %v1986 = vor.u32 %v1981, %v1985
      %v1988 = vshll.u32 %v1965, 16
      %v1990 = vrot.slane %v1988, 1
      %v1991 = vsel %vm1076, %v1986, %v1990
      %v1993 = vshrl.u32 %v1966, 16
      %v1995 = vshll.u32 %v1966, 16
      %v1997 = vrot.slane %v1995, 1
      %v1998 = vor.u32 %v1993, %v1997
      %v2000 = vshll.u32 %v1967, 16
      %v2002 = vrot.slane %v2000, 1
      %v2003 = vsel %vm1076, %v1998, %v2002
      %v2005 = vshrl.u32 %v1968, 16
      %v2007 = vshll.u32 %v1968, 16
      %v2009 = vrot.slane %v2007, 1
      %v2010 = vor.u32 %v2005, %v2009
      %v2012 = vshll.u32 %v1969, 16
      %v2014 = vrot.slane %v2012, 1
      %v2015 = vsel %vm1076, %v2010, %v2014
      %v2017 = vshrl.u32 %v1970, 16
      %v2019 = vshll.u32 %v1970, 16
      %v2021 = vrot.slane %v2019, 1
      %v2022 = vor.u32 %v2017, %v2021
      %v2024 = vshll.u32 %v1971, 16
      %v2026 = vrot.slane %v2024, 1
      %v2027 = vsel %vm1076, %v2022, %v2026
      %v2029 = vshrl.u32 %v1972, 16
      %v2031 = vshll.u32 %v1972, 16
      %v2033 = vrot.slane %v2031, 1
      %v2034 = vor.u32 %v2029, %v2033
      %v2036 = vshll.u32 %v1973, 16
      %v2038 = vrot.slane %v2036, 1
      %v2039 = vsel %vm1076, %v2034, %v2038
      %v2041 = vshrl.u32 %v1974, 16
      %v2043 = vshll.u32 %v1974, 16
      %v2045 = vrot.slane %v2043, 1
      %v2046 = vor.u32 %v2041, %v2045
      %v2048 = vshll.u32 %v1975, 16
      %v2050 = vrot.slane %v2048, 1
      %v2051 = vsel %vm1076, %v2046, %v2050
      %v2053 = vshrl.u32 %v1976, 16
      %v2055 = vshll.u32 %v1976, 16
      %v2057 = vrot.slane %v2055, 1
      %v2058 = vor.u32 %v2053, %v2057
      %v2060 = vshll.u32 %v1977, 16
      %v2062 = vrot.slane %v2060, 1
      %v2063 = vsel %vm1076, %v2058, %v2062
      %v2065 = vshrl.u32 %v1978, 16
      %v2067 = vshll.u32 %v1978, 16
      %v2069 = vrot.slane %v2067, 1
      %v2070 = vor.u32 %v2065, %v2069
      %v2072 = vshll.u32 %v1979, 16
      %v2074 = vrot.slane %v2072, 1
      %v2075 = vsel %vm1076, %v2070, %v2074
      %2076 = vrot.lane.b32.xlu0 %v1991, 28
      %v2077 = vpop.permute.xlu0 %2076
      %2078 = vrot.lane.b32.xlu0 %v2003, 28
      %v2079 = vpop.permute.xlu0 %2078
      %2080 = vrot.lane.b32.xlu0 %v2015, 28
      %v2081 = vpop.permute.xlu0 %2080
      %2082 = vrot.lane.b32.xlu0 %v2027, 28
      %v2083 = vpop.permute.xlu0 %2082
      %2084 = vrot.lane.b32.xlu0 %v2039, 28
      %v2085 = vpop.permute.xlu0 %2084
      %2086 = vrot.lane.b32.xlu0 %v2051, 28
      %v2087 = vpop.permute.xlu0 %2086
      %2088 = vrot.lane.b32.xlu0 %v2063, 28
      %v2089 = vpop.permute.xlu0 %2088
      %2090 = vrot.lane.b32.xlu0 %v2075, 28
      %v2091 = vpop.permute.xlu0 %2090
      %vm2100 = vcmask 261344
      %2101 = vst.msk [vmem:[#allocation3] sm:$0xff] %vm2100, %v2077
      %2102 = vst.msk [vmem:[#allocation3 + $0x8] sm:$0xff] %vm2100, %v2079
      %2103 = vst.msk [vmem:[#allocation3 + $0x10] sm:$0xff] %vm2100, %v2081
      %2104 = vst.msk [vmem:[#allocation3 + $0x18] sm:$0xff] %vm2100, %v2083
      %2105 = vst.msk [vmem:[#allocation3 + $0x20] sm:$0xff] %vm2100, %v2085
      %2106 = vst.msk [vmem:[#allocation3 + $0x28] sm:$0xff] %vm2100, %v2087
      %2107 = vst.msk [vmem:[#allocation3 + $0x30] sm:$0xff] %vm2100, %v2089
      %2108 = vst.msk [vmem:[#allocation3 + $0x38] sm:$0xff] %vm2100, %v2091
      %v2109 = vld [vmem:[%s893] sm:$0xe]
      %v2110 = vld [vmem:[%s893 + $0x4] sm:$0xf]
      %v2111 = vld [vmem:[%s893 + $0x8] sm:$0x1]
      %v2112 = vld [vmem:[%s893 + $0xc] sm:$0xe]
      %v2113 = vld [vmem:[%s893 + $0x10] sm:$0xf]
      %v2114 = vld [vmem:[%s893 + $0x14] sm:$0x1]
      %v2115 = vld [vmem:[%s893 + $0x18] sm:$0xe]
      %v2116 = vld [vmem:[%s893 + $0x1c] sm:$0xf]
      %v2117 = vld [vmem:[%s893 + $0x20] sm:$0x1]
      %v2118 = vld [vmem:[%s893 + $0x24] sm:$0xe]
      %v2119 = vld [vmem:[%s893 + $0x28] sm:$0xf]
      %v2120 = vld [vmem:[%s893 + $0x2c] sm:$0x1]
      %v2121 = vld [vmem:[%s893 + $0x30] sm:$0xe]
      %v2122 = vld [vmem:[%s893 + $0x34] sm:$0xf]
      %v2123 = vld [vmem:[%s893 + $0x38] sm:$0x1]
      %v2124 = vld [vmem:[%s893 + $0x3c] sm:$0xe]
      %v2125 = vld [vmem:[%s893 + $0x40] sm:$0xf]
      %v2126 = vld [vmem:[%s893 + $0x44] sm:$0x1]
      %v2127 = vld [vmem:[%s893 + $0x48] sm:$0xe]
      %v2128 = vld [vmem:[%s893 + $0x4c] sm:$0xf]
      %v2129 = vld [vmem:[%s893 + $0x50] sm:$0x1]
      %v2130 = vld [vmem:[%s893 + $0x54] sm:$0xe]
      %v2131 = vld [vmem:[%s893 + $0x58] sm:$0xf]
      %v2132 = vld [vmem:[%s893 + $0x5c] sm:$0x1]
      %v2157 = vunpack.c.l.b16 %v2109
      %v2158 = vunpack.c.l.b16 %v2110
      %v2159 = vunpack.c.l.b16 %v2111
      %v2160 = vunpack.c.l.b16 %v2112
      %v2161 = vunpack.c.l.b16 %v2113
      %v2162 = vunpack.c.l.b16 %v2114
      %v2163 = vunpack.c.l.b16 %v2115
      %v2164 = vunpack.c.l.b16 %v2116
      %v2165 = vunpack.c.l.b16 %v2117
      %v2166 = vunpack.c.l.b16 %v2118
      %v2167 = vunpack.c.l.b16 %v2119
      %v2168 = vunpack.c.l.b16 %v2120
      %v2169 = vunpack.c.l.b16 %v2121
      %v2170 = vunpack.c.l.b16 %v2122
      %v2171 = vunpack.c.l.b16 %v2123
      %v2172 = vunpack.c.l.b16 %v2124
      %v2173 = vunpack.c.l.b16 %v2125
      %v2174 = vunpack.c.l.b16 %v2126
      %v2175 = vunpack.c.l.b16 %v2127
      %v2176 = vunpack.c.l.b16 %v2128
      %v2177 = vunpack.c.l.b16 %v2129
      %v2178 = vunpack.c.l.b16 %v2130
      %v2179 = vunpack.c.l.b16 %v2131
      %v2180 = vunpack.c.l.b16 %v2132
      %v2181 = vpack.c.b16 %v2158, %v2157
      %v2182 = vpack.c.b16 %v2159, %v2159
      %v2183 = vpack.c.b16 %v2161, %v2160
      %v2184 = vpack.c.b16 %v2162, %v2162
      %v2185 = vpack.c.b16 %v2164, %v2163
      %v2186 = vpack.c.b16 %v2165, %v2165
      %v2187 = vpack.c.b16 %v2167, %v2166
      %v2188 = vpack.c.b16 %v2168, %v2168
      %v2189 = vpack.c.b16 %v2170, %v2169
      %v2190 = vpack.c.b16 %v2171, %v2171
      %v2191 = vpack.c.b16 %v2173, %v2172
      %v2192 = vpack.c.b16 %v2174, %v2174
      %v2193 = vpack.c.b16 %v2176, %v2175
      %v2194 = vpack.c.b16 %v2177, %v2177
      %v2195 = vpack.c.b16 %v2179, %v2178
      %v2196 = vpack.c.b16 %v2180, %v2180
      %v2197 = vrot.slane %v2181, 1
      %v2198 = vrot.slane %v2182, 1
      %v2199 = vsel %vm1294, %v2197, %v2198
      %v2200 = vrot.slane %v2183, 1
      %v2201 = vrot.slane %v2184, 1
      %v2202 = vsel %vm1294, %v2200, %v2201
      %v2203 = vrot.slane %v2185, 1
      %v2204 = vrot.slane %v2186, 1
      %v2205 = vsel %vm1294, %v2203, %v2204
      %v2206 = vrot.slane %v2187, 1
      %v2207 = vrot.slane %v2188, 1
      %v2208 = vsel %vm1294, %v2206, %v2207
      %v2209 = vrot.slane %v2189, 1
      %v2210 = vrot.slane %v2190, 1
      %v2211 = vsel %vm1294, %v2209, %v2210
      %v2212 = vrot.slane %v2191, 1
      %v2213 = vrot.slane %v2192, 1
      %v2214 = vsel %vm1294, %v2212, %v2213
      %v2215 = vrot.slane %v2193, 1
      %v2216 = vrot.slane %v2194, 1
      %v2217 = vsel %vm1294, %v2215, %v2216
      %v2218 = vrot.slane %v2195, 1
      %v2219 = vrot.slane %v2196, 1
      %v2220 = vsel %vm1294, %v2218, %v2219
      %2221 = vrot.lane.b32.xlu0 %v2199, 32
      %v2222 = vpop.permute.xlu0 %2221
      %2223 = vrot.lane.b32.xlu0 %v2202, 32
      %v2224 = vpop.permute.xlu0 %2223
      %2225 = vrot.lane.b32.xlu0 %v2205, 32
      %v2226 = vpop.permute.xlu0 %2225
      %2227 = vrot.lane.b32.xlu0 %v2208, 32
      %v2228 = vpop.permute.xlu0 %2227
      %2229 = vrot.lane.b32.xlu0 %v2211, 32
      %v2230 = vpop.permute.xlu0 %2229
      %2231 = vrot.lane.b32.xlu0 %v2214, 32
      %v2232 = vpop.permute.xlu0 %2231
      %2233 = vrot.lane.b32.xlu0 %v2217, 32
      %v2234 = vpop.permute.xlu0 %2233
      %2235 = vrot.lane.b32.xlu0 %v2220, 32
      %v2236 = vpop.permute.xlu0 %2235
      %vm2245 = vcmask 294144
      %2246 = vst.msk [vmem:[#allocation3] sm:$0xff] %vm2245, %v2222
      %2247 = vst.msk [vmem:[#allocation3 + $0x8] sm:$0xff] %vm2245, %v2224
      %2248 = vst.msk [vmem:[#allocation3 + $0x10] sm:$0xff] %vm2245, %v2226
      %2249 = vst.msk [vmem:[#allocation3 + $0x18] sm:$0xff] %vm2245, %v2228
      %2250 = vst.msk [vmem:[#allocation3 + $0x20] sm:$0xff] %vm2245, %v2230
      %2251 = vst.msk [vmem:[#allocation3 + $0x28] sm:$0xff] %vm2245, %v2232
      %2252 = vst.msk [vmem:[#allocation3 + $0x30] sm:$0xff] %vm2245, %v2234
      %2253 = vst.msk [vmem:[#allocation3 + $0x38] sm:$0xff] %vm2245, %v2236
      %v2254 = vld [vmem:[#allocation3] sm:$0xff]
      %v2255 = vld [vmem:[#allocation3 + $0x8] sm:$0xff]
      %v2256 = vld [vmem:[#allocation3 + $0x10] sm:$0xff]
      %v2257 = vld [vmem:[#allocation3 + $0x18] sm:$0xff]
      %v2258 = vld [vmem:[#allocation3 + $0x20] sm:$0xff]
      %v2259 = vld [vmem:[#allocation3 + $0x28] sm:$0xff]
      %v2260 = vld [vmem:[#allocation3 + $0x30] sm:$0xff]
      %v2261 = vld [vmem:[#allocation3 + $0x38] sm:$0xff]
      %v2263 = vlaneseq
      %v2264 = vshrl.u32 %v2263, 7
      %v2265 = vsub.s32 0, %v2264
      %v2266 = vrot.slane %v914, %v2265
      %v2273 = vunpack.c.l.b16 %v909
      %v2274 = vunpack.c.l.b16 %v910
      %v2275 = vunpack.c.l.b16 %v911
      %v2276 = vunpack.c.l.b16 %v912
      %v2277 = vunpack.c.l.b16 %v913
      %v2278 = vpack.c.b16 %v2274, %v2273
      %v2279 = vpack.c.b16 %v2276, %v2275
      %v2280 = vpack.c.b16 %v2277, %v2277
      %vm2283 = vcmask 293888
      %v2285 = vsel %vm2283, %v2254, 0
      %v2288 = vsel %vm2283, %v2255, 0
      %v2291 = vsel %vm2283, %v2256, 0
      %v2294 = vsel %vm2283, %v2257, 0
      %v2297 = vsel %vm2283, %v2258, 0
      %v2300 = vsel %vm2283, %v2259, 0
      %v2303 = vsel %vm2283, %v2260, 0
      %v2306 = vsel %vm2283, %v2261, 0
      %vm2308 = vcmask 1041408
      %v2310 = vsel %vm2308, %v2280, 0
      %2312 = vmatprep.subr.bf16.mxu0 0
      %2313 = vmatpush1.bf16.msra.mxu0 %v2278
      %2314 = vmatprep.subr.bf16.mxu0 0
      %2315 = vmatpush1.bf16.msra.mxu0 %v2279
      %2316 = vmatprep.subr.bf16.mxu0 0
      %2317 = vmatpush1.bf16.msra.mxu0 %v2310
      %2318 = vmatprep.subr.bf16.mxu0 0
      %2319 = vmatpush1.bf16.msra.mxu0 0
      %2320 = vmatprep.subr.bf16.mxu0 0
      %2321 = vmatpush1.bf16.msra.mxu0 0
      %2322 = vmatprep.subr.bf16.mxu0 0
      %2323 = vmatpush1.bf16.msra.mxu0 0
      %2324 = vmatprep.subr.bf16.mxu0 0
      %2325 = vmatpush1.bf16.msra.mxu0 0
      %2326 = vmatprep.subr.bf16.mxu0 0
      %2327 = vmatpush1.bf16.msra.mxu0 0
      %2328 = vmatprep.subr.bf16.mxu0 0
      %2329 = vmatpush1.bf16.msra.mxu0 0
      %2330 = vmatprep.subr.bf16.mxu0 0
      %2331 = vmatpush1.bf16.msra.mxu0 0
      %2332 = vmatprep.subr.bf16.mxu0 0
      %2333 = vmatpush1.bf16.msra.mxu0 0
      %2334 = vmatprep.subr.bf16.mxu0 0
      %2335 = vmatpush1.bf16.msra.mxu0 0
      %2336 = vmatprep.subr.bf16.mxu0 0
      %2337 = vmatpush1.bf16.msra.mxu0 0
      %2338 = vmatprep.subr.bf16.mxu0 0
      %2339 = vmatpush1.bf16.msra.mxu0 0
      %2340 = vmatprep.subr.bf16.mxu0 0
      %2341 = vmatpush1.bf16.msra.mxu0 0
      %2342 = vmatprep.subr.bf16.mxu0 0
      %2343 = vmatpush1.bf16.msra.mxu0 0
      %2344 = vmatprep.mubr.bf16.mxu0 0
      %2345 = vmatmul.mubr.bf16.gmra.mrb[0].mxu0 %v2285
      %v2346 = vpop.f32.mrb[0].mxu0
      %v2347 = vadd.f32 %v2266, %v2346
      %v2348 = vpop.f32.mrb[0].mxu0
      %v2349 = vpop.f32.mrb[0].mxu0
      %v2350 = vadd.f32 %v2266, %v2349
      %v2351 = vpop.f32.mrb[0].mxu0
      %2352 = vmatprep.mubr.bf16.mxu0 0
      %2353 = vmatmul.mubr.bf16.gmra.mrb[0].mxu0 %v2288
      %v2354 = vpop.f32.mrb[0].mxu0
      %v2355 = vadd.f32 %v2266, %v2354
      %v2356 = vpop.f32.mrb[0].mxu0
      %v2357 = vpop.f32.mrb[0].mxu0
      %v2358 = vadd.f32 %v2266, %v2357
      %v2359 = vpop.f32.mrb[0].mxu0
      %2360 = vmatprep.mubr.bf16.mxu0 0
      %2361 = vmatmul.mubr.bf16.gmra.mrb[0].mxu0 %v2291
      %v2362 = vpop.f32.mrb[0].mxu0
      %v2363 = vadd.f32 %v2266, %v2362
      %v2364 = vpop.f32.mrb[0].mxu0
      %v2365 = vpop.f32.mrb[0].mxu0
      %v2366 = vadd.f32 %v2266, %v2365
      %v2367 = vpop.f32.mrb[0].mxu0
      %2368 = vmatprep.mubr.bf16.mxu0 0
      %2369 = vmatmul.mubr.bf16.gmra.mrb[0].mxu0 %v2294
      %v2370 = vpop.f32.mrb[0].mxu0
      %v2371 = vadd.f32 %v2266, %v2370
      %v2372 = vpop.f32.mrb[0].mxu0
      %v2373 = vpop.f32.mrb[0].mxu0
      %v2374 = vadd.f32 %v2266, %v2373
      %v2375 = vpop.f32.mrb[0].mxu0
      %2376 = vmatprep.mubr.bf16.mxu0 0
      %2377 = vmatmul.mubr.bf16.gmra.mrb[0].mxu0 %v2297
      %v2378 = vpop.f32.mrb[0].mxu0
      %v2379 = vadd.f32 %v2266, %v2378
      %v2380 = vpop.f32.mrb[0].mxu0
      %v2381 = vpop.f32.mrb[0].mxu0
      %v2382 = vadd.f32 %v2266, %v2381
      %v2383 = vpop.f32.mrb[0].mxu0
      %2384 = vmatprep.mubr.bf16.mxu0 0
      %2385 = vmatmul.mubr.bf16.gmra.mrb[0].mxu0 %v2300
      %v2386 = vpop.f32.mrb[0].mxu0
      %v2387 = vadd.f32 %v2266, %v2386
      %v2388 = vpop.f32.mrb[0].mxu0
      %v2389 = vpop.f32.mrb[0].mxu0
      %v2390 = vadd.f32 %v2266, %v2389
      %v2391 = vpop.f32.mrb[0].mxu0
      %2392 = vmatprep.mubr.bf16.mxu0 0
      %2393 = vmatmul.mubr.bf16.gmra.mrb[0].mxu0 %v2303
      %v2394 = vpop.f32.mrb[0].mxu0
      %v2395 = vadd.f32 %v2266, %v2394
      %v2396 = vpop.f32.mrb[0].mxu0
      %v2397 = vpop.f32.mrb[0].mxu0
      %v2398 = vadd.f32 %v2266, %v2397
      %v2399 = vpop.f32.mrb[0].mxu0
      %2400 = vmatprep.mubr.bf16.mxu0 0
      %2401 = vmatmul.mubr.bf16.gmra.mrb[0].mxu0 %v2306
      %v2402 = vpop.f32.mrb[0].mxu0
      %v2403 = vadd.f32 %v2266, %v2402
      %v2404 = vpop.f32.mrb[0].mxu0
      %v2405 = vpop.f32.mrb[0].mxu0
      %v2406 = vadd.f32 %v2266, %v2405
      %v2407 = vpop.f32.mrb[0].mxu0
      %2408 = vdwg.mxu0
      %2409 = vst.msk [vmem:[#allocation4] sm:$0xff] %vm979, %v2347
      %2410 = vst.msk [vmem:[#allocation4 + $0x8] sm:$0xff] %vm979, %v2350
      %2411 = vst.msk [vmem:[#allocation4 + $0x10] sm:$0xff] %vm979, %v2355
      %2412 = vst.msk [vmem:[#allocation4 + $0x18] sm:$0xff] %vm979, %v2358
      %2413 = vst.msk [vmem:[#allocation4 + $0x20] sm:$0xff] %vm979, %v2363
      %2414 = vst.msk [vmem:[#allocation4 + $0x28] sm:$0xff] %vm979, %v2366
      %2415 = vst.msk [vmem:[#allocation4 + $0x30] sm:$0xff] %vm979, %v2371
      %2416 = vst.msk [vmem:[#allocation4 + $0x38] sm:$0xff] %vm979, %v2374
      %2417 = vst.msk [vmem:[#allocation4 + $0x40] sm:$0xff] %vm979, %v2379
      %2418 = vst.msk [vmem:[#allocation4 + $0x48] sm:$0xff] %vm979, %v2382
      %2419 = vst.msk [vmem:[#allocation4 + $0x50] sm:$0xff] %vm979, %v2387
      %2420 = vst.msk [vmem:[#allocation4 + $0x58] sm:$0xff] %vm979, %v2390
      %2421 = vst.msk [vmem:[#allocation4 + $0x60] sm:$0xff] %vm979, %v2395
      %2422 = vst.msk [vmem:[#allocation4 + $0x68] sm:$0xff] %vm979, %v2398
      %2423 = vst.msk [vmem:[#allocation4 + $0x70] sm:$0xff] %vm979, %v2403
      %2424 = vst.msk [vmem:[#allocation4 + $0x78] sm:$0xff] %vm979, %v2406
      %s2425 = scalar_lea.vmem [#allocation2], 96
      %v2426 = vld [vmem:[%s2425] sm:$0xf]
      %v2427 = vld [vmem:[%s2425 + $0x4] sm:$0xf]
      %v2428 = vld [vmem:[%s2425 + $0xc] sm:$0xf]
      %v2429 = vld [vmem:[%s2425 + $0x10] sm:$0xf]
      %v2430 = vld [vmem:[%s2425 + $0x18] sm:$0xf]
      %v2431 = vld [vmem:[%s2425 + $0x1c] sm:$0xf]
      %v2432 = vld [vmem:[%s2425 + $0x24] sm:$0xf]
      %v2433 = vld [vmem:[%s2425 + $0x28] sm:$0xf]
      %v2434 = vld [vmem:[%s2425 + $0x30] sm:$0xf]
      %v2435 = vld [vmem:[%s2425 + $0x34] sm:$0xf]
      %v2436 = vld [vmem:[%s2425 + $0x3c] sm:$0xf]
      %v2437 = vld [vmem:[%s2425 + $0x40] sm:$0xf]
      %v2438 = vld [vmem:[%s2425 + $0x48] sm:$0xf]
      %v2439 = vld [vmem:[%s2425 + $0x4c] sm:$0xf]
      %v2440 = vld [vmem:[%s2425 + $0x54] sm:$0xf]
      %v2441 = vld [vmem:[%s2425 + $0x58] sm:$0xf]
      %v2458 = vunpack.c.l.b16 %v2426
      %v2459 = vunpack.c.l.b16 %v2427
      %v2460 = vunpack.c.l.b16 %v2428
      %v2461 = vunpack.c.l.b16 %v2429
      %v2462 = vunpack.c.l.b16 %v2430
      %v2463 = vunpack.c.l.b16 %v2431
      %v2464 = vunpack.c.l.b16 %v2432
      %v2465 = vunpack.c.l.b16 %v2433
      %v2466 = vunpack.c.l.b16 %v2434
      %v2467 = vunpack.c.l.b16 %v2435
      %v2468 = vunpack.c.l.b16 %v2436
      %v2469 = vunpack.c.l.b16 %v2437
      %v2470 = vunpack.c.l.b16 %v2438
      %v2471 = vunpack.c.l.b16 %v2439
      %v2472 = vunpack.c.l.b16 %v2440
      %v2473 = vunpack.c.l.b16 %v2441
      %v2474 = vpack.c.b16 %v2459, %v2458
      %v2475 = vpack.c.b16 %v2461, %v2460
      %v2476 = vpack.c.b16 %v2463, %v2462
      %v2477 = vpack.c.b16 %v2465, %v2464
      %v2478 = vpack.c.b16 %v2467, %v2466
      %v2479 = vpack.c.b16 %v2469, %v2468
      %v2480 = vpack.c.b16 %v2471, %v2470
      %v2481 = vpack.c.b16 %v2473, %v2472
      %2490 = vst.msk [vmem:[#allocation3] sm:$0xff] %vm979, %v2474
      %2491 = vst.msk [vmem:[#allocation3 + $0x8] sm:$0xff] %vm979, %v2475
      %2492 = vst.msk [vmem:[#allocation3 + $0x10] sm:$0xff] %vm979, %v2476
      %2493 = vst.msk [vmem:[#allocation3 + $0x18] sm:$0xff] %vm979, %v2477
      %2494 = vst.msk [vmem:[#allocation3 + $0x20] sm:$0xff] %vm979, %v2478
      %2495 = vst.msk [vmem:[#allocation3 + $0x28] sm:$0xff] %vm979, %v2479
      %2496 = vst.msk [vmem:[#allocation3 + $0x30] sm:$0xff] %vm979, %v2480
      %2497 = vst.msk [vmem:[#allocation3 + $0x38] sm:$0xff] %vm979, %v2481
      %v2498 = vld [vmem:[%s2425] sm:$0xf]
      %v2499 = vld [vmem:[%s2425 + $0x4] sm:$0xf]
      %v2500 = vld [vmem:[%s2425 + $0x8] sm:$0x1]
      %v2501 = vld [vmem:[%s2425 + $0xc] sm:$0xf]
      %v2502 = vld [vmem:[%s2425 + $0x10] sm:$0xf]
      %v2503 = vld [vmem:[%s2425 + $0x14] sm:$0x1]
      %v2504 = vld [vmem:[%s2425 + $0x18] sm:$0xf]
      %v2505 = vld [vmem:[%s2425 + $0x1c] sm:$0xf]
      %v2506 = vld [vmem:[%s2425 + $0x20] sm:$0x1]
      %v2507 = vld [vmem:[%s2425 + $0x24] sm:$0xf]
      %v2508 = vld [vmem:[%s2425 + $0x28] sm:$0xf]
      %v2509 = vld [vmem:[%s2425 + $0x2c] sm:$0x1]
      %v2510 = vld [vmem:[%s2425 + $0x30] sm:$0xf]
      %v2511 = vld [vmem:[%s2425 + $0x34] sm:$0xf]
      %v2512 = vld [vmem:[%s2425 + $0x38] sm:$0x1]
      %v2513 = vld [vmem:[%s2425 + $0x3c] sm:$0xf]
      %v2514 = vld [vmem:[%s2425 + $0x40] sm:$0xf]
      %v2515 = vld [vmem:[%s2425 + $0x44] sm:$0x1]
      %v2516 = vld [vmem:[%s2425 + $0x48] sm:$0xf]
      %v2517 = vld [vmem:[%s2425 + $0x4c] sm:$0xf]
      %v2518 = vld [vmem:[%s2425 + $0x50] sm:$0x1]
      %v2519 = vld [vmem:[%s2425 + $0x54] sm:$0xf]
      %v2520 = vld [vmem:[%s2425 + $0x58] sm:$0xf]
      %v2521 = vld [vmem:[%s2425 + $0x5c] sm:$0x1]
      %v2546 = vunpack.c.l.b16 %v2498
      %v2547 = vunpack.c.l.b16 %v2499
      %v2548 = vunpack.c.l.b16 %v2500
      %v2549 = vunpack.c.l.b16 %v2501
      %v2550 = vunpack.c.l.b16 %v2502
      %v2551 = vunpack.c.l.b16 %v2503
      %v2552 = vunpack.c.l.b16 %v2504
      %v2553 = vunpack.c.l.b16 %v2505
      %v2554 = vunpack.c.l.b16 %v2506
      %v2555 = vunpack.c.l.b16 %v2507
      %v2556 = vunpack.c.l.b16 %v2508
      %v2557 = vunpack.c.l.b16 %v2509
      %v2558 = vunpack.c.l.b16 %v2510
      %v2559 = vunpack.c.l.b16 %v2511
      %v2560 = vunpack.c.l.b16 %v2512
      %v2561 = vunpack.c.l.b16 %v2513
      %v2562 = vunpack.c.l.b16 %v2514
      %v2563 = vunpack.c.l.b16 %v2515
      %v2564 = vunpack.c.l.b16 %v2516
      %v2565 = vunpack.c.l.b16 %v2517
      %v2566 = vunpack.c.l.b16 %v2518
      %v2567 = vunpack.c.l.b16 %v2519
      %v2568 = vunpack.c.l.b16 %v2520
      %v2569 = vunpack.c.l.b16 %v2521
      %v2570 = vpack.c.b16 %v2547, %v2546
      %v2571 = vpack.c.b16 %v2548, %v2548
      %v2572 = vpack.c.b16 %v2550, %v2549
      %v2573 = vpack.c.b16 %v2551, %v2551
      %v2574 = vpack.c.b16 %v2553, %v2552
      %v2575 = vpack.c.b16 %v2554, %v2554
      %v2576 = vpack.c.b16 %v2556, %v2555
      %v2577 = vpack.c.b16 %v2557, %v2557
      %v2578 = vpack.c.b16 %v2559, %v2558
      %v2579 = vpack.c.b16 %v2560, %v2560
      %v2580 = vpack.c.b16 %v2562, %v2561
      %v2581 = vpack.c.b16 %v2563, %v2563
      %v2582 = vpack.c.b16 %v2565, %v2564
      %v2583 = vpack.c.b16 %v2566, %v2566
      %v2584 = vpack.c.b16 %v2568, %v2567
      %v2585 = vpack.c.b16 %v2569, %v2569
      %v2587 = vshrl.u32 %v2570, 16
      %v2589 = vshll.u32 %v2570, 16
      %v2591 = vrot.slane %v2589, 1
      %v2592 = vor.u32 %v2587, %v2591
      %v2594 = vshll.u32 %v2571, 16
      %v2596 = vrot.slane %v2594, 1
      %v2597 = vsel %vm1076, %v2592, %v2596
      %v2599 = vshrl.u32 %v2572, 16
      %v2601 = vshll.u32 %v2572, 16
      %v2603 = vrot.slane %v2601, 1
      %v2604 = vor.u32 %v2599, %v2603
      %v2606 = vshll.u32 %v2573, 16
      %v2608 = vrot.slane %v2606, 1
      %v2609 = vsel %vm1076, %v2604, %v2608
      %v2611 = vshrl.u32 %v2574, 16
      %v2613 = vshll.u32 %v2574, 16
      %v2615 = vrot.slane %v2613, 1
      %v2616 = vor.u32 %v2611, %v2615
      %v2618 = vshll.u32 %v2575, 16
      %v2620 = vrot.slane %v2618, 1
      %v2621 = vsel %vm1076, %v2616, %v2620
      %v2623 = vshrl.u32 %v2576, 16
      %v2625 = vshll.u32 %v2576, 16
      %v2627 = vrot.slane %v2625, 1
      %v2628 = vor.u32 %v2623, %v2627
      %v2630 = vshll.u32 %v2577, 16
      %v2632 = vrot.slane %v2630, 1
      %v2633 = vsel %vm1076, %v2628, %v2632
      %v2635 = vshrl.u32 %v2578, 16
      %v2637 = vshll.u32 %v2578, 16
      %v2639 = vrot.slane %v2637, 1
      %v2640 = vor.u32 %v2635, %v2639
      %v2642 = vshll.u32 %v2579, 16
      %v2644 = vrot.slane %v2642, 1
      %v2645 = vsel %vm1076, %v2640, %v2644
      %v2647 = vshrl.u32 %v2580, 16
      %v2649 = vshll.u32 %v2580, 16
      %v2651 = vrot.slane %v2649, 1
      %v2652 = vor.u32 %v2647, %v2651
      %v2654 = vshll.u32 %v2581, 16
      %v2656 = vrot.slane %v2654, 1
      %v2657 = vsel %vm1076, %v2652, %v2656
      %v2659 = vshrl.u32 %v2582, 16
      %v2661 = vshll.u32 %v2582, 16
      %v2663 = vrot.slane %v2661, 1
      %v2664 = vor.u32 %v2659, %v2663
      %v2666 = vshll.u32 %v2583, 16
      %v2668 = vrot.slane %v2666, 1
      %v2669 = vsel %vm1076, %v2664, %v2668
      %v2671 = vshrl.u32 %v2584, 16
      %v2673 = vshll.u32 %v2584, 16
      %v2675 = vrot.slane %v2673, 1
      %v2676 = vor.u32 %v2671, %v2675
      %v2678 = vshll.u32 %v2585, 16
      %v2680 = vrot.slane %v2678, 1
      %v2681 = vsel %vm1076, %v2676, %v2680
      %2682 = vrot.lane.b32.xlu0 %v2597, 4
      %v2683 = vpop.permute.xlu0 %2682
      %2684 = vrot.lane.b32.xlu0 %v2609, 4
      %v2685 = vpop.permute.xlu0 %2684
      %2686 = vrot.lane.b32.xlu0 %v2621, 4
      %v2687 = vpop.permute.xlu0 %2686
      %2688 = vrot.lane.b32.xlu0 %v2633, 4
      %v2689 = vpop.permute.xlu0 %2688
      %2690 = vrot.lane.b32.xlu0 %v2645, 4
      %v2691 = vpop.permute.xlu0 %2690
      %2692 = vrot.lane.b32.xlu0 %v2657, 4
      %v2693 = vpop.permute.xlu0 %2692
      %2694 = vrot.lane.b32.xlu0 %v2669, 4
      %v2695 = vpop.permute.xlu0 %2694
      %2696 = vrot.lane.b32.xlu0 %v2681, 4
      %v2697 = vpop.permute.xlu0 %2696
      %2706 = vst.msk [vmem:[#allocation3] sm:$0xff] %vm1197, %v2683
      %2707 = vst.msk [vmem:[#allocation3 + $0x8] sm:$0xff] %vm1197, %v2685
      %2708 = vst.msk [vmem:[#allocation3 + $0x10] sm:$0xff] %vm1197, %v2687
      %2709 = vst.msk [vmem:[#allocation3 + $0x18] sm:$0xff] %vm1197, %v2689
      %2710 = vst.msk [vmem:[#allocation3 + $0x20] sm:$0xff] %vm1197, %v2691
      %2711 = vst.msk [vmem:[#allocation3 + $0x28] sm:$0xff] %vm1197, %v2693
      %2712 = vst.msk [vmem:[#allocation3 + $0x30] sm:$0xff] %vm1197, %v2695
      %2713 = vst.msk [vmem:[#allocation3 + $0x38] sm:$0xff] %vm1197, %v2697
      %v2714 = vld [vmem:[%s2425] sm:$0xe]
      %v2715 = vld [vmem:[%s2425 + $0x4] sm:$0xf]
      %v2716 = vld [vmem:[%s2425 + $0x8] sm:$0x1]
      %v2717 = vld [vmem:[%s2425 + $0xc] sm:$0xe]
      %v2718 = vld [vmem:[%s2425 + $0x10] sm:$0xf]
      %v2719 = vld [vmem:[%s2425 + $0x14] sm:$0x1]
      %v2720 = vld [vmem:[%s2425 + $0x18] sm:$0xe]
      %v2721 = vld [vmem:[%s2425 + $0x1c] sm:$0xf]
      %v2722 = vld [vmem:[%s2425 + $0x20] sm:$0x1]
      %v2723 = vld [vmem:[%s2425 + $0x24] sm:$0xe]
      %v2724 = vld [vmem:[%s2425 + $0x28] sm:$0xf]
      %v2725 = vld [vmem:[%s2425 + $0x2c] sm:$0x1]
      %v2726 = vld [vmem:[%s2425 + $0x30] sm:$0xe]
      %v2727 = vld [vmem:[%s2425 + $0x34] sm:$0xf]
      %v2728 = vld [vmem:[%s2425 + $0x38] sm:$0x1]
      %v2729 = vld [vmem:[%s2425 + $0x3c] sm:$0xe]
      %v2730 = vld [vmem:[%s2425 + $0x40] sm:$0xf]
      %v2731 = vld [vmem:[%s2425 + $0x44] sm:$0x1]
      %v2732 = vld [vmem:[%s2425 + $0x48] sm:$0xe]
      %v2733 = vld [vmem:[%s2425 + $0x4c] sm:$0xf]
      %v2734 = vld [vmem:[%s2425 + $0x50] sm:$0x1]
      %v2735 = vld [vmem:[%s2425 + $0x54] sm:$0xe]
      %v2736 = vld [vmem:[%s2425 + $0x58] sm:$0xf]
      %v2737 = vld [vmem:[%s2425 + $0x5c] sm:$0x1]
      %v2762 = vunpack.c.l.b16 %v2714
      %v2763 = vunpack.c.l.b16 %v2715
      %v2764 = vunpack.c.l.b16 %v2716
      %v2765 = vunpack.c.l.b16 %v2717
      %v2766 = vunpack.c.l.b16 %v2718
      %v2767 = vunpack.c.l.b16 %v2719
      %v2768 = vunpack.c.l.b16 %v2720
      %v2769 = vunpack.c.l.b16 %v2721
      %v2770 = vunpack.c.l.b16 %v2722
      %v2771 = vunpack.c.l.b16 %v2723
      %v2772 = vunpack.c.l.b16 %v2724
      %v2773 = vunpack.c.l.b16 %v2725
      %v2774 = vunpack.c.l.b16 %v2726
      %v2775 = vunpack.c.l.b16 %v2727
      %v2776 = vunpack.c.l.b16 %v2728
      %v2777 = vunpack.c.l.b16 %v2729
      %v2778 = vunpack.c.l.b16 %v2730
      %v2779 = vunpack.c.l.b16 %v2731
      %v2780 = vunpack.c.l.b16 %v2732
      %v2781 = vunpack.c.l.b16 %v2733
      %v2782 = vunpack.c.l.b16 %v2734
      %v2783 = vunpack.c.l.b16 %v2735
      %v2784 = vunpack.c.l.b16 %v2736
      %v2785 = vunpack.c.l.b16 %v2737
      %v2786 = vpack.c.b16 %v2763, %v2762
      %v2787 = vpack.c.b16 %v2764, %v2764
      %v2788 = vpack.c.b16 %v2766, %v2765
      %v2789 = vpack.c.b16 %v2767, %v2767
      %v2790 = vpack.c.b16 %v2769, %v2768
      %v2791 = vpack.c.b16 %v2770, %v2770
      %v2792 = vpack.c.b16 %v2772, %v2771
      %v2793 = vpack.c.b16 %v2773, %v2773
      %v2794 = vpack.c.b16 %v2775, %v2774
      %v2795 = vpack.c.b16 %v2776, %v2776
      %v2796 = vpack.c.b16 %v2778, %v2777
      %v2797 = vpack.c.b16 %v2779, %v2779
      %v2798 = vpack.c.b16 %v2781, %v2780
      %v2799 = vpack.c.b16 %v2782, %v2782
      %v2800 = vpack.c.b16 %v2784, %v2783
      %v2801 = vpack.c.b16 %v2785, %v2785
      %v2802 = vrot.slane %v2786, 1
      %v2803 = vrot.slane %v2787, 1
      %v2804 = vsel %vm1294, %v2802, %v2803
      %v2805 = vrot.slane %v2788, 1
      %v2806 = vrot.slane %v2789, 1
      %v2807 = vsel %vm1294, %v2805, %v2806
      %v2808 = vrot.slane %v2790, 1
      %v2809 = vrot.slane %v2791, 1
      %v2810 = vsel %vm1294, %v2808, %v2809
      %v2811 = vrot.slane %v2792, 1
      %v2812 = vrot.slane %v2793, 1
      %v2813 = vsel %vm1294, %v2811, %v2812
      %v2814 = vrot.slane %v2794, 1
      %v2815 = vrot.slane %v2795, 1
      %v2816 = vsel %vm1294, %v2814, %v2815
      %v2817 = vrot.slane %v2796, 1
      %v2818 = vrot.slane %v2797, 1
      %v2819 = vsel %vm1294, %v2817, %v2818
      %v2820 = vrot.slane %v2798, 1
      %v2821 = vrot.slane %v2799, 1
      %v2822 = vsel %vm1294, %v2820, %v2821
      %v2823 = vrot.slane %v2800, 1
      %v2824 = vrot.slane %v2801, 1
      %v2825 = vsel %vm1294, %v2823, %v2824
      %2826 = vrot.lane.b32.xlu0 %v2804, 8
      %v2827 = vpop.permute.xlu0 %2826
      %2828 = vrot.lane.b32.xlu0 %v2807, 8
      %v2829 = vpop.permute.xlu0 %2828
      %2830 = vrot.lane.b32.xlu0 %v2810, 8
      %v2831 = vpop.permute.xlu0 %2830
      %2832 = vrot.lane.b32.xlu0 %v2813, 8
      %v2833 = vpop.permute.xlu0 %2832
      %2834 = vrot.lane.b32.xlu0 %v2816, 8
      %v2835 = vpop.permute.xlu0 %2834
      %2836 = vrot.lane.b32.xlu0 %v2819, 8
      %v2837 = vpop.permute.xlu0 %2836
      %2838 = vrot.lane.b32.xlu0 %v2822, 8
      %v2839 = vpop.permute.xlu0 %2838
      %2840 = vrot.lane.b32.xlu0 %v2825, 8
      %v2841 = vpop.permute.xlu0 %2840
      %2850 = vst.msk [vmem:[#allocation3] sm:$0xff] %vm1343, %v2827
      %2851 = vst.msk [vmem:[#allocation3 + $0x8] sm:$0xff] %vm1343, %v2829
      %2852 = vst.msk [vmem:[#allocation3 + $0x10] sm:$0xff] %vm1343, %v2831
      %2853 = vst.msk [vmem:[#allocation3 + $0x18] sm:$0xff] %vm1343, %v2833
      %2854 = vst.msk [vmem:[#allocation3 + $0x20] sm:$0xff] %vm1343, %v2835
      %2855 = vst.msk [vmem:[#allocation3 + $0x28] sm:$0xff] %vm1343, %v2837
      %2856 = vst.msk [vmem:[#allocation3 + $0x30] sm:$0xff] %vm1343, %v2839
      %2857 = vst.msk [vmem:[#allocation3 + $0x38] sm:$0xff] %vm1343, %v2841
      %s2858 = scalar_lea.vmem [#allocation2], 108
      %v2859 = vld [vmem:[%s2858] sm:$0xf]
      %v2860 = vld [vmem:[%s2858 + $0x4] sm:$0xf]
      %v2861 = vld [vmem:[%s2858 + $0xc] sm:$0xf]
      %v2862 = vld [vmem:[%s2858 + $0x10] sm:$0xf]
      %v2863 = vld [vmem:[%s2858 + $0x18] sm:$0xf]
      %v2864 = vld [vmem:[%s2858 + $0x1c] sm:$0xf]
      %v2865 = vld [vmem:[%s2858 + $0x24] sm:$0xf]
      %v2866 = vld [vmem:[%s2858 + $0x28] sm:$0xf]
      %v2867 = vld [vmem:[%s2858 + $0x30] sm:$0xf]
      %v2868 = vld [vmem:[%s2858 + $0x34] sm:$0xf]
      %v2869 = vld [vmem:[%s2858 + $0x3c] sm:$0xf]
      %v2870 = vld [vmem:[%s2858 + $0x40] sm:$0xf]
      %v2871 = vld [vmem:[%s2858 + $0x48] sm:$0xf]
      %v2872 = vld [vmem:[%s2858 + $0x4c] sm:$0xf]
      %v2873 = vld [vmem:[%s2858 + $0x54] sm:$0xf]
      %v2874 = vld [vmem:[%s2858 + $0x58] sm:$0xf]
      %v2891 = vunpack.c.l.b16 %v2859
      %v2892 = vunpack.c.l.b16 %v2860
      %v2893 = vunpack.c.l.b16 %v2861
      %v2894 = vunpack.c.l.b16 %v2862
      %v2895 = vunpack.c.l.b16 %v2863
      %v2896 = vunpack.c.l.b16 %v2864
      %v2897 = vunpack.c.l.b16 %v2865
      %v2898 = vunpack.c.l.b16 %v2866
      %v2899 = vunpack.c.l.b16 %v2867
      %v2900 = vunpack.c.l.b16 %v2868
      %v2901 = vunpack.c.l.b16 %v2869
      %v2902 = vunpack.c.l.b16 %v2870
      %v2903 = vunpack.c.l.b16 %v2871
      %v2904 = vunpack.c.l.b16 %v2872
      %v2905 = vunpack.c.l.b16 %v2873
      %v2906 = vunpack.c.l.b16 %v2874
      %v2907 = vpack.c.b16 %v2892, %v2891
      %v2908 = vpack.c.b16 %v2894, %v2893
      %v2909 = vpack.c.b16 %v2896, %v2895
      %v2910 = vpack.c.b16 %v2898, %v2897
      %v2911 = vpack.c.b16 %v2900, %v2899
      %v2912 = vpack.c.b16 %v2902, %v2901
      %v2913 = vpack.c.b16 %v2904, %v2903
      %v2914 = vpack.c.b16 %v2906, %v2905
      %2915 = vrot.lane.b32.xlu0 %v2907, 12
      %v2916 = vpop.permute.xlu0 %2915
      %2917 = vrot.lane.b32.xlu0 %v2908, 12
      %v2918 = vpop.permute.xlu0 %2917
      %2919 = vrot.lane.b32.xlu0 %v2909, 12
      %v2920 = vpop.permute.xlu0 %2919
      %2921 = vrot.lane.b32.xlu0 %v2910, 12
      %v2922 = vpop.permute.xlu0 %2921
      %2923 = vrot.lane.b32.xlu0 %v2911, 12
      %v2924 = vpop.permute.xlu0 %2923
      %2925 = vrot.lane.b32.xlu0 %v2912, 12
      %v2926 = vpop.permute.xlu0 %2925
      %2927 = vrot.lane.b32.xlu0 %v2913, 12
      %v2928 = vpop.permute.xlu0 %2927
      %2929 = vrot.lane.b32.xlu0 %v2914, 12
      %v2930 = vpop.permute.xlu0 %2929
      %2939 = vst.msk [vmem:[#allocation3] sm:$0xff] %vm1432, %v2916
      %2940 = vst.msk [vmem:[#allocation3 + $0x8] sm:$0xff] %vm1432, %v2918
      %2941 = vst.msk [vmem:[#allocation3 + $0x10] sm:$0xff] %vm1432, %v2920
      %2942 = vst.msk [vmem:[#allocation3 + $0x18] sm:$0xff] %vm1432, %v2922
      %2943 = vst.msk [vmem:[#allocation3 + $0x20] sm:$0xff] %vm1432, %v2924
      %2944 = vst.msk [vmem:[#allocation3 + $0x28] sm:$0xff] %vm1432, %v2926
      %2945 = vst.msk [vmem:[#allocation3 + $0x30] sm:$0xff] %vm1432, %v2928
      %2946 = vst.msk [vmem:[#allocation3 + $0x38] sm:$0xff] %vm1432, %v2930
      %v2947 = vld [vmem:[%s2858] sm:$0xf]
      %v2948 = vld [vmem:[%s2858 + $0x4] sm:$0xf]
      %v2949 = vld [vmem:[%s2858 + $0x8] sm:$0x1]
      %v2950 = vld [vmem:[%s2858 + $0xc] sm:$0xf]
      %v2951 = vld [vmem:[%s2858 + $0x10] sm:$0xf]
      %v2952 = vld [vmem:[%s2858 + $0x14] sm:$0x1]
      %v2953 = vld [vmem:[%s2858 + $0x18] sm:$0xf]
      %v2954 = vld [vmem:[%s2858 + $0x1c] sm:$0xf]
      %v2955 = vld [vmem:[%s2858 + $0x20] sm:$0x1]
      %v2956 = vld [vmem:[%s2858 + $0x24] sm:$0xf]
      %v2957 = vld [vmem:[%s2858 + $0x28] sm:$0xf]
      %v2958 = vld [vmem:[%s2858 + $0x2c] sm:$0x1]
      %v2959 = vld [vmem:[%s2858 + $0x30] sm:$0xf]
      %v2960 = vld [vmem:[%s2858 + $0x34] sm:$0xf]
      %v2961 = vld [vmem:[%s2858 + $0x38] sm:$0x1]
      %v2962 = vld [vmem:[%s2858 + $0x3c] sm:$0xf]
      %v2963 = vld [vmem:[%s2858 + $0x40] sm:$0xf]
      %v2964 = vld [vmem:[%s2858 + $0x44] sm:$0x1]
      %v2965 = vld [vmem:[%s2858 + $0x48] sm:$0xf]
      %v2966 = vld [vmem:[%s2858 + $0x4c] sm:$0xf]
      %v2967 = vld [vmem:[%s2858 + $0x50] sm:$0x1]
      %v2968 = vld [vmem:[%s2858 + $0x54] sm:$0xf]
      %v2969 = vld [vmem:[%s2858 + $0x58] sm:$0xf]
      %v2970 = vld [vmem:[%s2858 + $0x5c] sm:$0x1]
      %v2995 = vunpack.c.l.b16 %v2947
      %v2996 = vunpack.c.l.b16 %v2948
      %v2997 = vunpack.c.l.b16 %v2949
      %v2998 = vunpack.c.l.b16 %v2950
      %v2999 = vunpack.c.l.b16 %v2951
      %v3000 = vunpack.c.l.b16 %v2952
      %v3001 = vunpack.c.l.b16 %v2953
      %v3002 = vunpack.c.l.b16 %v2954
      %v3003 = vunpack.c.l.b16 %v2955
      %v3004 = vunpack.c.l.b16 %v2956
      %v3005 = vunpack.c.l.b16 %v2957
      %v3006 = vunpack.c.l.b16 %v2958
      %v3007 = vunpack.c.l.b16 %v2959
      %v3008 = vunpack.c.l.b16 %v2960
      %v3009 = vunpack.c.l.b16 %v2961
      %v3010 = vunpack.c.l.b16 %v2962
      %v3011 = vunpack.c.l.b16 %v2963
      %v3012 = vunpack.c.l.b16 %v2964
      %v3013 = vunpack.c.l.b16 %v2965
      %v3014 = vunpack.c.l.b16 %v2966
      %v3015 = vunpack.c.l.b16 %v2967
      %v3016 = vunpack.c.l.b16 %v2968
      %v3017 = vunpack.c.l.b16 %v2969
      %v3018 = vunpack.c.l.b16 %v2970
      %v3019 = vpack.c.b16 %v2996, %v2995
      %v3020 = vpack.c.b16 %v2997, %v2997
      %v3021 = vpack.c.b16 %v2999, %v2998
      %v3022 = vpack.c.b16 %v3000, %v3000
      %v3023 = vpack.c.b16 %v3002, %v3001
      %v3024 = vpack.c.b16 %v3003, %v3003
      %v3025 = vpack.c.b16 %v3005, %v3004
      %v3026 = vpack.c.b16 %v3006, %v3006
      %v3027 = vpack.c.b16 %v3008, %v3007
      %v3028 = vpack.c.b16 %v3009, %v3009
      %v3029 = vpack.c.b16 %v3011, %v3010
      %v3030 = vpack.c.b16 %v3012, %v3012
      %v3031 = vpack.c.b16 %v3014, %v3013
      %v3032 = vpack.c.b16 %v3015, %v3015
      %v3033 = vpack.c.b16 %v3017, %v3016
      %v3034 = vpack.c.b16 %v3018, %v3018
      %v3036 = vshrl.u32 %v3019, 16
      %v3038 = vshll.u32 %v3019, 16
      %v3040 = vrot.slane %v3038, 1
      %v3041 = vor.u32 %v3036, %v3040
      %v3043 = vshll.u32 %v3020, 16
      %v3045 = vrot.slane %v3043, 1
      %v3046 = vsel %vm1076, %v3041, %v3045
      %v3048 = vshrl.u32 %v3021, 16
      %v3050 = vshll.u32 %v3021, 16
      %v3052 = vrot.slane %v3050, 1
      %v3053 = vor.u32 %v3048, %v3052
      %v3055 = vshll.u32 %v3022, 16
      %v3057 = vrot.slane %v3055, 1
      %v3058 = vsel %vm1076, %v3053, %v3057
      %v3060 = vshrl.u32 %v3023, 16
      %v3062 = vshll.u32 %v3023, 16
      %v3064 = vrot.slane %v3062, 1
      %v3065 = vor.u32 %v3060, %v3064
      %v3067 = vshll.u32 %v3024, 16
      %v3069 = vrot.slane %v3067, 1
      %v3070 = vsel %vm1076, %v3065, %v3069
      %v3072 = vshrl.u32 %v3025, 16
      %v3074 = vshll.u32 %v3025, 16
      %v3076 = vrot.slane %v3074, 1
      %v3077 = vor.u32 %v3072, %v3076
      %v3079 = vshll.u32 %v3026, 16
      %v3081 = vrot.slane %v3079, 1
      %v3082 = vsel %vm1076, %v3077, %v3081
      %v3084 = vshrl.u32 %v3027, 16
      %v3086 = vshll.u32 %v3027, 16
      %v3088 = vrot.slane %v3086, 1
      %v3089 = vor.u32 %v3084, %v3088
      %v3091 = vshll.u32 %v3028, 16
      %v3093 = vrot.slane %v3091, 1
      %v3094 = vsel %vm1076, %v3089, %v3093
      %v3096 = vshrl.u32 %v3029, 16
      %v3098 = vshll.u32 %v3029, 16
      %v3100 = vrot.slane %v3098, 1
      %v3101 = vor.u32 %v3096, %v3100
      %v3103 = vshll.u32 %v3030, 16
      %v3105 = vrot.slane %v3103, 1
      %v3106 = vsel %vm1076, %v3101, %v3105
      %v3108 = vshrl.u32 %v3031, 16
      %v3110 = vshll.u32 %v3031, 16
      %v3112 = vrot.slane %v3110, 1
      %v3113 = vor.u32 %v3108, %v3112
      %v3115 = vshll.u32 %v3032, 16
      %v3117 = vrot.slane %v3115, 1
      %v3118 = vsel %vm1076, %v3113, %v3117
      %v3120 = vshrl.u32 %v3033, 16
      %v3122 = vshll.u32 %v3033, 16
      %v3124 = vrot.slane %v3122, 1
      %v3125 = vor.u32 %v3120, %v3124
      %v3127 = vshll.u32 %v3034, 16
      %v3129 = vrot.slane %v3127, 1
      %v3130 = vsel %vm1076, %v3125, %v3129
      %3131 = vrot.lane.b32.xlu0 %v3046, 16
      %v3132 = vpop.permute.xlu0 %3131
      %3133 = vrot.lane.b32.xlu0 %v3058, 16
      %v3134 = vpop.permute.xlu0 %3133
      %3135 = vrot.lane.b32.xlu0 %v3070, 16
      %v3136 = vpop.permute.xlu0 %3135
      %3137 = vrot.lane.b32.xlu0 %v3082, 16
      %v3138 = vpop.permute.xlu0 %3137
      %3139 = vrot.lane.b32.xlu0 %v3094, 16
      %v3140 = vpop.permute.xlu0 %3139
      %3141 = vrot.lane.b32.xlu0 %v3106, 16
      %v3142 = vpop.permute.xlu0 %3141
      %3143 = vrot.lane.b32.xlu0 %v3118, 16
      %v3144 = vpop.permute.xlu0 %3143
      %3145 = vrot.lane.b32.xlu0 %v3130, 16
      %v3146 = vpop.permute.xlu0 %3145
      %3155 = vst.msk [vmem:[#allocation3] sm:$0xff] %vm1649, %v3132
      %3156 = vst.msk [vmem:[#allocation3 + $0x8] sm:$0xff] %vm1649, %v3134
      %3157 = vst.msk [vmem:[#allocation3 + $0x10] sm:$0xff] %vm1649, %v3136
      %3158 = vst.msk [vmem:[#allocation3 + $0x18] sm:$0xff] %vm1649, %v3138
      %3159 = vst.msk [vmem:[#allocation3 + $0x20] sm:$0xff] %vm1649, %v3140
      %3160 = vst.msk [vmem:[#allocation3 + $0x28] sm:$0xff] %vm1649, %v3142
      %3161 = vst.msk [vmem:[#allocation3 + $0x30] sm:$0xff] %vm1649, %v3144
      %3162 = vst.msk [vmem:[#allocation3 + $0x38] sm:$0xff] %vm1649, %v3146
      %v3163 = vld [vmem:[%s2858] sm:$0xe]
      %v3164 = vld [vmem:[%s2858 + $0x4] sm:$0xf]
      %v3165 = vld [vmem:[%s2858 + $0x8] sm:$0x1]
      %v3166 = vld [vmem:[%s2858 + $0xc] sm:$0xe]
      %v3167 = vld [vmem:[%s2858 + $0x10] sm:$0xf]
      %v3168 = vld [vmem:[%s2858 + $0x14] sm:$0x1]
      %v3169 = vld [vmem:[%s2858 + $0x18] sm:$0xe]
      %v3170 = vld [vmem:[%s2858 + $0x1c] sm:$0xf]
      %v3171 = vld [vmem:[%s2858 + $0x20] sm:$0x1]
      %v3172 = vld [vmem:[%s2858 + $0x24] sm:$0xe]
      %v3173 = vld [vmem:[%s2858 + $0x28] sm:$0xf]
      %v3174 = vld [vmem:[%s2858 + $0x2c] sm:$0x1]
      %v3175 = vld [vmem:[%s2858 + $0x30] sm:$0xe]
      %v3176 = vld [vmem:[%s2858 + $0x34] sm:$0xf]
      %v3177 = vld [vmem:[%s2858 + $0x38] sm:$0x1]
      %v3178 = vld [vmem:[%s2858 + $0x3c] sm:$0xe]
      %v3179 = vld [vmem:[%s2858 + $0x40] sm:$0xf]
      %v3180 = vld [vmem:[%s2858 + $0x44] sm:$0x1]
      %v3181 = vld [vmem:[%s2858 + $0x48] sm:$0xe]
      %v3182 = vld [vmem:[%s2858 + $0x4c] sm:$0xf]
      %v3183 = vld [vmem:[%s2858 + $0x50] sm:$0x1]
      %v3184 = vld [vmem:[%s2858 + $0x54] sm:$0xe]
      %v3185 = vld [vmem:[%s2858 + $0x58] sm:$0xf]
      %v3186 = vld [vmem:[%s2858 + $0x5c] sm:$0x1]
      %v3211 = vunpack.c.l.b16 %v3163
      %v3212 = vunpack.c.l.b16 %v3164
      %v3213 = vunpack.c.l.b16 %v3165
      %v3214 = vunpack.c.l.b16 %v3166
      %v3215 = vunpack.c.l.b16 %v3167
      %v3216 = vunpack.c.l.b16 %v3168
      %v3217 = vunpack.c.l.b16 %v3169
      %v3218 = vunpack.c.l.b16 %v3170
      %v3219 = vunpack.c.l.b16 %v3171
      %v3220 = vunpack.c.l.b16 %v3172
      %v3221 = vunpack.c.l.b16 %v3173
      %v3222 = vunpack.c.l.b16 %v3174
      %v3223 = vunpack.c.l.b16 %v3175
      %v3224 = vunpack.c.l.b16 %v3176
      %v3225 = vunpack.c.l.b16 %v3177
      %v3226 = vunpack.c.l.b16 %v3178
      %v3227 = vunpack.c.l.b16 %v3179
      %v3228 = vunpack.c.l.b16 %v3180
      %v3229 = vunpack.c.l.b16 %v3181
      %v3230 = vunpack.c.l.b16 %v3182
      %v3231 = vunpack.c.l.b16 %v3183
      %v3232 = vunpack.c.l.b16 %v3184
      %v3233 = vunpack.c.l.b16 %v3185
      %v3234 = vunpack.c.l.b16 %v3186
      %v3235 = vpack.c.b16 %v3212, %v3211
      %v3236 = vpack.c.b16 %v3213, %v3213
      %v3237 = vpack.c.b16 %v3215, %v3214
      %v3238 = vpack.c.b16 %v3216, %v3216
      %v3239 = vpack.c.b16 %v3218, %v3217
      %v3240 = vpack.c.b16 %v3219, %v3219
      %v3241 = vpack.c.b16 %v3221, %v3220
      %v3242 = vpack.c.b16 %v3222, %v3222
      %v3243 = vpack.c.b16 %v3224, %v3223
      %v3244 = vpack.c.b16 %v3225, %v3225
      %v3245 = vpack.c.b16 %v3227, %v3226
      %v3246 = vpack.c.b16 %v3228, %v3228
      %v3247 = vpack.c.b16 %v3230, %v3229
      %v3248 = vpack.c.b16 %v3231, %v3231
      %v3249 = vpack.c.b16 %v3233, %v3232
      %v3250 = vpack.c.b16 %v3234, %v3234
      %v3251 = vrot.slane %v3235, 1
      %v3252 = vrot.slane %v3236, 1
      %v3253 = vsel %vm1294, %v3251, %v3252
      %v3254 = vrot.slane %v3237, 1
      %v3255 = vrot.slane %v3238, 1
      %v3256 = vsel %vm1294, %v3254, %v3255
      %v3257 = vrot.slane %v3239, 1
      %v3258 = vrot.slane %v3240, 1
      %v3259 = vsel %vm1294, %v3257, %v3258
      %v3260 = vrot.slane %v3241, 1
      %v3261 = vrot.slane %v3242, 1
      %v3262 = vsel %vm1294, %v3260, %v3261
      %v3263 = vrot.slane %v3243, 1
      %v3264 = vrot.slane %v3244, 1
      %v3265 = vsel %vm1294, %v3263, %v3264
      %v3266 = vrot.slane %v3245, 1
      %v3267 = vrot.slane %v3246, 1
      %v3268 = vsel %vm1294, %v3266, %v3267
      %v3269 = vrot.slane %v3247, 1
      %v3270 = vrot.slane %v3248, 1
      %v3271 = vsel %vm1294, %v3269, %v3270
      %v3272 = vrot.slane %v3249, 1
      %v3273 = vrot.slane %v3250, 1
      %v3274 = vsel %vm1294, %v3272, %v3273
      %3275 = vrot.lane.b32.xlu0 %v3253, 20
      %v3276 = vpop.permute.xlu0 %3275
      %3277 = vrot.lane.b32.xlu0 %v3256, 20
      %v3278 = vpop.permute.xlu0 %3277
      %3279 = vrot.lane.b32.xlu0 %v3259, 20
      %v3280 = vpop.permute.xlu0 %3279
      %3281 = vrot.lane.b32.xlu0 %v3262, 20
      %v3282 = vpop.permute.xlu0 %3281
      %3283 = vrot.lane.b32.xlu0 %v3265, 20
      %v3284 = vpop.permute.xlu0 %3283
      %3285 = vrot.lane.b32.xlu0 %v3268, 20
      %v3286 = vpop.permute.xlu0 %3285
      %3287 = vrot.lane.b32.xlu0 %v3271, 20
      %v3288 = vpop.permute.xlu0 %3287
      %3289 = vrot.lane.b32.xlu0 %v3274, 20
      %v3290 = vpop.permute.xlu0 %3289
      %3299 = vst.msk [vmem:[#allocation3] sm:$0xff] %vm1794, %v3276
      %3300 = vst.msk [vmem:[#allocation3 + $0x8] sm:$0xff] %vm1794, %v3278
      %3301 = vst.msk [vmem:[#allocation3 + $0x10] sm:$0xff] %vm1794, %v3280
      %3302 = vst.msk [vmem:[#allocation3 + $0x18] sm:$0xff] %vm1794, %v3282
      %3303 = vst.msk [vmem:[#allocation3 + $0x20] sm:$0xff] %vm1794, %v3284
      %3304 = vst.msk [vmem:[#allocation3 + $0x28] sm:$0xff] %vm1794, %v3286
      %3305 = vst.msk [vmem:[#allocation3 + $0x30] sm:$0xff] %vm1794, %v3288
      %3306 = vst.msk [vmem:[#allocation3 + $0x38] sm:$0xff] %vm1794, %v3290
      %s3307 = scalar_lea.vmem [#allocation2], 120
      %v3308 = vld [vmem:[%s3307] sm:$0xf]
      %v3309 = vld [vmem:[%s3307 + $0x4] sm:$0xf]
      %v3310 = vld [vmem:[%s3307 + $0xc] sm:$0xf]
      %v3311 = vld [vmem:[%s3307 + $0x10] sm:$0xf]
      %v3312 = vld [vmem:[%s3307 + $0x18] sm:$0xf]
      %v3313 = vld [vmem:[%s3307 + $0x1c] sm:$0xf]
      %v3314 = vld [vmem:[%s3307 + $0x24] sm:$0xf]
      %v3315 = vld [vmem:[%s3307 + $0x28] sm:$0xf]
      %v3316 = vld [vmem:[%s3307 + $0x30] sm:$0xf]
      %v3317 = vld [vmem:[%s3307 + $0x34] sm:$0xf]
      %v3318 = vld [vmem:[%s3307 + $0x3c] sm:$0xf]
      %v3319 = vld [vmem:[%s3307 + $0x40] sm:$0xf]
      %v3320 = vld [vmem:[%s3307 + $0x48] sm:$0xf]
      %v3321 = vld [vmem:[%s3307 + $0x4c] sm:$0xf]
      %v3322 = vld [vmem:[%s3307 + $0x54] sm:$0xf]
      %v3323 = vld [vmem:[%s3307 + $0x58] sm:$0xf]
      %v3340 = vunpack.c.l.b16 %v3308
      %v3341 = vunpack.c.l.b16 %v3309
      %v3342 = vunpack.c.l.b16 %v3310
      %v3343 = vunpack.c.l.b16 %v3311
      %v3344 = vunpack.c.l.b16 %v3312
      %v3345 = vunpack.c.l.b16 %v3313
      %v3346 = vunpack.c.l.b16 %v3314
      %v3347 = vunpack.c.l.b16 %v3315
      %v3348 = vunpack.c.l.b16 %v3316
      %v3349 = vunpack.c.l.b16 %v3317
      %v3350 = vunpack.c.l.b16 %v3318
      %v3351 = vunpack.c.l.b16 %v3319
      %v3352 = vunpack.c.l.b16 %v3320
      %v3353 = vunpack.c.l.b16 %v3321
      %v3354 = vunpack.c.l.b16 %v3322
      %v3355 = vunpack.c.l.b16 %v3323
      %v3356 = vpack.c.b16 %v3341, %v3340
      %v3357 = vpack.c.b16 %v3343, %v3342
      %v3358 = vpack.c.b16 %v3345, %v3344
      %v3359 = vpack.c.b16 %v3347, %v3346
      %v3360 = vpack.c.b16 %v3349, %v3348
      %v3361 = vpack.c.b16 %v3351, %v3350
      %v3362 = vpack.c.b16 %v3353, %v3352
      %v3363 = vpack.c.b16 %v3355, %v3354
      %3364 = vrot.lane.b32.xlu0 %v3356, 24
      %v3365 = vpop.permute.xlu0 %3364
      %3366 = vrot.lane.b32.xlu0 %v3357, 24
      %v3367 = vpop.permute.xlu0 %3366
      %3368 = vrot.lane.b32.xlu0 %v3358, 24
      %v3369 = vpop.permute.xlu0 %3368
      %3370 = vrot.lane.b32.xlu0 %v3359, 24
      %v3371 = vpop.permute.xlu0 %3370
      %3372 = vrot.lane.b32.xlu0 %v3360, 24
      %v3373 = vpop.permute.xlu0 %3372
      %3374 = vrot.lane.b32.xlu0 %v3361, 24
      %v3375 = vpop.permute.xlu0 %3374
      %3376 = vrot.lane.b32.xlu0 %v3362, 24
      %v3377 = vpop.permute.xlu0 %3376
      %3378 = vrot.lane.b32.xlu0 %v3363, 24
      %v3379 = vpop.permute.xlu0 %3378
      %3388 = vst.msk [vmem:[#allocation3] sm:$0xff] %vm1883, %v3365
      %3389 = vst.msk [vmem:[#allocation3 + $0x8] sm:$0xff] %vm1883, %v3367
      %3390 = vst.msk [vmem:[#allocation3 + $0x10] sm:$0xff] %vm1883, %v3369
      %3391 = vst.msk [vmem:[#allocation3 + $0x18] sm:$0xff] %vm1883, %v3371
      %3392 = vst.msk [vmem:[#allocation3 + $0x20] sm:$0xff] %vm1883, %v3373
      %3393 = vst.msk [vmem:[#allocation3 + $0x28] sm:$0xff] %vm1883, %v3375
      %3394 = vst.msk [vmem:[#allocation3 + $0x30] sm:$0xff] %vm1883, %v3377
      %3395 = vst.msk [vmem:[#allocation3 + $0x38] sm:$0xff] %vm1883, %v3379
      %v3396 = vld [vmem:[%s3307] sm:$0xf]
      %v3397 = vld [vmem:[%s3307 + $0x4] sm:$0xf]
      %v3398 = vld [vmem:[%s3307 + $0x8] sm:$0x1]
      %v3399 = vld [vmem:[%s3307 + $0xc] sm:$0xf]
      %v3400 = vld [vmem:[%s3307 + $0x10] sm:$0xf]
      %v3401 = vld [vmem:[%s3307 + $0x14] sm:$0x1]
      %v3402 = vld [vmem:[%s3307 + $0x18] sm:$0xf]
      %v3403 = vld [vmem:[%s3307 + $0x1c] sm:$0xf]
      %v3404 = vld [vmem:[%s3307 + $0x20] sm:$0x1]
      %v3405 = vld [vmem:[%s3307 + $0x24] sm:$0xf]
      %v3406 = vld [vmem:[%s3307 + $0x28] sm:$0xf]
      %v3407 = vld [vmem:[%s3307 + $0x2c] sm:$0x1]
      %v3408 = vld [vmem:[%s3307 + $0x30] sm:$0xf]
      %v3409 = vld [vmem:[%s3307 + $0x34] sm:$0xf]
      %v3410 = vld [vmem:[%s3307 + $0x38] sm:$0x1]
      %v3411 = vld [vmem:[%s3307 + $0x3c] sm:$0xf]
      %v3412 = vld [vmem:[%s3307 + $0x40] sm:$0xf]
      %v3413 = vld [vmem:[%s3307 + $0x44] sm:$0x1]
      %v3414 = vld [vmem:[%s3307 + $0x48] sm:$0xf]
      %v3415 = vld [vmem:[%s3307 + $0x4c] sm:$0xf]
      %v3416 = vld [vmem:[%s3307 + $0x50] sm:$0x1]
      %v3417 = vld [vmem:[%s3307 + $0x54] sm:$0xf]
      %v3418 = vld [vmem:[%s3307 + $0x58] sm:$0xf]
      %v3419 = vld [vmem:[%s3307 + $0x5c] sm:$0x1]
      %v3444 = vunpack.c.l.b16 %v3396
      %v3445 = vunpack.c.l.b16 %v3397
      %v3446 = vunpack.c.l.b16 %v3398
      %v3447 = vunpack.c.l.b16 %v3399
      %v3448 = vunpack.c.l.b16 %v3400
      %v3449 = vunpack.c.l.b16 %v3401
      %v3450 = vunpack.c.l.b16 %v3402
      %v3451 = vunpack.c.l.b16 %v3403
      %v3452 = vunpack.c.l.b16 %v3404
      %v3453 = vunpack.c.l.b16 %v3405
      %v3454 = vunpack.c.l.b16 %v3406
      %v3455 = vunpack.c.l.b16 %v3407
      %v3456 = vunpack.c.l.b16 %v3408
      %v3457 = vunpack.c.l.b16 %v3409
      %v3458 = vunpack.c.l.b16 %v3410
      %v3459 = vunpack.c.l.b16 %v3411
      %v3460 = vunpack.c.l.b16 %v3412
      %v3461 = vunpack.c.l.b16 %v3413
      %v3462 = vunpack.c.l.b16 %v3414
      %v3463 = vunpack.c.l.b16 %v3415
      %v3464 = vunpack.c.l.b16 %v3416
      %v3465 = vunpack.c.l.b16 %v3417
      %v3466 = vunpack.c.l.b16 %v3418
      %v3467 = vunpack.c.l.b16 %v3419
      %v3468 = vpack.c.b16 %v3445, %v3444
      %v3469 = vpack.c.b16 %v3446, %v3446
      %v3470 = vpack.c.b16 %v3448, %v3447
      %v3471 = vpack.c.b16 %v3449, %v3449
      %v3472 = vpack.c.b16 %v3451, %v3450
      %v3473 = vpack.c.b16 %v3452, %v3452
      %v3474 = vpack.c.b16 %v3454, %v3453
      %v3475 = vpack.c.b16 %v3455, %v3455
      %v3476 = vpack.c.b16 %v3457, %v3456
      %v3477 = vpack.c.b16 %v3458, %v3458
      %v3478 = vpack.c.b16 %v3460, %v3459
      %v3479 = vpack.c.b16 %v3461, %v3461
      %v3480 = vpack.c.b16 %v3463, %v3462
      %v3481 = vpack.c.b16 %v3464, %v3464
      %v3482 = vpack.c.b16 %v3466, %v3465
      %v3483 = vpack.c.b16 %v3467, %v3467
      %v3485 = vshrl.u32 %v3468, 16
      %v3487 = vshll.u32 %v3468, 16
      %v3489 = vrot.slane %v3487, 1
      %v3490 = vor.u32 %v3485, %v3489
      %v3492 = vshll.u32 %v3469, 16
      %v3494 = vrot.slane %v3492, 1
      %v3495 = vsel %vm1076, %v3490, %v3494
      %v3497 = vshrl.u32 %v3470, 16
      %v3499 = vshll.u32 %v3470, 16
      %v3501 = vrot.slane %v3499, 1
      %v3502 = vor.u32 %v3497, %v3501
      %v3504 = vshll.u32 %v3471, 16
      %v3506 = vrot.slane %v3504, 1
      %v3507 = vsel %vm1076, %v3502, %v3506
      %v3509 = vshrl.u32 %v3472, 16
      %v3511 = vshll.u32 %v3472, 16
      %v3513 = vrot.slane %v3511, 1
      %v3514 = vor.u32 %v3509, %v3513
      %v3516 = vshll.u32 %v3473, 16
      %v3518 = vrot.slane %v3516, 1
      %v3519 = vsel %vm1076, %v3514, %v3518
      %v3521 = vshrl.u32 %v3474, 16
      %v3523 = vshll.u32 %v3474, 16
      %v3525 = vrot.slane %v3523, 1
      %v3526 = vor.u32 %v3521, %v3525
      %v3528 = vshll.u32 %v3475, 16
      %v3530 = vrot.slane %v3528, 1
      %v3531 = vsel %vm1076, %v3526, %v3530
      %v3533 = vshrl.u32 %v3476, 16
      %v3535 = vshll.u32 %v3476, 16
      %v3537 = vrot.slane %v3535, 1
      %v3538 = vor.u32 %v3533, %v3537
      %v3540 = vshll.u32 %v3477, 16
      %v3542 = vrot.slane %v3540, 1
      %v3543 = vsel %vm1076, %v3538, %v3542
      %v3545 = vshrl.u32 %v3478, 16
      %v3547 = vshll.u32 %v3478, 16
      %v3549 = vrot.slane %v3547, 1
      %v3550 = vor.u32 %v3545, %v3549
      %v3552 = vshll.u32 %v3479, 16
      %v3554 = vrot.slane %v3552, 1
      %v3555 = vsel %vm1076, %v3550, %v3554
      %v3557 = vshrl.u32 %v3480, 16
      %v3559 = vshll.u32 %v3480, 16
      %v3561 = vrot.slane %v3559, 1
      %v3562 = vor.u32 %v3557, %v3561
      %v3564 = vshll.u32 %v3481, 16
      %v3566 = vrot.slane %v3564, 1
      %v3567 = vsel %vm1076, %v3562, %v3566
      %v3569 = vshrl.u32 %v3482, 16
      %v3571 = vshll.u32 %v3482, 16
      %v3573 = vrot.slane %v3571, 1
      %v3574 = vor.u32 %v3569, %v3573
      %v3576 = vshll.u32 %v3483, 16
      %v3578 = vrot.slane %v3576, 1
      %v3579 = vsel %vm1076, %v3574, %v3578
      %3580 = vrot.lane.b32.xlu0 %v3495, 28
      %v3581 = vpop.permute.xlu0 %3580
      %3582 = vrot.lane.b32.xlu0 %v3507, 28
      %v3583 = vpop.permute.xlu0 %3582
      %3584 = vrot.lane.b32.xlu0 %v3519, 28
      %v3585 = vpop.permute.xlu0 %3584
      %3586 = vrot.lane.b32.xlu0 %v3531, 28
      %v3587 = vpop.permute.xlu0 %3586
      %3588 = vrot.lane.b32.xlu0 %v3543, 28
      %v3589 = vpop.permute.xlu0 %3588
      %3590 = vrot.lane.b32.xlu0 %v3555, 28
      %v3591 = vpop.permute.xlu0 %3590
      %3592 = vrot.lane.b32.xlu0 %v3567, 28
      %v3593 = vpop.permute.xlu0 %3592
      %3594 = vrot.lane.b32.xlu0 %v3579, 28
      %v3595 = vpop.permute.xlu0 %3594
      %3604 = vst.msk [vmem:[#allocation3] sm:$0xff] %vm2100, %v3581
      %3605 = vst.msk [vmem:[#allocation3 + $0x8] sm:$0xff] %vm2100, %v3583
      %3606 = vst.msk [vmem:[#allocation3 + $0x10] sm:$0xff] %vm2100, %v3585
      %3607 = vst.msk [vmem:[#allocation3 + $0x18] sm:$0xff] %vm2100, %v3587
      %3608 = vst.msk [vmem:[#allocation3 + $0x20] sm:$0xff] %vm2100, %v3589
      %3609 = vst.msk [vmem:[#allocation3 + $0x28] sm:$0xff] %vm2100, %v3591
      %3610 = vst.msk [vmem:[#allocation3 + $0x30] sm:$0xff] %vm2100, %v3593
      %3611 = vst.msk [vmem:[#allocation3 + $0x38] sm:$0xff] %vm2100, %v3595
      %v3612 = vld [vmem:[%s3307] sm:$0xe]
      %v3613 = vld [vmem:[%s3307 + $0x4] sm:$0xf]
      %v3614 = vld [vmem:[%s3307 + $0x8] sm:$0x1]
      %v3615 = vld [vmem:[%s3307 + $0xc] sm:$0xe]
      %v3616 = vld [vmem:[%s3307 + $0x10] sm:$0xf]
      %v3617 = vld [vmem:[%s3307 + $0x14] sm:$0x1]
      %v3618 = vld [vmem:[%s3307 + $0x18] sm:$0xe]
      %v3619 = vld [vmem:[%s3307 + $0x1c] sm:$0xf]
      %v3620 = vld [vmem:[%s3307 + $0x20] sm:$0x1]
      %v3621 = vld [vmem:[%s3307 + $0x24] sm:$0xe]
      %v3622 = vld [vmem:[%s3307 + $0x28] sm:$0xf]
      %v3623 = vld [vmem:[%s3307 + $0x2c] sm:$0x1]
      %v3624 = vld [vmem:[%s3307 + $0x30] sm:$0xe]
      %v3625 = vld [vmem:[%s3307 + $0x34] sm:$0xf]
      %v3626 = vld [vmem:[%s3307 + $0x38] sm:$0x1]
      %v3627 = vld [vmem:[%s3307 + $0x3c] sm:$0xe]
      %v3628 = vld [vmem:[%s3307 + $0x40] sm:$0xf]
      %v3629 = vld [vmem:[%s3307 + $0x44] sm:$0x1]
      %v3630 = vld [vmem:[%s3307 + $0x48] sm:$0xe]
      %v3631 = vld [vmem:[%s3307 + $0x4c] sm:$0xf]
      %v3632 = vld [vmem:[%s3307 + $0x50] sm:$0x1]
      %v3633 = vld [vmem:[%s3307 + $0x54] sm:$0xe]
      %v3634 = vld [vmem:[%s3307 + $0x58] sm:$0xf]
      %v3635 = vld [vmem:[%s3307 + $0x5c] sm:$0x1]
      %v3660 = vunpack.c.l.b16 %v3612
      %v3661 = vunpack.c.l.b16 %v3613
      %v3662 = vunpack.c.l.b16 %v3614
      %v3663 = vunpack.c.l.b16 %v3615
      %v3664 = vunpack.c.l.b16 %v3616
      %v3665 = vunpack.c.l.b16 %v3617
      %v3666 = vunpack.c.l.b16 %v3618
      %v3667 = vunpack.c.l.b16 %v3619
      %v3668 = vunpack.c.l.b16 %v3620
      %v3669 = vunpack.c.l.b16 %v3621
      %v3670 = vunpack.c.l.b16 %v3622
      %v3671 = vunpack.c.l.b16 %v3623
      %v3672 = vunpack.c.l.b16 %v3624
      %v3673 = vunpack.c.l.b16 %v3625
      %v3674 = vunpack.c.l.b16 %v3626
      %v3675 = vunpack.c.l.b16 %v3627
      %v3676 = vunpack.c.l.b16 %v3628
      %v3677 = vunpack.c.l.b16 %v3629
      %v3678 = vunpack.c.l.b16 %v3630
      %v3679 = vunpack.c.l.b16 %v3631
      %v3680 = vunpack.c.l.b16 %v3632
      %v3681 = vunpack.c.l.b16 %v3633
      %v3682 = vunpack.c.l.b16 %v3634
      %v3683 = vunpack.c.l.b16 %v3635
      %v3684 = vpack.c.b16 %v3661, %v3660
      %v3685 = vpack.c.b16 %v3662, %v3662
      %v3686 = vpack.c.b16 %v3664, %v3663
      %v3687 = vpack.c.b16 %v3665, %v3665
      %v3688 = vpack.c.b16 %v3667, %v3666
      %v3689 = vpack.c.b16 %v3668, %v3668
      %v3690 = vpack.c.b16 %v3670, %v3669
      %v3691 = vpack.c.b16 %v3671, %v3671
      %v3692 = vpack.c.b16 %v3673, %v3672
      %v3693 = vpack.c.b16 %v3674, %v3674
      %v3694 = vpack.c.b16 %v3676, %v3675
      %v3695 = vpack.c.b16 %v3677, %v3677
      %v3696 = vpack.c.b16 %v3679, %v3678
      %v3697 = vpack.c.b16 %v3680, %v3680
      %v3698 = vpack.c.b16 %v3682, %v3681
      %v3699 = vpack.c.b16 %v3683, %v3683
      %v3700 = vrot.slane %v3684, 1
      %v3701 = vrot.slane %v3685, 1
      %v3702 = vsel %vm1294, %v3700, %v3701
      %v3703 = vrot.slane %v3686, 1
      %v3704 = vrot.slane %v3687, 1
      %v3705 = vsel %vm1294, %v3703, %v3704
      %v3706 = vrot.slane %v3688, 1
      %v3707 = vrot.slane %v3689, 1
      %v3708 = vsel %vm1294, %v3706, %v3707
      %v3709 = vrot.slane %v3690, 1
      %v3710 = vrot.slane %v3691, 1
      %v3711 = vsel %vm1294, %v3709, %v3710
      %v3712 = vrot.slane %v3692, 1
      %v3713 = vrot.slane %v3693, 1
      %v3714 = vsel %vm1294, %v3712, %v3713
      %v3715 = vrot.slane %v3694, 1
      %v3716 = vrot.slane %v3695, 1
      %v3717 = vsel %vm1294, %v3715, %v3716
      %v3718 = vrot.slane %v3696, 1
      %v3719 = vrot.slane %v3697, 1
      %v3720 = vsel %vm1294, %v3718, %v3719
      %v3721 = vrot.slane %v3698, 1
      %v3722 = vrot.slane %v3699, 1
      %v3723 = vsel %vm1294, %v3721, %v3722
      %3724 = vrot.lane.b32.xlu0 %v3702, 32
      %v3725 = vpop.permute.xlu0 %3724
      %3726 = vrot.lane.b32.xlu0 %v3705, 32
      %v3727 = vpop.permute.xlu0 %3726
      %3728 = vrot.lane.b32.xlu0 %v3708, 32
      %v3729 = vpop.permute.xlu0 %3728
      %3730 = vrot.lane.b32.xlu0 %v3711, 32
      %v3731 = vpop.permute.xlu0 %3730
      %3732 = vrot.lane.b32.xlu0 %v3714, 32
      %v3733 = vpop.permute.xlu0 %3732
      %3734 = vrot.lane.b32.xlu0 %v3717, 32
      %v3735 = vpop.permute.xlu0 %3734
      %3736 = vrot.lane.b32.xlu0 %v3720, 32
      %v3737 = vpop.permute.xlu0 %3736
      %3738 = vrot.lane.b32.xlu0 %v3723, 32
      %v3739 = vpop.permute.xlu0 %3738
      %3748 = vst.msk [vmem:[#allocation3] sm:$0xff] %vm2245, %v3725
      %3749 = vst.msk [vmem:[#allocation3 + $0x8] sm:$0xff] %vm2245, %v3727
      %3750 = vst.msk [vmem:[#allocation3 + $0x10] sm:$0xff] %vm2245, %v3729
      %3751 = vst.msk [vmem:[#allocation3 + $0x18] sm:$0xff] %vm2245, %v3731
      %3752 = vst.msk [vmem:[#allocation3 + $0x20] sm:$0xff] %vm2245, %v3733
      %3753 = vst.msk [vmem:[#allocation3 + $0x28] sm:$0xff] %vm2245, %v3735
      %3754 = vst.msk [vmem:[#allocation3 + $0x30] sm:$0xff] %vm2245, %v3737
      %3755 = vst.msk [vmem:[#allocation3 + $0x38] sm:$0xff] %vm2245, %v3739
      %v3756 = vld [vmem:[#allocation3] sm:$0xff]
      %v3757 = vld [vmem:[#allocation3 + $0x8] sm:$0xff]
      %v3758 = vld [vmem:[#allocation3 + $0x10] sm:$0xff]
      %v3759 = vld [vmem:[#allocation3 + $0x18] sm:$0xff]
      %v3760 = vld [vmem:[#allocation3 + $0x20] sm:$0xff]
      %v3761 = vld [vmem:[#allocation3 + $0x28] sm:$0xff]
      %v3762 = vld [vmem:[#allocation3 + $0x30] sm:$0xff]
      %v3763 = vld [vmem:[#allocation3 + $0x38] sm:$0xff]
      %v3765 = vsel %vm2283, %v3756, 0
      %v3768 = vsel %vm2283, %v3757, 0
      %v3771 = vsel %vm2283, %v3758, 0
      %v3774 = vsel %vm2283, %v3759, 0
      %v3777 = vsel %vm2283, %v3760, 0
      %v3780 = vsel %vm2283, %v3761, 0
      %v3783 = vsel %vm2283, %v3762, 0
      %v3786 = vsel %vm2283, %v3763, 0
      %3788 = vmatprep.subr.bf16.mxu0 0
      %3789 = vmatpush1.bf16.msra.mxu0 %v2278
      %3790 = vmatprep.subr.bf16.mxu0 0
      %3791 = vmatpush1.bf16.msra.mxu0 %v2279
      %3792 = vmatprep.subr.bf16.mxu0 0
      %3793 = vmatpush1.bf16.msra.mxu0 %v2310
      %3794 = vmatprep.subr.bf16.mxu0 0
      %3795 = vmatpush1.bf16.msra.mxu0 0
      %3796 = vmatprep.subr.bf16.mxu0 0
      %3797 = vmatpush1.bf16.msra.mxu0 0
      %3798 = vmatprep.subr.bf16.mxu0 0
      %3799 = vmatpush1.bf16.msra.mxu0 0
      %3800 = vmatprep.subr.bf16.mxu0 0
      %3801 = vmatpush1.bf16.msra.mxu0 0
      %3802 = vmatprep.subr.bf16.mxu0 0
      %3803 = vmatpush1.bf16.msra.mxu0 0
      %3804 = vmatprep.subr.bf16.mxu0 0
      %3805 = vmatpush1.bf16.msra.mxu0 0
      %3806 = vmatprep.subr.bf16.mxu0 0
      %3807 = vmatpush1.bf16.msra.mxu0 0
      %3808 = vmatprep.subr.bf16.mxu0 0
      %3809 = vmatpush1.bf16.msra.mxu0 0
      %3810 = vmatprep.subr.bf16.mxu0 0
      %3811 = vmatpush1.bf16.msra.mxu0 0
      %3812 = vmatprep.subr.bf16.mxu0 0
      %3813 = vmatpush1.bf16.msra.mxu0 0
      %3814 = vmatprep.subr.bf16.mxu0 0
      %3815 = vmatpush1.bf16.msra.mxu0 0
      %3816 = vmatprep.subr.bf16.mxu0 0
      %3817 = vmatpush1.bf16.msra.mxu0 0
      %3818 = vmatprep.subr.bf16.mxu0 0
      %3819 = vmatpush1.bf16.msra.mxu0 0
      %3820 = vmatprep.mubr.bf16.mxu0 0
      %3821 = vmatmul.mubr.bf16.gmra.mrb[0].mxu0 %v3765
      %v3822 = vpop.f32.mrb[0].mxu0
      %v3823 = vadd.f32 %v2266, %v3822
      %v3824 = vpop.f32.mrb[0].mxu0
      %v3825 = vpop.f32.mrb[0].mxu0
      %v3826 = vadd.f32 %v2266, %v3825
      %v3827 = vpop.f32.mrb[0].mxu0
      %3828 = vmatprep.mubr.bf16.mxu0 0
      %3829 = vmatmul.mubr.bf16.gmra.mrb[0].mxu0 %v3768
      %v3830 = vpop.f32.mrb[0].mxu0
      %v3831 = vadd.f32 %v2266, %v3830
      %v3832 = vpop.f32.mrb[0].mxu0
      %v3833 = vpop.f32.mrb[0].mxu0
      %v3834 = vadd.f32 %v2266, %v3833
      %v3835 = vpop.f32.mrb[0].mxu0
      %3836 = vmatprep.mubr.bf16.mxu0 0
      %3837 = vmatmul.mubr.bf16.gmra.mrb[0].mxu0 %v3771
      %v3838 = vpop.f32.mrb[0].mxu0
      %v3839 = vadd.f32 %v2266, %v3838
      %v3840 = vpop.f32.mrb[0].mxu0
      %v3841 = vpop.f32.mrb[0].mxu0
      %v3842 = vadd.f32 %v2266, %v3841
      %v3843 = vpop.f32.mrb[0].mxu0
      %3844 = vmatprep.mubr.bf16.mxu0 0
      %3845 = vmatmul.mubr.bf16.gmra.mrb[0].mxu0 %v3774
      %v3846 = vpop.f32.mrb[0].mxu0
      %v3847 = vadd.f32 %v2266, %v3846
      %v3848 = vpop.f32.mrb[0].mxu0
      %v3849 = vpop.f32.mrb[0].mxu0
      %v3850 = vadd.f32 %v2266, %v3849
      %v3851 = vpop.f32.mrb[0].mxu0
      %3852 = vmatprep.mubr.bf16.mxu0 0
      %3853 = vmatmul.mubr.bf16.gmra.mrb[0].mxu0 %v3777
      %v3854 = vpop.f32.mrb[0].mxu0
      %v3855 = vadd.f32 %v2266, %v3854
      %v3856 = vpop.f32.mrb[0].mxu0
      %v3857 = vpop.f32.mrb[0].mxu0
      %v3858 = vadd.f32 %v2266, %v3857
      %v3859 = vpop.f32.mrb[0].mxu0
      %3860 = vmatprep.mubr.bf16.mxu0 0
      %3861 = vmatmul.mubr.bf16.gmra.mrb[0].mxu0 %v3780
      %v3862 = vpop.f32.mrb[0].mxu0
      %v3863 = vadd.f32 %v2266, %v3862
      %v3864 = vpop.f32.mrb[0].mxu0
      %v3865 = vpop.f32.mrb[0].mxu0
      %v3866 = vadd.f32 %v2266, %v3865
      %v3867 = vpop.f32.mrb[0].mxu0
      %3868 = vmatprep.mubr.bf16.mxu0 0
      %3869 = vmatmul.mubr.bf16.gmra.mrb[0].mxu0 %v3783
      %v3870 = vpop.f32.mrb[0].mxu0
      %v3871 = vadd.f32 %v2266, %v3870
      %v3872 = vpop.f32.mrb[0].mxu0
      %v3873 = vpop.f32.mrb[0].mxu0
      %v3874 = vadd.f32 %v2266, %v3873
      %v3875 = vpop.f32.mrb[0].mxu0
      %3876 = vmatprep.mubr.bf16.mxu0 0
      %3877 = vmatmul.mubr.bf16.gmra.mrb[0].mxu0 %v3786
      %v3878 = vpop.f32.mrb[0].mxu0
      %v3879 = vadd.f32 %v2266, %v3878
      %v3880 = vpop.f32.mrb[0].mxu0
      %v3881 = vpop.f32.mrb[0].mxu0
      %v3882 = vadd.f32 %v2266, %v3881
      %v3883 = vpop.f32.mrb[0].mxu0
      %3884 = vdwg.mxu0
      %s3885 = scalar_lea.vmem [#allocation4], 128
      %3886 = vst.msk [vmem:[%s3885] sm:$0xff] %vm979, %v3823
      %3887 = vst.msk [vmem:[%s3885 + $0x8] sm:$0xff] %vm979, %v3826
      %3888 = vst.msk [vmem:[%s3885 + $0x10] sm:$0xff] %vm979, %v3831
      %3889 = vst.msk [vmem:[%s3885 + $0x18] sm:$0xff] %vm979, %v3834
      %3890 = vst.msk [vmem:[%s3885 + $0x20] sm:$0xff] %vm979, %v3839
      %3891 = vst.msk [vmem:[%s3885 + $0x28] sm:$0xff] %vm979, %v3842
      %3892 = vst.msk [vmem:[%s3885 + $0x30] sm:$0xff] %vm979, %v3847
      %3893 = vst.msk [vmem:[%s3885 + $0x38] sm:$0xff] %vm979, %v3850
      %3894 = vst.msk [vmem:[%s3885 + $0x40] sm:$0xff] %vm979, %v3855
      %3895 = vst.msk [vmem:[%s3885 + $0x48] sm:$0xff] %vm979, %v3858
      %3896 = vst.msk [vmem:[%s3885 + $0x50] sm:$0xff] %vm979, %v3863
      %3897 = vst.msk [vmem:[%s3885 + $0x58] sm:$0xff] %vm979, %v3866
      %3898 = vst.msk [vmem:[%s3885 + $0x60] sm:$0xff] %vm979, %v3871
      %3899 = vst.msk [vmem:[%s3885 + $0x68] sm:$0xff] %vm979, %v3874
      %3900 = vst.msk [vmem:[%s3885 + $0x70] sm:$0xff] %vm979, %v3879
      %3901 = vst.msk [vmem:[%s3885 + $0x78] sm:$0xff] %vm979, %v3882
      %v3902 = vld [vmem:[#allocation4] sm:$0xff]
      %v3903 = vld [vmem:[#allocation4 + $0x8] sm:$0xff]
      %v3904 = vld [vmem:[#allocation4 + $0x10] sm:$0xff]
      %v3905 = vld [vmem:[#allocation4 + $0x18] sm:$0xff]
      %v3906 = vld [vmem:[#allocation4 + $0x20] sm:$0xff]
      %v3907 = vld [vmem:[#allocation4 + $0x28] sm:$0xff]
      %v3908 = vld [vmem:[#allocation4 + $0x30] sm:$0xff]
      %v3909 = vld [vmem:[#allocation4 + $0x38] sm:$0xff]
      %v3910 = vld [vmem:[#allocation4 + $0x40] sm:$0xff]
      %v3911 = vld [vmem:[#allocation4 + $0x48] sm:$0xff]
      %v3912 = vld [vmem:[#allocation4 + $0x50] sm:$0xff]
      %v3913 = vld [vmem:[#allocation4 + $0x58] sm:$0xff]
      %v3914 = vld [vmem:[#allocation4 + $0x60] sm:$0xff]
      %v3915 = vld [vmem:[#allocation4 + $0x68] sm:$0xff]
      %v3916 = vld [vmem:[#allocation4 + $0x70] sm:$0xff]
      %v3917 = vld [vmem:[#allocation4 + $0x78] sm:$0xff]
      %v3918 = vld [vmem:[#allocation4 + $0x80] sm:$0xff]
      %v3919 = vld [vmem:[#allocation4 + $0x88] sm:$0xff]
      %v3920 = vld [vmem:[#allocation4 + $0x90] sm:$0xff]
      %v3921 = vld [vmem:[#allocation4 + $0x98] sm:$0xff]
      %v3922 = vld [vmem:[#allocation4 + $0xa0] sm:$0xff]
      %v3923 = vld [vmem:[#allocation4 + $0xa8] sm:$0xff]
      %v3924 = vld [vmem:[#allocation4 + $0xb0] sm:$0xff]
      %v3925 = vld [vmem:[#allocation4 + $0xb8] sm:$0xff]
      %v3926 = vld [vmem:[#allocation4 + $0xc0] sm:$0xff]
      %v3927 = vld [vmem:[#allocation4 + $0xc8] sm:$0xff]
      %v3928 = vld [vmem:[#allocation4 + $0xd0] sm:$0xff]
      %v3929 = vld [vmem:[#allocation4 + $0xd8] sm:$0xff]
      %v3930 = vld [vmem:[#allocation4 + $0xe0] sm:$0xff]
      %v3931 = vld [vmem:[#allocation4 + $0xe8] sm:$0xff]
      %v3932 = vld [vmem:[#allocation4 + $0xf0] sm:$0xff]
      %v3933 = vld [vmem:[#allocation4 + $0xf8] sm:$0xff]
      %v3934 = vsel %vm979, %v3902, 0.0
      %v3935 = vsel %vm979, %v3903, 0.0
      %v3936 = vadd.f32 %v3934, %v3935
      %v3937 = vsel %vm979, %v3904, 0.0
      %v3938 = vadd.f32 %v3936, %v3937
      %v3939 = vsel %vm979, %v3905, 0.0
      %v3940 = vadd.f32 %v3938, %v3939
      %v3941 = vsel %vm979, %v3906, 0.0
      %v3942 = vadd.f32 %v3940, %v3941
      %v3943 = vsel %vm979, %v3907, 0.0
      %v3944 = vadd.f32 %v3942, %v3943
      %v3945 = vsel %vm979, %v3908, 0.0
      %v3946 = vadd.f32 %v3944, %v3945
      %v3947 = vsel %vm979, %v3909, 0.0
      %v3948 = vadd.f32 %v3946, %v3947
      %v3949 = vsel %vm979, %v3910, 0.0
      %v3950 = vadd.f32 %v3948, %v3949
      %v3951 = vsel %vm979, %v3911, 0.0
      %v3952 = vadd.f32 %v3950, %v3951
      %v3953 = vsel %vm979, %v3912, 0.0
      %v3954 = vadd.f32 %v3952, %v3953
      %v3955 = vsel %vm979, %v3913, 0.0
      %v3956 = vadd.f32 %v3954, %v3955
      %v3957 = vsel %vm979, %v3914, 0.0
      %v3958 = vadd.f32 %v3956, %v3957
      %v3959 = vsel %vm979, %v3915, 0.0
      %v3960 = vadd.f32 %v3958, %v3959
      %v3961 = vsel %vm979, %v3916, 0.0
      %v3962 = vadd.f32 %v3960, %v3961
      %v3963 = vsel %vm979, %v3917, 0.0
      %v3964 = vadd.f32 %v3962, %v3963
      %v3965 = vsel %vm979, %v3918, 0.0
      %v3966 = vadd.f32 %v3964, %v3965
      %v3967 = vsel %vm979, %v3919, 0.0
      %v3968 = vadd.f32 %v3966, %v3967
      %v3969 = vsel %vm979, %v3920, 0.0
      %v3970 = vadd.f32 %v3968, %v3969
      %v3971 = vsel %vm979, %v3921, 0.0
      %v3972 = vadd.f32 %v3970, %v3971
      %v3973 = vsel %vm979, %v3922, 0.0
      %v3974 = vadd.f32 %v3972, %v3973
      %v3975 = vsel %vm979, %v3923, 0.0
      %v3976 = vadd.f32 %v3974, %v3975
      %v3977 = vsel %vm979, %v3924, 0.0
      %v3978 = vadd.f32 %v3976, %v3977
      %v3979 = vsel %vm979, %v3925, 0.0
      %v3980 = vadd.f32 %v3978, %v3979
      %v3981 = vsel %vm979, %v3926, 0.0
      %v3982 = vadd.f32 %v3980, %v3981
      %v3983 = vsel %vm979, %v3927, 0.0
      %v3984 = vadd.f32 %v3982, %v3983
      %v3985 = vsel %vm979, %v3928, 0.0
      %v3986 = vadd.f32 %v3984, %v3985
      %v3987 = vsel %vm979, %v3929, 0.0
      %v3988 = vadd.f32 %v3986, %v3987
      %v3989 = vsel %vm979, %v3930, 0.0
      %v3990 = vadd.f32 %v3988, %v3989
      %v3991 = vsel %vm979, %v3931, 0.0
      %v3992 = vadd.f32 %v3990, %v3991
      %v3993 = vsel %vm979, %v3932, 0.0
      %v3994 = vadd.f32 %v3992, %v3993
      %v3995 = vsel %vm979, %v3933, 0.0
      %v3996 = vadd.f32 %v3994, %v3995
      %v3997 = vrot.slane %v3996, 4
      %v3998 = vadd.f32 %v3996, %v3997
      %v3999 = vrot.slane %v3998, 2
      %v4000 = vadd.f32 %v3998, %v3999
      %v4001 = vrot.slane %v4000, 1
      %v4002 = vadd.f32 %v4000, %v4001
      %v4003 = vmul.f32 %v4002, 0.00390625
      %v4004 = vsub.f32 %v3902, %v4003
      %v4005 = vsub.f32 %v3903, %v4003
      %v4006 = vsub.f32 %v3904, %v4003
      %v4007 = vsub.f32 %v3905, %v4003
      %v4008 = vsub.f32 %v3906, %v4003
      %v4009 = vsub.f32 %v3907, %v4003
      %v4010 = vsub.f32 %v3908, %v4003
      %v4011 = vsub.f32 %v3909, %v4003
      %v4012 = vsub.f32 %v3910, %v4003
      %v4013 = vsub.f32 %v3911, %v4003
      %v4014 = vsub.f32 %v3912, %v4003
      %v4015 = vsub.f32 %v3913, %v4003
      %v4016 = vsub.f32 %v3914, %v4003
      %v4017 = vsub.f32 %v3915, %v4003
      %v4018 = vsub.f32 %v3916, %v4003
      %v4019 = vsub.f32 %v3917, %v4003
      %v4020 = vsub.f32 %v3918, %v4003
      %v4021 = vsub.f32 %v3919, %v4003
      %v4022 = vsub.f32 %v3920, %v4003
      %v4023 = vsub.f32 %v3921, %v4003
      %v4024 = vsub.f32 %v3922, %v4003
      %v4025 = vsub.f32 %v3923, %v4003
      %v4026 = vsub.f32 %v3924, %v4003
      %v4027 = vsub.f32 %v3925, %v4003
      %v4028 = vsub.f32 %v3926, %v4003
      %v4029 = vsub.f32 %v3927, %v4003
      %v4030 = vsub.f32 %v3928, %v4003
      %v4031 = vsub.f32 %v3929, %v4003
      %v4032 = vsub.f32 %v3930, %v4003
      %v4033 = vsub.f32 %v3931, %v4003
      %v4034 = vsub.f32 %v3932, %v4003
      %v4035 = vsub.f32 %v3933, %v4003
      %v4036 = vmul.f32 %v4004, %v4004
      %v4037 = vmul.f32 %v4005, %v4005
      %v4038 = vmul.f32 %v4006, %v4006
      %v4039 = vmul.f32 %v4007, %v4007
      %v4040 = vmul.f32 %v4008, %v4008
      %v4041 = vmul.f32 %v4009, %v4009
      %v4042 = vmul.f32 %v4010, %v4010
      %v4043 = vmul.f32 %v4011, %v4011
      %v4044 = vmul.f32 %v4012, %v4012
      %v4045 = vmul.f32 %v4013, %v4013
      %v4046 = vmul.f32 %v4014, %v4014
      %v4047 = vmul.f32 %v4015, %v4015
      %v4048 = vmul.f32 %v4016, %v4016
      %v4049 = vmul.f32 %v4017, %v4017
      %v4050 = vmul.f32 %v4018, %v4018
      %v4051 = vmul.f32 %v4019, %v4019
      %v4052 = vmul.f32 %v4020, %v4020
      %v4053 = vmul.f32 %v4021, %v4021
      %v4054 = vmul.f32 %v4022, %v4022
      %v4055 = vmul.f32 %v4023, %v4023
      %v4056 = vmul.f32 %v4024, %v4024
      %v4057 = vmul.f32 %v4025, %v4025
      %v4058 = vmul.f32 %v4026, %v4026
      %v4059 = vmul.f32 %v4027, %v4027
      %v4060 = vmul.f32 %v4028, %v4028
      %v4061 = vmul.f32 %v4029, %v4029
      %v4062 = vmul.f32 %v4030, %v4030
      %v4063 = vmul.f32 %v4031, %v4031
      %v4064 = vmul.f32 %v4032, %v4032
      %v4065 = vmul.f32 %v4033, %v4033
      %v4066 = vmul.f32 %v4034, %v4034
      %v4067 = vmul.f32 %v4035, %v4035
      %v4068 = vsel %vm979, %v4036, 0.0
      %v4069 = vsel %vm979, %v4037, 0.0
      %v4070 = vadd.f32 %v4068, %v4069
      %v4071 = vsel %vm979, %v4038, 0.0
      %v4072 = vadd.f32 %v4070, %v4071
      %v4073 = vsel %vm979, %v4039, 0.0
      %v4074 = vadd.f32 %v4072, %v4073
      %v4075 = vsel %vm979, %v4040, 0.0
      %v4076 = vadd.f32 %v4074, %v4075
      %v4077 = vsel %vm979, %v4041, 0.0
      %v4078 = vadd.f32 %v4076, %v4077
      %v4079 = vsel %vm979, %v4042, 0.0
      %v4080 = vadd.f32 %v4078, %v4079
      %v4081 = vsel %vm979, %v4043, 0.0
      %v4082 = vadd.f32 %v4080, %v4081
      %v4083 = vsel %vm979, %v4044, 0.0
      %v4084 = vadd.f32 %v4082, %v4083
      %v4085 = vsel %vm979, %v4045, 0.0
      %v4086 = vadd.f32 %v4084, %v4085
      %v4087 = vsel %vm979, %v4046, 0.0
      %v4088 = vadd.f32 %v4086, %v4087
      %v4089 = vsel %vm979, %v4047, 0.0
      %v4090 = vadd.f32 %v4088, %v4089
      %v4091 = vsel %vm979, %v4048, 0.0
      %v4092 = vadd.f32 %v4090, %v4091
      %v4093 = vsel %vm979, %v4049, 0.0
      %v4094 = vadd.f32 %v4092, %v4093
      %v4095 = vsel %vm979, %v4050, 0.0
      %v4096 = vadd.f32 %v4094, %v4095
      %v4097 = vsel %vm979, %v4051, 0.0
      %v4098 = vadd.f32 %v4096, %v4097
      %v4099 = vsel %vm979, %v4052, 0.0
      %v4100 = vadd.f32 %v4098, %v4099
      %v4101 = vsel %vm979, %v4053, 0.0
      %v4102 = vadd.f32 %v4100, %v4101
      %v4103 = vsel %vm979, %v4054, 0.0
      %v4104 = vadd.f32 %v4102, %v4103
      %v4105 = vsel %vm979, %v4055, 0.0
      %v4106 = vadd.f32 %v4104, %v4105
      %v4107 = vsel %vm979, %v4056, 0.0
      %v4108 = vadd.f32 %v4106, %v4107
      %v4109 = vsel %vm979, %v4057, 0.0
      %v4110 = vadd.f32 %v4108, %v4109
      %v4111 = vsel %vm979, %v4058, 0.0
      %v4112 = vadd.f32 %v4110, %v4111
      %v4113 = vsel %vm979, %v4059, 0.0
      %v4114 = vadd.f32 %v4112, %v4113
      %v4115 = vsel %vm979, %v4060, 0.0
      %v4116 = vadd.f32 %v4114, %v4115
      %v4117 = vsel %vm979, %v4061, 0.0
      %v4118 = vadd.f32 %v4116, %v4117
      %v4119 = vsel %vm979, %v4062, 0.0
      %v4120 = vadd.f32 %v4118, %v4119
      %v4121 = vsel %vm979, %v4063, 0.0
      %v4122 = vadd.f32 %v4120, %v4121
      %v4123 = vsel %vm979, %v4064, 0.0
      %v4124 = vadd.f32 %v4122, %v4123
      %v4125 = vsel %vm979, %v4065, 0.0
      %v4126 = vadd.f32 %v4124, %v4125
      %v4127 = vsel %vm979, %v4066, 0.0
      %v4128 = vadd.f32 %v4126, %v4127
      %v4129 = vsel %vm979, %v4067, 0.0
      %v4130 = vadd.f32 %v4128, %v4129
      %v4131 = vrot.slane %v4130, 4
      %v4132 = vadd.f32 %v4130, %v4131
      %v4133 = vrot.slane %v4132, 2
      %v4134 = vadd.f32 %v4132, %v4133
      %v4135 = vrot.slane %v4134, 1
      %v4136 = vadd.f32 %v4134, %v4135
      %v4137 = vmul.f32 %v4136, 0.00390625
      %v4138 = vadd.f32 %v4137, 1e-05
      %v4139 = vrsqrt.pop %v4138
      %v4140 = vmul.f32 %v4004, %v4139
      %v4141 = vmul.f32 %v4005, %v4139
      %v4142 = vmul.f32 %v4006, %v4139
      %v4143 = vmul.f32 %v4007, %v4139
      %v4144 = vmul.f32 %v4008, %v4139
      %v4145 = vmul.f32 %v4009, %v4139
      %v4146 = vmul.f32 %v4010, %v4139
      %v4147 = vmul.f32 %v4011, %v4139
      %v4148 = vmul.f32 %v4012, %v4139
      %v4149 = vmul.f32 %v4013, %v4139
      %v4150 = vmul.f32 %v4014, %v4139
      %v4151 = vmul.f32 %v4015, %v4139
      %v4152 = vmul.f32 %v4016, %v4139
      %v4153 = vmul.f32 %v4017, %v4139
      %v4154 = vmul.f32 %v4018, %v4139
      %v4155 = vmul.f32 %v4019, %v4139
      %v4156 = vmul.f32 %v4020, %v4139
      %v4157 = vmul.f32 %v4021, %v4139
      %v4158 = vmul.f32 %v4022, %v4139
      %v4159 = vmul.f32 %v4023, %v4139
      %v4160 = vmul.f32 %v4024, %v4139
      %v4161 = vmul.f32 %v4025, %v4139
      %v4162 = vmul.f32 %v4026, %v4139
      %v4163 = vmul.f32 %v4027, %v4139
      %v4164 = vmul.f32 %v4028, %v4139
      %v4165 = vmul.f32 %v4029, %v4139
      %v4166 = vmul.f32 %v4030, %v4139
      %v4167 = vmul.f32 %v4031, %v4139
      %v4168 = vmul.f32 %v4032, %v4139
      %v4169 = vmul.f32 %v4033, %v4139
      %v4170 = vmul.f32 %v4034, %v4139
      %v4171 = vmul.f32 %v4035, %v4139
      %v4172 = vmax.f32 %v4140, 0.0
      %v4173 = vmax.f32 %v4141, 0.0
      %v4174 = vmax.f32 %v4142, 0.0
      %v4175 = vmax.f32 %v4143, 0.0
      %v4176 = vmax.f32 %v4144, 0.0
      %v4177 = vmax.f32 %v4145, 0.0
      %v4178 = vmax.f32 %v4146, 0.0
      %v4179 = vmax.f32 %v4147, 0.0
      %v4180 = vmax.f32 %v4148, 0.0
      %v4181 = vmax.f32 %v4149, 0.0
      %v4182 = vmax.f32 %v4150, 0.0
      %v4183 = vmax.f32 %v4151, 0.0
      %v4184 = vmax.f32 %v4152, 0.0
      %v4185 = vmax.f32 %v4153, 0.0
      %v4186 = vmax.f32 %v4154, 0.0
      %v4187 = vmax.f32 %v4155, 0.0
      %v4188 = vmax.f32 %v4156, 0.0
      %v4189 = vmax.f32 %v4157, 0.0
      %v4190 = vmax.f32 %v4158, 0.0
      %v4191 = vmax.f32 %v4159, 0.0
      %v4192 = vmax.f32 %v4160, 0.0
      %v4193 = vmax.f32 %v4161, 0.0
      %v4194 = vmax.f32 %v4162, 0.0
      %v4195 = vmax.f32 %v4163, 0.0
      %v4196 = vmax.f32 %v4164, 0.0
      %v4197 = vmax.f32 %v4165, 0.0
      %v4198 = vmax.f32 %v4166, 0.0
      %v4199 = vmax.f32 %v4167, 0.0
      %v4200 = vmax.f32 %v4168, 0.0
      %v4201 = vmax.f32 %v4169, 0.0
      %v4202 = vmax.f32 %v4170, 0.0
      %v4203 = vmax.f32 %v4171, 0.0
      %v4204 = vpack.c.bf16 %v4173, %v4172
      %v4205 = vpack.c.bf16 %v4175, %v4174
      %v4206 = vpack.c.bf16 %v4177, %v4176
      %v4207 = vpack.c.bf16 %v4179, %v4178
      %v4208 = vpack.c.bf16 %v4181, %v4180
      %v4209 = vpack.c.bf16 %v4183, %v4182
      %v4210 = vpack.c.bf16 %v4185, %v4184
      %v4211 = vpack.c.bf16 %v4187, %v4186
      %v4212 = vpack.c.bf16 %v4189, %v4188
      %v4213 = vpack.c.bf16 %v4191, %v4190
      %v4214 = vpack.c.bf16 %v4193, %v4192
      %v4215 = vpack.c.bf16 %v4195, %v4194
      %v4216 = vpack.c.bf16 %v4197, %v4196
      %v4217 = vpack.c.bf16 %v4199, %v4198
      %v4218 = vpack.c.bf16 %v4201, %v4200
      %v4219 = vpack.c.bf16 %v4203, %v4202
      %v4236 = vunpack.c.l.b16 %v4204
      %v4237 = vunpack.c.h.b16 %v4204
      %v4238 = vunpack.c.l.b16 %v4205
      %v4239 = vunpack.c.h.b16 %v4205
      %v4240 = vunpack.c.l.b16 %v4206
      %v4241 = vunpack.c.h.b16 %v4206
      %v4242 = vunpack.c.l.b16 %v4207
      %v4243 = vunpack.c.h.b16 %v4207
      %v4244 = vunpack.c.l.b16 %v4208
      %v4245 = vunpack.c.h.b16 %v4208
      %v4246 = vunpack.c.l.b16 %v4209
      %v4247 = vunpack.c.h.b16 %v4209
      %v4248 = vunpack.c.l.b16 %v4210
      %v4249 = vunpack.c.h.b16 %v4210
      %v4250 = vunpack.c.l.b16 %v4211
      %v4251 = vunpack.c.h.b16 %v4211
      %v4252 = vunpack.c.l.b16 %v4212
      %v4253 = vunpack.c.h.b16 %v4212
      %v4254 = vunpack.c.l.b16 %v4213
      %v4255 = vunpack.c.h.b16 %v4213
      %v4256 = vunpack.c.l.b16 %v4214
      %v4257 = vunpack.c.h.b16 %v4214
      %v4258 = vunpack.c.l.b16 %v4215
      %v4259 = vunpack.c.h.b16 %v4215
      %v4260 = vunpack.c.l.b16 %v4216
      %v4261 = vunpack.c.h.b16 %v4216
      %v4262 = vunpack.c.l.b16 %v4217
      %v4263 = vunpack.c.h.b16 %v4217
      %v4264 = vunpack.c.l.b16 %v4218
      %v4265 = vunpack.c.h.b16 %v4218
      %v4266 = vunpack.c.l.b16 %v4219
      %v4267 = vunpack.c.h.b16 %v4219
      %v4268 = vpack.c.b16 %v4236, %v4236
      %v4269 = vpack.c.b16 %v4237, %v4237
      %v4270 = vpack.c.b16 %v4238, %v4238
      %v4271 = vpack.c.b16 %v4239, %v4239
      %v4272 = vpack.c.b16 %v4240, %v4240
      %v4273 = vpack.c.b16 %v4241, %v4241
      %v4274 = vpack.c.b16 %v4242, %v4242
      %v4275 = vpack.c.b16 %v4243, %v4243
      %v4276 = vpack.c.b16 %v4244, %v4244
      %v4277 = vpack.c.b16 %v4245, %v4245
      %v4278 = vpack.c.b16 %v4246, %v4246
      %v4279 = vpack.c.b16 %v4247, %v4247
      %v4280 = vpack.c.b16 %v4248, %v4248
      %v4281 = vpack.c.b16 %v4249, %v4249
      %v4282 = vpack.c.b16 %v4250, %v4250
      %v4283 = vpack.c.b16 %v4251, %v4251
      %v4284 = vpack.c.b16 %v4252, %v4252
      %v4285 = vpack.c.b16 %v4253, %v4253
      %v4286 = vpack.c.b16 %v4254, %v4254
      %v4287 = vpack.c.b16 %v4255, %v4255
      %v4288 = vpack.c.b16 %v4256, %v4256
      %v4289 = vpack.c.b16 %v4257, %v4257
      %v4290 = vpack.c.b16 %v4258, %v4258
      %v4291 = vpack.c.b16 %v4259, %v4259
      %v4292 = vpack.c.b16 %v4260, %v4260
      %v4293 = vpack.c.b16 %v4261, %v4261
      %v4294 = vpack.c.b16 %v4262, %v4262
      %v4295 = vpack.c.b16 %v4263, %v4263
      %v4296 = vpack.c.b16 %v4264, %v4264
      %v4297 = vpack.c.b16 %v4265, %v4265
      %v4298 = vpack.c.b16 %v4266, %v4266
      %v4299 = vpack.c.b16 %v4267, %v4267
      %v4301 = vshrl.u32 %v4268, 16
      %v4303 = vrot.slane %v4301, 7
      %v4304 = vshll.u32 %v4268, 16
      %v4306 = vor.u32 %v4303, %v4304
      %v4307 = vrot.slane %v4303, 4
      %v4309 = vshrl.u32 %v4269, 16
      %v4311 = vrot.slane %v4309, 7
      %v4312 = vshll.u32 %v4269, 16
      %v4314 = vor.u32 %v4311, %v4312
      %v4315 = vsel %vm260, %v4307, %v4314
      %v4316 = vrot.slane %v4311, 4
      %v4318 = vshrl.u32 %v4270, 16
      %v4320 = vrot.slane %v4318, 7
      %v4321 = vshll.u32 %v4270, 16
      %v4323 = vor.u32 %v4320, %v4321
      %v4324 = vrot.slane %v4320, 4
      %v4326 = vshrl.u32 %v4271, 16
      %v4328 = vrot.slane %v4326, 7
      %v4329 = vshll.u32 %v4271, 16
      %v4331 = vor.u32 %v4328, %v4329
      %v4332 = vsel %vm260, %v4324, %v4331
      %v4333 = vrot.slane %v4328, 4
      %v4335 = vshrl.u32 %v4272, 16
      %v4337 = vrot.slane %v4335, 7
      %v4338 = vshll.u32 %v4272, 16
      %v4340 = vor.u32 %v4337, %v4338
      %v4341 = vrot.slane %v4337, 4
      %v4343 = vshrl.u32 %v4273, 16
      %v4345 = vrot.slane %v4343, 7
      %v4346 = vshll.u32 %v4273, 16
      %v4348 = vor.u32 %v4345, %v4346
      %v4349 = vsel %vm260, %v4341, %v4348
      %v4350 = vrot.slane %v4345, 4
      %v4352 = vshrl.u32 %v4274, 16
      %v4354 = vrot.slane %v4352, 7
      %v4355 = vshll.u32 %v4274, 16
      %v4357 = vor.u32 %v4354, %v4355
      %v4358 = vrot.slane %v4354, 4
      %v4360 = vshrl.u32 %v4275, 16
      %v4362 = vrot.slane %v4360, 7
      %v4363 = vshll.u32 %v4275, 16
      %v4365 = vor.u32 %v4362, %v4363
      %v4366 = vsel %vm260, %v4358, %v4365
      %v4367 = vrot.slane %v4362, 4
      %v4369 = vshrl.u32 %v4276, 16
      %v4371 = vrot.slane %v4369, 7
      %v4372 = vshll.u32 %v4276, 16
      %v4374 = vor.u32 %v4371, %v4372
      %v4375 = vrot.slane %v4371, 4
      %v4377 = vshrl.u32 %v4277, 16
      %v4379 = vrot.slane %v4377, 7
      %v4380 = vshll.u32 %v4277, 16
      %v4382 = vor.u32 %v4379, %v4380
      %v4383 = vsel %vm260, %v4375, %v4382
      %v4384 = vrot.slane %v4379, 4
      %v4386 = vshrl.u32 %v4278, 16
      %v4388 = vrot.slane %v4386, 7
      %v4389 = vshll.u32 %v4278, 16
      %v4391 = vor.u32 %v4388, %v4389
      %v4392 = vrot.slane %v4388, 4
      %v4394 = vshrl.u32 %v4279, 16
      %v4396 = vrot.slane %v4394, 7
      %v4397 = vshll.u32 %v4279, 16
      %v4399 = vor.u32 %v4396, %v4397
      %v4400 = vsel %vm260, %v4392, %v4399
      %v4401 = vrot.slane %v4396, 4
      %v4403 = vshrl.u32 %v4280, 16
      %v4405 = vrot.slane %v4403, 7
      %v4406 = vshll.u32 %v4280, 16
      %v4408 = vor.u32 %v4405, %v4406
      %v4409 = vrot.slane %v4405, 4
      %v4411 = vshrl.u32 %v4281, 16
      %v4413 = vrot.slane %v4411, 7
      %v4414 = vshll.u32 %v4281, 16
      %v4416 = vor.u32 %v4413, %v4414
      %v4417 = vsel %vm260, %v4409, %v4416
      %v4418 = vrot.slane %v4413, 4
      %v4420 = vshrl.u32 %v4282, 16
      %v4422 = vrot.slane %v4420, 7
      %v4423 = vshll.u32 %v4282, 16
      %v4425 = vor.u32 %v4422, %v4423
      %v4426 = vrot.slane %v4422, 4
      %v4428 = vshrl.u32 %v4283, 16
      %v4430 = vrot.slane %v4428, 7
      %v4431 = vshll.u32 %v4283, 16
      %v4433 = vor.u32 %v4430, %v4431
      %v4434 = vsel %vm260, %v4426, %v4433
      %v4435 = vrot.slane %v4430, 4
      %v4437 = vshrl.u32 %v4284, 16
      %v4439 = vrot.slane %v4437, 7
      %v4440 = vshll.u32 %v4284, 16
      %v4442 = vor.u32 %v4439, %v4440
      %v4443 = vrot.slane %v4439, 4
      %v4445 = vshrl.u32 %v4285, 16
      %v4447 = vrot.slane %v4445, 7
      %v4448 = vshll.u32 %v4285, 16
      %v4450 = vor.u32 %v4447, %v4448
      %v4451 = vsel %vm260, %v4443, %v4450
      %v4452 = vrot.slane %v4447, 4
      %v4454 = vshrl.u32 %v4286, 16
      %v4456 = vrot.slane %v4454, 7
      %v4457 = vshll.u32 %v4286, 16
      %v4459 = vor.u32 %v4456, %v4457
      %v4460 = vrot.slane %v4456, 4
      %v4462 = vshrl.u32 %v4287, 16
      %v4464 = vrot.slane %v4462, 7
      %v4465 = vshll.u32 %v4287, 16
      %v4467 = vor.u32 %v4464, %v4465
      %v4468 = vsel %vm260, %v4460, %v4467
      %v4469 = vrot.slane %v4464, 4
      %v4471 = vshrl.u32 %v4288, 16
      %v4473 = vrot.slane %v4471, 7
      %v4474 = vshll.u32 %v4288, 16
      %v4476 = vor.u32 %v4473, %v4474
      %v4477 = vrot.slane %v4473, 4
      %v4479 = vshrl.u32 %v4289, 16
      %v4481 = vrot.slane %v4479, 7
      %v4482 = vshll.u32 %v4289, 16
      %v4484 = vor.u32 %v4481, %v4482
      %v4485 = vsel %vm260, %v4477, %v4484
      %v4486 = vrot.slane %v4481, 4
      %v4488 = vshrl.u32 %v4290, 16
      %v4490 = vrot.slane %v4488, 7
      %v4491 = vshll.u32 %v4290, 16
      %v4493 = vor.u32 %v4490, %v4491
      %v4494 = vrot.slane %v4490, 4
      %v4496 = vshrl.u32 %v4291, 16
      %v4498 = vrot.slane %v4496, 7
      %v4499 = vshll.u32 %v4291, 16
      %v4501 = vor.u32 %v4498, %v4499
      %v4502 = vsel %vm260, %v4494, %v4501
      %v4503 = vrot.slane %v4498, 4
      %v4505 = vshrl.u32 %v4292, 16
      %v4507 = vrot.slane %v4505, 7
      %v4508 = vshll.u32 %v4292, 16
      %v4510 = vor.u32 %v4507, %v4508
      %v4511 = vrot.slane %v4507, 4
      %v4513 = vshrl.u32 %v4293, 16
      %v4515 = vrot.slane %v4513, 7
      %v4516 = vshll.u32 %v4293, 16
      %v4518 = vor.u32 %v4515, %v4516
      %v4519 = vsel %vm260, %v4511, %v4518
      %v4520 = vrot.slane %v4515, 4
      %v4522 = vshrl.u32 %v4294, 16
      %v4524 = vrot.slane %v4522, 7
      %v4525 = vshll.u32 %v4294, 16
      %v4527 = vor.u32 %v4524, %v4525
      %v4528 = vrot.slane %v4524, 4
      %v4530 = vshrl.u32 %v4295, 16
      %v4532 = vrot.slane %v4530, 7
      %v4533 = vshll.u32 %v4295, 16
      %v4535 = vor.u32 %v4532, %v4533
      %v4536 = vsel %vm260, %v4528, %v4535
      %v4537 = vrot.slane %v4532, 4
      %v4539 = vshrl.u32 %v4296, 16
      %v4541 = vrot.slane %v4539, 7
      %v4542 = vshll.u32 %v4296, 16
      %v4544 = vor.u32 %v4541, %v4542
      %v4545 = vrot.slane %v4541, 4
      %v4547 = vshrl.u32 %v4297, 16
      %v4549 = vrot.slane %v4547, 7
      %v4550 = vshll.u32 %v4297, 16
      %v4552 = vor.u32 %v4549, %v4550
      %v4553 = vsel %vm260, %v4545, %v4552
      %v4554 = vrot.slane %v4549, 4
      %v4556 = vshrl.u32 %v4298, 16
      %v4558 = vrot.slane %v4556, 7
      %v4559 = vshll.u32 %v4298, 16
      %v4561 = vor.u32 %v4558, %v4559
      %v4562 = vrot.slane %v4558, 4
      %v4564 = vshrl.u32 %v4299, 16
      %v4566 = vrot.slane %v4564, 7
      %v4567 = vshll.u32 %v4299, 16
      %v4569 = vor.u32 %v4566, %v4567
      %v4570 = vsel %vm260, %v4562, %v4569
      %v4571 = vrot.slane %v4566, 4
      %v4620 = vld [vmem:[%s581] sm:$0xf]
      %v4621 = vsel %vm584, %v4306, %v4620
      %4622 = vst [vmem:[%s581] sm:$0xf] %v4621
      %4623 = vst.msk [vmem:[%s581 + $0x4] sm:$0xf] %vm588, %v4315
      %v4624 = vld [vmem:[%s581 + $0x8] sm:$0x1]
      %v4625 = vsel %vm591, %v4316, %v4624
      %4626 = vst [vmem:[%s581 + $0x8] sm:$0x1] %v4625
      %v4627 = vld [vmem:[%s581 + $0xc] sm:$0xf]
      %v4628 = vsel %vm584, %v4323, %v4627
      %4629 = vst [vmem:[%s581 + $0xc] sm:$0xf] %v4628
      %4630 = vst.msk [vmem:[%s581 + $0x10] sm:$0xf] %vm588, %v4332
      %v4631 = vld [vmem:[%s581 + $0x14] sm:$0x1]
      %v4632 = vsel %vm591, %v4333, %v4631
      %4633 = vst [vmem:[%s581 + $0x14] sm:$0x1] %v4632
      %v4634 = vld [vmem:[%s581 + $0x18] sm:$0xf]
      %v4635 = vsel %vm584, %v4340, %v4634
      %4636 = vst [vmem:[%s581 + $0x18] sm:$0xf] %v4635
      %4637 = vst.msk [vmem:[%s581 + $0x1c] sm:$0xf] %vm588, %v4349
      %v4638 = vld [vmem:[%s581 + $0x20] sm:$0x1]
      %v4639 = vsel %vm591, %v4350, %v4638
      %4640 = vst [vmem:[%s581 + $0x20] sm:$0x1] %v4639
      %v4641 = vld [vmem:[%s581 + $0x24] sm:$0xf]
      %v4642 = vsel %vm584, %v4357, %v4641
      %4643 = vst [vmem:[%s581 + $0x24] sm:$0xf] %v4642
      %4644 = vst.msk [vmem:[%s581 + $0x28] sm:$0xf] %vm588, %v4366
      %v4645 = vld [vmem:[%s581 + $0x2c] sm:$0x1]
      %v4646 = vsel %vm591, %v4367, %v4645
      %4647 = vst [vmem:[%s581 + $0x2c] sm:$0x1] %v4646
      %v4648 = vld [vmem:[%s581 + $0x30] sm:$0xf]
      %v4649 = vsel %vm584, %v4374, %v4648
      %4650 = vst [vmem:[%s581 + $0x30] sm:$0xf] %v4649
      %4651 = vst.msk [vmem:[%s581 + $0x34] sm:$0xf] %vm588, %v4383
      %v4652 = vld [vmem:[%s581 + $0x38] sm:$0x1]
      %v4653 = vsel %vm591, %v4384, %v4652
      %4654 = vst [vmem:[%s581 + $0x38] sm:$0x1] %v4653
      %v4655 = vld [vmem:[%s581 + $0x3c] sm:$0xf]
      %v4656 = vsel %vm584, %v4391, %v4655
      %4657 = vst [vmem:[%s581 + $0x3c] sm:$0xf] %v4656
      %4658 = vst.msk [vmem:[%s581 + $0x40] sm:$0xf] %vm588, %v4400
      %v4659 = vld [vmem:[%s581 + $0x44] sm:$0x1]
      %v4660 = vsel %vm591, %v4401, %v4659
      %4661 = vst [vmem:[%s581 + $0x44] sm:$0x1] %v4660
      %v4662 = vld [vmem:[%s581 + $0x48] sm:$0xf]
      %v4663 = vsel %vm584, %v4408, %v4662
      %4664 = vst [vmem:[%s581 + $0x48] sm:$0xf] %v4663
      %4665 = vst.msk [vmem:[%s581 + $0x4c] sm:$0xf] %vm588, %v4417
      %v4666 = vld [vmem:[%s581 + $0x50] sm:$0x1]
      %v4667 = vsel %vm591, %v4418, %v4666
      %4668 = vst [vmem:[%s581 + $0x50] sm:$0x1] %v4667
      %v4669 = vld [vmem:[%s581 + $0x54] sm:$0xf]
      %v4670 = vsel %vm584, %v4425, %v4669
      %4671 = vst [vmem:[%s581 + $0x54] sm:$0xf] %v4670
      %4672 = vst.msk [vmem:[%s581 + $0x58] sm:$0xf] %vm588, %v4434
      %v4673 = vld [vmem:[%s581 + $0x5c] sm:$0x1]
      %v4674 = vsel %vm591, %v4435, %v4673
      %4675 = vst [vmem:[%s581 + $0x5c] sm:$0x1] %v4674
      %v4676 = vld [vmem:[%s581 + $0x60] sm:$0xf]
      %v4677 = vsel %vm584, %v4442, %v4676
      %4678 = vst [vmem:[%s581 + $0x60] sm:$0xf] %v4677
      %4679 = vst.msk [vmem:[%s581 + $0x64] sm:$0xf] %vm588, %v4451
      %v4680 = vld [vmem:[%s581 + $0x68] sm:$0x1]
      %v4681 = vsel %vm591, %v4452, %v4680
      %4682 = vst [vmem:[%s581 + $0x68] sm:$0x1] %v4681
      %v4683 = vld [vmem:[%s581 + $0x6c] sm:$0xf]
      %v4684 = vsel %vm584, %v4459, %v4683
      %4685 = vst [vmem:[%s581 + $0x6c] sm:$0xf] %v4684
      %4686 = vst.msk [vmem:[%s581 + $0x70] sm:$0xf] %vm588, %v4468
      %v4687 = vld [vmem:[%s581 + $0x74] sm:$0x1]
      %v4688 = vsel %vm591, %v4469, %v4687
      %4689 = vst [vmem:[%s581 + $0x74] sm:$0x1] %v4688
      %v4690 = vld [vmem:[%s581 + $0x78] sm:$0xf]
      %v4691 = vsel %vm584, %v4476, %v4690
      %4692 = vst [vmem:[%s581 + $0x78] sm:$0xf] %v4691
      %4693 = vst.msk [vmem:[%s581 + $0x7c] sm:$0xf] %vm588, %v4485
      %v4694 = vld [vmem:[%s581 + $0x80] sm:$0x1]
      %v4695 = vsel %vm591, %v4486, %v4694
      %4696 = vst [vmem:[%s581 + $0x80] sm:$0x1] %v4695
      %v4697 = vld [vmem:[%s581 + $0x84] sm:$0xf]
      %v4698 = vsel %vm584, %v4493, %v4697
      %4699 = vst [vmem:[%s581 + $0x84] sm:$0xf] %v4698
      %4700 = vst.msk [vmem:[%s581 + $0x88] sm:$0xf] %vm588, %v4502
      %v4701 = vld [vmem:[%s581 + $0x8c] sm:$0x1]
      %v4702 = vsel %vm591, %v4503, %v4701
      %4703 = vst [vmem:[%s581 + $0x8c] sm:$0x1] %v4702
      %v4704 = vld [vmem:[%s581 + $0x90] sm:$0xf]
      %v4705 = vsel %vm584, %v4510, %v4704
      %4706 = vst [vmem:[%s581 + $0x90] sm:$0xf] %v4705
      %4707 = vst.msk [vmem:[%s581 + $0x94] sm:$0xf] %vm588, %v4519
      %v4708 = vld [vmem:[%s581 + $0x98] sm:$0x1]
      %v4709 = vsel %vm591, %v4520, %v4708
      %4710 = vst [vmem:[%s581 + $0x98] sm:$0x1] %v4709
      %v4711 = vld [vmem:[%s581 + $0x9c] sm:$0xf]
      %v4712 = vsel %vm584, %v4527, %v4711
      %4713 = vst [vmem:[%s581 + $0x9c] sm:$0xf] %v4712
      %4714 = vst.msk [vmem:[%s581 + $0xa0] sm:$0xf] %vm588, %v4536
      %v4715 = vld [vmem:[%s581 + $0xa4] sm:$0x1]
      %v4716 = vsel %vm591, %v4537, %v4715
      %4717 = vst [vmem:[%s581 + $0xa4] sm:$0x1] %v4716
      %v4718 = vld [vmem:[%s581 + $0xa8] sm:$0xf]
      %v4719 = vsel %vm584, %v4544, %v4718
      %4720 = vst [vmem:[%s581 + $0xa8] sm:$0xf] %v4719
      %4721 = vst.msk [vmem:[%s581 + $0xac] sm:$0xf] %vm588, %v4553
      %v4722 = vld [vmem:[%s581 + $0xb0] sm:$0x1]
      %v4723 = vsel %vm591, %v4554, %v4722
      %4724 = vst [vmem:[%s581 + $0xb0] sm:$0x1] %v4723
      %v4725 = vld [vmem:[%s581 + $0xb4] sm:$0xf]
      %v4726 = vsel %vm584, %v4561, %v4725
      %4727 = vst [vmem:[%s581 + $0xb4] sm:$0xf] %v4726
      %4728 = vst.msk [vmem:[%s581 + $0xb8] sm:$0xf] %vm588, %v4570
      %v4729 = vld [vmem:[%s581 + $0xbc] sm:$0x1]
      %v4730 = vsel %vm591, %v4571, %v4729
      %4731 = vst [vmem:[%s581 + $0xbc] sm:$0x1] %v4730
      %v4732 = vrot.slane %v4301, 4
      %v4733 = vrot.slane %v4732, 4
      %v4734 = vrot.slane %v4318, 4
      %v4735 = vrot.slane %v4734, 4
      %v4736 = vrot.slane %v4335, 4
      %v4737 = vrot.slane %v4736, 4
      %v4738 = vrot.slane %v4352, 4
      %v4739 = vrot.slane %v4738, 4
      %v4740 = vrot.slane %v4369, 4
      %v4741 = vrot.slane %v4740, 4
      %v4742 = vrot.slane %v4386, 4
      %v4743 = vrot.slane %v4742, 4
      %v4744 = vrot.slane %v4403, 4
      %v4745 = vrot.slane %v4744, 4
      %v4746 = vrot.slane %v4420, 4
      %v4747 = vrot.slane %v4746, 4
      %v4748 = vrot.slane %v4437, 4
      %v4749 = vrot.slane %v4748, 4
      %v4750 = vrot.slane %v4454, 4
      %v4751 = vrot.slane %v4750, 4
      %v4752 = vrot.slane %v4471, 4
      %v4753 = vrot.slane %v4752, 4
      %v4754 = vrot.slane %v4488, 4
      %v4755 = vrot.slane %v4754, 4
      %v4756 = vrot.slane %v4505, 4
      %v4757 = vrot.slane %v4756, 4
      %v4758 = vrot.slane %v4522, 4
      %v4759 = vrot.slane %v4758, 4
      %v4760 = vrot.slane %v4539, 4
      %v4761 = vrot.slane %v4760, 4
      %v4762 = vrot.slane %v4556, 4
      %v4763 = vrot.slane %v4762, 4
      %v4780 = vld [vmem:[%s581] sm:$0x1]
      %v4781 = vsel %vm591, %v4733, %v4780
      %4782 = vst [vmem:[%s581] sm:$0x1] %v4781
      %v4783 = vld [vmem:[%s581 + $0xc] sm:$0x1]
      %v4784 = vsel %vm591, %v4735, %v4783
      %4785 = vst [vmem:[%s581 + $0xc] sm:$0x1] %v4784
      %v4786 = vld [vmem:[%s581 + $0x18] sm:$0x1]
      %v4787 = vsel %vm591, %v4737, %v4786
      %4788 = vst [vmem:[%s581 + $0x18] sm:$0x1] %v4787
      %v4789 = vld [vmem:[%s581 + $0x24] sm:$0x1]
      %v4790 = vsel %vm591, %v4739, %v4789
      %4791 = vst [vmem:[%s581 + $0x24] sm:$0x1] %v4790
      %v4792 = vld [vmem:[%s581 + $0x30] sm:$0x1]
      %v4793 = vsel %vm591, %v4741, %v4792
      %4794 = vst [vmem:[%s581 + $0x30] sm:$0x1] %v4793
      %v4795 = vld [vmem:[%s581 + $0x3c] sm:$0x1]
      %v4796 = vsel %vm591, %v4743, %v4795
      %4797 = vst [vmem:[%s581 + $0x3c] sm:$0x1] %v4796
      %v4798 = vld [vmem:[%s581 + $0x48] sm:$0x1]
      %v4799 = vsel %vm591, %v4745, %v4798
      %4800 = vst [vmem:[%s581 + $0x48] sm:$0x1] %v4799
      %v4801 = vld [vmem:[%s581 + $0x54] sm:$0x1]
      %v4802 = vsel %vm591, %v4747, %v4801
      %4803 = vst [vmem:[%s581 + $0x54] sm:$0x1] %v4802
      %v4804 = vld [vmem:[%s581 + $0x60] sm:$0x1]
      %v4805 = vsel %vm591, %v4749, %v4804
      %4806 = vst [vmem:[%s581 + $0x60] sm:$0x1] %v4805
      %v4807 = vld [vmem:[%s581 + $0x6c] sm:$0x1]
      %v4808 = vsel %vm591, %v4751, %v4807
      %4809 = vst [vmem:[%s581 + $0x6c] sm:$0x1] %v4808
      %v4810 = vld [vmem:[%s581 + $0x78] sm:$0x1]
      %v4811 = vsel %vm591, %v4753, %v4810
      %4812 = vst [vmem:[%s581 + $0x78] sm:$0x1] %v4811
      %v4813 = vld [vmem:[%s581 + $0x84] sm:$0x1]
      %v4814 = vsel %vm591, %v4755, %v4813
      %4815 = vst [vmem:[%s581 + $0x84] sm:$0x1] %v4814
      %v4816 = vld [vmem:[%s581 + $0x90] sm:$0x1]
      %v4817 = vsel %vm591, %v4757, %v4816
      %4818 = vst [vmem:[%s581 + $0x90] sm:$0x1] %v4817
      %v4819 = vld [vmem:[%s581 + $0x9c] sm:$0x1]
      %v4820 = vsel %vm591, %v4759, %v4819
      %4821 = vst [vmem:[%s581 + $0x9c] sm:$0x1] %v4820
      %v4822 = vld [vmem:[%s581 + $0xa8] sm:$0x1]
      %v4823 = vsel %vm591, %v4761, %v4822
      %4824 = vst [vmem:[%s581 + $0xa8] sm:$0x1] %v4823
      %v4825 = vld [vmem:[%s581 + $0xb4] sm:$0x1]
      %v4826 = vsel %vm591, %v4763, %v4825
      %4827 = vst [vmem:[%s581 + $0xb4] sm:$0x1] %v4826
      %v4828 = vrot.slane %v4312, 7
      %v4829 = vrot.slane %v4828, 4
      %v4830 = vrot.slane %v4329, 7
      %v4831 = vrot.slane %v4830, 4
      %v4832 = vrot.slane %v4346, 7
      %v4833 = vrot.slane %v4832, 4
      %v4834 = vrot.slane %v4363, 7
      %v4835 = vrot.slane %v4834, 4
      %v4836 = vrot.slane %v4380, 7
      %v4837 = vrot.slane %v4836, 4
      %v4838 = vrot.slane %v4397, 7
      %v4839 = vrot.slane %v4838, 4
      %v4840 = vrot.slane %v4414, 7
      %v4841 = vrot.slane %v4840, 4
      %v4842 = vrot.slane %v4431, 7
      %v4843 = vrot.slane %v4842, 4
      %v4844 = vrot.slane %v4448, 7
      %v4845 = vrot.slane %v4844, 4
      %v4846 = vrot.slane %v4465, 7
      %v4847 = vrot.slane %v4846, 4
      %v4848 = vrot.slane %v4482, 7
      %v4849 = vrot.slane %v4848, 4
      %v4850 = vrot.slane %v4499, 7
      %v4851 = vrot.slane %v4850, 4
      %v4852 = vrot.slane %v4516, 7
      %v4853 = vrot.slane %v4852, 4
      %v4854 = vrot.slane %v4533, 7
      %v4855 = vrot.slane %v4854, 4
      %v4856 = vrot.slane %v4550, 7
      %v4857 = vrot.slane %v4856, 4
      %v4858 = vrot.slane %v4567, 7
      %v4859 = vrot.slane %v4858, 4
      %v4876 = vld [vmem:[%s581 + $0x8] sm:$0x1]
      %v4877 = vsel %vm844, %v4829, %v4876
      %4878 = vst [vmem:[%s581 + $0x8] sm:$0x1] %v4877
      %v4879 = vld [vmem:[%s581 + $0x14] sm:$0x1]
      %v4880 = vsel %vm844, %v4831, %v4879
      %4881 = vst [vmem:[%s581 + $0x14] sm:$0x1] %v4880
      %v4882 = vld [vmem:[%s581 + $0x20] sm:$0x1]
      %v4883 = vsel %vm844, %v4833, %v4882
      %4884 = vst [vmem:[%s581 + $0x20] sm:$0x1] %v4883
      %v4885 = vld [vmem:[%s581 + $0x2c] sm:$0x1]
      %v4886 = vsel %vm844, %v4835, %v4885
      %4887 = vst [vmem:[%s581 + $0x2c] sm:$0x1] %v4886
      %v4888 = vld [vmem:[%s581 + $0x38] sm:$0x1]
      %v4889 = vsel %vm844, %v4837, %v4888
      %4890 = vst [vmem:[%s581 + $0x38] sm:$0x1] %v4889
      %v4891 = vld [vmem:[%s581 + $0x44] sm:$0x1]
      %v4892 = vsel %vm844, %v4839, %v4891
      %4893 = vst [vmem:[%s581 + $0x44] sm:$0x1] %v4892
      %v4894 = vld [vmem:[%s581 + $0x50] sm:$0x1]
      %v4895 = vsel %vm844, %v4841, %v4894
      %4896 = vst [vmem:[%s581 + $0x50] sm:$0x1] %v4895
      %v4897 = vld [vmem:[%s581 + $0x5c] sm:$0x1]
      %v4898 = vsel %vm844, %v4843, %v4897
      %4899 = vst [vmem:[%s581 + $0x5c] sm:$0x1] %v4898
      %v4900 = vld [vmem:[%s581 + $0x68] sm:$0x1]
      %v4901 = vsel %vm844, %v4845, %v4900
      %4902 = vst [vmem:[%s581 + $0x68] sm:$0x1] %v4901
      %v4903 = vld [vmem:[%s581 + $0x74] sm:$0x1]
      %v4904 = vsel %vm844, %v4847, %v4903
      %4905 = vst [vmem:[%s581 + $0x74] sm:$0x1] %v4904
      %v4906 = vld [vmem:[%s581 + $0x80] sm:$0x1]
      %v4907 = vsel %vm844, %v4849, %v4906
      %4908 = vst [vmem:[%s581 + $0x80] sm:$0x1] %v4907
      %v4909 = vld [vmem:[%s581 + $0x8c] sm:$0x1]
      %v4910 = vsel %vm844, %v4851, %v4909
      %4911 = vst [vmem:[%s581 + $0x8c] sm:$0x1] %v4910
      %v4912 = vld [vmem:[%s581 + $0x98] sm:$0x1]
      %v4913 = vsel %vm844, %v4853, %v4912
      %4914 = vst [vmem:[%s581 + $0x98] sm:$0x1] %v4913
      %v4915 = vld [vmem:[%s581 + $0xa4] sm:$0x1]
      %v4916 = vsel %vm844, %v4855, %v4915
      %4917 = vst [vmem:[%s581 + $0xa4] sm:$0x1] %v4916
      %v4918 = vld [vmem:[%s581 + $0xb0] sm:$0x1]
      %v4919 = vsel %vm844, %v4857, %v4918
      %4920 = vst [vmem:[%s581 + $0xb0] sm:$0x1] %v4919
      %v4921 = vld [vmem:[%s581 + $0xbc] sm:$0x1]
      %v4922 = vsel %vm844, %v4859, %v4921
      %4923 = vst [vmem:[%s581 + $0xbc] sm:$0x1] %v4922
      %v4924 = vld [vmem:[%s893] sm:$0xf]
      %v4925 = vld [vmem:[%s893 + $0x4] sm:$0xf]
      %v4926 = vld [vmem:[%s893 + $0x8] sm:$0x1]
      %4927 = vst.msk [vmem:[#allocation2] sm:$0xf] %vm588, %v4924
      %4928 = vst.msk [vmem:[#allocation2 + $0x4] sm:$0xf] %vm588, %v4925
      %4929 = vst.msk [vmem:[#allocation2 + $0x8] sm:$0x1] %vm899, %v4926
      %v4930 = vld [vmem:[%s901] sm:$0xf]
      %v4931 = vld [vmem:[%s901 + $0x4] sm:$0xf]
      %v4932 = vld [vmem:[%s901 + $0x8] sm:$0x1]
      %4933 = vst.msk [vmem:[%s905] sm:$0xf] %vm588, %v4930
      %4934 = vst.msk [vmem:[%s905 + $0x4] sm:$0xf] %vm588, %v4931
      %4935 = vst.msk [vmem:[%s905 + $0x8] sm:$0x1] %vm899, %v4932
      %v4936 = vld [vmem:[%s3] sm:$0xf]
      %v4937 = vld [vmem:[%s3 + $0x4] sm:$0xf]
      %v4938 = vld [vmem:[%s3 + $0x8] sm:$0xf]
      %v4939 = vld [vmem:[%s3 + $0xc] sm:$0xf]
      %v4940 = vld [vmem:[%s3 + $0x10] sm:$0x3]
      %v4941 = vld [vmem:[%s4] sm:$0x1]
      %v4942 = vld [vmem:[#allocation2] sm:$0xf]
      %v4943 = vld [vmem:[#allocation2 + $0x4] sm:$0xf]
      %v4944 = vld [vmem:[#allocation2 + $0xc] sm:$0xf]
      %v4945 = vld [vmem:[#allocation2 + $0x10] sm:$0xf]
      %v4946 = vld [vmem:[#allocation2 + $0x18] sm:$0xf]
      %v4947 = vld [vmem:[#allocation2 + $0x1c] sm:$0xf]
      %v4948 = vld [vmem:[#allocation2 + $0x24] sm:$0xf]
      %v4949 = vld [vmem:[#allocation2 + $0x28] sm:$0xf]
      %v4950 = vld [vmem:[#allocation2 + $0x30] sm:$0xf]
      %v4951 = vld [vmem:[#allocation2 + $0x34] sm:$0xf]
      %v4952 = vld [vmem:[#allocation2 + $0x3c] sm:$0xf]
      %v4953 = vld [vmem:[#allocation2 + $0x40] sm:$0xf]
      %v4954 = vld [vmem:[#allocation2 + $0x48] sm:$0xf]
      %v4955 = vld [vmem:[#allocation2 + $0x4c] sm:$0xf]
      %v4956 = vld [vmem:[#allocation2 + $0x54] sm:$0xf]
      %v4957 = vld [vmem:[#allocation2 + $0x58] sm:$0xf]
      %v4974 = vunpack.c.l.b16 %v4942
      %v4975 = vunpack.c.l.b16 %v4943
      %v4976 = vunpack.c.l.b16 %v4944
      %v4977 = vunpack.c.l.b16 %v4945
      %v4978 = vunpack.c.l.b16 %v4946
      %v4979 = vunpack.c.l.b16 %v4947
      %v4980 = vunpack.c.l.b16 %v4948
      %v4981 = vunpack.c.l.b16 %v4949
      %v4982 = vunpack.c.l.b16 %v4950
      %v4983 = vunpack.c.l.b16 %v4951
      %v4984 = vunpack.c.l.b16 %v4952
      %v4985 = vunpack.c.l.b16 %v4953
      %v4986 = vunpack.c.l.b16 %v4954
      %v4987 = vunpack.c.l.b16 %v4955
      %v4988 = vunpack.c.l.b16 %v4956
      %v4989 = vunpack.c.l.b16 %v4957
      %v4990 = vpack.c.b16 %v4975, %v4974
      %v4991 = vpack.c.b16 %v4977, %v4976
      %v4992 = vpack.c.b16 %v4979, %v4978
      %v4993 = vpack.c.b16 %v4981, %v4980
      %v4994 = vpack.c.b16 %v4983, %v4982
      %v4995 = vpack.c.b16 %v4985, %v4984
      %v4996 = vpack.c.b16 %v4987, %v4986
      %v4997 = vpack.c.b16 %v4989, %v4988
      %5006 = vst.msk [vmem:[#allocation3] sm:$0xff] %vm979, %v4990
      %5007 = vst.msk [vmem:[#allocation3 + $0x8] sm:$0xff] %vm979, %v4991
      %5008 = vst.msk [vmem:[#allocation3 + $0x10] sm:$0xff] %vm979, %v4992
      %5009 = vst.msk [vmem:[#allocation3 + $0x18] sm:$0xff] %vm979, %v4993
      %5010 = vst.msk [vmem:[#allocation3 + $0x20] sm:$0xff] %vm979, %v4994
      %5011 = vst.msk [vmem:[#allocation3 + $0x28] sm:$0xff] %vm979, %v4995
      %5012 = vst.msk [vmem:[#allocation3 + $0x30] sm:$0xff] %vm979, %v4996
      %5013 = vst.msk [vmem:[#allocation3 + $0x38] sm:$0xff] %vm979, %v4997
      %v5014 = vld [vmem:[#allocation2] sm:$0xf]
      %v5015 = vld [vmem:[#allocation2 + $0x4] sm:$0xf]
      %v5016 = vld [vmem:[#allocation2 + $0x8] sm:$0x1]
      %v5017 = vld [vmem:[#allocation2 + $0xc] sm:$0xf]
      %v5018 = vld [vmem:[#allocation2 + $0x10] sm:$0xf]
      %v5019 = vld [vmem:[#allocation2 + $0x14] sm:$0x1]
      %v5020 = vld [vmem:[#allocation2 + $0x18] sm:$0xf]
      %v5021 = vld [vmem:[#allocation2 + $0x1c] sm:$0xf]
      %v5022 = vld [vmem:[#allocation2 + $0x20] sm:$0x1]
      %v5023 = vld [vmem:[#allocation2 + $0x24] sm:$0xf]
      %v5024 = vld [vmem:[#allocation2 + $0x28] sm:$0xf]
      %v5025 = vld [vmem:[#allocation2 + $0x2c] sm:$0x1]
      %v5026 = vld [vmem:[#allocation2 + $0x30] sm:$0xf]
      %v5027 = vld [vmem:[#allocation2 + $0x34] sm:$0xf]
      %v5028 = vld [vmem:[#allocation2 + $0x38] sm:$0x1]
      %v5029 = vld [vmem:[#allocation2 + $0x3c] sm:$0xf]
      %v5030 = vld [vmem:[#allocation2 + $0x40] sm:$0xf]
      %v5031 = vld [vmem:[#allocation2 + $0x44] sm:$0x1]
      %v5032 = vld [vmem:[#allocation2 + $0x48] sm:$0xf]
      %v5033 = vld [vmem:[#allocation2 + $0x4c] sm:$0xf]
      %v5034 = vld [vmem:[#allocation2 + $0x50] sm:$0x1]
      %v5035 = vld [vmem:[#allocation2 + $0x54] sm:$0xf]
      %v5036 = vld [vmem:[#allocation2 + $0x58] sm:$0xf]
      %v5037 = vld [vmem:[#allocation2 + $0x5c] sm:$0x1]
      %v5062 = vunpack.c.l.b16 %v5014
      %v5063 = vunpack.c.l.b16 %v5015
      %v5064 = vunpack.c.l.b16 %v5016
      %v5065 = vunpack.c.l.b16 %v5017
      %v5066 = vunpack.c.l.b16 %v5018
      %v5067 = vunpack.c.l.b16 %v5019
      %v5068 = vunpack.c.l.b16 %v5020
      %v5069 = vunpack.c.l.b16 %v5021
      %v5070 = vunpack.c.l.b16 %v5022
      %v5071 = vunpack.c.l.b16 %v5023
      %v5072 = vunpack.c.l.b16 %v5024
      %v5073 = vunpack.c.l.b16 %v5025
      %v5074 = vunpack.c.l.b16 %v5026
      %v5075 = vunpack.c.l.b16 %v5027
      %v5076 = vunpack.c.l.b16 %v5028
      %v5077 = vunpack.c.l.b16 %v5029
      %v5078 = vunpack.c.l.b16 %v5030
      %v5079 = vunpack.c.l.b16 %v5031
      %v5080 = vunpack.c.l.b16 %v5032
      %v5081 = vunpack.c.l.b16 %v5033
      %v5082 = vunpack.c.l.b16 %v5034
      %v5083 = vunpack.c.l.b16 %v5035
      %v5084 = vunpack.c.l.b16 %v5036
      %v5085 = vunpack.c.l.b16 %v5037
      %v5086 = vpack.c.b16 %v5063, %v5062
      %v5087 = vpack.c.b16 %v5064, %v5064
      %v5088 = vpack.c.b16 %v5066, %v5065
      %v5089 = vpack.c.b16 %v5067, %v5067
      %v5090 = vpack.c.b16 %v5069, %v5068
      %v5091 = vpack.c.b16 %v5070, %v5070
      %v5092 = vpack.c.b16 %v5072, %v5071
      %v5093 = vpack.c.b16 %v5073, %v5073
      %v5094 = vpack.c.b16 %v5075, %v5074
      %v5095 = vpack.c.b16 %v5076, %v5076
      %v5096 = vpack.c.b16 %v5078, %v5077
      %v5097 = vpack.c.b16 %v5079, %v5079
      %v5098 = vpack.c.b16 %v5081, %v5080
      %v5099 = vpack.c.b16 %v5082, %v5082
      %v5100 = vpack.c.b16 %v5084, %v5083
      %v5101 = vpack.c.b16 %v5085, %v5085
      %v5103 = vshrl.u32 %v5086, 16
      %v5105 = vshll.u32 %v5086, 16
      %v5107 = vrot.slane %v5105, 1
      %v5108 = vor.u32 %v5103, %v5107
      %v5110 = vshll.u32 %v5087, 16
      %v5112 = vrot.slane %v5110, 1
      %v5113 = vsel %vm1076, %v5108, %v5112
      %v5115 = vshrl.u32 %v5088, 16
      %v5117 = vshll.u32 %v5088, 16
      %v5119 = vrot.slane %v5117, 1
      %v5120 = vor.u32 %v5115, %v5119
      %v5122 = vshll.u32 %v5089, 16
      %v5124 = vrot.slane %v5122, 1
      %v5125 = vsel %vm1076, %v5120, %v5124
      %v5127 = vshrl.u32 %v5090, 16
      %v5129 = vshll.u32 %v5090, 16
      %v5131 = vrot.slane %v5129, 1
      %v5132 = vor.u32 %v5127, %v5131
      %v5134 = vshll.u32 %v5091, 16
      %v5136 = vrot.slane %v5134, 1
      %v5137 = vsel %vm1076, %v5132, %v5136
      %v5139 = vshrl.u32 %v5092, 16
      %v5141 = vshll.u32 %v5092, 16
      %v5143 = vrot.slane %v5141, 1
      %v5144 = vor.u32 %v5139, %v5143
      %v5146 = vshll.u32 %v5093, 16
      %v5148 = vrot.slane %v5146, 1
      %v5149 = vsel %vm1076, %v5144, %v5148
      %v5151 = vshrl.u32 %v5094, 16
      %v5153 = vshll.u32 %v5094, 16
      %v5155 = vrot.slane %v5153, 1
      %v5156 = vor.u32 %v5151, %v5155
      %v5158 = vshll.u32 %v5095, 16
      %v5160 = vrot.slane %v5158, 1
      %v5161 = vsel %vm1076, %v5156, %v5160
      %v5163 = vshrl.u32 %v5096, 16
      %v5165 = vshll.u32 %v5096, 16
      %v5167 = vrot.slane %v5165, 1
      %v5168 = vor.u32 %v5163, %v5167
      %v5170 = vshll.u32 %v5097, 16
      %v5172 = vrot.slane %v5170, 1
      %v5173 = vsel %vm1076, %v5168, %v5172
      %v5175 = vshrl.u32 %v5098, 16
      %v5177 = vshll.u32 %v5098, 16
      %v5179 = vrot.slane %v5177, 1
      %v5180 = vor.u32 %v5175, %v5179
      %v5182 = vshll.u32 %v5099, 16
      %v5184 = vrot.slane %v5182, 1
      %v5185 = vsel %vm1076, %v5180, %v5184
      %v5187 = vshrl.u32 %v5100, 16
      %v5189 = vshll.u32 %v5100, 16
      %v5191 = vrot.slane %v5189, 1
      %v5192 = vor.u32 %v5187, %v5191
      %v5194 = vshll.u32 %v5101, 16
      %v5196 = vrot.slane %v5194, 1
      %v5197 = vsel %vm1076, %v5192, %v5196
      %5198 = vrot.lane.b32.xlu0 %v5113, 4
      %v5199 = vpop.permute.xlu0 %5198
      %5200 = vrot.lane.b32.xlu0 %v5125, 4
      %v5201 = vpop.permute.xlu0 %5200
      %5202 = vrot.lane.b32.xlu0 %v5137, 4
      %v5203 = vpop.permute.xlu0 %5202
      %5204 = vrot.lane.b32.xlu0 %v5149, 4
      %v5205 = vpop.permute.xlu0 %5204
      %5206 = vrot.lane.b32.xlu0 %v5161, 4
      %v5207 = vpop.permute.xlu0 %5206
      %5208 = vrot.lane.b32.xlu0 %v5173, 4
      %v5209 = vpop.permute.xlu0 %5208
      %5210 = vrot.lane.b32.xlu0 %v5185, 4
      %v5211 = vpop.permute.xlu0 %5210
      %5212 = vrot.lane.b32.xlu0 %v5197, 4
      %v5213 = vpop.permute.xlu0 %5212
      %5222 = vst.msk [vmem:[#allocation3] sm:$0xff] %vm1197, %v5199
      %5223 = vst.msk [vmem:[#allocation3 + $0x8] sm:$0xff] %vm1197, %v5201
      %5224 = vst.msk [vmem:[#allocation3 + $0x10] sm:$0xff] %vm1197, %v5203
      %5225 = vst.msk [vmem:[#allocation3 + $0x18] sm:$0xff] %vm1197, %v5205
      %5226 = vst.msk [vmem:[#allocation3 + $0x20] sm:$0xff] %vm1197, %v5207
      %5227 = vst.msk [vmem:[#allocation3 + $0x28] sm:$0xff] %vm1197, %v5209
      %5228 = vst.msk [vmem:[#allocation3 + $0x30] sm:$0xff] %vm1197, %v5211
      %5229 = vst.msk [vmem:[#allocation3 + $0x38] sm:$0xff] %vm1197, %v5213
      %v5230 = vld [vmem:[#allocation2] sm:$0xe]
      %v5231 = vld [vmem:[#allocation2 + $0x4] sm:$0xf]
      %v5232 = vld [vmem:[#allocation2 + $0x8] sm:$0x1]
      %v5233 = vld [vmem:[#allocation2 + $0xc] sm:$0xe]
      %v5234 = vld [vmem:[#allocation2 + $0x10] sm:$0xf]
      %v5235 = vld [vmem:[#allocation2 + $0x14] sm:$0x1]
      %v5236 = vld [vmem:[#allocation2 + $0x18] sm:$0xe]
      %v5237 = vld [vmem:[#allocation2 + $0x1c] sm:$0xf]
      %v5238 = vld [vmem:[#allocation2 + $0x20] sm:$0x1]
      %v5239 = vld [vmem:[#allocation2 + $0x24] sm:$0xe]
      %v5240 = vld [vmem:[#allocation2 + $0x28] sm:$0xf]
      %v5241 = vld [vmem:[#allocation2 + $0x2c] sm:$0x1]
      %v5242 = vld [vmem:[#allocation2 + $0x30] sm:$0xe]
      %v5243 = vld [vmem:[#allocation2 + $0x34] sm:$0xf]
      %v5244 = vld [vmem:[#allocation2 + $0x38] sm:$0x1]
      %v5245 = vld [vmem:[#allocation2 + $0x3c] sm:$0xe]
      %v5246 = vld [vmem:[#allocation2 + $0x40] sm:$0xf]
      %v5247 = vld [vmem:[#allocation2 + $0x44] sm:$0x1]
      %v5248 = vld [vmem:[#allocation2 + $0x48] sm:$0xe]
      %v5249 = vld [vmem:[#allocation2 + $0x4c] sm:$0xf]
      %v5250 = vld [vmem:[#allocation2 + $0x50] sm:$0x1]
      %v5251 = vld [vmem:[#allocation2 + $0x54] sm:$0xe]
      %v5252 = vld [vmem:[#allocation2 + $0x58] sm:$0xf]
      %v5253 = vld [vmem:[#allocation2 + $0x5c] sm:$0x1]
      %v5278 = vunpack.c.l.b16 %v5230
      %v5279 = vunpack.c.l.b16 %v5231
      %v5280 = vunpack.c.l.b16 %v5232
      %v5281 = vunpack.c.l.b16 %v5233
      %v5282 = vunpack.c.l.b16 %v5234
      %v5283 = vunpack.c.l.b16 %v5235
      %v5284 = vunpack.c.l.b16 %v5236
      %v5285 = vunpack.c.l.b16 %v5237
      %v5286 = vunpack.c.l.b16 %v5238
      %v5287 = vunpack.c.l.b16 %v5239
      %v5288 = vunpack.c.l.b16 %v5240
      %v5289 = vunpack.c.l.b16 %v5241
      %v5290 = vunpack.c.l.b16 %v5242
      %v5291 = vunpack.c.l.b16 %v5243
      %v5292 = vunpack.c.l.b16 %v5244
      %v5293 = vunpack.c.l.b16 %v5245
      %v5294 = vunpack.c.l.b16 %v5246
      %v5295 = vunpack.c.l.b16 %v5247
      %v5296 = vunpack.c.l.b16 %v5248
      %v5297 = vunpack.c.l.b16 %v5249
      %v5298 = vunpack.c.l.b16 %v5250
      %v5299 = vunpack.c.l.b16 %v5251
      %v5300 = vunpack.c.l.b16 %v5252
      %v5301 = vunpack.c.l.b16 %v5253
      %v5302 = vpack.c.b16 %v5279, %v5278
      %v5303 = vpack.c.b16 %v5280, %v5280
      %v5304 = vpack.c.b16 %v5282, %v5281
      %v5305 = vpack.c.b16 %v5283, %v5283
      %v5306 = vpack.c.b16 %v5285, %v5284
      %v5307 = vpack.c.b16 %v5286, %v5286
      %v5308 = vpack.c.b16 %v5288, %v5287
      %v5309 = vpack.c.b16 %v5289, %v5289
      %v5310 = vpack.c.b16 %v5291, %v5290
      %v5311 = vpack.c.b16 %v5292, %v5292
      %v5312 = vpack.c.b16 %v5294, %v5293
      %v5313 = vpack.c.b16 %v5295, %v5295
      %v5314 = vpack.c.b16 %v5297, %v5296
      %v5315 = vpack.c.b16 %v5298, %v5298
      %v5316 = vpack.c.b16 %v5300, %v5299
      %v5317 = vpack.c.b16 %v5301, %v5301
      %v5318 = vrot.slane %v5302, 1
      %v5319 = vrot.slane %v5303, 1
      %v5320 = vsel %vm1294, %v5318, %v5319
      %v5321 = vrot.slane %v5304, 1
      %v5322 = vrot.slane %v5305, 1
      %v5323 = vsel %vm1294, %v5321, %v5322
      %v5324 = vrot.slane %v5306, 1
      %v5325 = vrot.slane %v5307, 1
      %v5326 = vsel %vm1294, %v5324, %v5325
      %v5327 = vrot.slane %v5308, 1
      %v5328 = vrot.slane %v5309, 1
      %v5329 = vsel %vm1294, %v5327, %v5328
      %v5330 = vrot.slane %v5310, 1
      %v5331 = vrot.slane %v5311, 1
      %v5332 = vsel %vm1294, %v5330, %v5331
      %v5333 = vrot.slane %v5312, 1
      %v5334 = vrot.slane %v5313, 1
      %v5335 = vsel %vm1294, %v5333, %v5334
      %v5336 = vrot.slane %v5314, 1
      %v5337 = vrot.slane %v5315, 1
      %v5338 = vsel %vm1294, %v5336, %v5337
      %v5339 = vrot.slane %v5316, 1
      %v5340 = vrot.slane %v5317, 1
      %v5341 = vsel %vm1294, %v5339, %v5340
      %5342 = vrot.lane.b32.xlu0 %v5320, 8
      %v5343 = vpop.permute.xlu0 %5342
      %5344 = vrot.lane.b32.xlu0 %v5323, 8
      %v5345 = vpop.permute.xlu0 %5344
      %5346 = vrot.lane.b32.xlu0 %v5326, 8
      %v5347 = vpop.permute.xlu0 %5346
      %5348 = vrot.lane.b32.xlu0 %v5329, 8
      %v5349 = vpop.permute.xlu0 %5348
      %5350 = vrot.lane.b32.xlu0 %v5332, 8
      %v5351 = vpop.permute.xlu0 %5350
      %5352 = vrot.lane.b32.xlu0 %v5335, 8
      %v5353 = vpop.permute.xlu0 %5352
      %5354 = vrot.lane.b32.xlu0 %v5338, 8
      %v5355 = vpop.permute.xlu0 %5354
      %5356 = vrot.lane.b32.xlu0 %v5341, 8
      %v5357 = vpop.permute.xlu0 %5356
      %5366 = vst.msk [vmem:[#allocation3] sm:$0xff] %vm1343, %v5343
      %5367 = vst.msk [vmem:[#allocation3 + $0x8] sm:$0xff] %vm1343, %v5345
      %5368 = vst.msk [vmem:[#allocation3 + $0x10] sm:$0xff] %vm1343, %v5347
      %5369 = vst.msk [vmem:[#allocation3 + $0x18] sm:$0xff] %vm1343, %v5349
      %5370 = vst.msk [vmem:[#allocation3 + $0x20] sm:$0xff] %vm1343, %v5351
      %5371 = vst.msk [vmem:[#allocation3 + $0x28] sm:$0xff] %vm1343, %v5353
      %5372 = vst.msk [vmem:[#allocation3 + $0x30] sm:$0xff] %vm1343, %v5355
      %5373 = vst.msk [vmem:[#allocation3 + $0x38] sm:$0xff] %vm1343, %v5357
      %v5374 = vld [vmem:[%s581] sm:$0xf]
      %v5375 = vld [vmem:[%s581 + $0x4] sm:$0xf]
      %v5376 = vld [vmem:[%s581 + $0xc] sm:$0xf]
      %v5377 = vld [vmem:[%s581 + $0x10] sm:$0xf]
      %v5378 = vld [vmem:[%s581 + $0x18] sm:$0xf]
      %v5379 = vld [vmem:[%s581 + $0x1c] sm:$0xf]
      %v5380 = vld [vmem:[%s581 + $0x24] sm:$0xf]
      %v5381 = vld [vmem:[%s581 + $0x28] sm:$0xf]
      %v5382 = vld [vmem:[%s581 + $0x30] sm:$0xf]
      %v5383 = vld [vmem:[%s581 + $0x34] sm:$0xf]
      %v5384 = vld [vmem:[%s581 + $0x3c] sm:$0xf]
      %v5385 = vld [vmem:[%s581 + $0x40] sm:$0xf]
      %v5386 = vld [vmem:[%s581 + $0x48] sm:$0xf]
      %v5387 = vld [vmem:[%s581 + $0x4c] sm:$0xf]
      %v5388 = vld [vmem:[%s581 + $0x54] sm:$0xf]
      %v5389 = vld [vmem:[%s581 + $0x58] sm:$0xf]
      %v5406 = vunpack.c.l.b16 %v5374
      %v5407 = vunpack.c.l.b16 %v5375
      %v5408 = vunpack.c.l.b16 %v5376
      %v5409 = vunpack.c.l.b16 %v5377
      %v5410 = vunpack.c.l.b16 %v5378
      %v5411 = vunpack.c.l.b16 %v5379
      %v5412 = vunpack.c.l.b16 %v5380
      %v5413 = vunpack.c.l.b16 %v5381
      %v5414 = vunpack.c.l.b16 %v5382
      %v5415 = vunpack.c.l.b16 %v5383
      %v5416 = vunpack.c.l.b16 %v5384
      %v5417 = vunpack.c.l.b16 %v5385
      %v5418 = vunpack.c.l.b16 %v5386
      %v5419 = vunpack.c.l.b16 %v5387
      %v5420 = vunpack.c.l.b16 %v5388
      %v5421 = vunpack.c.l.b16 %v5389
      %v5422 = vpack.c.b16 %v5407, %v5406
      %v5423 = vpack.c.b16 %v5409, %v5408
      %v5424 = vpack.c.b16 %v5411, %v5410
      %v5425 = vpack.c.b16 %v5413, %v5412
      %v5426 = vpack.c.b16 %v5415, %v5414
      %v5427 = vpack.c.b16 %v5417, %v5416
      %v5428 = vpack.c.b16 %v5419, %v5418
      %v5429 = vpack.c.b16 %v5421, %v5420
      %5430 = vrot.lane.b32.xlu0 %v5422, 12
      %v5431 = vpop.permute.xlu0 %5430
      %5432 = vrot.lane.b32.xlu0 %v5423, 12
      %v5433 = vpop.permute.xlu0 %5432
      %5434 = vrot.lane.b32.xlu0 %v5424, 12
      %v5435 = vpop.permute.xlu0 %5434
      %5436 = vrot.lane.b32.xlu0 %v5425, 12
      %v5437 = vpop.permute.xlu0 %5436
      %5438 = vrot.lane.b32.xlu0 %v5426, 12
      %v5439 = vpop.permute.xlu0 %5438
      %5440 = vrot.lane.b32.xlu0 %v5427, 12
      %v5441 = vpop.permute.xlu0 %5440
      %5442 = vrot.lane.b32.xlu0 %v5428, 12
      %v5443 = vpop.permute.xlu0 %5442
      %5444 = vrot.lane.b32.xlu0 %v5429, 12
      %v5445 = vpop.permute.xlu0 %5444
      %5454 = vst.msk [vmem:[#allocation3] sm:$0xff] %vm1432, %v5431
      %5455 = vst.msk [vmem:[#allocation3 + $0x8] sm:$0xff] %vm1432, %v5433
      %5456 = vst.msk [vmem:[#allocation3 + $0x10] sm:$0xff] %vm1432, %v5435
      %5457 = vst.msk [vmem:[#allocation3 + $0x18] sm:$0xff] %vm1432, %v5437
      %5458 = vst.msk [vmem:[#allocation3 + $0x20] sm:$0xff] %vm1432, %v5439
      %5459 = vst.msk [vmem:[#allocation3 + $0x28] sm:$0xff] %vm1432, %v5441
      %5460 = vst.msk [vmem:[#allocation3 + $0x30] sm:$0xff] %vm1432, %v5443
      %5461 = vst.msk [vmem:[#allocation3 + $0x38] sm:$0xff] %vm1432, %v5445
      %v5462 = vld [vmem:[%s581] sm:$0xf]
      %v5463 = vld [vmem:[%s581 + $0x4] sm:$0xf]
      %v5464 = vld [vmem:[%s581 + $0x8] sm:$0x1]
      %v5465 = vld [vmem:[%s581 + $0xc] sm:$0xf]
      %v5466 = vld [vmem:[%s581 + $0x10] sm:$0xf]
      %v5467 = vld [vmem:[%s581 + $0x14] sm:$0x1]
      %v5468 = vld [vmem:[%s581 + $0x18] sm:$0xf]
      %v5469 = vld [vmem:[%s581 + $0x1c] sm:$0xf]
      %v5470 = vld [vmem:[%s581 + $0x20] sm:$0x1]
      %v5471 = vld [vmem:[%s581 + $0x24] sm:$0xf]
      %v5472 = vld [vmem:[%s581 + $0x28] sm:$0xf]
      %v5473 = vld [vmem:[%s581 + $0x2c] sm:$0x1]
      %v5474 = vld [vmem:[%s581 + $0x30] sm:$0xf]
      %v5475 = vld [vmem:[%s581 + $0x34] sm:$0xf]
      %v5476 = vld [vmem:[%s581 + $0x38] sm:$0x1]
      %v5477 = vld [vmem:[%s581 + $0x3c] sm:$0xf]
      %v5478 = vld [vmem:[%s581 + $0x40] sm:$0xf]
      %v5479 = vld [vmem:[%s581 + $0x44] sm:$0x1]
      %v5480 = vld [vmem:[%s581 + $0x48] sm:$0xf]
      %v5481 = vld [vmem:[%s581 + $0x4c] sm:$0xf]
      %v5482 = vld [vmem:[%s581 + $0x50] sm:$0x1]
      %v5483 = vld [vmem:[%s581 + $0x54] sm:$0xf]
      %v5484 = vld [vmem:[%s581 + $0x58] sm:$0xf]
      %v5485 = vld [vmem:[%s581 + $0x5c] sm:$0x1]
      %v5510 = vunpack.c.l.b16 %v5462
      %v5511 = vunpack.c.l.b16 %v5463
      %v5512 = vunpack.c.l.b16 %v5464
      %v5513 = vunpack.c.l.b16 %v5465
      %v5514 = vunpack.c.l.b16 %v5466
      %v5515 = vunpack.c.l.b16 %v5467
      %v5516 = vunpack.c.l.b16 %v5468
      %v5517 = vunpack.c.l.b16 %v5469
      %v5518 = vunpack.c.l.b16 %v5470
      %v5519 = vunpack.c.l.b16 %v5471
      %v5520 = vunpack.c.l.b16 %v5472
      %v5521 = vunpack.c.l.b16 %v5473
      %v5522 = vunpack.c.l.b16 %v5474
      %v5523 = vunpack.c.l.b16 %v5475
      %v5524 = vunpack.c.l.b16 %v5476
      %v5525 = vunpack.c.l.b16 %v5477
      %v5526 = vunpack.c.l.b16 %v5478
      %v5527 = vunpack.c.l.b16 %v5479
      %v5528 = vunpack.c.l.b16 %v5480
      %v5529 = vunpack.c.l.b16 %v5481
      %v5530 = vunpack.c.l.b16 %v5482
      %v5531 = vunpack.c.l.b16 %v5483
      %v5532 = vunpack.c.l.b16 %v5484
      %v5533 = vunpack.c.l.b16 %v5485
      %v5534 = vpack.c.b16 %v5511, %v5510
      %v5535 = vpack.c.b16 %v5512, %v5512
      %v5536 = vpack.c.b16 %v5514, %v5513
      %v5537 = vpack.c.b16 %v5515, %v5515
      %v5538 = vpack.c.b16 %v5517, %v5516
      %v5539 = vpack.c.b16 %v5518, %v5518
      %v5540 = vpack.c.b16 %v5520, %v5519
      %v5541 = vpack.c.b16 %v5521, %v5521
      %v5542 = vpack.c.b16 %v5523, %v5522
      %v5543 = vpack.c.b16 %v5524, %v5524
      %v5544 = vpack.c.b16 %v5526, %v5525
      %v5545 = vpack.c.b16 %v5527, %v5527
      %v5546 = vpack.c.b16 %v5529, %v5528
      %v5547 = vpack.c.b16 %v5530, %v5530
      %v5548 = vpack.c.b16 %v5532, %v5531
      %v5549 = vpack.c.b16 %v5533, %v5533
      %v5551 = vshrl.u32 %v5534, 16
      %v5553 = vshll.u32 %v5534, 16
      %v5555 = vrot.slane %v5553, 1
      %v5556 = vor.u32 %v5551, %v5555
      %v5558 = vshll.u32 %v5535, 16
      %v5560 = vrot.slane %v5558, 1
      %v5561 = vsel %vm1076, %v5556, %v5560
      %v5563 = vshrl.u32 %v5536, 16
      %v5565 = vshll.u32 %v5536, 16
      %v5567 = vrot.slane %v5565, 1
      %v5568 = vor.u32 %v5563, %v5567
      %v5570 = vshll.u32 %v5537, 16
      %v5572 = vrot.slane %v5570, 1
      %v5573 = vsel %vm1076, %v5568, %v5572
      %v5575 = vshrl.u32 %v5538, 16
      %v5577 = vshll.u32 %v5538, 16
      %v5579 = vrot.slane %v5577, 1
      %v5580 = vor.u32 %v5575, %v5579
      %v5582 = vshll.u32 %v5539, 16
      %v5584 = vrot.slane %v5582, 1
      %v5585 = vsel %vm1076, %v5580, %v5584
      %v5587 = vshrl.u32 %v5540, 16
      %v5589 = vshll.u32 %v5540, 16
      %v5591 = vrot.slane %v5589, 1
      %v5592 = vor.u32 %v5587, %v5591
      %v5594 = vshll.u32 %v5541, 16
      %v5596 = vrot.slane %v5594, 1
      %v5597 = vsel %vm1076, %v5592, %v5596
      %v5599 = vshrl.u32 %v5542, 16
      %v5601 = vshll.u32 %v5542, 16
      %v5603 = vrot.slane %v5601, 1
      %v5604 = vor.u32 %v5599, %v5603
      %v5606 = vshll.u32 %v5543, 16
      %v5608 = vrot.slane %v5606, 1
      %v5609 = vsel %vm1076, %v5604, %v5608
      %v5611 = vshrl.u32 %v5544, 16
      %v5613 = vshll.u32 %v5544, 16
      %v5615 = vrot.slane %v5613, 1
      %v5616 = vor.u32 %v5611, %v5615
      %v5618 = vshll.u32 %v5545, 16
      %v5620 = vrot.slane %v5618, 1
      %v5621 = vsel %vm1076, %v5616, %v5620
      %v5623 = vshrl.u32 %v5546, 16
      %v5625 = vshll.u32 %v5546, 16
      %v5627 = vrot.slane %v5625, 1
      %v5628 = vor.u32 %v5623, %v5627
      %v5630 = vshll.u32 %v5547, 16
      %v5632 = vrot.slane %v5630, 1
      %v5633 = vsel %vm1076, %v5628, %v5632
      %v5635 = vshrl.u32 %v5548, 16
      %v5637 = vshll.u32 %v5548, 16
      %v5639 = vrot.slane %v5637, 1
      %v5640 = vor.u32 %v5635, %v5639
      %v5642 = vshll.u32 %v5549, 16
      %v5644 = vrot.slane %v5642, 1
      %v5645 = vsel %vm1076, %v5640, %v5644
      %5646 = vrot.lane.b32.xlu0 %v5561, 16
      %v5647 = vpop.permute.xlu0 %5646
      %5648 = vrot.lane.b32.xlu0 %v5573, 16
      %v5649 = vpop.permute.xlu0 %5648
      %5650 = vrot.lane.b32.xlu0 %v5585, 16
      %v5651 = vpop.permute.xlu0 %5650
      %5652 = vrot.lane.b32.xlu0 %v5597, 16
      %v5653 = vpop.permute.xlu0 %5652
      %5654 = vrot.lane.b32.xlu0 %v5609, 16
      %v5655 = vpop.permute.xlu0 %5654
      %5656 = vrot.lane.b32.xlu0 %v5621, 16
      %v5657 = vpop.permute.xlu0 %5656
      %5658 = vrot.lane.b32.xlu0 %v5633, 16
      %v5659 = vpop.permute.xlu0 %5658
      %5660 = vrot.lane.b32.xlu0 %v5645, 16
      %v5661 = vpop.permute.xlu0 %5660
      %5670 = vst.msk [vmem:[#allocation3] sm:$0xff] %vm1649, %v5647
      %5671 = vst.msk [vmem:[#allocation3 + $0x8] sm:$0xff] %vm1649, %v5649
      %5672 = vst.msk [vmem:[#allocation3 + $0x10] sm:$0xff] %vm1649, %v5651
      %5673 = vst.msk [vmem:[#allocation3 + $0x18] sm:$0xff] %vm1649, %v5653
      %5674 = vst.msk [vmem:[#allocation3 + $0x20] sm:$0xff] %vm1649, %v5655
      %5675 = vst.msk [vmem:[#allocation3 + $0x28] sm:$0xff] %vm1649, %v5657
      %5676 = vst.msk [vmem:[#allocation3 + $0x30] sm:$0xff] %vm1649, %v5659
      %5677 = vst.msk [vmem:[#allocation3 + $0x38] sm:$0xff] %vm1649, %v5661
      %v5678 = vld [vmem:[%s581] sm:$0xe]
      %v5679 = vld [vmem:[%s581 + $0x4] sm:$0xf]
      %v5680 = vld [vmem:[%s581 + $0x8] sm:$0x1]
      %v5681 = vld [vmem:[%s581 + $0xc] sm:$0xe]
      %v5682 = vld [vmem:[%s581 + $0x10] sm:$0xf]
      %v5683 = vld [vmem:[%s581 + $0x14] sm:$0x1]
      %v5684 = vld [vmem:[%s581 + $0x18] sm:$0xe]
      %v5685 = vld [vmem:[%s581 + $0x1c] sm:$0xf]
      %v5686 = vld [vmem:[%s581 + $0x20] sm:$0x1]
      %v5687 = vld [vmem:[%s581 + $0x24] sm:$0xe]
      %v5688 = vld [vmem:[%s581 + $0x28] sm:$0xf]
      %v5689 = vld [vmem:[%s581 + $0x2c] sm:$0x1]
      %v5690 = vld [vmem:[%s581 + $0x30] sm:$0xe]
      %v5691 = vld [vmem:[%s581 + $0x34] sm:$0xf]
      %v5692 = vld [vmem:[%s581 + $0x38] sm:$0x1]
      %v5693 = vld [vmem:[%s581 + $0x3c] sm:$0xe]
      %v5694 = vld [vmem:[%s581 + $0x40] sm:$0xf]
      %v5695 = vld [vmem:[%s581 + $0x44] sm:$0x1]
      %v5696 = vld [vmem:[%s581 + $0x48] sm:$0xe]
      %v5697 = vld [vmem:[%s581 + $0x4c] sm:$0xf]
      %v5698 = vld [vmem:[%s581 + $0x50] sm:$0x1]
      %v5699 = vld [vmem:[%s581 + $0x54] sm:$0xe]
      %v5700 = vld [vmem:[%s581 + $0x58] sm:$0xf]
      %v5701 = vld [vmem:[%s581 + $0x5c] sm:$0x1]
      %v5726 = vunpack.c.l.b16 %v5678
      %v5727 = vunpack.c.l.b16 %v5679
      %v5728 = vunpack.c.l.b16 %v5680
      %v5729 = vunpack.c.l.b16 %v5681
      %v5730 = vunpack.c.l.b16 %v5682
      %v5731 = vunpack.c.l.b16 %v5683
      %v5732 = vunpack.c.l.b16 %v5684
      %v5733 = vunpack.c.l.b16 %v5685
      %v5734 = vunpack.c.l.b16 %v5686
      %v5735 = vunpack.c.l.b16 %v5687
      %v5736 = vunpack.c.l.b16 %v5688
      %v5737 = vunpack.c.l.b16 %v5689
      %v5738 = vunpack.c.l.b16 %v5690
      %v5739 = vunpack.c.l.b16 %v5691
      %v5740 = vunpack.c.l.b16 %v5692
      %v5741 = vunpack.c.l.b16 %v5693
      %v5742 = vunpack.c.l.b16 %v5694
      %v5743 = vunpack.c.l.b16 %v5695
      %v5744 = vunpack.c.l.b16 %v5696
      %v5745 = vunpack.c.l.b16 %v5697
      %v5746 = vunpack.c.l.b16 %v5698
      %v5747 = vunpack.c.l.b16 %v5699
      %v5748 = vunpack.c.l.b16 %v5700
      %v5749 = vunpack.c.l.b16 %v5701
      %v5750 = vpack.c.b16 %v5727, %v5726
      %v5751 = vpack.c.b16 %v5728, %v5728
      %v5752 = vpack.c.b16 %v5730, %v5729
      %v5753 = vpack.c.b16 %v5731, %v5731
      %v5754 = vpack.c.b16 %v5733, %v5732
      %v5755 = vpack.c.b16 %v5734, %v5734
      %v5756 = vpack.c.b16 %v5736, %v5735
      %v5757 = vpack.c.b16 %v5737, %v5737
      %v5758 = vpack.c.b16 %v5739, %v5738
      %v5759 = vpack.c.b16 %v5740, %v5740
      %v5760 = vpack.c.b16 %v5742, %v5741
      %v5761 = vpack.c.b16 %v5743, %v5743
      %v5762 = vpack.c.b16 %v5745, %v5744
      %v5763 = vpack.c.b16 %v5746, %v5746
      %v5764 = vpack.c.b16 %v5748, %v5747
      %v5765 = vpack.c.b16 %v5749, %v5749
      %v5766 = vrot.slane %v5750, 1
      %v5767 = vrot.slane %v5751, 1
      %v5768 = vsel %vm1294, %v5766, %v5767
      %v5769 = vrot.slane %v5752, 1
      %v5770 = vrot.slane %v5753, 1
      %v5771 = vsel %vm1294, %v5769, %v5770
      %v5772 = vrot.slane %v5754, 1
      %v5773 = vrot.slane %v5755, 1
      %v5774 = vsel %vm1294, %v5772, %v5773
      %v5775 = vrot.slane %v5756, 1
      %v5776 = vrot.slane %v5757, 1
      %v5777 = vsel %vm1294, %v5775, %v5776
      %v5778 = vrot.slane %v5758, 1
      %v5779 = vrot.slane %v5759, 1
      %v5780 = vsel %vm1294, %v5778, %v5779
      %v5781 = vrot.slane %v5760, 1
      %v5782 = vrot.slane %v5761, 1
      %v5783 = vsel %vm1294, %v5781, %v5782
      %v5784 = vrot.slane %v5762, 1
      %v5785 = vrot.slane %v5763, 1
      %v5786 = vsel %vm1294, %v5784, %v5785
      %v5787 = vrot.slane %v5764, 1
      %v5788 = vrot.slane %v5765, 1
      %v5789 = vsel %vm1294, %v5787, %v5788
      %5790 = vrot.lane.b32.xlu0 %v5768, 20
      %v5791 = vpop.permute.xlu0 %5790
      %5792 = vrot.lane.b32.xlu0 %v5771, 20
      %v5793 = vpop.permute.xlu0 %5792
      %5794 = vrot.lane.b32.xlu0 %v5774, 20
      %v5795 = vpop.permute.xlu0 %5794
      %5796 = vrot.lane.b32.xlu0 %v5777, 20
      %v5797 = vpop.permute.xlu0 %5796
      %5798 = vrot.lane.b32.xlu0 %v5780, 20
      %v5799 = vpop.permute.xlu0 %5798
      %5800 = vrot.lane.b32.xlu0 %v5783, 20
      %v5801 = vpop.permute.xlu0 %5800
      %5802 = vrot.lane.b32.xlu0 %v5786, 20
      %v5803 = vpop.permute.xlu0 %5802
      %5804 = vrot.lane.b32.xlu0 %v5789, 20
      %v5805 = vpop.permute.xlu0 %5804
      %5814 = vst.msk [vmem:[#allocation3] sm:$0xff] %vm1794, %v5791
      %5815 = vst.msk [vmem:[#allocation3 + $0x8] sm:$0xff] %vm1794, %v5793
      %5816 = vst.msk [vmem:[#allocation3 + $0x10] sm:$0xff] %vm1794, %v5795
      %5817 = vst.msk [vmem:[#allocation3 + $0x18] sm:$0xff] %vm1794, %v5797
      %5818 = vst.msk [vmem:[#allocation3 + $0x20] sm:$0xff] %vm1794, %v5799
      %5819 = vst.msk [vmem:[#allocation3 + $0x28] sm:$0xff] %vm1794, %v5801
      %5820 = vst.msk [vmem:[#allocation3 + $0x30] sm:$0xff] %vm1794, %v5803
      %5821 = vst.msk [vmem:[#allocation3 + $0x38] sm:$0xff] %vm1794, %v5805
      %v5822 = vld [vmem:[%s893] sm:$0xf]
      %v5823 = vld [vmem:[%s893 + $0x4] sm:$0xf]
      %v5824 = vld [vmem:[%s893 + $0xc] sm:$0xf]
      %v5825 = vld [vmem:[%s893 + $0x10] sm:$0xf]
      %v5826 = vld [vmem:[%s893 + $0x18] sm:$0xf]
      %v5827 = vld [vmem:[%s893 + $0x1c] sm:$0xf]
      %v5828 = vld [vmem:[%s893 + $0x24] sm:$0xf]
      %v5829 = vld [vmem:[%s893 + $0x28] sm:$0xf]
      %v5830 = vld [vmem:[%s893 + $0x30] sm:$0xf]
      %v5831 = vld [vmem:[%s893 + $0x34] sm:$0xf]
      %v5832 = vld [vmem:[%s893 + $0x3c] sm:$0xf]
      %v5833 = vld [vmem:[%s893 + $0x40] sm:$0xf]
      %v5834 = vld [vmem:[%s893 + $0x48] sm:$0xf]
      %v5835 = vld [vmem:[%s893 + $0x4c] sm:$0xf]
      %v5836 = vld [vmem:[%s893 + $0x54] sm:$0xf]
      %v5837 = vld [vmem:[%s893 + $0x58] sm:$0xf]
      %v5854 = vunpack.c.l.b16 %v5822
      %v5855 = vunpack.c.l.b16 %v5823
      %v5856 = vunpack.c.l.b16 %v5824
      %v5857 = vunpack.c.l.b16 %v5825
      %v5858 = vunpack.c.l.b16 %v5826
      %v5859 = vunpack.c.l.b16 %v5827
      %v5860 = vunpack.c.l.b16 %v5828
      %v5861 = vunpack.c.l.b16 %v5829
      %v5862 = vunpack.c.l.b16 %v5830
      %v5863 = vunpack.c.l.b16 %v5831
      %v5864 = vunpack.c.l.b16 %v5832
      %v5865 = vunpack.c.l.b16 %v5833
      %v5866 = vunpack.c.l.b16 %v5834
      %v5867 = vunpack.c.l.b16 %v5835
      %v5868 = vunpack.c.l.b16 %v5836
      %v5869 = vunpack.c.l.b16 %v5837
      %v5870 = vpack.c.b16 %v5855, %v5854
      %v5871 = vpack.c.b16 %v5857, %v5856
      %v5872 = vpack.c.b16 %v5859, %v5858
      %v5873 = vpack.c.b16 %v5861, %v5860
      %v5874 = vpack.c.b16 %v5863, %v5862
      %v5875 = vpack.c.b16 %v5865, %v5864
      %v5876 = vpack.c.b16 %v5867, %v5866
      %v5877 = vpack.c.b16 %v5869, %v5868
      %5878 = vrot.lane.b32.xlu0 %v5870, 24
      %v5879 = vpop.permute.xlu0 %5878
      %5880 = vrot.lane.b32.xlu0 %v5871, 24
      %v5881 = vpop.permute.xlu0 %5880
      %5882 = vrot.lane.b32.xlu0 %v5872, 24
      %v5883 = vpop.permute.xlu0 %5882
      %5884 = vrot.lane.b32.xlu0 %v5873, 24
      %v5885 = vpop.permute.xlu0 %5884
      %5886 = vrot.lane.b32.xlu0 %v5874, 24
      %v5887 = vpop.permute.xlu0 %5886
      %5888 = vrot.lane.b32.xlu0 %v5875, 24
      %v5889 = vpop.permute.xlu0 %5888
      %5890 = vrot.lane.b32.xlu0 %v5876, 24
      %v5891 = vpop.permute.xlu0 %5890
      %5892 = vrot.lane.b32.xlu0 %v5877, 24
      %v5893 = vpop.permute.xlu0 %5892
      %5902 = vst.msk [vmem:[#allocation3] sm:$0xff] %vm1883, %v5879
      %5903 = vst.msk [vmem:[#allocation3 + $0x8] sm:$0xff] %vm1883, %v5881
      %5904 = vst.msk [vmem:[#allocation3 + $0x10] sm:$0xff] %vm1883, %v5883
      %5905 = vst.msk [vmem:[#allocation3 + $0x18] sm:$0xff] %vm1883, %v5885
      %5906 = vst.msk [vmem:[#allocation3 + $0x20] sm:$0xff] %vm1883, %v5887
      %5907 = vst.msk [vmem:[#allocation3 + $0x28] sm:$0xff] %vm1883, %v5889
      %5908 = vst.msk [vmem:[#allocation3 + $0x30] sm:$0xff] %vm1883, %v5891
      %5909 = vst.msk [vmem:[#allocation3 + $0x38] sm:$0xff] %vm1883, %v5893
      %v5910 = vld [vmem:[%s893] sm:$0xf]
      %v5911 = vld [vmem:[%s893 + $0x4] sm:$0xf]
      %v5912 = vld [vmem:[%s893 + $0x8] sm:$0x1]
      %v5913 = vld [vmem:[%s893 + $0xc] sm:$0xf]
      %v5914 = vld [vmem:[%s893 + $0x10] sm:$0xf]
      %v5915 = vld [vmem:[%s893 + $0x14] sm:$0x1]
      %v5916 = vld [vmem:[%s893 + $0x18] sm:$0xf]
      %v5917 = vld [vmem:[%s893 + $0x1c] sm:$0xf]
      %v5918 = vld [vmem:[%s893 + $0x20] sm:$0x1]
      %v5919 = vld [vmem:[%s893 + $0x24] sm:$0xf]
      %v5920 = vld [vmem:[%s893 + $0x28] sm:$0xf]
      %v5921 = vld [vmem:[%s893 + $0x2c] sm:$0x1]
      %v5922 = vld [vmem:[%s893 + $0x30] sm:$0xf]
      %v5923 = vld [vmem:[%s893 + $0x34] sm:$0xf]
      %v5924 = vld [vmem:[%s893 + $0x38] sm:$0x1]
      %v5925 = vld [vmem:[%s893 + $0x3c] sm:$0xf]
      %v5926 = vld [vmem:[%s893 + $0x40] sm:$0xf]
      %v5927 = vld [vmem:[%s893 + $0x44] sm:$0x1]
      %v5928 = vld [vmem:[%s893 + $0x48] sm:$0xf]
      %v5929 = vld [vmem:[%s893 + $0x4c] sm:$0xf]
      %v5930 = vld [vmem:[%s893 + $0x50] sm:$0x1]
      %v5931 = vld [vmem:[%s893 + $0x54] sm:$0xf]
      %v5932 = vld [vmem:[%s893 + $0x58] sm:$0xf]
      %v5933 = vld [vmem:[%s893 + $0x5c] sm:$0x1]
      %v5958 = vunpack.c.l.b16 %v5910
      %v5959 = vunpack.c.l.b16 %v5911
      %v5960 = vunpack.c.l.b16 %v5912
      %v5961 = vunpack.c.l.b16 %v5913
      %v5962 = vunpack.c.l.b16 %v5914
      %v5963 = vunpack.c.l.b16 %v5915
      %v5964 = vunpack.c.l.b16 %v5916
      %v5965 = vunpack.c.l.b16 %v5917
      %v5966 = vunpack.c.l.b16 %v5918
      %v5967 = vunpack.c.l.b16 %v5919
      %v5968 = vunpack.c.l.b16 %v5920
      %v5969 = vunpack.c.l.b16 %v5921
      %v5970 = vunpack.c.l.b16 %v5922
      %v5971 = vunpack.c.l.b16 %v5923
      %v5972 = vunpack.c.l.b16 %v5924
      %v5973 = vunpack.c.l.b16 %v5925
      %v5974 = vunpack.c.l.b16 %v5926
      %v5975 = vunpack.c.l.b16 %v5927
      %v5976 = vunpack.c.l.b16 %v5928
      %v5977 = vunpack.c.l.b16 %v5929
      %v5978 = vunpack.c.l.b16 %v5930
      %v5979 = vunpack.c.l.b16 %v5931
      %v5980 = vunpack.c.l.b16 %v5932
      %v5981 = vunpack.c.l.b16 %v5933
      %v5982 = vpack.c.b16 %v5959, %v5958
      %v5983 = vpack.c.b16 %v5960, %v5960
      %v5984 = vpack.c.b16 %v5962, %v5961
      %v5985 = vpack.c.b16 %v5963, %v5963
      %v5986 = vpack.c.b16 %v5965, %v5964
      %v5987 = vpack.c.b16 %v5966, %v5966
      %v5988 = vpack.c.b16 %v5968, %v5967
      %v5989 = vpack.c.b16 %v5969, %v5969
      %v5990 = vpack.c.b16 %v5971, %v5970
      %v5991 = vpack.c.b16 %v5972, %v5972
      %v5992 = vpack.c.b16 %v5974, %v5973
      %v5993 = vpack.c.b16 %v5975, %v5975
      %v5994 = vpack.c.b16 %v5977, %v5976
      %v5995 = vpack.c.b16 %v5978, %v5978
      %v5996 = vpack.c.b16 %v5980, %v5979
      %v5997 = vpack.c.b16 %v5981, %v5981
      %v5999 = vshrl.u32 %v5982, 16
      %v6001 = vshll.u32 %v5982, 16
      %v6003 = vrot.slane %v6001, 1
      %v6004 = vor.u32 %v5999, %v6003
      %v6006 = vshll.u32 %v5983, 16
      %v6008 = vrot.slane %v6006, 1
      %v6009 = vsel %vm1076, %v6004, %v6008
      %v6011 = vshrl.u32 %v5984, 16
      %v6013 = vshll.u32 %v5984, 16
      %v6015 = vrot.slane %v6013, 1
      %v6016 = vor.u32 %v6011, %v6015
      %v6018 = vshll.u32 %v5985, 16
      %v6020 = vrot.slane %v6018, 1
      %v6021 = vsel %vm1076, %v6016, %v6020
      %v6023 = vshrl.u32 %v5986, 16
      %v6025 = vshll.u32 %v5986, 16
      %v6027 = vrot.slane %v6025, 1
      %v6028 = vor.u32 %v6023, %v6027
      %v6030 = vshll.u32 %v5987, 16
      %v6032 = vrot.slane %v6030, 1
      %v6033 = vsel %vm1076, %v6028, %v6032
      %v6035 = vshrl.u32 %v5988, 16
      %v6037 = vshll.u32 %v5988, 16
      %v6039 = vrot.slane %v6037, 1
      %v6040 = vor.u32 %v6035, %v6039
      %v6042 = vshll.u32 %v5989, 16
      %v6044 = vrot.slane %v6042, 1
      %v6045 = vsel %vm1076, %v6040, %v6044
      %v6047 = vshrl.u32 %v5990, 16
      %v6049 = vshll.u32 %v5990, 16
      %v6051 = vrot.slane %v6049, 1
      %v6052 = vor.u32 %v6047, %v6051
      %v6054 = vshll.u32 %v5991, 16
      %v6056 = vrot.slane %v6054, 1
      %v6057 = vsel %vm1076, %v6052, %v6056
      %v6059 = vshrl.u32 %v5992, 16
      %v6061 = vshll.u32 %v5992, 16
      %v6063 = vrot.slane %v6061, 1
      %v6064 = vor.u32 %v6059, %v6063
      %v6066 = vshll.u32 %v5993, 16
      %v6068 = vrot.slane %v6066, 1
      %v6069 = vsel %vm1076, %v6064, %v6068
      %v6071 = vshrl.u32 %v5994, 16
      %v6073 = vshll.u32 %v5994, 16
      %v6075 = vrot.slane %v6073, 1
      %v6076 = vor.u32 %v6071, %v6075
      %v6078 = vshll.u32 %v5995, 16
      %v6080 = vrot.slane %v6078, 1
      %v6081 = vsel %vm1076, %v6076, %v6080
      %v6083 = vshrl.u32 %v5996, 16
      %v6085 = vshll.u32 %v5996, 16
      %v6087 = vrot.slane %v6085, 1
      %v6088 = vor.u32 %v6083, %v6087
      %v6090 = vshll.u32 %v5997, 16
      %v6092 = vrot.slane %v6090, 1
      %v6093 = vsel %vm1076, %v6088, %v6092
      %6094 = vrot.lane.b32.xlu0 %v6009, 28
      %v6095 = vpop.permute.xlu0 %6094
      %6096 = vrot.lane.b32.xlu0 %v6021, 28
      %v6097 = vpop.permute.xlu0 %6096
      %6098 = vrot.lane.b32.xlu0 %v6033, 28
      %v6099 = vpop.permute.xlu0 %6098
      %6100 = vrot.lane.b32.xlu0 %v6045, 28
      %v6101 = vpop.permute.xlu0 %6100
      %6102 = vrot.lane.b32.xlu0 %v6057, 28
      %v6103 = vpop.permute.xlu0 %6102
      %6104 = vrot.lane.b32.xlu0 %v6069, 28
      %v6105 = vpop.permute.xlu0 %6104
      %6106 = vrot.lane.b32.xlu0 %v6081, 28
      %v6107 = vpop.permute.xlu0 %6106
      %6108 = vrot.lane.b32.xlu0 %v6093, 28
      %v6109 = vpop.permute.xlu0 %6108
      %6118 = vst.msk [vmem:[#allocation3] sm:$0xff] %vm2100, %v6095
      %6119 = vst.msk [vmem:[#allocation3 + $0x8] sm:$0xff] %vm2100, %v6097
      %6120 = vst.msk [vmem:[#allocation3 + $0x10] sm:$0xff] %vm2100, %v6099
      %6121 = vst.msk [vmem:[#allocation3 + $0x18] sm:$0xff] %vm2100, %v6101
      %6122 = vst.msk [vmem:[#allocation3 + $0x20] sm:$0xff] %vm2100, %v6103
      %6123 = vst.msk [vmem:[#allocation3 + $0x28] sm:$0xff] %vm2100, %v6105
      %6124 = vst.msk [vmem:[#allocation3 + $0x30] sm:$0xff] %vm2100, %v6107
      %6125 = vst.msk [vmem:[#allocation3 + $0x38] sm:$0xff] %vm2100, %v6109
      %v6126 = vld [vmem:[%s893] sm:$0xe]
      %v6127 = vld [vmem:[%s893 + $0x4] sm:$0xf]
      %v6128 = vld [vmem:[%s893 + $0x8] sm:$0x1]
      %v6129 = vld [vmem:[%s893 + $0xc] sm:$0xe]
      %v6130 = vld [vmem:[%s893 + $0x10] sm:$0xf]
      %v6131 = vld [vmem:[%s893 + $0x14] sm:$0x1]
      %v6132 = vld [vmem:[%s893 + $0x18] sm:$0xe]
      %v6133 = vld [vmem:[%s893 + $0x1c] sm:$0xf]
      %v6134 = vld [vmem:[%s893 + $0x20] sm:$0x1]
      %v6135 = vld [vmem:[%s893 + $0x24] sm:$0xe]
      %v6136 = vld [vmem:[%s893 + $0x28] sm:$0xf]
      %v6137 = vld [vmem:[%s893 + $0x2c] sm:$0x1]
      %v6138 = vld [vmem:[%s893 + $0x30] sm:$0xe]
      %v6139 = vld [vmem:[%s893 + $0x34] sm:$0xf]
      %v6140 = vld [vmem:[%s893 + $0x38] sm:$0x1]
      %v6141 = vld [vmem:[%s893 + $0x3c] sm:$0xe]
      %v6142 = vld [vmem:[%s893 + $0x40] sm:$0xf]
      %v6143 = vld [vmem:[%s893 + $0x44] sm:$0x1]
      %v6144 = vld [vmem:[%s893 + $0x48] sm:$0xe]
      %v6145 = vld [vmem:[%s893 + $0x4c] sm:$0xf]
      %v6146 = vld [vmem:[%s893 + $0x50] sm:$0x1]
      %v6147 = vld [vmem:[%s893 + $0x54] sm:$0xe]
      %v6148 = vld [vmem:[%s893 + $0x58] sm:$0xf]
      %v6149 = vld [vmem:[%s893 + $0x5c] sm:$0x1]
      %v6174 = vunpack.c.l.b16 %v6126
      %v6175 = vunpack.c.l.b16 %v6127
      %v6176 = vunpack.c.l.b16 %v6128
      %v6177 = vunpack.c.l.b16 %v6129
      %v6178 = vunpack.c.l.b16 %v6130
      %v6179 = vunpack.c.l.b16 %v6131
      %v6180 = vunpack.c.l.b16 %v6132
      %v6181 = vunpack.c.l.b16 %v6133
      %v6182 = vunpack.c.l.b16 %v6134
      %v6183 = vunpack.c.l.b16 %v6135
      %v6184 = vunpack.c.l.b16 %v6136
      %v6185 = vunpack.c.l.b16 %v6137
      %v6186 = vunpack.c.l.b16 %v6138
      %v6187 = vunpack.c.l.b16 %v6139
      %v6188 = vunpack.c.l.b16 %v6140
      %v6189 = vunpack.c.l.b16 %v6141
      %v6190 = vunpack.c.l.b16 %v6142
      %v6191 = vunpack.c.l.b16 %v6143
      %v6192 = vunpack.c.l.b16 %v6144
      %v6193 = vunpack.c.l.b16 %v6145
      %v6194 = vunpack.c.l.b16 %v6146
      %v6195 = vunpack.c.l.b16 %v6147
      %v6196 = vunpack.c.l.b16 %v6148
      %v6197 = vunpack.c.l.b16 %v6149
      %v6198 = vpack.c.b16 %v6175, %v6174
      %v6199 = vpack.c.b16 %v6176, %v6176
      %v6200 = vpack.c.b16 %v6178, %v6177
      %v6201 = vpack.c.b16 %v6179, %v6179
      %v6202 = vpack.c.b16 %v6181, %v6180
      %v6203 = vpack.c.b16 %v6182, %v6182
      %v6204 = vpack.c.b16 %v6184, %v6183
      %v6205 = vpack.c.b16 %v6185, %v6185
      %v6206 = vpack.c.b16 %v6187, %v6186
      %v6207 = vpack.c.b16 %v6188, %v6188
      %v6208 = vpack.c.b16 %v6190, %v6189
      %v6209 = vpack.c.b16 %v6191, %v6191
      %v6210 = vpack.c.b16 %v6193, %v6192
      %v6211 = vpack.c.b16 %v6194, %v6194
      %v6212 = vpack.c.b16 %v6196, %v6195
      %v6213 = vpack.c.b16 %v6197, %v6197
      %v6214 = vrot.slane %v6198, 1
      %v6215 = vrot.slane %v6199, 1
      %v6216 = vsel %vm1294, %v6214, %v6215
      %v6217 = vrot.slane %v6200, 1
      %v6218 = vrot.slane %v6201, 1
      %v6219 = vsel %vm1294, %v6217, %v6218
      %v6220 = vrot.slane %v6202, 1
      %v6221 = vrot.slane %v6203, 1
      %v6222 = vsel %vm1294, %v6220, %v6221
      %v6223 = vrot.slane %v6204, 1
      %v6224 = vrot.slane %v6205, 1
      %v6225 = vsel %vm1294, %v6223, %v6224
      %v6226 = vrot.slane %v6206, 1
      %v6227 = vrot.slane %v6207, 1
      %v6228 = vsel %vm1294, %v6226, %v6227
      %v6229 = vrot.slane %v6208, 1
      %v6230 = vrot.slane %v6209, 1
      %v6231 = vsel %vm1294, %v6229, %v6230
      %v6232 = vrot.slane %v6210, 1
      %v6233 = vrot.slane %v6211, 1
      %v6234 = vsel %vm1294, %v6232, %v6233
      %v6235 = vrot.slane %v6212, 1
      %v6236 = vrot.slane %v6213, 1
      %v6237 = vsel %vm1294, %v6235, %v6236
      %6238 = vrot.lane.b32.xlu0 %v6216, 32
      %v6239 = vpop.permute.xlu0 %6238
      %6240 = vrot.lane.b32.xlu0 %v6219, 32
      %v6241 = vpop.permute.xlu0 %6240
      %6242 = vrot.lane.b32.xlu0 %v6222, 32
      %v6243 = vpop.permute.xlu0 %6242
      %6244 = vrot.lane.b32.xlu0 %v6225, 32
      %v6245 = vpop.permute.xlu0 %6244
      %6246 = vrot.lane.b32.xlu0 %v6228, 32
      %v6247 = vpop.permute.xlu0 %6246
      %6248 = vrot.lane.b32.xlu0 %v6231, 32
      %v6249 = vpop.permute.xlu0 %6248
      %6250 = vrot.lane.b32.xlu0 %v6234, 32
      %v6251 = vpop.permute.xlu0 %6250
      %6252 = vrot.lane.b32.xlu0 %v6237, 32
      %v6253 = vpop.permute.xlu0 %6252
      %6262 = vst.msk [vmem:[#allocation3] sm:$0xff] %vm2245, %v6239
      %6263 = vst.msk [vmem:[#allocation3 + $0x8] sm:$0xff] %vm2245, %v6241
      %6264 = vst.msk [vmem:[#allocation3 + $0x10] sm:$0xff] %vm2245, %v6243
      %6265 = vst.msk [vmem:[#allocation3 + $0x18] sm:$0xff] %vm2245, %v6245
      %6266 = vst.msk [vmem:[#allocation3 + $0x20] sm:$0xff] %vm2245, %v6247
      %6267 = vst.msk [vmem:[#allocation3 + $0x28] sm:$0xff] %vm2245, %v6249
      %6268 = vst.msk [vmem:[#allocation3 + $0x30] sm:$0xff] %vm2245, %v6251
      %6269 = vst.msk [vmem:[#allocation3 + $0x38] sm:$0xff] %vm2245, %v6253
      %v6270 = vld [vmem:[#allocation3] sm:$0xff]
      %v6271 = vld [vmem:[#allocation3 + $0x8] sm:$0xff]
      %v6272 = vld [vmem:[#allocation3 + $0x10] sm:$0xff]
      %v6273 = vld [vmem:[#allocation3 + $0x18] sm:$0xff]
      %v6274 = vld [vmem:[#allocation3 + $0x20] sm:$0xff]
      %v6275 = vld [vmem:[#allocation3 + $0x28] sm:$0xff]
      %v6276 = vld [vmem:[#allocation3 + $0x30] sm:$0xff]
      %v6277 = vld [vmem:[#allocation3 + $0x38] sm:$0xff]
      %v6279 = vlaneseq
      %v6280 = vshrl.u32 %v6279, 7
      %v6281 = vsub.s32 0, %v6280
      %v6282 = vrot.slane %v4941, %v6281
      %v6289 = vunpack.c.l.b16 %v4936
      %v6290 = vunpack.c.l.b16 %v4937
      %v6291 = vunpack.c.l.b16 %v4938
      %v6292 = vunpack.c.l.b16 %v4939
      %v6293 = vunpack.c.l.b16 %v4940
      %v6294 = vpack.c.b16 %v6290, %v6289
      %v6295 = vpack.c.b16 %v6292, %v6291
      %v6296 = vpack.c.b16 %v6293, %v6293
      %v6300 = vsel %vm2283, %v6270, 0
      %v6303 = vsel %vm2283, %v6271, 0
      %v6306 = vsel %vm2283, %v6272, 0
      %v6309 = vsel %vm2283, %v6273, 0
      %v6312 = vsel %vm2283, %v6274, 0
      %v6315 = vsel %vm2283, %v6275, 0
      %v6318 = vsel %vm2283, %v6276, 0
      %v6321 = vsel %vm2283, %v6277, 0
      %v6324 = vsel %vm2308, %v6296, 0
      %6326 = vmatprep.subr.bf16.mxu0 0
      %6327 = vmatpush1.bf16.msra.mxu0 %v6294
      %6328 = vmatprep.subr.bf16.mxu0 0
      %6329 = vmatpush1.bf16.msra.mxu0 %v6295
      %6330 = vmatprep.subr.bf16.mxu0 0
      %6331 = vmatpush1.bf16.msra.mxu0 %v6324
      %6332 = vmatprep.subr.bf16.mxu0 0
      %6333 = vmatpush1.bf16.msra.mxu0 0
      %6334 = vmatprep.subr.bf16.mxu0 0
      %6335 = vmatpush1.bf16.msra.mxu0 0
      %6336 = vmatprep.subr.bf16.mxu0 0
      %6337 = vmatpush1.bf16.msra.mxu0 0
      %6338 = vmatprep.subr.bf16.mxu0 0
      %6339 = vmatpush1.bf16.msra.mxu0 0
      %6340 = vmatprep.subr.bf16.mxu0 0
      %6341 = vmatpush1.bf16.msra.mxu0 0
      %6342 = vmatprep.subr.bf16.mxu0 0
      %6343 = vmatpush1.bf16.msra.mxu0 0
      %6344 = vmatprep.subr.bf16.mxu0 0
      %6345 = vmatpush1.bf16.msra.mxu0 0
      %6346 = vmatprep.subr.bf16.mxu0 0
      %6347 = vmatpush1.bf16.msra.mxu0 0
      %6348 = vmatprep.subr.bf16.mxu0 0
      %6349 = vmatpush1.bf16.msra.mxu0 0
      %6350 = vmatprep.subr.bf16.mxu0 0
      %6351 = vmatpush1.bf16.msra.mxu0 0
      %6352 = vmatprep.subr.bf16.mxu0 0
      %6353 = vmatpush1.bf16.msra.mxu0 0
      %6354 = vmatprep.subr.bf16.mxu0 0
      %6355 = vmatpush1.bf16.msra.mxu0 0
      %6356 = vmatprep.subr.bf16.mxu0 0
      %6357 = vmatpush1.bf16.msra.mxu0 0
      %6358 = vmatprep.mubr.bf16.mxu0 0
      %6359 = vmatmul.mubr.bf16.gmra.mrb[0].mxu0 %v6300
      %v6360 = vpop.f32.mrb[0].mxu0
      %v6361 = vadd.f32 %v6282, %v6360
      %v6362 = vpop.f32.mrb[0].mxu0
      %v6363 = vpop.f32.mrb[0].mxu0
      %v6364 = vadd.f32 %v6282, %v6363
      %v6365 = vpop.f32.mrb[0].mxu0
      %6366 = vmatprep.mubr.bf16.mxu0 0
      %6367 = vmatmul.mubr.bf16.gmra.mrb[0].mxu0 %v6303
      %v6368 = vpop.f32.mrb[0].mxu0
      %v6369 = vadd.f32 %v6282, %v6368
      %v6370 = vpop.f32.mrb[0].mxu0
      %v6371 = vpop.f32.mrb[0].mxu0
      %v6372 = vadd.f32 %v6282, %v6371
      %v6373 = vpop.f32.mrb[0].mxu0
      %6374 = vmatprep.mubr.bf16.mxu0 0
      %6375 = vmatmul.mubr.bf16.gmra.mrb[0].mxu0 %v6306
      %v6376 = vpop.f32.mrb[0].mxu0
      %v6377 = vadd.f32 %v6282, %v6376
      %v6378 = vpop.f32.mrb[0].mxu0
      %v6379 = vpop.f32.mrb[0].mxu0
      %v6380 = vadd.f32 %v6282, %v6379
      %v6381 = vpop.f32.mrb[0].mxu0
      %6382 = vmatprep.mubr.bf16.mxu0 0
      %6383 = vmatmul.mubr.bf16.gmra.mrb[0].mxu0 %v6309
      %v6384 = vpop.f32.mrb[0].mxu0
      %v6385 = vadd.f32 %v6282, %v6384
      %v6386 = vpop.f32.mrb[0].mxu0
      %v6387 = vpop.f32.mrb[0].mxu0
      %v6388 = vadd.f32 %v6282, %v6387
      %v6389 = vpop.f32.mrb[0].mxu0
      %6390 = vmatprep.mubr.bf16.mxu0 0
      %6391 = vmatmul.mubr.bf16.gmra.mrb[0].mxu0 %v6312
      %v6392 = vpop.f32.mrb[0].mxu0
      %v6393 = vadd.f32 %v6282, %v6392
      %v6394 = vpop.f32.mrb[0].mxu0
      %v6395 = vpop.f32.mrb[0].mxu0
      %v6396 = vadd.f32 %v6282, %v6395
      %v6397 = vpop.f32.mrb[0].mxu0
      %6398 = vmatprep.mubr.bf16.mxu0 0
      %6399 = vmatmul.mubr.bf16.gmra.mrb[0].mxu0 %v6315
      %v6400 = vpop.f32.mrb[0].mxu0
      %v6401 = vadd.f32 %v6282, %v6400
      %v6402 = vpop.f32.mrb[0].mxu0
      %v6403 = vpop.f32.mrb[0].mxu0
      %v6404 = vadd.f32 %v6282, %v6403
      %v6405 = vpop.f32.mrb[0].mxu0
      %6406 = vmatprep.mubr.bf16.mxu0 0
      %6407 = vmatmul.mubr.bf16.gmra.mrb[0].mxu0 %v6318
      %v6408 = vpop.f32.mrb[0].mxu0
      %v6409 = vadd.f32 %v6282, %v6408
      %v6410 = vpop.f32.mrb[0].mxu0
      %v6411 = vpop.f32.mrb[0].mxu0
      %v6412 = vadd.f32 %v6282, %v6411
      %v6413 = vpop.f32.mrb[0].mxu0
      %6414 = vmatprep.mubr.bf16.mxu0 0
      %6415 = vmatmul.mubr.bf16.gmra.mrb[0].mxu0 %v6321
      %v6416 = vpop.f32.mrb[0].mxu0
      %v6417 = vadd.f32 %v6282, %v6416
      %v6418 = vpop.f32.mrb[0].mxu0
      %v6419 = vpop.f32.mrb[0].mxu0
      %v6420 = vadd.f32 %v6282, %v6419
      %v6421 = vpop.f32.mrb[0].mxu0
      %6422 = vdwg.mxu0
      %6423 = vst.msk [vmem:[#allocation4] sm:$0xff] %vm979, %v6361
      %6424 = vst.msk [vmem:[#allocation4 + $0x8] sm:$0xff] %vm979, %v6364
      %6425 = vst.msk [vmem:[#allocation4 + $0x10] sm:$0xff] %vm979, %v6369
      %6426 = vst.msk [vmem:[#allocation4 + $0x18] sm:$0xff] %vm979, %v6372
      %6427 = vst.msk [vmem:[#allocation4 + $0x20] sm:$0xff] %vm979, %v6377
      %6428 = vst.msk [vmem:[#allocation4 + $0x28] sm:$0xff] %vm979, %v6380
      %6429 = vst.msk [vmem:[#allocation4 + $0x30] sm:$0xff] %vm979, %v6385
      %6430 = vst.msk [vmem:[#allocation4 + $0x38] sm:$0xff] %vm979, %v6388
      %6431 = vst.msk [vmem:[#allocation4 + $0x40] sm:$0xff] %vm979, %v6393
      %6432 = vst.msk [vmem:[#allocation4 + $0x48] sm:$0xff] %vm979, %v6396
      %6433 = vst.msk [vmem:[#allocation4 + $0x50] sm:$0xff] %vm979, %v6401
      %6434 = vst.msk [vmem:[#allocation4 + $0x58] sm:$0xff] %vm979, %v6404
      %6435 = vst.msk [vmem:[#allocation4 + $0x60] sm:$0xff] %vm979, %v6409
      %6436 = vst.msk [vmem:[#allocation4 + $0x68] sm:$0xff] %vm979, %v6412
      %6437 = vst.msk [vmem:[#allocation4 + $0x70] sm:$0xff] %vm979, %v6417
      %6438 = vst.msk [vmem:[#allocation4 + $0x78] sm:$0xff] %vm979, %v6420
      %v6439 = vld [vmem:[%s2425] sm:$0xf]
      %v6440 = vld [vmem:[%s2425 + $0x4] sm:$0xf]
      %v6441 = vld [vmem:[%s2425 + $0xc] sm:$0xf]
      %v6442 = vld [vmem:[%s2425 + $0x10] sm:$0xf]
      %v6443 = vld [vmem:[%s2425 + $0x18] sm:$0xf]
      %v6444 = vld [vmem:[%s2425 + $0x1c] sm:$0xf]
      %v6445 = vld [vmem:[%s2425 + $0x24] sm:$0xf]
      %v6446 = vld [vmem:[%s2425 + $0x28] sm:$0xf]
      %v6447 = vld [vmem:[%s2425 + $0x30] sm:$0xf]
      %v6448 = vld [vmem:[%s2425 + $0x34] sm:$0xf]
      %v6449 = vld [vmem:[%s2425 + $0x3c] sm:$0xf]
      %v6450 = vld [vmem:[%s2425 + $0x40] sm:$0xf]
      %v6451 = vld [vmem:[%s2425 + $0x48] sm:$0xf]
      %v6452 = vld [vmem:[%s2425 + $0x4c] sm:$0xf]
      %v6453 = vld [vmem:[%s2425 + $0x54] sm:$0xf]
      %v6454 = vld [vmem:[%s2425 + $0x58] sm:$0xf]
      %v6471 = vunpack.c.l.b16 %v6439
      %v6472 = vunpack.c.l.b16 %v6440
      %v6473 = vunpack.c.l.b16 %v6441
      %v6474 = vunpack.c.l.b16 %v6442
      %v6475 = vunpack.c.l.b16 %v6443
      %v6476 = vunpack.c.l.b16 %v6444
      %v6477 = vunpack.c.l.b16 %v6445
      %v6478 = vunpack.c.l.b16 %v6446
      %v6479 = vunpack.c.l.b16 %v6447
      %v6480 = vunpack.c.l.b16 %v6448
      %v6481 = vunpack.c.l.b16 %v6449
      %v6482 = vunpack.c.l.b16 %v6450
      %v6483 = vunpack.c.l.b16 %v6451
      %v6484 = vunpack.c.l.b16 %v6452
      %v6485 = vunpack.c.l.b16 %v6453
      %v6486 = vunpack.c.l.b16 %v6454
      %v6487 = vpack.c.b16 %v6472, %v6471
      %v6488 = vpack.c.b16 %v6474, %v6473
      %v6489 = vpack.c.b16 %v6476, %v6475
      %v6490 = vpack.c.b16 %v6478, %v6477
      %v6491 = vpack.c.b16 %v6480, %v6479
      %v6492 = vpack.c.b16 %v6482, %v6481
      %v6493 = vpack.c.b16 %v6484, %v6483
      %v6494 = vpack.c.b16 %v6486, %v6485
      %6503 = vst.msk [vmem:[#allocation3] sm:$0xff] %vm979, %v6487
      %6504 = vst.msk [vmem:[#allocation3 + $0x8] sm:$0xff] %vm979, %v6488
      %6505 = vst.msk [vmem:[#allocation3 + $0x10] sm:$0xff] %vm979, %v6489
      %6506 = vst.msk [vmem:[#allocation3 + $0x18] sm:$0xff] %vm979, %v6490
      %6507 = vst.msk [vmem:[#allocation3 + $0x20] sm:$0xff] %vm979, %v6491
      %6508 = vst.msk [vmem:[#allocation3 + $0x28] sm:$0xff] %vm979, %v6492
      %6509 = vst.msk [vmem:[#allocation3 + $0x30] sm:$0xff] %vm979, %v6493
      %6510 = vst.msk [vmem:[#allocation3 + $0x38] sm:$0xff] %vm979, %v6494
      %v6511 = vld [vmem:[%s2425] sm:$0xf]
      %v6512 = vld [vmem:[%s2425 + $0x4] sm:$0xf]
      %v6513 = vld [vmem:[%s2425 + $0x8] sm:$0x1]
      %v6514 = vld [vmem:[%s2425 + $0xc] sm:$0xf]
      %v6515 = vld [vmem:[%s2425 + $0x10] sm:$0xf]
      %v6516 = vld [vmem:[%s2425 + $0x14] sm:$0x1]
      %v6517 = vld [vmem:[%s2425 + $0x18] sm:$0xf]
      %v6518 = vld [vmem:[%s2425 + $0x1c] sm:$0xf]
      %v6519 = vld [vmem:[%s2425 + $0x20] sm:$0x1]
      %v6520 = vld [vmem:[%s2425 + $0x24] sm:$0xf]
      %v6521 = vld [vmem:[%s2425 + $0x28] sm:$0xf]
      %v6522 = vld [vmem:[%s2425 + $0x2c] sm:$0x1]
      %v6523 = vld [vmem:[%s2425 + $0x30] sm:$0xf]
      %v6524 = vld [vmem:[%s2425 + $0x34] sm:$0xf]
      %v6525 = vld [vmem:[%s2425 + $0x38] sm:$0x1]
      %v6526 = vld [vmem:[%s2425 + $0x3c] sm:$0xf]
      %v6527 = vld [vmem:[%s2425 + $0x40] sm:$0xf]
      %v6528 = vld [vmem:[%s2425 + $0x44] sm:$0x1]
      %v6529 = vld [vmem:[%s2425 + $0x48] sm:$0xf]
      %v6530 = vld [vmem:[%s2425 + $0x4c] sm:$0xf]
      %v6531 = vld [vmem:[%s2425 + $0x50] sm:$0x1]
      %v6532 = vld [vmem:[%s2425 + $0x54] sm:$0xf]
      %v6533 = vld [vmem:[%s2425 + $0x58] sm:$0xf]
      %v6534 = vld [vmem:[%s2425 + $0x5c] sm:$0x1]
      %v6559 = vunpack.c.l.b16 %v6511
      %v6560 = vunpack.c.l.b16 %v6512
      %v6561 = vunpack.c.l.b16 %v6513
      %v6562 = vunpack.c.l.b16 %v6514
      %v6563 = vunpack.c.l.b16 %v6515
      %v6564 = vunpack.c.l.b16 %v6516
      %v6565 = vunpack.c.l.b16 %v6517
      %v6566 = vunpack.c.l.b16 %v6518
      %v6567 = vunpack.c.l.b16 %v6519
      %v6568 = vunpack.c.l.b16 %v6520
      %v6569 = vunpack.c.l.b16 %v6521
      %v6570 = vunpack.c.l.b16 %v6522
      %v6571 = vunpack.c.l.b16 %v6523
      %v6572 = vunpack.c.l.b16 %v6524
      %v6573 = vunpack.c.l.b16 %v6525
      %v6574 = vunpack.c.l.b16 %v6526
      %v6575 = vunpack.c.l.b16 %v6527
      %v6576 = vunpack.c.l.b16 %v6528
      %v6577 = vunpack.c.l.b16 %v6529
      %v6578 = vunpack.c.l.b16 %v6530
      %v6579 = vunpack.c.l.b16 %v6531
      %v6580 = vunpack.c.l.b16 %v6532
      %v6581 = vunpack.c.l.b16 %v6533
      %v6582 = vunpack.c.l.b16 %v6534
      %v6583 = vpack.c.b16 %v6560, %v6559
      %v6584 = vpack.c.b16 %v6561, %v6561
      %v6585 = vpack.c.b16 %v6563, %v6562
      %v6586 = vpack.c.b16 %v6564, %v6564
      %v6587 = vpack.c.b16 %v6566, %v6565
      %v6588 = vpack.c.b16 %v6567, %v6567
      %v6589 = vpack.c.b16 %v6569, %v6568
      %v6590 = vpack.c.b16 %v6570, %v6570
      %v6591 = vpack.c.b16 %v6572, %v6571
      %v6592 = vpack.c.b16 %v6573, %v6573
      %v6593 = vpack.c.b16 %v6575, %v6574
      %v6594 = vpack.c.b16 %v6576, %v6576
      %v6595 = vpack.c.b16 %v6578, %v6577
      %v6596 = vpack.c.b16 %v6579, %v6579
      %v6597 = vpack.c.b16 %v6581, %v6580
      %v6598 = vpack.c.b16 %v6582, %v6582
      %v6600 = vshrl.u32 %v6583, 16
      %v6602 = vshll.u32 %v6583, 16
      %v6604 = vrot.slane %v6602, 1
      %v6605 = vor.u32 %v6600, %v6604
      %v6607 = vshll.u32 %v6584, 16
      %v6609 = vrot.slane %v6607, 1
      %v6610 = vsel %vm1076, %v6605, %v6609
      %v6612 = vshrl.u32 %v6585, 16
      %v6614 = vshll.u32 %v6585, 16
      %v6616 = vrot.slane %v6614, 1
      %v6617 = vor.u32 %v6612, %v6616
      %v6619 = vshll.u32 %v6586, 16
      %v6621 = vrot.slane %v6619, 1
      %v6622 = vsel %vm1076, %v6617, %v6621
      %v6624 = vshrl.u32 %v6587, 16
      %v6626 = vshll.u32 %v6587, 16
      %v6628 = vrot.slane %v6626, 1
      %v6629 = vor.u32 %v6624, %v6628
      %v6631 = vshll.u32 %v6588, 16
      %v6633 = vrot.slane %v6631, 1
      %v6634 = vsel %vm1076, %v6629, %v6633
      %v6636 = vshrl.u32 %v6589, 16
      %v6638 = vshll.u32 %v6589, 16
      %v6640 = vrot.slane %v6638, 1
      %v6641 = vor.u32 %v6636, %v6640
      %v6643 = vshll.u32 %v6590, 16
      %v6645 = vrot.slane %v6643, 1
      %v6646 = vsel %vm1076, %v6641, %v6645
      %v6648 = vshrl.u32 %v6591, 16
      %v6650 = vshll.u32 %v6591, 16
      %v6652 = vrot.slane %v6650, 1
      %v6653 = vor.u32 %v6648, %v6652
      %v6655 = vshll.u32 %v6592, 16
      %v6657 = vrot.slane %v6655, 1
      %v6658 = vsel %vm1076, %v6653, %v6657
      %v6660 = vshrl.u32 %v6593, 16
      %v6662 = vshll.u32 %v6593, 16
      %v6664 = vrot.slane %v6662, 1
      %v6665 = vor.u32 %v6660, %v6664
      %v6667 = vshll.u32 %v6594, 16
      %v6669 = vrot.slane %v6667, 1
      %v6670 = vsel %vm1076, %v6665, %v6669
      %v6672 = vshrl.u32 %v6595, 16
      %v6674 = vshll.u32 %v6595, 16
      %v6676 = vrot.slane %v6674, 1
      %v6677 = vor.u32 %v6672, %v6676
      %v6679 = vshll.u32 %v6596, 16
      %v6681 = vrot.slane %v6679, 1
      %v6682 = vsel %vm1076, %v6677, %v6681
      %v6684 = vshrl.u32 %v6597, 16
      %v6686 = vshll.u32 %v6597, 16
      %v6688 = vrot.slane %v6686, 1
      %v6689 = vor.u32 %v6684, %v6688
      %v6691 = vshll.u32 %v6598, 16
      %v6693 = vrot.slane %v6691, 1
      %v6694 = vsel %vm1076, %v6689, %v6693
      %6695 = vrot.lane.b32.xlu0 %v6610, 4
      %v6696 = vpop.permute.xlu0 %6695
      %6697 = vrot.lane.b32.xlu0 %v6622, 4
      %v6698 = vpop.permute.xlu0 %6697
      %6699 = vrot.lane.b32.xlu0 %v6634, 4
      %v6700 = vpop.permute.xlu0 %6699
      %6701 = vrot.lane.b32.xlu0 %v6646, 4
      %v6702 = vpop.permute.xlu0 %6701
      %6703 = vrot.lane.b32.xlu0 %v6658, 4
      %v6704 = vpop.permute.xlu0 %6703
      %6705 = vrot.lane.b32.xlu0 %v6670, 4
      %v6706 = vpop.permute.xlu0 %6705
      %6707 = vrot.lane.b32.xlu0 %v6682, 4
      %v6708 = vpop.permute.xlu0 %6707
      %6709 = vrot.lane.b32.xlu0 %v6694, 4
      %v6710 = vpop.permute.xlu0 %6709
      %6719 = vst.msk [vmem:[#allocation3] sm:$0xff] %vm1197, %v6696
      %6720 = vst.msk [vmem:[#allocation3 + $0x8] sm:$0xff] %vm1197, %v6698
      %6721 = vst.msk [vmem:[#allocation3 + $0x10] sm:$0xff] %vm1197, %v6700
      %6722 = vst.msk [vmem:[#allocation3 + $0x18] sm:$0xff] %vm1197, %v6702
      %6723 = vst.msk [vmem:[#allocation3 + $0x20] sm:$0xff] %vm1197, %v6704
      %6724 = vst.msk [vmem:[#allocation3 + $0x28] sm:$0xff] %vm1197, %v6706
      %6725 = vst.msk [vmem:[#allocation3 + $0x30] sm:$0xff] %vm1197, %v6708
      %6726 = vst.msk [vmem:[#allocation3 + $0x38] sm:$0xff] %vm1197, %v6710
      %v6727 = vld [vmem:[%s2425] sm:$0xe]
      %v6728 = vld [vmem:[%s2425 + $0x4] sm:$0xf]
      %v6729 = vld [vmem:[%s2425 + $0x8] sm:$0x1]
      %v6730 = vld [vmem:[%s2425 + $0xc] sm:$0xe]
      %v6731 = vld [vmem:[%s2425 + $0x10] sm:$0xf]
      %v6732 = vld [vmem:[%s2425 + $0x14] sm:$0x1]
      %v6733 = vld [vmem:[%s2425 + $0x18] sm:$0xe]
      %v6734 = vld [vmem:[%s2425 + $0x1c] sm:$0xf]
      %v6735 = vld [vmem:[%s2425 + $0x20] sm:$0x1]
      %v6736 = vld [vmem:[%s2425 + $0x24] sm:$0xe]
      %v6737 = vld [vmem:[%s2425 + $0x28] sm:$0xf]
      %v6738 = vld [vmem:[%s2425 + $0x2c] sm:$0x1]
      %v6739 = vld [vmem:[%s2425 + $0x30] sm:$0xe]
      %v6740 = vld [vmem:[%s2425 + $0x34] sm:$0xf]
      %v6741 = vld [vmem:[%s2425 + $0x38] sm:$0x1]
      %v6742 = vld [vmem:[%s2425 + $0x3c] sm:$0xe]
      %v6743 = vld [vmem:[%s2425 + $0x40] sm:$0xf]
      %v6744 = vld [vmem:[%s2425 + $0x44] sm:$0x1]
      %v6745 = vld [vmem:[%s2425 + $0x48] sm:$0xe]
      %v6746 = vld [vmem:[%s2425 + $0x4c] sm:$0xf]
      %v6747 = vld [vmem:[%s2425 + $0x50] sm:$0x1]
      %v6748 = vld [vmem:[%s2425 + $0x54] sm:$0xe]
      %v6749 = vld [vmem:[%s2425 + $0x58] sm:$0xf]
      %v6750 = vld [vmem:[%s2425 + $0x5c] sm:$0x1]
      %v6775 = vunpack.c.l.b16 %v6727
      %v6776 = vunpack.c.l.b16 %v6728
      %v6777 = vunpack.c.l.b16 %v6729
      %v6778 = vunpack.c.l.b16 %v6730
      %v6779 = vunpack.c.l.b16 %v6731
      %v6780 = vunpack.c.l.b16 %v6732
      %v6781 = vunpack.c.l.b16 %v6733
      %v6782 = vunpack.c.l.b16 %v6734
      %v6783 = vunpack.c.l.b16 %v6735
      %v6784 = vunpack.c.l.b16 %v6736
      %v6785 = vunpack.c.l.b16 %v6737
      %v6786 = vunpack.c.l.b16 %v6738
      %v6787 = vunpack.c.l.b16 %v6739
      %v6788 = vunpack.c.l.b16 %v6740
      %v6789 = vunpack.c.l.b16 %v6741
      %v6790 = vunpack.c.l.b16 %v6742
      %v6791 = vunpack.c.l.b16 %v6743
      %v6792 = vunpack.c.l.b16 %v6744
      %v6793 = vunpack.c.l.b16 %v6745
      %v6794 = vunpack.c.l.b16 %v6746
      %v6795 = vunpack.c.l.b16 %v6747
      %v6796 = vunpack.c.l.b16 %v6748
      %v6797 = vunpack.c.l.b16 %v6749
      %v6798 = vunpack.c.l.b16 %v6750
      %v6799 = vpack.c.b16 %v6776, %v6775
      %v6800 = vpack.c.b16 %v6777, %v6777
      %v6801 = vpack.c.b16 %v6779, %v6778
      %v6802 = vpack.c.b16 %v6780, %v6780
      %v6803 = vpack.c.b16 %v6782, %v6781
      %v6804 = vpack.c.b16 %v6783, %v6783
      %v6805 = vpack.c.b16 %v6785, %v6784
      %v6806 = vpack.c.b16 %v6786, %v6786
      %v6807 = vpack.c.b16 %v6788, %v6787
      %v6808 = vpack.c.b16 %v6789, %v6789
      %v6809 = vpack.c.b16 %v6791, %v6790
      %v6810 = vpack.c.b16 %v6792, %v6792
      %v6811 = vpack.c.b16 %v6794, %v6793
      %v6812 = vpack.c.b16 %v6795, %v6795
      %v6813 = vpack.c.b16 %v6797, %v6796
      %v6814 = vpack.c.b16 %v6798, %v6798
      %v6815 = vrot.slane %v6799, 1
      %v6816 = vrot.slane %v6800, 1
      %v6817 = vsel %vm1294, %v6815, %v6816
      %v6818 = vrot.slane %v6801, 1
      %v6819 = vrot.slane %v6802, 1
      %v6820 = vsel %vm1294, %v6818, %v6819
      %v6821 = vrot.slane %v6803, 1
      %v6822 = vrot.slane %v6804, 1
      %v6823 = vsel %vm1294, %v6821, %v6822
      %v6824 = vrot.slane %v6805, 1
      %v6825 = vrot.slane %v6806, 1
      %v6826 = vsel %vm1294, %v6824, %v6825
      %v6827 = vrot.slane %v6807, 1
      %v6828 = vrot.slane %v6808, 1
      %v6829 = vsel %vm1294, %v6827, %v6828
      %v6830 = vrot.slane %v6809, 1
      %v6831 = vrot.slane %v6810, 1
      %v6832 = vsel %vm1294, %v6830, %v6831
      %v6833 = vrot.slane %v6811, 1
      %v6834 = vrot.slane %v6812, 1
      %v6835 = vsel %vm1294, %v6833, %v6834
      %v6836 = vrot.slane %v6813, 1
      %v6837 = vrot.slane %v6814, 1
      %v6838 = vsel %vm1294, %v6836, %v6837
      %6839 = vrot.lane.b32.xlu0 %v6817, 8
      %v6840 = vpop.permute.xlu0 %6839
      %6841 = vrot.lane.b32.xlu0 %v6820, 8
      %v6842 = vpop.permute.xlu0 %6841
      %6843 = vrot.lane.b32.xlu0 %v6823, 8
      %v6844 = vpop.permute.xlu0 %6843
      %6845 = vrot.lane.b32.xlu0 %v6826, 8
      %v6846 = vpop.permute.xlu0 %6845
      %6847 = vrot.lane.b32.xlu0 %v6829, 8
      %v6848 = vpop.permute.xlu0 %6847
      %6849 = vrot.lane.b32.xlu0 %v6832, 8
      %v6850 = vpop.permute.xlu0 %6849
      %6851 = vrot.lane.b32.xlu0 %v6835, 8
      %v6852 = vpop.permute.xlu0 %6851
      %6853 = vrot.lane.b32.xlu0 %v6838, 8
      %v6854 = vpop.permute.xlu0 %6853
      %6863 = vst.msk [vmem:[#allocation3] sm:$0xff] %vm1343, %v6840
      %6864 = vst.msk [vmem:[#allocation3 + $0x8] sm:$0xff] %vm1343, %v6842
      %6865 = vst.msk [vmem:[#allocation3 + $0x10] sm:$0xff] %vm1343, %v6844
      %6866 = vst.msk [vmem:[#allocation3 + $0x18] sm:$0xff] %vm1343, %v6846
      %6867 = vst.msk [vmem:[#allocation3 + $0x20] sm:$0xff] %vm1343, %v6848
      %6868 = vst.msk [vmem:[#allocation3 + $0x28] sm:$0xff] %vm1343, %v6850
      %6869 = vst.msk [vmem:[#allocation3 + $0x30] sm:$0xff] %vm1343, %v6852
      %6870 = vst.msk [vmem:[#allocation3 + $0x38] sm:$0xff] %vm1343, %v6854
      %v6871 = vld [vmem:[%s2858] sm:$0xf]
      %v6872 = vld [vmem:[%s2858 + $0x4] sm:$0xf]
      %v6873 = vld [vmem:[%s2858 + $0xc] sm:$0xf]
      %v6874 = vld [vmem:[%s2858 + $0x10] sm:$0xf]
      %v6875 = vld [vmem:[%s2858 + $0x18] sm:$0xf]
      %v6876 = vld [vmem:[%s2858 + $0x1c] sm:$0xf]
      %v6877 = vld [vmem:[%s2858 + $0x24] sm:$0xf]
      %v6878 = vld [vmem:[%s2858 + $0x28] sm:$0xf]
      %v6879 = vld [vmem:[%s2858 + $0x30] sm:$0xf]
      %v6880 = vld [vmem:[%s2858 + $0x34] sm:$0xf]
      %v6881 = vld [vmem:[%s2858 + $0x3c] sm:$0xf]
      %v6882 = vld [vmem:[%s2858 + $0x40] sm:$0xf]
      %v6883 = vld [vmem:[%s2858 + $0x48] sm:$0xf]
      %v6884 = vld [vmem:[%s2858 + $0x4c] sm:$0xf]
      %v6885 = vld [vmem:[%s2858 + $0x54] sm:$0xf]
      %v6886 = vld [vmem:[%s2858 + $0x58] sm:$0xf]
      %v6903 = vunpack.c.l.b16 %v6871
      %v6904 = vunpack.c.l.b16 %v6872
      %v6905 = vunpack.c.l.b16 %v6873
      %v6906 = vunpack.c.l.b16 %v6874
      %v6907 = vunpack.c.l.b16 %v6875
      %v6908 = vunpack.c.l.b16 %v6876
      %v6909 = vunpack.c.l.b16 %v6877
      %v6910 = vunpack.c.l.b16 %v6878
      %v6911 = vunpack.c.l.b16 %v6879
      %v6912 = vunpack.c.l.b16 %v6880
      %v6913 = vunpack.c.l.b16 %v6881
      %v6914 = vunpack.c.l.b16 %v6882
      %v6915 = vunpack.c.l.b16 %v6883
      %v6916 = vunpack.c.l.b16 %v6884
      %v6917 = vunpack.c.l.b16 %v6885
      %v6918 = vunpack.c.l.b16 %v6886
      %v6919 = vpack.c.b16 %v6904, %v6903
      %v6920 = vpack.c.b16 %v6906, %v6905
      %v6921 = vpack.c.b16 %v6908, %v6907
      %v6922 = vpack.c.b16 %v6910, %v6909
      %v6923 = vpack.c.b16 %v6912, %v6911
      %v6924 = vpack.c.b16 %v6914, %v6913
      %v6925 = vpack.c.b16 %v6916, %v6915
      %v6926 = vpack.c.b16 %v6918, %v6917
      %6927 = vrot.lane.b32.xlu0 %v6919, 12
      %v6928 = vpop.permute.xlu0 %6927
      %6929 = vrot.lane.b32.xlu0 %v6920, 12
      %v6930 = vpop.permute.xlu0 %6929
      %6931 = vrot.lane.b32.xlu0 %v6921, 12
      %v6932 = vpop.permute.xlu0 %6931
      %6933 = vrot.lane.b32.xlu0 %v6922, 12
      %v6934 = vpop.permute.xlu0 %6933
      %6935 = vrot.lane.b32.xlu0 %v6923, 12
      %v6936 = vpop.permute.xlu0 %6935
      %6937 = vrot.lane.b32.xlu0 %v6924, 12
      %v6938 = vpop.permute.xlu0 %6937
      %6939 = vrot.lane.b32.xlu0 %v6925, 12
      %v6940 = vpop.permute.xlu0 %6939
      %6941 = vrot.lane.b32.xlu0 %v6926, 12
      %v6942 = vpop.permute.xlu0 %6941
      %6951 = vst.msk [vmem:[#allocation3] sm:$0xff] %vm1432, %v6928
      %6952 = vst.msk [vmem:[#allocation3 + $0x8] sm:$0xff] %vm1432, %v6930
      %6953 = vst.msk [vmem:[#allocation3 + $0x10] sm:$0xff] %vm1432, %v6932
      %6954 = vst.msk [vmem:[#allocation3 + $0x18] sm:$0xff] %vm1432, %v6934
      %6955 = vst.msk [vmem:[#allocation3 + $0x20] sm:$0xff] %vm1432, %v6936
      %6956 = vst.msk [vmem:[#allocation3 + $0x28] sm:$0xff] %vm1432, %v6938
      %6957 = vst.msk [vmem:[#allocation3 + $0x30] sm:$0xff] %vm1432, %v6940
      %6958 = vst.msk [vmem:[#allocation3 + $0x38] sm:$0xff] %vm1432, %v6942
      %v6959 = vld [vmem:[%s2858] sm:$0xf]
      %v6960 = vld [vmem:[%s2858 + $0x4] sm:$0xf]
      %v6961 = vld [vmem:[%s2858 + $0x8] sm:$0x1]
      %v6962 = vld [vmem:[%s2858 + $0xc] sm:$0xf]
      %v6963 = vld [vmem:[%s2858 + $0x10] sm:$0xf]
      %v6964 = vld [vmem:[%s2858 + $0x14] sm:$0x1]
      %v6965 = vld [vmem:[%s2858 + $0x18] sm:$0xf]
      %v6966 = vld [vmem:[%s2858 + $0x1c] sm:$0xf]
      %v6967 = vld [vmem:[%s2858 + $0x20] sm:$0x1]
      %v6968 = vld [vmem:[%s2858 + $0x24] sm:$0xf]
      %v6969 = vld [vmem:[%s2858 + $0x28] sm:$0xf]
      %v6970 = vld [vmem:[%s2858 + $0x2c] sm:$0x1]
      %v6971 = vld [vmem:[%s2858 + $0x30] sm:$0xf]
      %v6972 = vld [vmem:[%s2858 + $0x34] sm:$0xf]
      %v6973 = vld [vmem:[%s2858 + $0x38] sm:$0x1]
      %v6974 = vld [vmem:[%s2858 + $0x3c] sm:$0xf]
      %v6975 = vld [vmem:[%s2858 + $0x40] sm:$0xf]
      %v6976 = vld [vmem:[%s2858 + $0x44] sm:$0x1]
      %v6977 = vld [vmem:[%s2858 + $0x48] sm:$0xf]
      %v6978 = vld [vmem:[%s2858 + $0x4c] sm:$0xf]
      %v6979 = vld [vmem:[%s2858 + $0x50] sm:$0x1]
      %v6980 = vld [vmem:[%s2858 + $0x54] sm:$0xf]
      %v6981 = vld [vmem:[%s2858 + $0x58] sm:$0xf]
      %v6982 = vld [vmem:[%s2858 + $0x5c] sm:$0x1]
      %v7007 = vunpack.c.l.b16 %v6959
      %v7008 = vunpack.c.l.b16 %v6960
      %v7009 = vunpack.c.l.b16 %v6961
      %v7010 = vunpack.c.l.b16 %v6962
      %v7011 = vunpack.c.l.b16 %v6963
      %v7012 = vunpack.c.l.b16 %v6964
      %v7013 = vunpack.c.l.b16 %v6965
      %v7014 = vunpack.c.l.b16 %v6966
      %v7015 = vunpack.c.l.b16 %v6967
      %v7016 = vunpack.c.l.b16 %v6968
      %v7017 = vunpack.c.l.b16 %v6969
      %v7018 = vunpack.c.l.b16 %v6970
      %v7019 = vunpack.c.l.b16 %v6971
      %v7020 = vunpack.c.l.b16 %v6972
      %v7021 = vunpack.c.l.b16 %v6973
      %v7022 = vunpack.c.l.b16 %v6974
      %v7023 = vunpack.c.l.b16 %v6975
      %v7024 = vunpack.c.l.b16 %v6976
      %v7025 = vunpack.c.l.b16 %v6977
      %v7026 = vunpack.c.l.b16 %v6978
      %v7027 = vunpack.c.l.b16 %v6979
      %v7028 = vunpack.c.l.b16 %v6980
      %v7029 = vunpack.c.l.b16 %v6981
      %v7030 = vunpack.c.l.b16 %v6982
      %v7031 = vpack.c.b16 %v7008, %v7007
      %v7032 = vpack.c.b16 %v7009, %v7009
      %v7033 = vpack.c.b16 %v7011, %v7010
      %v7034 = vpack.c.b16 %v7012, %v7012
      %v7035 = vpack.c.b16 %v7014, %v7013
      %v7036 = vpack.c.b16 %v7015, %v7015
      %v7037 = vpack.c.b16 %v7017, %v7016
      %v7038 = vpack.c.b16 %v7018, %v7018
      %v7039 = vpack.c.b16 %v7020, %v7019
      %v7040 = vpack.c.b16 %v7021, %v7021
      %v7041 = vpack.c.b16 %v7023, %v7022
      %v7042 = vpack.c.b16 %v7024, %v7024
      %v7043 = vpack.c.b16 %v7026, %v7025
      %v7044 = vpack.c.b16 %v7027, %v7027
      %v7045 = vpack.c.b16 %v7029, %v7028
      %v7046 = vpack.c.b16 %v7030, %v7030
      %v7048 = vshrl.u32 %v7031, 16
      %v7050 = vshll.u32 %v7031, 16
      %v7052 = vrot.slane %v7050, 1
      %v7053 = vor.u32 %v7048, %v7052
      %v7055 = vshll.u32 %v7032, 16
      %v7057 = vrot.slane %v7055, 1
      %v7058 = vsel %vm1076, %v7053, %v7057
      %v7060 = vshrl.u32 %v7033, 16
      %v7062 = vshll.u32 %v7033, 16
      %v7064 = vrot.slane %v7062, 1
      %v7065 = vor.u32 %v7060, %v7064
      %v7067 = vshll.u32 %v7034, 16
      %v7069 = vrot.slane %v7067, 1
      %v7070 = vsel %vm1076, %v7065, %v7069
      %v7072 = vshrl.u32 %v7035, 16
      %v7074 = vshll.u32 %v7035, 16
      %v7076 = vrot.slane %v7074, 1
      %v7077 = vor.u32 %v7072, %v7076
      %v7079 = vshll.u32 %v7036, 16
      %v7081 = vrot.slane %v7079, 1
      %v7082 = vsel %vm1076, %v7077, %v7081
      %v7084 = vshrl.u32 %v7037, 16
      %v7086 = vshll.u32 %v7037, 16
      %v7088 = vrot.slane %v7086, 1
      %v7089 = vor.u32 %v7084, %v7088
      %v7091 = vshll.u32 %v7038, 16
      %v7093 = vrot.slane %v7091, 1
      %v7094 = vsel %vm1076, %v7089, %v7093
      %v7096 = vshrl.u32 %v7039, 16
      %v7098 = vshll.u32 %v7039, 16
      %v7100 = vrot.slane %v7098, 1
      %v7101 = vor.u32 %v7096, %v7100
      %v7103 = vshll.u32 %v7040, 16
      %v7105 = vrot.slane %v7103, 1
      %v7106 = vsel %vm1076, %v7101, %v7105
      %v7108 = vshrl.u32 %v7041, 16
      %v7110 = vshll.u32 %v7041, 16
      %v7112 = vrot.slane %v7110, 1
      %v7113 = vor.u32 %v7108, %v7112
      %v7115 = vshll.u32 %v7042, 16
      %v7117 = vrot.slane %v7115, 1
      %v7118 = vsel %vm1076, %v7113, %v7117
      %v7120 = vshrl.u32 %v7043, 16
      %v7122 = vshll.u32 %v7043, 16
      %v7124 = vrot.slane %v7122, 1
      %v7125 = vor.u32 %v7120, %v7124
      %v7127 = vshll.u32 %v7044, 16
      %v7129 = vrot.slane %v7127, 1
      %v7130 = vsel %vm1076, %v7125, %v7129
      %v7132 = vshrl.u32 %v7045, 16
      %v7134 = vshll.u32 %v7045, 16
      %v7136 = vrot.slane %v7134, 1
      %v7137 = vor.u32 %v7132, %v7136
      %v7139 = vshll.u32 %v7046, 16
      %v7141 = vrot.slane %v7139, 1
      %v7142 = vsel %vm1076, %v7137, %v7141
      %7143 = vrot.lane.b32.xlu0 %v7058, 16
      %v7144 = vpop.permute.xlu0 %7143
      %7145 = vrot.lane.b32.xlu0 %v7070, 16
      %v7146 = vpop.permute.xlu0 %7145
      %7147 = vrot.lane.b32.xlu0 %v7082, 16
      %v7148 = vpop.permute.xlu0 %7147
      %7149 = vrot.lane.b32.xlu0 %v7094, 16
      %v7150 = vpop.permute.xlu0 %7149
      %7151 = vrot.lane.b32.xlu0 %v7106, 16
      %v7152 = vpop.permute.xlu0 %7151
      %7153 = vrot.lane.b32.xlu0 %v7118, 16
      %v7154 = vpop.permute.xlu0 %7153
      %7155 = vrot.lane.b32.xlu0 %v7130, 16
      %v7156 = vpop.permute.xlu0 %7155
      %7157 = vrot.lane.b32.xlu0 %v7142, 16
      %v7158 = vpop.permute.xlu0 %7157
      %7167 = vst.msk [vmem:[#allocation3] sm:$0xff] %vm1649, %v7144
      %7168 = vst.msk [vmem:[#allocation3 + $0x8] sm:$0xff] %vm1649, %v7146
      %7169 = vst.msk [vmem:[#allocation3 + $0x10] sm:$0xff] %vm1649, %v7148
      %7170 = vst.msk [vmem:[#allocation3 + $0x18] sm:$0xff] %vm1649, %v7150
      %7171 = vst.msk [vmem:[#allocation3 + $0x20] sm:$0xff] %vm1649, %v7152
      %7172 = vst.msk [vmem:[#allocation3 + $0x28] sm:$0xff] %vm1649, %v7154
      %7173 = vst.msk [vmem:[#allocation3 + $0x30] sm:$0xff] %vm1649, %v7156
      %7174 = vst.msk [vmem:[#allocation3 + $0x38] sm:$0xff] %vm1649, %v7158
      %v7175 = vld [vmem:[%s2858] sm:$0xe]
      %v7176 = vld [vmem:[%s2858 + $0x4] sm:$0xf]
      %v7177 = vld [vmem:[%s2858 + $0x8] sm:$0x1]
      %v7178 = vld [vmem:[%s2858 + $0xc] sm:$0xe]
      %v7179 = vld [vmem:[%s2858 + $0x10] sm:$0xf]
      %v7180 = vld [vmem:[%s2858 + $0x14] sm:$0x1]
      %v7181 = vld [vmem:[%s2858 + $0x18] sm:$0xe]
      %v7182 = vld [vmem:[%s2858 + $0x1c] sm:$0xf]
      %v7183 = vld [vmem:[%s2858 + $0x20] sm:$0x1]
      %v7184 = vld [vmem:[%s2858 + $0x24] sm:$0xe]
      %v7185 = vld [vmem:[%s2858 + $0x28] sm:$0xf]
      %v7186 = vld [vmem:[%s2858 + $0x2c] sm:$0x1]
      %v7187 = vld [vmem:[%s2858 + $0x30] sm:$0xe]
      %v7188 = vld [vmem:[%s2858 + $0x34] sm:$0xf]
      %v7189 = vld [vmem:[%s2858 + $0x38] sm:$0x1]
      %v7190 = vld [vmem:[%s2858 + $0x3c] sm:$0xe]
      %v7191 = vld [vmem:[%s2858 + $0x40] sm:$0xf]
      %v7192 = vld [vmem:[%s2858 + $0x44] sm:$0x1]
      %v7193 = vld [vmem:[%s2858 + $0x48] sm:$0xe]
      %v7194 = vld [vmem:[%s2858 + $0x4c] sm:$0xf]
      %v7195 = vld [vmem:[%s2858 + $0x50] sm:$0x1]
      %v7196 = vld [vmem:[%s2858 + $0x54] sm:$0xe]
      %v7197 = vld [vmem:[%s2858 + $0x58] sm:$0xf]
      %v7198 = vld [vmem:[%s2858 + $0x5c] sm:$0x1]
      %v7223 = vunpack.c.l.b16 %v7175
      %v7224 = vunpack.c.l.b16 %v7176
      %v7225 = vunpack.c.l.b16 %v7177
      %v7226 = vunpack.c.l.b16 %v7178
      %v7227 = vunpack.c.l.b16 %v7179
      %v7228 = vunpack.c.l.b16 %v7180
      %v7229 = vunpack.c.l.b16 %v7181
      %v7230 = vunpack.c.l.b16 %v7182
      %v7231 = vunpack.c.l.b16 %v7183
      %v7232 = vunpack.c.l.b16 %v7184
      %v7233 = vunpack.c.l.b16 %v7185
      %v7234 = vunpack.c.l.b16 %v7186
      %v7235 = vunpack.c.l.b16 %v7187
      %v7236 = vunpack.c.l.b16 %v7188
      %v7237 = vunpack.c.l.b16 %v7189
      %v7238 = vunpack.c.l.b16 %v7190
      %v7239 = vunpack.c.l.b16 %v7191
      %v7240 = vunpack.c.l.b16 %v7192
      %v7241 = vunpack.c.l.b16 %v7193
      %v7242 = vunpack.c.l.b16 %v7194
      %v7243 = vunpack.c.l.b16 %v7195
      %v7244 = vunpack.c.l.b16 %v7196
      %v7245 = vunpack.c.l.b16 %v7197
      %v7246 = vunpack.c.l.b16 %v7198
      %v7247 = vpack.c.b16 %v7224, %v7223
      %v7248 = vpack.c.b16 %v7225, %v7225
      %v7249 = vpack.c.b16 %v7227, %v7226
      %v7250 = vpack.c.b16 %v7228, %v7228
      %v7251 = vpack.c.b16 %v7230, %v7229
      %v7252 = vpack.c.b16 %v7231, %v7231
      %v7253 = vpack.c.b16 %v7233, %v7232
      %v7254 = vpack.c.b16 %v7234, %v7234
      %v7255 = vpack.c.b16 %v7236, %v7235
      %v7256 = vpack.c.b16 %v7237, %v7237
      %v7257 = vpack.c.b16 %v7239, %v7238
      %v7258 = vpack.c.b16 %v7240, %v7240
      %v7259 = vpack.c.b16 %v7242, %v7241
      %v7260 = vpack.c.b16 %v7243, %v7243
      %v7261 = vpack.c.b16 %v7245, %v7244
      %v7262 = vpack.c.b16 %v7246, %v7246
      %v7263 = vrot.slane %v7247, 1
      %v7264 = vrot.slane %v7248, 1
      %v7265 = vsel %vm1294, %v7263, %v7264
      %v7266 = vrot.slane %v7249, 1
      %v7267 = vrot.slane %v7250, 1
      %v7268 = vsel %vm1294, %v7266, %v7267
      %v7269 = vrot.slane %v7251, 1
      %v7270 = vrot.slane %v7252, 1
      %v7271 = vsel %vm1294, %v7269, %v7270
      %v7272 = vrot.slane %v7253, 1
      %v7273 = vrot.slane %v7254, 1
      %v7274 = vsel %vm1294, %v7272, %v7273
      %v7275 = vrot.slane %v7255, 1
      %v7276 = vrot.slane %v7256, 1
      %v7277 = vsel %vm1294, %v7275, %v7276
      %v7278 = vrot.slane %v7257, 1
      %v7279 = vrot.slane %v7258, 1
      %v7280 = vsel %vm1294, %v7278, %v7279
      %v7281 = vrot.slane %v7259, 1
      %v7282 = vrot.slane %v7260, 1
      %v7283 = vsel %vm1294, %v7281, %v7282
      %v7284 = vrot.slane %v7261, 1
      %v7285 = vrot.slane %v7262, 1
      %v7286 = vsel %vm1294, %v7284, %v7285
      %7287 = vrot.lane.b32.xlu0 %v7265, 20
      %v7288 = vpop.permute.xlu0 %7287
      %7289 = vrot.lane.b32.xlu0 %v7268, 20
      %v7290 = vpop.permute.xlu0 %7289
      %7291 = vrot.lane.b32.xlu0 %v7271, 20
      %v7292 = vpop.permute.xlu0 %7291
      %7293 = vrot.lane.b32.xlu0 %v7274, 20
      %v7294 = vpop.permute.xlu0 %7293
      %7295 = vrot.lane.b32.xlu0 %v7277, 20
      %v7296 = vpop.permute.xlu0 %7295
      %7297 = vrot.lane.b32.xlu0 %v7280, 20
      %v7298 = vpop.permute.xlu0 %7297
      %7299 = vrot.lane.b32.xlu0 %v7283, 20
      %v7300 = vpop.permute.xlu0 %7299
      %7301 = vrot.lane.b32.xlu0 %v7286, 20
      %v7302 = vpop.permute.xlu0 %7301
      %7311 = vst.msk [vmem:[#allocation3] sm:$0xff] %vm1794, %v7288
      %7312 = vst.msk [vmem:[#allocation3 + $0x8] sm:$0xff] %vm1794, %v7290
      %7313 = vst.msk [vmem:[#allocation3 + $0x10] sm:$0xff] %vm1794, %v7292
      %7314 = vst.msk [vmem:[#allocation3 + $0x18] sm:$0xff] %vm1794, %v7294
      %7315 = vst.msk [vmem:[#allocation3 + $0x20] sm:$0xff] %vm1794, %v7296
      %7316 = vst.msk [vmem:[#allocation3 + $0x28] sm:$0xff] %vm1794, %v7298
      %7317 = vst.msk [vmem:[#allocation3 + $0x30] sm:$0xff] %vm1794, %v7300
      %7318 = vst.msk [vmem:[#allocation3 + $0x38] sm:$0xff] %vm1794, %v7302
      %v7319 = vld [vmem:[%s3307] sm:$0xf]
      %v7320 = vld [vmem:[%s3307 + $0x4] sm:$0xf]
      %v7321 = vld [vmem:[%s3307 + $0xc] sm:$0xf]
      %v7322 = vld [vmem:[%s3307 + $0x10] sm:$0xf]
      %v7323 = vld [vmem:[%s3307 + $0x18] sm:$0xf]
      %v7324 = vld [vmem:[%s3307 + $0x1c] sm:$0xf]
      %v7325 = vld [vmem:[%s3307 + $0x24] sm:$0xf]
      %v7326 = vld [vmem:[%s3307 + $0x28] sm:$0xf]
      %v7327 = vld [vmem:[%s3307 + $0x30] sm:$0xf]
      %v7328 = vld [vmem:[%s3307 + $0x34] sm:$0xf]
      %v7329 = vld [vmem:[%s3307 + $0x3c] sm:$0xf]
      %v7330 = vld [vmem:[%s3307 + $0x40] sm:$0xf]
      %v7331 = vld [vmem:[%s3307 + $0x48] sm:$0xf]
      %v7332 = vld [vmem:[%s3307 + $0x4c] sm:$0xf]
      %v7333 = vld [vmem:[%s3307 + $0x54] sm:$0xf]
      %v7334 = vld [vmem:[%s3307 + $0x58] sm:$0xf]
      %v7351 = vunpack.c.l.b16 %v7319
      %v7352 = vunpack.c.l.b16 %v7320
      %v7353 = vunpack.c.l.b16 %v7321
      %v7354 = vunpack.c.l.b16 %v7322
      %v7355 = vunpack.c.l.b16 %v7323
      %v7356 = vunpack.c.l.b16 %v7324
      %v7357 = vunpack.c.l.b16 %v7325
      %v7358 = vunpack.c.l.b16 %v7326
      %v7359 = vunpack.c.l.b16 %v7327
      %v7360 = vunpack.c.l.b16 %v7328
      %v7361 = vunpack.c.l.b16 %v7329
      %v7362 = vunpack.c.l.b16 %v7330
      %v7363 = vunpack.c.l.b16 %v7331
      %v7364 = vunpack.c.l.b16 %v7332
      %v7365 = vunpack.c.l.b16 %v7333
      %v7366 = vunpack.c.l.b16 %v7334
      %v7367 = vpack.c.b16 %v7352, %v7351
      %v7368 = vpack.c.b16 %v7354, %v7353
      %v7369 = vpack.c.b16 %v7356, %v7355
      %v7370 = vpack.c.b16 %v7358, %v7357
      %v7371 = vpack.c.b16 %v7360, %v7359
      %v7372 = vpack.c.b16 %v7362, %v7361
      %v7373 = vpack.c.b16 %v7364, %v7363
      %v7374 = vpack.c.b16 %v7366, %v7365
      %7375 = vrot.lane.b32.xlu0 %v7367, 24
      %v7376 = vpop.permute.xlu0 %7375
      %7377 = vrot.lane.b32.xlu0 %v7368, 24
      %v7378 = vpop.permute.xlu0 %7377
      %7379 = vrot.lane.b32.xlu0 %v7369, 24
      %v7380 = vpop.permute.xlu0 %7379
      %7381 = vrot.lane.b32.xlu0 %v7370, 24
      %v7382 = vpop.permute.xlu0 %7381
      %7383 = vrot.lane.b32.xlu0 %v7371, 24
      %v7384 = vpop.permute.xlu0 %7383
      %7385 = vrot.lane.b32.xlu0 %v7372, 24
      %v7386 = vpop.permute.xlu0 %7385
      %7387 = vrot.lane.b32.xlu0 %v7373, 24
      %v7388 = vpop.permute.xlu0 %7387
      %7389 = vrot.lane.b32.xlu0 %v7374, 24
      %v7390 = vpop.permute.xlu0 %7389
      %7399 = vst.msk [vmem:[#allocation3] sm:$0xff] %vm1883, %v7376
      %7400 = vst.msk [vmem:[#allocation3 + $0x8] sm:$0xff] %vm1883, %v7378
      %7401 = vst.msk [vmem:[#allocation3 + $0x10] sm:$0xff] %vm1883, %v7380
      %7402 = vst.msk [vmem:[#allocation3 + $0x18] sm:$0xff] %vm1883, %v7382
      %7403 = vst.msk [vmem:[#allocation3 + $0x20] sm:$0xff] %vm1883, %v7384
      %7404 = vst.msk [vmem:[#allocation3 + $0x28] sm:$0xff] %vm1883, %v7386
      %7405 = vst.msk [vmem:[#allocation3 + $0x30] sm:$0xff] %vm1883, %v7388
      %7406 = vst.msk [vmem:[#allocation3 + $0x38] sm:$0xff] %vm1883, %v7390
      %v7407 = vld [vmem:[%s3307] sm:$0xf]
      %v7408 = vld [vmem:[%s3307 + $0x4] sm:$0xf]
      %v7409 = vld [vmem:[%s3307 + $0x8] sm:$0x1]
      %v7410 = vld [vmem:[%s3307 + $0xc] sm:$0xf]
      %v7411 = vld [vmem:[%s3307 + $0x10] sm:$0xf]
      %v7412 = vld [vmem:[%s3307 + $0x14] sm:$0x1]
      %v7413 = vld [vmem:[%s3307 + $0x18] sm:$0xf]
      %v7414 = vld [vmem:[%s3307 + $0x1c] sm:$0xf]
      %v7415 = vld [vmem:[%s3307 + $0x20] sm:$0x1]
      %v7416 = vld [vmem:[%s3307 + $0x24] sm:$0xf]
      %v7417 = vld [vmem:[%s3307 + $0x28] sm:$0xf]
      %v7418 = vld [vmem:[%s3307 + $0x2c] sm:$0x1]
      %v7419 = vld [vmem:[%s3307 + $0x30] sm:$0xf]
      %v7420 = vld [vmem:[%s3307 + $0x34] sm:$0xf]
      %v7421 = vld [vmem:[%s3307 + $0x38] sm:$0x1]
      %v7422 = vld [vmem:[%s3307 + $0x3c] sm:$0xf]
      %v7423 = vld [vmem:[%s3307 + $0x40] sm:$0xf]
      %v7424 = vld [vmem:[%s3307 + $0x44] sm:$0x1]
      %v7425 = vld [vmem:[%s3307 + $0x48] sm:$0xf]
      %v7426 = vld [vmem:[%s3307 + $0x4c] sm:$0xf]
      %v7427 = vld [vmem:[%s3307 + $0x50] sm:$0x1]
      %v7428 = vld [vmem:[%s3307 + $0x54] sm:$0xf]
      %v7429 = vld [vmem:[%s3307 + $0x58] sm:$0xf]
      %v7430 = vld [vmem:[%s3307 + $0x5c] sm:$0x1]
      %v7455 = vunpack.c.l.b16 %v7407
      %v7456 = vunpack.c.l.b16 %v7408
      %v7457 = vunpack.c.l.b16 %v7409
      %v7458 = vunpack.c.l.b16 %v7410
      %v7459 = vunpack.c.l.b16 %v7411
      %v7460 = vunpack.c.l.b16 %v7412
      %v7461 = vunpack.c.l.b16 %v7413
      %v7462 = vunpack.c.l.b16 %v7414
      %v7463 = vunpack.c.l.b16 %v7415
      %v7464 = vunpack.c.l.b16 %v7416
      %v7465 = vunpack.c.l.b16 %v7417
      %v7466 = vunpack.c.l.b16 %v7418
      %v7467 = vunpack.c.l.b16 %v7419
      %v7468 = vunpack.c.l.b16 %v7420
      %v7469 = vunpack.c.l.b16 %v7421
      %v7470 = vunpack.c.l.b16 %v7422
      %v7471 = vunpack.c.l.b16 %v7423
      %v7472 = vunpack.c.l.b16 %v7424
      %v7473 = vunpack.c.l.b16 %v7425
      %v7474 = vunpack.c.l.b16 %v7426
      %v7475 = vunpack.c.l.b16 %v7427
      %v7476 = vunpack.c.l.b16 %v7428
      %v7477 = vunpack.c.l.b16 %v7429
      %v7478 = vunpack.c.l.b16 %v7430
      %v7479 = vpack.c.b16 %v7456, %v7455
      %v7480 = vpack.c.b16 %v7457, %v7457
      %v7481 = vpack.c.b16 %v7459, %v7458
      %v7482 = vpack.c.b16 %v7460, %v7460
      %v7483 = vpack.c.b16 %v7462, %v7461
      %v7484 = vpack.c.b16 %v7463, %v7463
      %v7485 = vpack.c.b16 %v7465, %v7464
      %v7486 = vpack.c.b16 %v7466, %v7466
      %v7487 = vpack.c.b16 %v7468, %v7467
      %v7488 = vpack.c.b16 %v7469, %v7469
      %v7489 = vpack.c.b16 %v7471, %v7470
      %v7490 = vpack.c.b16 %v7472, %v7472
      %v7491 = vpack.c.b16 %v7474, %v7473
      %v7492 = vpack.c.b16 %v7475, %v7475
      %v7493 = vpack.c.b16 %v7477, %v7476
      %v7494 = vpack.c.b16 %v7478, %v7478
      %v7496 = vshrl.u32 %v7479, 16
      %v7498 = vshll.u32 %v7479, 16
      %v7500 = vrot.slane %v7498, 1
      %v7501 = vor.u32 %v7496, %v7500
      %v7503 = vshll.u32 %v7480, 16
      %v7505 = vrot.slane %v7503, 1
      %v7506 = vsel %vm1076, %v7501, %v7505
      %v7508 = vshrl.u32 %v7481, 16
      %v7510 = vshll.u32 %v7481, 16
      %v7512 = vrot.slane %v7510, 1
      %v7513 = vor.u32 %v7508, %v7512
      %v7515 = vshll.u32 %v7482, 16
      %v7517 = vrot.slane %v7515, 1
      %v7518 = vsel %vm1076, %v7513, %v7517
      %v7520 = vshrl.u32 %v7483, 16
      %v7522 = vshll.u32 %v7483, 16
      %v7524 = vrot.slane %v7522, 1
      %v7525 = vor.u32 %v7520, %v7524
      %v7527 = vshll.u32 %v7484, 16
      %v7529 = vrot.slane %v7527, 1
      %v7530 = vsel %vm1076, %v7525, %v7529
      %v7532 = vshrl.u32 %v7485, 16
      %v7534 = vshll.u32 %v7485, 16
      %v7536 = vrot.slane %v7534, 1
      %v7537 = vor.u32 %v7532, %v7536
      %v7539 = vshll.u32 %v7486, 16
      %v7541 = vrot.slane %v7539, 1
      %v7542 = vsel %vm1076, %v7537, %v7541
      %v7544 = vshrl.u32 %v7487, 16
      %v7546 = vshll.u32 %v7487, 16
      %v7548 = vrot.slane %v7546, 1
      %v7549 = vor.u32 %v7544, %v7548
      %v7551 = vshll.u32 %v7488, 16
      %v7553 = vrot.slane %v7551, 1
      %v7554 = vsel %vm1076, %v7549, %v7553
      %v7556 = vshrl.u32 %v7489, 16
      %v7558 = vshll.u32 %v7489, 16
      %v7560 = vrot.slane %v7558, 1
      %v7561 = vor.u32 %v7556, %v7560
      %v7563 = vshll.u32 %v7490, 16
      %v7565 = vrot.slane %v7563, 1
      %v7566 = vsel %vm1076, %v7561, %v7565
      %v7568 = vshrl.u32 %v7491, 16
      %v7570 = vshll.u32 %v7491, 16
      %v7572 = vrot.slane %v7570, 1
      %v7573 = vor.u32 %v7568, %v7572
      %v7575 = vshll.u32 %v7492, 16
      %v7577 = vrot.slane %v7575, 1
      %v7578 = vsel %vm1076, %v7573, %v7577
      %v7580 = vshrl.u32 %v7493, 16
      %v7582 = vshll.u32 %v7493, 16
      %v7584 = vrot.slane %v7582, 1
      %v7585 = vor.u32 %v7580, %v7584
      %v7587 = vshll.u32 %v7494, 16
      %v7589 = vrot.slane %v7587, 1
      %v7590 = vsel %vm1076, %v7585, %v7589
      %7591 = vrot.lane.b32.xlu0 %v7506, 28
      %v7592 = vpop.permute.xlu0 %7591
      %7593 = vrot.lane.b32.xlu0 %v7518, 28
      %v7594 = vpop.permute.xlu0 %7593
      %7595 = vrot.lane.b32.xlu0 %v7530, 28
      %v7596 = vpop.permute.xlu0 %7595
      %7597 = vrot.lane.b32.xlu0 %v7542, 28
      %v7598 = vpop.permute.xlu0 %7597
      %7599 = vrot.lane.b32.xlu0 %v7554, 28
      %v7600 = vpop.permute.xlu0 %7599
      %7601 = vrot.lane.b32.xlu0 %v7566, 28
      %v7602 = vpop.permute.xlu0 %7601
      %7603 = vrot.lane.b32.xlu0 %v7578, 28
      %v7604 = vpop.permute.xlu0 %7603
      %7605 = vrot.lane.b32.xlu0 %v7590, 28
      %v7606 = vpop.permute.xlu0 %7605
      %7615 = vst.msk [vmem:[#allocation3] sm:$0xff] %vm2100, %v7592
      %7616 = vst.msk [vmem:[#allocation3 + $0x8] sm:$0xff] %vm2100, %v7594
      %7617 = vst.msk [vmem:[#allocation3 + $0x10] sm:$0xff] %vm2100, %v7596
      %7618 = vst.msk [vmem:[#allocation3 + $0x18] sm:$0xff] %vm2100, %v7598
      %7619 = vst.msk [vmem:[#allocation3 + $0x20] sm:$0xff] %vm2100, %v7600
      %7620 = vst.msk [vmem:[#allocation3 + $0x28] sm:$0xff] %vm2100, %v7602
      %7621 = vst.msk [vmem:[#allocation3 + $0x30] sm:$0xff] %vm2100, %v7604
      %7622 = vst.msk [vmem:[#allocation3 + $0x38] sm:$0xff] %vm2100, %v7606
      %v7623 = vld [vmem:[%s3307] sm:$0xe]
      %v7624 = vld [vmem:[%s3307 + $0x4] sm:$0xf]
      %v7625 = vld [vmem:[%s3307 + $0x8] sm:$0x1]
      %v7626 = vld [vmem:[%s3307 + $0xc] sm:$0xe]
      %v7627 = vld [vmem:[%s3307 + $0x10] sm:$0xf]
      %v7628 = vld [vmem:[%s3307 + $0x14] sm:$0x1]
      %v7629 = vld [vmem:[%s3307 + $0x18] sm:$0xe]
      %v7630 = vld [vmem:[%s3307 + $0x1c] sm:$0xf]
      %v7631 = vld [vmem:[%s3307 + $0x20] sm:$0x1]
      %v7632 = vld [vmem:[%s3307 + $0x24] sm:$0xe]
      %v7633 = vld [vmem:[%s3307 + $0x28] sm:$0xf]
      %v7634 = vld [vmem:[%s3307 + $0x2c] sm:$0x1]
      %v7635 = vld [vmem:[%s3307 + $0x30] sm:$0xe]
      %v7636 = vld [vmem:[%s3307 + $0x34] sm:$0xf]
      %v7637 = vld [vmem:[%s3307 + $0x38] sm:$0x1]
      %v7638 = vld [vmem:[%s3307 + $0x3c] sm:$0xe]
      %v7639 = vld [vmem:[%s3307 + $0x40] sm:$0xf]
      %v7640 = vld [vmem:[%s3307 + $0x44] sm:$0x1]
      %v7641 = vld [vmem:[%s3307 + $0x48] sm:$0xe]
      %v7642 = vld [vmem:[%s3307 + $0x4c] sm:$0xf]
      %v7643 = vld [vmem:[%s3307 + $0x50] sm:$0x1]
      %v7644 = vld [vmem:[%s3307 + $0x54] sm:$0xe]
      %v7645 = vld [vmem:[%s3307 + $0x58] sm:$0xf]
      %v7646 = vld [vmem:[%s3307 + $0x5c] sm:$0x1]
      %v7671 = vunpack.c.l.b16 %v7623
      %v7672 = vunpack.c.l.b16 %v7624
      %v7673 = vunpack.c.l.b16 %v7625
      %v7674 = vunpack.c.l.b16 %v7626
      %v7675 = vunpack.c.l.b16 %v7627
      %v7676 = vunpack.c.l.b16 %v7628
      %v7677 = vunpack.c.l.b16 %v7629
      %v7678 = vunpack.c.l.b16 %v7630
      %v7679 = vunpack.c.l.b16 %v7631
      %v7680 = vunpack.c.l.b16 %v7632
      %v7681 = vunpack.c.l.b16 %v7633
      %v7682 = vunpack.c.l.b16 %v7634
      %v7683 = vunpack.c.l.b16 %v7635
      %v7684 = vunpack.c.l.b16 %v7636
      %v7685 = vunpack.c.l.b16 %v7637
      %v7686 = vunpack.c.l.b16 %v7638
      %v7687 = vunpack.c.l.b16 %v7639
      %v7688 = vunpack.c.l.b16 %v7640
      %v7689 = vunpack.c.l.b16 %v7641
      %v7690 = vunpack.c.l.b16 %v7642
      %v7691 = vunpack.c.l.b16 %v7643
      %v7692 = vunpack.c.l.b16 %v7644
      %v7693 = vunpack.c.l.b16 %v7645
      %v7694 = vunpack.c.l.b16 %v7646
      %v7695 = vpack.c.b16 %v7672, %v7671
      %v7696 = vpack.c.b16 %v7673, %v7673
      %v7697 = vpack.c.b16 %v7675, %v7674
      %v7698 = vpack.c.b16 %v7676, %v7676
      %v7699 = vpack.c.b16 %v7678, %v7677
      %v7700 = vpack.c.b16 %v7679, %v7679
      %v7701 = vpack.c.b16 %v7681, %v7680
      %v7702 = vpack.c.b16 %v7682, %v7682
      %v7703 = vpack.c.b16 %v7684, %v7683
      %v7704 = vpack.c.b16 %v7685, %v7685
      %v7705 = vpack.c.b16 %v7687, %v7686
      %v7706 = vpack.c.b16 %v7688, %v7688
      %v7707 = vpack.c.b16 %v7690, %v7689
      %v7708 = vpack.c.b16 %v7691, %v7691
      %v7709 = vpack.c.b16 %v7693, %v7692
      %v7710 = vpack.c.b16 %v7694, %v7694
      %v7711 = vrot.slane %v7695, 1
      %v7712 = vrot.slane %v7696, 1
      %v7713 = vsel %vm1294, %v7711, %v7712
      %v7714 = vrot.slane %v7697, 1
      %v7715 = vrot.slane %v7698, 1
      %v7716 = vsel %vm1294, %v7714, %v7715
      %v7717 = vrot.slane %v7699, 1
      %v7718 = vrot.slane %v7700, 1
      %v7719 = vsel %vm1294, %v7717, %v7718
      %v7720 = vrot.slane %v7701, 1
      %v7721 = vrot.slane %v7702, 1
      %v7722 = vsel %vm1294, %v7720, %v7721
      %v7723 = vrot.slane %v7703, 1
      %v7724 = vrot.slane %v7704, 1
      %v7725 = vsel %vm1294, %v7723, %v7724
      %v7726 = vrot.slane %v7705, 1
      %v7727 = vrot.slane %v7706, 1
      %v7728 = vsel %vm1294, %v7726, %v7727
      %v7729 = vrot.slane %v7707, 1
      %v7730 = vrot.slane %v7708, 1
      %v7731 = vsel %vm1294, %v7729, %v7730
      %v7732 = vrot.slane %v7709, 1
      %v7733 = vrot.slane %v7710, 1
      %v7734 = vsel %vm1294, %v7732, %v7733
      %7735 = vrot.lane.b32.xlu0 %v7713, 32
      %v7736 = vpop.permute.xlu0 %7735
      %7737 = vrot.lane.b32.xlu0 %v7716, 32
      %v7738 = vpop.permute.xlu0 %7737
      %7739 = vrot.lane.b32.xlu0 %v7719, 32
      %v7740 = vpop.permute.xlu0 %7739
      %7741 = vrot.lane.b32.xlu0 %v7722, 32
      %v7742 = vpop.permute.xlu0 %7741
      %7743 = vrot.lane.b32.xlu0 %v7725, 32
      %v7744 = vpop.permute.xlu0 %7743
      %7745 = vrot.lane.b32.xlu0 %v7728, 32
      %v7746 = vpop.permute.xlu0 %7745
      %7747 = vrot.lane.b32.xlu0 %v7731, 32
      %v7748 = vpop.permute.xlu0 %7747
      %7749 = vrot.lane.b32.xlu0 %v7734, 32
      %v7750 = vpop.permute.xlu0 %7749
      %7759 = vst.msk [vmem:[#allocation3] sm:$0xff] %vm2245, %v7736
      %7760 = vst.msk [vmem:[#allocation3 + $0x8] sm:$0xff] %vm2245, %v7738
      %7761 = vst.msk [vmem:[#allocation3 + $0x10] sm:$0xff] %vm2245, %v7740
      %7762 = vst.msk [vmem:[#allocation3 + $0x18] sm:$0xff] %vm2245, %v7742
      %7763 = vst.msk [vmem:[#allocation3 + $0x20] sm:$0xff] %vm2245, %v7744
      %7764 = vst.msk [vmem:[#allocation3 + $0x28] sm:$0xff] %vm2245, %v7746
      %7765 = vst.msk [vmem:[#allocation3 + $0x30] sm:$0xff] %vm2245, %v7748
      %7766 = vst.msk [vmem:[#allocation3 + $0x38] sm:$0xff] %vm2245, %v7750
      %v7767 = vld [vmem:[#allocation3] sm:$0xff]
      %v7768 = vld [vmem:[#allocation3 + $0x8] sm:$0xff]
      %v7769 = vld [vmem:[#allocation3 + $0x10] sm:$0xff]
      %v7770 = vld [vmem:[#allocation3 + $0x18] sm:$0xff]
      %v7771 = vld [vmem:[#allocation3 + $0x20] sm:$0xff]
      %v7772 = vld [vmem:[#allocation3 + $0x28] sm:$0xff]
      %v7773 = vld [vmem:[#allocation3 + $0x30] sm:$0xff]
      %v7774 = vld [vmem:[#allocation3 + $0x38] sm:$0xff]
      %v7776 = vsel %vm2283, %v7767, 0
      %v7779 = vsel %vm2283, %v7768, 0
      %v7782 = vsel %vm2283, %v7769, 0
      %v7785 = vsel %vm2283, %v7770, 0
      %v7788 = vsel %vm2283, %v7771, 0
      %v7791 = vsel %vm2283, %v7772, 0
      %v7794 = vsel %vm2283, %v7773, 0
      %v7797 = vsel %vm2283, %v7774, 0
      %7799 = vmatprep.subr.bf16.mxu0 0
      %7800 = vmatpush1.bf16.msra.mxu0 %v6294
      %7801 = vmatprep.subr.bf16.mxu0 0
      %7802 = vmatpush1.bf16.msra.mxu0 %v6295
      %7803 = vmatprep.subr.bf16.mxu0 0
      %7804 = vmatpush1.bf16.msra.mxu0 %v6324
      %7805 = vmatprep.subr.bf16.mxu0 0
      %7806 = vmatpush1.bf16.msra.mxu0 0
      %7807 = vmatprep.subr.bf16.mxu0 0
      %7808 = vmatpush1.bf16.msra.mxu0 0
      %7809 = vmatprep.subr.bf16.mxu0 0
      %7810 = vmatpush1.bf16.msra.mxu0 0
      %7811 = vmatprep.subr.bf16.mxu0 0
      %7812 = vmatpush1.bf16.msra.mxu0 0
      %7813 = vmatprep.subr.bf16.mxu0 0
      %7814 = vmatpush1.bf16.msra.mxu0 0
      %7815 = vmatprep.subr.bf16.mxu0 0
      %7816 = vmatpush1.bf16.msra.mxu0 0
      %7817 = vmatprep.subr.bf16.mxu0 0
      %7818 = vmatpush1.bf16.msra.mxu0 0
      %7819 = vmatprep.subr.bf16.mxu0 0
      %7820 = vmatpush1.bf16.msra.mxu0 0
      %7821 = vmatprep.subr.bf16.mxu0 0
      %7822 = vmatpush1.bf16.msra.mxu0 0
      %7823 = vmatprep.subr.bf16.mxu0 0
      %7824 = vmatpush1.bf16.msra.mxu0 0
      %7825 = vmatprep.subr.bf16.mxu0 0
      %7826 = vmatpush1.bf16.msra.mxu0 0
      %7827 = vmatprep.subr.bf16.mxu0 0
      %7828 = vmatpush1.bf16.msra.mxu0 0
      %7829 = vmatprep.subr.bf16.mxu0 0
      %7830 = vmatpush1.bf16.msra.mxu0 0
      %7831 = vmatprep.mubr.bf16.mxu0 0
      %7832 = vmatmul.mubr.bf16.gmra.mrb[0].mxu0 %v7776
      %v7833 = vpop.f32.mrb[0].mxu0
      %v7834 = vadd.f32 %v6282, %v7833
      %v7835 = vpop.f32.mrb[0].mxu0
      %v7836 = vpop.f32.mrb[0].mxu0
      %v7837 = vadd.f32 %v6282, %v7836
      %v7838 = vpop.f32.mrb[0].mxu0
      %7839 = vmatprep.mubr.bf16.mxu0 0
      %7840 = vmatmul.mubr.bf16.gmra.mrb[0].mxu0 %v7779
      %v7841 = vpop.f32.mrb[0].mxu0
      %v7842 = vadd.f32 %v6282, %v7841
      %v7843 = vpop.f32.mrb[0].mxu0
      %v7844 = vpop.f32.mrb[0].mxu0
      %v7845 = vadd.f32 %v6282, %v7844
      %v7846 = vpop.f32.mrb[0].mxu0
      %7847 = vmatprep.mubr.bf16.mxu0 0
      %7848 = vmatmul.mubr.bf16.gmra.mrb[0].mxu0 %v7782
      %v7849 = vpop.f32.mrb[0].mxu0
      %v7850 = vadd.f32 %v6282, %v7849
      %v7851 = vpop.f32.mrb[0].mxu0
      %v7852 = vpop.f32.mrb[0].mxu0
      %v7853 = vadd.f32 %v6282, %v7852
      %v7854 = vpop.f32.mrb[0].mxu0
      %7855 = vmatprep.mubr.bf16.mxu0 0
      %7856 = vmatmul.mubr.bf16.gmra.mrb[0].mxu0 %v7785
      %v7857 = vpop.f32.mrb[0].mxu0
      %v7858 = vadd.f32 %v6282, %v7857
      %v7859 = vpop.f32.mrb[0].mxu0
      %v7860 = vpop.f32.mrb[0].mxu0
      %v7861 = vadd.f32 %v6282, %v7860
      %v7862 = vpop.f32.mrb[0].mxu0
      %7863 = vmatprep.mubr.bf16.mxu0 0
      %7864 = vmatmul.mubr.bf16.gmra.mrb[0].mxu0 %v7788
      %v7865 = vpop.f32.mrb[0].mxu0
      %v7866 = vadd.f32 %v6282, %v7865
      %v7867 = vpop.f32.mrb[0].mxu0
      %v7868 = vpop.f32.mrb[0].mxu0
      %v7869 = vadd.f32 %v6282, %v7868
      %v7870 = vpop.f32.mrb[0].mxu0
      %7871 = vmatprep.mubr.bf16.mxu0 0
      %7872 = vmatmul.mubr.bf16.gmra.mrb[0].mxu0 %v7791
      %v7873 = vpop.f32.mrb[0].mxu0
      %v7874 = vadd.f32 %v6282, %v7873
      %v7875 = vpop.f32.mrb[0].mxu0
      %v7876 = vpop.f32.mrb[0].mxu0
      %v7877 = vadd.f32 %v6282, %v7876
      %v7878 = vpop.f32.mrb[0].mxu0
      %7879 = vmatprep.mubr.bf16.mxu0 0
      %7880 = vmatmul.mubr.bf16.gmra.mrb[0].mxu0 %v7794
      %v7881 = vpop.f32.mrb[0].mxu0
      %v7882 = vadd.f32 %v6282, %v7881
      %v7883 = vpop.f32.mrb[0].mxu0
      %v7884 = vpop.f32.mrb[0].mxu0
      %v7885 = vadd.f32 %v6282, %v7884
      %v7886 = vpop.f32.mrb[0].mxu0
      %7887 = vmatprep.mubr.bf16.mxu0 0
      %7888 = vmatmul.mubr.bf16.gmra.mrb[0].mxu0 %v7797
      %v7889 = vpop.f32.mrb[0].mxu0
      %v7890 = vadd.f32 %v6282, %v7889
      %v7891 = vpop.f32.mrb[0].mxu0
      %v7892 = vpop.f32.mrb[0].mxu0
      %v7893 = vadd.f32 %v6282, %v7892
      %v7894 = vpop.f32.mrb[0].mxu0
      %7895 = vdwg.mxu0
      %7896 = vst.msk [vmem:[%s3885] sm:$0xff] %vm979, %v7834
      %7897 = vst.msk [vmem:[%s3885 + $0x8] sm:$0xff] %vm979, %v7837
      %7898 = vst.msk [vmem:[%s3885 + $0x10] sm:$0xff] %vm979, %v7842
      %7899 = vst.msk [vmem:[%s3885 + $0x18] sm:$0xff] %vm979, %v7845
      %7900 = vst.msk [vmem:[%s3885 + $0x20] sm:$0xff] %vm979, %v7850
      %7901 = vst.msk [vmem:[%s3885 + $0x28] sm:$0xff] %vm979, %v7853
      %7902 = vst.msk [vmem:[%s3885 + $0x30] sm:$0xff] %vm979, %v7858
      %7903 = vst.msk [vmem:[%s3885 + $0x38] sm:$0xff] %vm979, %v7861
      %7904 = vst.msk [vmem:[%s3885 + $0x40] sm:$0xff] %vm979, %v7866
      %7905 = vst.msk [vmem:[%s3885 + $0x48] sm:$0xff] %vm979, %v7869
      %7906 = vst.msk [vmem:[%s3885 + $0x50] sm:$0xff] %vm979, %v7874
      %7907 = vst.msk [vmem:[%s3885 + $0x58] sm:$0xff] %vm979, %v7877
      %7908 = vst.msk [vmem:[%s3885 + $0x60] sm:$0xff] %vm979, %v7882
      %7909 = vst.msk [vmem:[%s3885 + $0x68] sm:$0xff] %vm979, %v7885
      %7910 = vst.msk [vmem:[%s3885 + $0x70] sm:$0xff] %vm979, %v7890
      %7911 = vst.msk [vmem:[%s3885 + $0x78] sm:$0xff] %vm979, %v7893
      %v7912 = vld [vmem:[#allocation4] sm:$0xff]
      %v7913 = vld [vmem:[#allocation4 + $0x8] sm:$0xff]
      %v7914 = vld [vmem:[#allocation4 + $0x10] sm:$0xff]
      %v7915 = vld [vmem:[#allocation4 + $0x18] sm:$0xff]
      %v7916 = vld [vmem:[#allocation4 + $0x20] sm:$0xff]
      %v7917 = vld [vmem:[#allocation4 + $0x28] sm:$0xff]
      %v7918 = vld [vmem:[#allocation4 + $0x30] sm:$0xff]
      %v7919 = vld [vmem:[#allocation4 + $0x38] sm:$0xff]
      %v7920 = vld [vmem:[#allocation4 + $0x40] sm:$0xff]
      %v7921 = vld [vmem:[#allocation4 + $0x48] sm:$0xff]
      %v7922 = vld [vmem:[#allocation4 + $0x50] sm:$0xff]
      %v7923 = vld [vmem:[#allocation4 + $0x58] sm:$0xff]
      %v7924 = vld [vmem:[#allocation4 + $0x60] sm:$0xff]
      %v7925 = vld [vmem:[#allocation4 + $0x68] sm:$0xff]
      %v7926 = vld [vmem:[#allocation4 + $0x70] sm:$0xff]
      %v7927 = vld [vmem:[#allocation4 + $0x78] sm:$0xff]
      %v7928 = vld [vmem:[#allocation4 + $0x80] sm:$0xff]
      %v7929 = vld [vmem:[#allocation4 + $0x88] sm:$0xff]
      %v7930 = vld [vmem:[#allocation4 + $0x90] sm:$0xff]
      %v7931 = vld [vmem:[#allocation4 + $0x98] sm:$0xff]
      %v7932 = vld [vmem:[#allocation4 + $0xa0] sm:$0xff]
      %v7933 = vld [vmem:[#allocation4 + $0xa8] sm:$0xff]
      %v7934 = vld [vmem:[#allocation4 + $0xb0] sm:$0xff]
      %v7935 = vld [vmem:[#allocation4 + $0xb8] sm:$0xff]
      %v7936 = vld [vmem:[#allocation4 + $0xc0] sm:$0xff]
      %v7937 = vld [vmem:[#allocation4 + $0xc8] sm:$0xff]
      %v7938 = vld [vmem:[#allocation4 + $0xd0] sm:$0xff]
      %v7939 = vld [vmem:[#allocation4 + $0xd8] sm:$0xff]
      %v7940 = vld [vmem:[#allocation4 + $0xe0] sm:$0xff]
      %v7941 = vld [vmem:[#allocation4 + $0xe8] sm:$0xff]
      %v7942 = vld [vmem:[#allocation4 + $0xf0] sm:$0xff]
      %v7943 = vld [vmem:[#allocation4 + $0xf8] sm:$0xff]
      %v7944 = vsel %vm979, %v7912, 0.0
      %v7945 = vsel %vm979, %v7913, 0.0
      %v7946 = vadd.f32 %v7944, %v7945
      %v7947 = vsel %vm979, %v7914, 0.0
      %v7948 = vadd.f32 %v7946, %v7947
      %v7949 = vsel %vm979, %v7915, 0.0
      %v7950 = vadd.f32 %v7948, %v7949
      %v7951 = vsel %vm979, %v7916, 0.0
      %v7952 = vadd.f32 %v7950, %v7951
      %v7953 = vsel %vm979, %v7917, 0.0
      %v7954 = vadd.f32 %v7952, %v7953
      %v7955 = vsel %vm979, %v7918, 0.0
      %v7956 = vadd.f32 %v7954, %v7955
      %v7957 = vsel %vm979, %v7919, 0.0
      %v7958 = vadd.f32 %v7956, %v7957
      %v7959 = vsel %vm979, %v7920, 0.0
      %v7960 = vadd.f32 %v7958, %v7959
      %v7961 = vsel %vm979, %v7921, 0.0
      %v7962 = vadd.f32 %v7960, %v7961
      %v7963 = vsel %vm979, %v7922, 0.0
      %v7964 = vadd.f32 %v7962, %v7963
      %v7965 = vsel %vm979, %v7923, 0.0
      %v7966 = vadd.f32 %v7964, %v7965
      %v7967 = vsel %vm979, %v7924, 0.0
      %v7968 = vadd.f32 %v7966, %v7967
      %v7969 = vsel %vm979, %v7925, 0.0
      %v7970 = vadd.f32 %v7968, %v7969
      %v7971 = vsel %vm979, %v7926, 0.0
      %v7972 = vadd.f32 %v7970, %v7971
      %v7973 = vsel %vm979, %v7927, 0.0
      %v7974 = vadd.f32 %v7972, %v7973
      %v7975 = vsel %vm979, %v7928, 0.0
      %v7976 = vadd.f32 %v7974, %v7975
      %v7977 = vsel %vm979, %v7929, 0.0
      %v7978 = vadd.f32 %v7976, %v7977
      %v7979 = vsel %vm979, %v7930, 0.0
      %v7980 = vadd.f32 %v7978, %v7979
      %v7981 = vsel %vm979, %v7931, 0.0
      %v7982 = vadd.f32 %v7980, %v7981
      %v7983 = vsel %vm979, %v7932, 0.0
      %v7984 = vadd.f32 %v7982, %v7983
      %v7985 = vsel %vm979, %v7933, 0.0
      %v7986 = vadd.f32 %v7984, %v7985
      %v7987 = vsel %vm979, %v7934, 0.0
      %v7988 = vadd.f32 %v7986, %v7987
      %v7989 = vsel %vm979, %v7935, 0.0
      %v7990 = vadd.f32 %v7988, %v7989
      %v7991 = vsel %vm979, %v7936, 0.0
      %v7992 = vadd.f32 %v7990, %v7991
      %v7993 = vsel %vm979, %v7937, 0.0
      %v7994 = vadd.f32 %v7992, %v7993
      %v7995 = vsel %vm979, %v7938, 0.0
      %v7996 = vadd.f32 %v7994, %v7995
      %v7997 = vsel %vm979, %v7939, 0.0
      %v7998 = vadd.f32 %v7996, %v7997
      %v7999 = vsel %vm979, %v7940, 0.0
      %v8000 = vadd.f32 %v7998, %v7999
      %v8001 = vsel %vm979, %v7941, 0.0
      %v8002 = vadd.f32 %v8000, %v8001
      %v8003 = vsel %vm979, %v7942, 0.0
      %v8004 = vadd.f32 %v8002, %v8003
      %v8005 = vsel %vm979, %v7943, 0.0
      %v8006 = vadd.f32 %v8004, %v8005
      %v8007 = vrot.slane %v8006, 4
      %v8008 = vadd.f32 %v8006, %v8007
      %v8009 = vrot.slane %v8008, 2
      %v8010 = vadd.f32 %v8008, %v8009
      %v8011 = vrot.slane %v8010, 1
      %v8012 = vadd.f32 %v8010, %v8011
      %v8013 = vmul.f32 %v8012, 0.00390625
      %v8014 = vsub.f32 %v7912, %v8013
      %v8015 = vsub.f32 %v7913, %v8013
      %v8016 = vsub.f32 %v7914, %v8013
      %v8017 = vsub.f32 %v7915, %v8013
      %v8018 = vsub.f32 %v7916, %v8013
      %v8019 = vsub.f32 %v7917, %v8013
      %v8020 = vsub.f32 %v7918, %v8013
      %v8021 = vsub.f32 %v7919, %v8013
      %v8022 = vsub.f32 %v7920, %v8013
      %v8023 = vsub.f32 %v7921, %v8013
      %v8024 = vsub.f32 %v7922, %v8013
      %v8025 = vsub.f32 %v7923, %v8013
      %v8026 = vsub.f32 %v7924, %v8013
      %v8027 = vsub.f32 %v7925, %v8013
      %v8028 = vsub.f32 %v7926, %v8013
      %v8029 = vsub.f32 %v7927, %v8013
      %v8030 = vsub.f32 %v7928, %v8013
      %v8031 = vsub.f32 %v7929, %v8013
      %v8032 = vsub.f32 %v7930, %v8013
      %v8033 = vsub.f32 %v7931, %v8013
      %v8034 = vsub.f32 %v7932, %v8013
      %v8035 = vsub.f32 %v7933, %v8013
      %v8036 = vsub.f32 %v7934, %v8013
      %v8037 = vsub.f32 %v7935, %v8013
      %v8038 = vsub.f32 %v7936, %v8013
      %v8039 = vsub.f32 %v7937, %v8013
      %v8040 = vsub.f32 %v7938, %v8013
      %v8041 = vsub.f32 %v7939, %v8013
      %v8042 = vsub.f32 %v7940, %v8013
      %v8043 = vsub.f32 %v7941, %v8013
      %v8044 = vsub.f32 %v7942, %v8013
      %v8045 = vsub.f32 %v7943, %v8013
      %v8046 = vmul.f32 %v8014, %v8014
      %v8047 = vmul.f32 %v8015, %v8015
      %v8048 = vmul.f32 %v8016, %v8016
      %v8049 = vmul.f32 %v8017, %v8017
      %v8050 = vmul.f32 %v8018, %v8018
      %v8051 = vmul.f32 %v8019, %v8019
      %v8052 = vmul.f32 %v8020, %v8020
      %v8053 = vmul.f32 %v8021, %v8021
      %v8054 = vmul.f32 %v8022, %v8022
      %v8055 = vmul.f32 %v8023, %v8023
      %v8056 = vmul.f32 %v8024, %v8024
      %v8057 = vmul.f32 %v8025, %v8025
      %v8058 = vmul.f32 %v8026, %v8026
      %v8059 = vmul.f32 %v8027, %v8027
      %v8060 = vmul.f32 %v8028, %v8028
      %v8061 = vmul.f32 %v8029, %v8029
      %v8062 = vmul.f32 %v8030, %v8030
      %v8063 = vmul.f32 %v8031, %v8031
      %v8064 = vmul.f32 %v8032, %v8032
      %v8065 = vmul.f32 %v8033, %v8033
      %v8066 = vmul.f32 %v8034, %v8034
      %v8067 = vmul.f32 %v8035, %v8035
      %v8068 = vmul.f32 %v8036, %v8036
      %v8069 = vmul.f32 %v8037, %v8037
      %v8070 = vmul.f32 %v8038, %v8038
      %v8071 = vmul.f32 %v8039, %v8039
      %v8072 = vmul.f32 %v8040, %v8040
      %v8073 = vmul.f32 %v8041, %v8041
      %v8074 = vmul.f32 %v8042, %v8042
      %v8075 = vmul.f32 %v8043, %v8043
      %v8076 = vmul.f32 %v8044, %v8044
      %v8077 = vmul.f32 %v8045, %v8045
      %v8078 = vsel %vm979, %v8046, 0.0
      %v8079 = vsel %vm979, %v8047, 0.0
      %v8080 = vadd.f32 %v8078, %v8079
      %v8081 = vsel %vm979, %v8048, 0.0
      %v8082 = vadd.f32 %v8080, %v8081
      %v8083 = vsel %vm979, %v8049, 0.0
      %v8084 = vadd.f32 %v8082, %v8083
      %v8085 = vsel %vm979, %v8050, 0.0
      %v8086 = vadd.f32 %v8084, %v8085
      %v8087 = vsel %vm979, %v8051, 0.0
      %v8088 = vadd.f32 %v8086, %v8087
      %v8089 = vsel %vm979, %v8052, 0.0
      %v8090 = vadd.f32 %v8088, %v8089
      %v8091 = vsel %vm979, %v8053, 0.0
      %v8092 = vadd.f32 %v8090, %v8091
      %v8093 = vsel %vm979, %v8054, 0.0
      %v8094 = vadd.f32 %v8092, %v8093
      %v8095 = vsel %vm979, %v8055, 0.0
      %v8096 = vadd.f32 %v8094, %v8095
      %v8097 = vsel %vm979, %v8056, 0.0
      %v8098 = vadd.f32 %v8096, %v8097
      %v8099 = vsel %vm979, %v8057, 0.0
      %v8100 = vadd.f32 %v8098, %v8099
      %v8101 = vsel %vm979, %v8058, 0.0
      %v8102 = vadd.f32 %v8100, %v8101
      %v8103 = vsel %vm979, %v8059, 0.0
      %v8104 = vadd.f32 %v8102, %v8103
      %v8105 = vsel %vm979, %v8060, 0.0
      %v8106 = vadd.f32 %v8104, %v8105
      %v8107 = vsel %vm979, %v8061, 0.0
      %v8108 = vadd.f32 %v8106, %v8107
      %v8109 = vsel %vm979, %v8062, 0.0
      %v8110 = vadd.f32 %v8108, %v8109
      %v8111 = vsel %vm979, %v8063, 0.0
      %v8112 = vadd.f32 %v8110, %v8111
      %v8113 = vsel %vm979, %v8064, 0.0
      %v8114 = vadd.f32 %v8112, %v8113
      %v8115 = vsel %vm979, %v8065, 0.0
      %v8116 = vadd.f32 %v8114, %v8115
      %v8117 = vsel %vm979, %v8066, 0.0
      %v8118 = vadd.f32 %v8116, %v8117
      %v8119 = vsel %vm979, %v8067, 0.0
      %v8120 = vadd.f32 %v8118, %v8119
      %v8121 = vsel %vm979, %v8068, 0.0
      %v8122 = vadd.f32 %v8120, %v8121
      %v8123 = vsel %vm979, %v8069, 0.0
      %v8124 = vadd.f32 %v8122, %v8123
      %v8125 = vsel %vm979, %v8070, 0.0
      %v8126 = vadd.f32 %v8124, %v8125
      %v8127 = vsel %vm979, %v8071, 0.0
      %v8128 = vadd.f32 %v8126, %v8127
      %v8129 = vsel %vm979, %v8072, 0.0
      %v8130 = vadd.f32 %v8128, %v8129
      %v8131 = vsel %vm979, %v8073, 0.0
      %v8132 = vadd.f32 %v8130, %v8131
      %v8133 = vsel %vm979, %v8074, 0.0
      %v8134 = vadd.f32 %v8132, %v8133
      %v8135 = vsel %vm979, %v8075, 0.0
      %v8136 = vadd.f32 %v8134, %v8135
      %v8137 = vsel %vm979, %v8076, 0.0
      %v8138 = vadd.f32 %v8136, %v8137
      %v8139 = vsel %vm979, %v8077, 0.0
      %v8140 = vadd.f32 %v8138, %v8139
      %v8141 = vrot.slane %v8140, 4
      %v8142 = vadd.f32 %v8140, %v8141
      %v8143 = vrot.slane %v8142, 2
      %v8144 = vadd.f32 %v8142, %v8143
      %v8145 = vrot.slane %v8144, 1
      %v8146 = vadd.f32 %v8144, %v8145
      %v8147 = vmul.f32 %v8146, 0.00390625
      %v8148 = vadd.f32 %v8147, 1e-05
      %v8149 = vrsqrt.pop %v8148
      %v8150 = vmul.f32 %v8014, %v8149
      %v8151 = vmul.f32 %v8015, %v8149
      %v8152 = vmul.f32 %v8016, %v8149
      %v8153 = vmul.f32 %v8017, %v8149
      %v8154 = vmul.f32 %v8018, %v8149
      %v8155 = vmul.f32 %v8019, %v8149
      %v8156 = vmul.f32 %v8020, %v8149
      %v8157 = vmul.f32 %v8021, %v8149
      %v8158 = vmul.f32 %v8022, %v8149
      %v8159 = vmul.f32 %v8023, %v8149
      %v8160 = vmul.f32 %v8024, %v8149
      %v8161 = vmul.f32 %v8025, %v8149
      %v8162 = vmul.f32 %v8026, %v8149
      %v8163 = vmul.f32 %v8027, %v8149
      %v8164 = vmul.f32 %v8028, %v8149
      %v8165 = vmul.f32 %v8029, %v8149
      %v8166 = vmul.f32 %v8030, %v8149
      %v8167 = vmul.f32 %v8031, %v8149
      %v8168 = vmul.f32 %v8032, %v8149
      %v8169 = vmul.f32 %v8033, %v8149
      %v8170 = vmul.f32 %v8034, %v8149
      %v8171 = vmul.f32 %v8035, %v8149
      %v8172 = vmul.f32 %v8036, %v8149
      %v8173 = vmul.f32 %v8037, %v8149
      %v8174 = vmul.f32 %v8038, %v8149
      %v8175 = vmul.f32 %v8039, %v8149
      %v8176 = vmul.f32 %v8040, %v8149
      %v8177 = vmul.f32 %v8041, %v8149
      %v8178 = vmul.f32 %v8042, %v8149
      %v8179 = vmul.f32 %v8043, %v8149
      %v8180 = vmul.f32 %v8044, %v8149
      %v8181 = vmul.f32 %v8045, %v8149
      %v8182 = vld [vmem:[%s219] sm:$0xf]
      %v8183 = vld [vmem:[%s219 + $0x4] sm:$0xf]
      %v8184 = vld [vmem:[%s219 + $0x8] sm:$0xf]
      %v8185 = vld [vmem:[%s219 + $0xc] sm:$0xf]
      %v8186 = vld [vmem:[%s219 + $0x10] sm:$0xf]
      %v8187 = vld [vmem:[%s219 + $0x14] sm:$0xf]
      %v8188 = vld [vmem:[%s219 + $0x18] sm:$0xf]
      %v8189 = vld [vmem:[%s219 + $0x1c] sm:$0xf]
      %v8190 = vld [vmem:[%s219 + $0x20] sm:$0xf]
      %v8191 = vld [vmem:[%s219 + $0x24] sm:$0xf]
      %v8192 = vld [vmem:[%s219 + $0x28] sm:$0xf]
      %v8193 = vld [vmem:[%s219 + $0x2c] sm:$0xf]
      %v8194 = vld [vmem:[%s219 + $0x30] sm:$0xf]
      %v8195 = vld [vmem:[%s219 + $0x34] sm:$0xf]
      %v8196 = vld [vmem:[%s219 + $0x38] sm:$0xf]
      %v8197 = vld [vmem:[%s219 + $0x3c] sm:$0xf]
      %v8198 = vld [vmem:[%s219 + $0x40] sm:$0xf]
      %v8199 = vld [vmem:[%s219 + $0x44] sm:$0xf]
      %v8200 = vld [vmem:[%s219 + $0x48] sm:$0xf]
      %v8201 = vld [vmem:[%s219 + $0x4c] sm:$0xf]
      %v8202 = vld [vmem:[%s219 + $0x50] sm:$0xf]
      %v8203 = vld [vmem:[%s219 + $0x54] sm:$0xf]
      %v8204 = vld [vmem:[%s219 + $0x58] sm:$0xf]
      %v8205 = vld [vmem:[%s219 + $0x5c] sm:$0xf]
      %v8206 = vld [vmem:[%s219 + $0x60] sm:$0xf]
      %v8207 = vld [vmem:[%s219 + $0x64] sm:$0xf]
      %v8208 = vld [vmem:[%s219 + $0x68] sm:$0xf]
      %v8209 = vld [vmem:[%s219 + $0x6c] sm:$0xf]
      %v8210 = vld [vmem:[%s219 + $0x70] sm:$0xf]
      %v8211 = vld [vmem:[%s219 + $0x74] sm:$0xf]
      %v8212 = vld [vmem:[%s219 + $0x78] sm:$0xf]
      %v8213 = vld [vmem:[%s219 + $0x7c] sm:$0xf]
      %v8214 = vunpack.c.l.bf16 %v8182
      %v8215 = vunpack.c.l.bf16 %v8183
      %v8216 = vunpack.c.l.bf16 %v8184
      %v8217 = vunpack.c.l.bf16 %v8185
      %v8218 = vunpack.c.l.bf16 %v8186
      %v8219 = vunpack.c.l.bf16 %v8187
      %v8220 = vunpack.c.l.bf16 %v8188
      %v8221 = vunpack.c.l.bf16 %v8189
      %v8222 = vunpack.c.l.bf16 %v8190
      %v8223 = vunpack.c.l.bf16 %v8191
      %v8224 = vunpack.c.l.bf16 %v8192
      %v8225 = vunpack.c.l.bf16 %v8193
      %v8226 = vunpack.c.l.bf16 %v8194
      %v8227 = vunpack.c.l.bf16 %v8195
      %v8228 = vunpack.c.l.bf16 %v8196
      %v8229 = vunpack.c.l.bf16 %v8197
      %v8230 = vunpack.c.l.bf16 %v8198
      %v8231 = vunpack.c.l.bf16 %v8199
      %v8232 = vunpack.c.l.bf16 %v8200
      %v8233 = vunpack.c.l.bf16 %v8201
      %v8234 = vunpack.c.l.bf16 %v8202
      %v8235 = vunpack.c.l.bf16 %v8203
      %v8236 = vunpack.c.l.bf16 %v8204
      %v8237 = vunpack.c.l.bf16 %v8205
      %v8238 = vunpack.c.l.bf16 %v8206
      %v8239 = vunpack.c.l.bf16 %v8207
      %v8240 = vunpack.c.l.bf16 %v8208
      %v8241 = vunpack.c.l.bf16 %v8209
      %v8242 = vunpack.c.l.bf16 %v8210
      %v8243 = vunpack.c.l.bf16 %v8211
      %v8244 = vunpack.c.l.bf16 %v8212
      %v8245 = vunpack.c.l.bf16 %v8213
      %v8246 = vadd.f32 %v8214, %v8150
      %v8247 = vadd.f32 %v8215, %v8151
      %v8248 = vadd.f32 %v8216, %v8152
      %v8249 = vadd.f32 %v8217, %v8153
      %v8250 = vadd.f32 %v8218, %v8154
      %v8251 = vadd.f32 %v8219, %v8155
      %v8252 = vadd.f32 %v8220, %v8156
      %v8253 = vadd.f32 %v8221, %v8157
      %v8254 = vadd.f32 %v8222, %v8158
      %v8255 = vadd.f32 %v8223, %v8159
      %v8256 = vadd.f32 %v8224, %v8160
      %v8257 = vadd.f32 %v8225, %v8161
      %v8258 = vadd.f32 %v8226, %v8162
      %v8259 = vadd.f32 %v8227, %v8163
      %v8260 = vadd.f32 %v8228, %v8164
      %v8261 = vadd.f32 %v8229, %v8165
      %v8262 = vadd.f32 %v8230, %v8166
      %v8263 = vadd.f32 %v8231, %v8167
      %v8264 = vadd.f32 %v8232, %v8168
      %v8265 = vadd.f32 %v8233, %v8169
      %v8266 = vadd.f32 %v8234, %v8170
      %v8267 = vadd.f32 %v8235, %v8171
      %v8268 = vadd.f32 %v8236, %v8172
      %v8269 = vadd.f32 %v8237, %v8173
      %v8270 = vadd.f32 %v8238, %v8174
      %v8271 = vadd.f32 %v8239, %v8175
      %v8272 = vadd.f32 %v8240, %v8176
      %v8273 = vadd.f32 %v8241, %v8177
      %v8274 = vadd.f32 %v8242, %v8178
      %v8275 = vadd.f32 %v8243, %v8179
      %v8276 = vadd.f32 %v8244, %v8180
      %v8277 = vadd.f32 %v8245, %v8181
      %8278 = vst.msk [vmem:[%s224] sm:$0xff] %vm979, %v8246
      %8279 = vst.msk [vmem:[%s224 + $0x8] sm:$0xff] %vm979, %v8247
      %8280 = vst.msk [vmem:[%s224 + $0x10] sm:$0xff] %vm979, %v8248
      %8281 = vst.msk [vmem:[%s224 + $0x18] sm:$0xff] %vm979, %v8249
      %8282 = vst.msk [vmem:[%s224 + $0x20] sm:$0xff] %vm979, %v8250
      %8283 = vst.msk [vmem:[%s224 + $0x28] sm:$0xff] %vm979, %v8251
      %8284 = vst.msk [vmem:[%s224 + $0x30] sm:$0xff] %vm979, %v8252
      %8285 = vst.msk [vmem:[%s224 + $0x38] sm:$0xff] %vm979, %v8253
      %8286 = vst.msk [vmem:[%s224 + $0x40] sm:$0xff] %vm979, %v8254
      %8287 = vst.msk [vmem:[%s224 + $0x48] sm:$0xff] %vm979, %v8255
      %8288 = vst.msk [vmem:[%s224 + $0x50] sm:$0xff] %vm979, %v8256
      %8289 = vst.msk [vmem:[%s224 + $0x58] sm:$0xff] %vm979, %v8257
      %8290 = vst.msk [vmem:[%s224 + $0x60] sm:$0xff] %vm979, %v8258
      %8291 = vst.msk [vmem:[%s224 + $0x68] sm:$0xff] %vm979, %v8259
      %8292 = vst.msk [vmem:[%s224 + $0x70] sm:$0xff] %vm979, %v8260
      %8293 = vst.msk [vmem:[%s224 + $0x78] sm:$0xff] %vm979, %v8261
      %8294 = vst.msk [vmem:[%s224 + $0x80] sm:$0xff] %vm979, %v8262
      %8295 = vst.msk [vmem:[%s224 + $0x88] sm:$0xff] %vm979, %v8263
      %8296 = vst.msk [vmem:[%s224 + $0x90] sm:$0xff] %vm979, %v8264
      %8297 = vst.msk [vmem:[%s224 + $0x98] sm:$0xff] %vm979, %v8265
      %8298 = vst.msk [vmem:[%s224 + $0xa0] sm:$0xff] %vm979, %v8266
      %8299 = vst.msk [vmem:[%s224 + $0xa8] sm:$0xff] %vm979, %v8267
      %8300 = vst.msk [vmem:[%s224 + $0xb0] sm:$0xff] %vm979, %v8268
      %8301 = vst.msk [vmem:[%s224 + $0xb8] sm:$0xff] %vm979, %v8269
      %8302 = vst.msk [vmem:[%s224 + $0xc0] sm:$0xff] %vm979, %v8270
      %8303 = vst.msk [vmem:[%s224 + $0xc8] sm:$0xff] %vm979, %v8271
      %8304 = vst.msk [vmem:[%s224 + $0xd0] sm:$0xff] %vm979, %v8272
      %8305 = vst.msk [vmem:[%s224 + $0xd8] sm:$0xff] %vm979, %v8273
      %8306 = vst.msk [vmem:[%s224 + $0xe0] sm:$0xff] %vm979, %v8274
      %8307 = vst.msk [vmem:[%s224 + $0xe8] sm:$0xff] %vm979, %v8275
      %8308 = vst.msk [vmem:[%s224 + $0xf0] sm:$0xff] %vm979, %v8276
      %8309 = vst.msk [vmem:[%s224 + $0xf8] sm:$0xff] %vm979, %v8277
      %p8310 = scmp.lt.s32.totalorder %s16, 1
      %s8311 = scalar_select %p8310, %s16, 1
      %s8312 = smul.addr %s8311, 32
      %s8313 = smul.addr %s8312, 8
      %s8314 = scalar_lea.vmem %s5, %s8313
      // Predicated region
      $region41: #{resnet_block.1} parent=39 // pred_check
        %p8315 = pneg %p144
      $region42: #{resnet_block.1} parent=39 // pred_check_branch
        %8317 = sbr.rel (%p8315) target = $region44
      $region43: #{resnet_block.1} parent=39 // pred_region
        _
      $region44: #{resnet_block.1} parent=39 // pred_fallthru
        _
    $region40: #{resnet_block.1} parent=5 // pred_fallthru
      _
    %p8318 = scmp.le.s32.totalorder 2, %s11
    // Predicated region
    $region45: #{resnet_block.1} parent=5 // pred_check
      %p8319 = pneg %p8318
    $region46: #{resnet_block.1} parent=5 // pred_check_branch
      %8321 = sbr.rel (%p8319) target = $region48
    $region47: #{resnet_block.1} parent=5 // pred_region
      %s8322 = ssub.s32 %s11, 2
      // Predicated region
      $region49: #{resnet_block.1} parent=47 // pred_check
        %p8323 = pneg %p150
      $region50: #{resnet_block.1} parent=47 // pred_check_branch
        %8325 = sbr.rel (%p8323) target = $region52
      $region51: #{resnet_block.1} parent=47 // pred_region
        %p8326 = scmp.lt.s32.totalorder %s17, 1
        %s8327 = scalar_select %p8326, %s17, 1
        %s8328 = smul.addr %s8327, 32
        %s8329 = smul.addr %s8328, 8
        %s8330 = scalar_lea.vmem %s5, %s8329
      $region52: #{resnet_block.1} parent=47 // pred_fallthru
        _
    $region48: #{resnet_block.1} parent=5 // pred_fallthru
      _
  $region6: #{resnet_block.1} parent=0 // loop_footer
    %s15 = sadd.s32 1, %s11
  $region7: #{resnet_block.1} parent=0 // loop_footer_branch
    %10 = sbr.rel target = $region3
  $region8: #{resnet_block.1} parent=0 // loop_exit
    _

</llo_original>
